<compile_context>
chip_gen: v6e
topology: v6e:2x2x1
jax: 0.10.0
libtpu: 0.0.40
codegen_flags: <defaults>
</compile_context>

<pallas_src>
import jax
import jax.numpy as jnp
from jax import lax
from jax.experimental import pallas as pl
from jax.experimental.pallas import tpu as pltpu

# TODO(synk): OPENPOSE_15_CONFIG / FORWARD_KINEMATICS sources were not
# provided; the PARENT tree (joint 0 = root) and FK conventions below are
# deterministic, documented assumptions matching the standard 6D-rotation FK
# pipeline.
PARENT = (0, 0, 1, 2, 3, 1, 5, 6, 0, 8, 9, 0, 11, 12, 1)

EPS_NORM = 1e-12   # F.normalize eps
EPS_COS = 1e-8     # F.cosine_similarity eps

SUB = 8            # sublanes per batch chunk
LANES = 128        # lanes per batch chunk
CHUNK = SUB * LANES


# ----- helpers on tuples of (SUB, LANES) component planes (pure VPU) --------

def _dot3(a, b):
    return a[0] * b[0] + a[1] * b[1] + a[2] * b[2]


def _normalize3(v):
    # v / max(||v||, eps)  ==  v * rsqrt(max(||v||^2, eps^2))
    inv = lax.rsqrt(jnp.maximum(_dot3(v, v), EPS_NORM * EPS_NORM))
    return (v[0] * inv, v[1] * inv, v[2] * inv)


def _cross3(a, b):
    return (a[1] * b[2] - a[2] * b[1],
            a[2] * b[0] - a[0] * b[2],
            a[0] * b[1] - a[1] * b[0])


def _mat3_mul(a, b):
    # row-major flattened 3x3 (9 planes): C[3r+c] = sum_k A[3r+k] * B[3k+c]
    return tuple(a[3 * r + 0] * b[0 + c]
                 + a[3 * r + 1] * b[3 + c]
                 + a[3 * r + 2] * b[6 + c]
                 for r in range(3) for c in range(3))


def _mat3_vec(a, v):
    return tuple(a[3 * r + 0] * v[0] + a[3 * r + 1] * v[1] + a[3 * r + 2] * v[2]
                 for r in range(3))


# ------------------------------- kernel -------------------------------------

def lc_loss_kernel(pred_ref, y_ref, out_ref, acc_ref):
    # pred_ref: (chunks, 90, SUB, LANES)   y_ref: (chunks, 99, SUB, LANES)
    # out_ref : (1, 1, 15) per-core per-joint sum of cosine similarities
    # acc_ref : (15, SUB, LANES) per-joint per-lane partial sums
    step = pl.program_id(1)

    @pl.when(step == 0)
    def _():
        acc_ref[...] = jnp.zeros_like(acc_ref)

    chunks = pred_ref.shape[0]

    @pl.loop(0, chunks)
    def _(c):
        p = pred_ref.at[c]     # Ref view (90, SUB, LANES)
        yv = y_ref.at[c]       # Ref view (99, SUB, LANES)

        r_glob = [None] * 15   # each: 9 planes, row-major 3x3
        loc = [None] * 15      # each: 3 planes

        for j in range(15):
            pj = PARENT[j]

            # 1) r6d -> local rotation matrix (columns b1, b2, b3)
            a1 = (p[6 * j + 0], p[6 * j + 1], p[6 * j + 2])
            a2 = (p[6 * j + 3], p[6 * j + 4], p[6 * j + 5])
            b1 = _normalize3(a1)
            d = _dot3(b1, a2)
            b2 = _normalize3((a2[0] - d * b1[0],
                              a2[1] - d * b1[1],
                              a2[2] - d * b1[2]))
            b3 = _cross3(b1, b2)
            r_loc = (b1[0], b2[0], b3[0],
                     b1[1], b2[1], b3[1],
                     b1[2], b2[2], b3[2])

            # 2) compose along the kinematic tree (forward_tree_batch)
            if j == 0:
                parent_r = tuple(yv[90 + k] for k in range(9))  # root rotation
            else:
                parent_r = r_glob[pj]
            r_glob[j] = _mat3_mul(parent_r, r_loc)

            # 3) forward kinematics from template offsets
            tmpl = (yv[45 + 3 * j], yv[46 + 3 * j], yv[47 + 3 * j])
            if j == 0:
                loc[0] = tmpl
            else:
                mv = _mat3_vec(r_glob[j], tmpl)
                loc[j] = (loc[pj][0] + mv[0],
                          loc[pj][1] + mv[1],
                          loc[pj][2] + mv[2])

            # 4) relative-location cosine similarity (per-lane, no reduction)
            rel_y = (yv[3 * j + 0] - yv[3 * pj + 0],
                     yv[3 * j + 1] - yv[3 * pj + 1],
                     yv[3 * j + 2] - yv[3 * pj + 2])
            rel_p = (loc[j][0] - loc[pj][0],
                     loc[j][1] - loc[pj][1],
                     loc[j][2] - loc[pj][2])
            w12 = _dot3(rel_y, rel_p)
            w1 = _dot3(rel_y, rel_y)
            w2 = _dot3(rel_p, rel_p)
            cs = w12 * lax.rsqrt(jnp.maximum(w1 * w2, EPS_COS * EPS_COS))
            acc_ref[j] += cs   # zero-padded batch elements yield cs == 0

    # Epilogue: one cross-lane reduction per joint, done once per core.
    @pl.when(step == pl.num_programs(1) - 1)
    def _():
        totals = [jnp.sum(acc_ref[j]).reshape(1, 1) for j in range(15)]
        out_ref[0] = jnp.concatenate(totals, axis=1)


# ------------------------------- wrapper ------------------------------------

def lc_loss(pred, y, *, chunks_per_block=4):
    """LC loss; pred (B, 90), y (B, 99) -> (15,) float32."""
    B = pred.shape[0]
    assert pred.shape == (B, 90) and y.shape == (B, 99)

    n_chunks = -(-B // CHUNK)                       # ceil(B / 1024)
    cpb = max(1, min(chunks_per_block, n_chunks))   # chunks per grid step
    n_blocks = -(-n_chunks // cpb)
    # Split blocks across 2 TensorCores when evenly possible (~2x on v7x,
    # runs serially but correctly on single-core v5e/v6e).
    n_cores = 2 if (n_blocks >= 2 and n_blocks % 2 == 0) else 1
    blocks_per_core = n_blocks // n_cores
    b_pad = n_blocks * cpb * CHUNK

    def pack(x, f):
        x = x.astype(jnp.float32)                   # single cast, f32 compute
        if b_pad != B:
            x = jnp.pad(x, ((0, b_pad - B), (0, 0)))
        x = x.reshape(n_blocks * cpb, SUB, LANES, f)
        return jnp.transpose(x, (0, 3, 1, 2))       # (chunks, f, SUB, LANES)

    pred_t = pack(pred, 90)
    y_t = pack(y, 99)

    in_map = lambda c, i: (c * blocks_per_core + i, 0, 0, 0)
    partial = pl.pallas_call(
        lc_loss_kernel,
        out_shape=jax.ShapeDtypeStruct((n_cores, 1, 15), jnp.float32),
        grid_spec=pltpu.PrefetchScalarGridSpec(
            num_scalar_prefetch=0,
            grid=(n_cores, blocks_per_core),
            in_specs=[
                pl.BlockSpec((cpb, 90, SUB, LANES), in_map),
                pl.BlockSpec((cpb, 99, SUB, LANES), in_map),
            ],
            out_specs=pl.BlockSpec((1, 1, 15), lambda c, i: (c, 0, 0)),
            scratch_shapes=[pltpu.VMEM((15, SUB, LANES), jnp.float32)],
        ),
        compiler_params=pltpu.CompilerParams(
            dimension_semantics=("parallel", "arbitrary")),
    )(pred_t, y_t)

    sum_cs = jnp.sum(partial, axis=(0, 1))          # (15,) total sum of cos-sim
    return 50.0 * (1.0 - sum_cs / B)


# --------------------------- pure-JAX reference ------------------------------

def lc_loss_ref(pred, y):
    B = pred.shape[0]
    r6d = pred.reshape(B, 15, 6)
    a1, a2 = r6d[..., :3], r6d[..., 3:]

    def nrm(v):
        return v / jnp.maximum(
            jnp.linalg.norm(v, axis=-1, keepdims=True), EPS_NORM)

    b1 = nrm(a1)
    b2 = nrm(a2 - jnp.sum(b1 * a2, -1, keepdims=True) * b1)
    b3 = jnp.cross(b1, b2)
    r_local = jnp.stack([b1, b2, b3], axis=-1)          # (B,15,3,3), cols

    y_loc = y[:, :45].reshape(B, 15, 3)
    tmpl = y[:, 45:90].reshape(B, 15, 3)
    y_rot = y[:, 90:99].reshape(B, 3, 3)

    rg = [jnp.matmul(y_rot, r_local[:, 0])]
    for j in range(1, 15):
        rg.append(jnp.matmul(rg[PARENT[j]], r_local[:, j]))

    loc = [tmpl[:, 0]]
    for j in range(1, 15):
        loc.append(loc[PARENT[j]] + jnp.einsum('brc,bc->br', rg[j], tmpl[:, j]))
    loc = jnp.stack(loc, axis=1)

    par = jnp.array(PARENT)
    rel_y = y_loc - y_loc[:, par]
    rel_p = loc - loc[:, par]
    w12 = jnp.sum(rel_y * rel_p, -1)
    w1 = jnp.sum(rel_y * rel_y, -1)
    w2 = jnp.sum(rel_p * rel_p, -1)
    cs = w12 / jnp.sqrt(jnp.maximum(w1 * w2, EPS_COS * EPS_COS))
    return 50.0 * jnp.mean(1.0 - cs, axis=0)


if __name__ == "__main__":
    key = jax.random.PRNGKey(0)
    kp, ky = jax.random.split(key)

    # Case 1: small batch, exercises zero-padding (grid (1,1), 1 chunk).
    B1 = 300
    pred1 = jax.random.normal(kp, (B1, 90), dtype=jnp.float32)
    y1 = jax.random.normal(ky, (B1, 99), dtype=jnp.float32)
    out1 = lc_loss(pred1, y1)
    jax.block_until_ready(out1)
    ref1 = lc_loss_ref(pred1, y1)
    assert out1.shape == (15,)
    assert jnp.allclose(out1, ref1, atol=1e-3, rtol=1e-3), (out1, ref1)

    # Case 2: multi-chunk batch, exercises (a) the inner chunk loop and
    # (b) cross-grid-step accumulation plus the 2-way core split.
    B2 = 4096
    pred2 = jax.random.normal(kp, (B2, 90), dtype=jnp.float32)
    y2 = jax.random.normal(ky, (B2, 99), dtype=jnp.float32)
    out2 = lc_loss(pred2, y2)                      # grid (1,1), 4-chunk loop
    out3 = lc_loss(pred2, y2, chunks_per_block=1)  # grid (2,2), core split
    jax.block_until_ready((out2, out3))
    ref2 = lc_loss_ref(pred2, y2)
    assert jnp.allclose(out2, ref2, atol=1e-3, rtol=1e-3), (out2, ref2)
    assert jnp.allclose(out3, ref2, atol=1e-3, rtol=1e-3), (out3, ref2)

    print("KERNEL_OK")
</pallas_src>

<mosaic_0001>
module attributes {stable_mosaic.version = 11 : i64} {
  func.func @lc_loss_kernel(%arg0: i32, %arg1: i32, %arg2: memref<1x90x8x128xf32, #tpu.memory_space<vmem>>, %arg3: memref<1x99x8x128xf32, #tpu.memory_space<vmem>>, %arg4: memref<1x1x15xf32, #tpu.memory_space<vmem>>, %arg5: memref<15x8x128xf32, #tpu.memory_space<vmem>>) attributes {dimension_semantics = [#tpu.dimension_semantics<parallel>, #tpu.dimension_semantics<arbitrary>], iteration_bounds = array<i64: 1, 1>, scalar_prefetch = 0 : i64, scratch_operands = 1 : i64, tpu.core_type = #tpu.core_type<tc>, window_params = [{transform_indices = @transform_0, window_bounds = array<i64: 1, 90, 8, 128>}, {transform_indices = @transform_1, window_bounds = array<i64: 1, 99, 8, 128>}, {transform_indices = @transform_2, window_bounds = array<i64: 1, 1, 15>}]} {
    %c0_i32 = arith.constant 0 : i32
    %0 = arith.cmpi eq, %arg1, %c0_i32 : i32
    %1 = arith.extui %0 : i1 to i32
    %c0_i32_0 = arith.constant 0 : i32
    %2 = arith.cmpi ne, %1, %c0_i32_0 : i32
    scf.if %2 {
      %cst_1445 = arith.constant 0.000000e+00 : f32
      %2981 = vector.broadcast %cst_1445 : f32 to vector<15x8x128xf32>
      %c0_1446 = arith.constant 0 : index
      %c0_1447 = arith.constant 0 : index
      %c0_1448 = arith.constant 0 : index
      %2982 = vector.load %arg5[%c0_1446, %c0_1447, %c0_1448] : memref<15x8x128xf32, #tpu.memory_space<vmem>>, vector<15x8x128xf32>
      tpu.vector_store %arg5[%c0_1446, %c0_1447, %c0_1448], %2981 {strides = array<i32>} : memref<15x8x128xf32, #tpu.memory_space<vmem>>, vector<15x8x128xf32>,
    } else {
    }
    %c0_i32_1 = arith.constant 0 : i32
    %c1_i32 = arith.constant 1 : i32
    %3 = arith.muli %c0_i32_1, %c1_i32 : i32
    %c0_i32_2 = arith.constant 0 : i32
    %4 = arith.addi %c0_i32_2, %3 : i32
    %c0_i32_3 = arith.constant 0 : i32
    %c0_i32_4 = arith.constant 0 : i32
    %c0_i32_5 = arith.constant 0 : i32
    %5 = tpu.memref_slice %arg2[%4, %c0_i32_3, %c0_i32_4, %c0_i32_5] : memref<1x90x8x128xf32, #tpu.memory_space<vmem>> -> memref<1x90x8x128xf32, #tpu.memory_space<vmem>>
    %6 = tpu.memref_squeeze %5 : memref<1x90x8x128xf32, #tpu.memory_space<vmem>> -> memref<90x8x128xf32, #tpu.memory_space<vmem>>
    %c0 = arith.constant 0 : index
    %c0_6 = arith.constant 0 : index
    %c0_7 = arith.constant 0 : index
    %7 = vector.load %6[%c0, %c0_6, %c0_7] : memref<90x8x128xf32, #tpu.memory_space<vmem>>, vector<1x8x128xf32>
    %8 = vector.shape_cast %7 : vector<1x8x128xf32> to vector<8x128xf32>
    %c0_i32_8 = arith.constant 0 : i32
    %c0_i32_9 = arith.constant 0 : i32
    %c0_i32_10 = arith.constant 0 : i32
    %9 = tpu.memref_slice %arg2[%4, %c0_i32_8, %c0_i32_9, %c0_i32_10] : memref<1x90x8x128xf32, #tpu.memory_space<vmem>> -> memref<1x90x8x128xf32, #tpu.memory_space<vmem>>
    %10 = tpu.memref_squeeze %9 : memref<1x90x8x128xf32, #tpu.memory_space<vmem>> -> memref<90x8x128xf32, #tpu.memory_space<vmem>>
    %c1 = arith.constant 1 : index
    %c0_11 = arith.constant 0 : index
    %c0_12 = arith.constant 0 : index
    %11 = vector.load %10[%c1, %c0_11, %c0_12] : memref<90x8x128xf32, #tpu.memory_space<vmem>>, vector<1x8x128xf32>
    %12 = vector.shape_cast %11 : vector<1x8x128xf32> to vector<8x128xf32>
    %c0_i32_13 = arith.constant 0 : i32
    %c0_i32_14 = arith.constant 0 : i32
    %c0_i32_15 = arith.constant 0 : i32
    %13 = tpu.memref_slice %arg2[%4, %c0_i32_13, %c0_i32_14, %c0_i32_15] : memref<1x90x8x128xf32, #tpu.memory_space<vmem>> -> memref<1x90x8x128xf32, #tpu.memory_space<vmem>>
    %14 = tpu.memref_squeeze %13 : memref<1x90x8x128xf32, #tpu.memory_space<vmem>> -> memref<90x8x128xf32, #tpu.memory_space<vmem>>
    %c2 = arith.constant 2 : index
    %c0_16 = arith.constant 0 : index
    %c0_17 = arith.constant 0 : index
    %15 = vector.load %14[%c2, %c0_16, %c0_17] : memref<90x8x128xf32, #tpu.memory_space<vmem>>, vector<1x8x128xf32>
    %16 = vector.shape_cast %15 : vector<1x8x128xf32> to vector<8x128xf32>
    %c0_i32_18 = arith.constant 0 : i32
    %c0_i32_19 = arith.constant 0 : i32
    %c0_i32_20 = arith.constant 0 : i32
    %17 = tpu.memref_slice %arg2[%4, %c0_i32_18, %c0_i32_19, %c0_i32_20] : memref<1x90x8x128xf32, #tpu.memory_space<vmem>> -> memref<1x90x8x128xf32, #tpu.memory_space<vmem>>
    %18 = tpu.memref_squeeze %17 : memref<1x90x8x128xf32, #tpu.memory_space<vmem>> -> memref<90x8x128xf32, #tpu.memory_space<vmem>>
    %c3 = arith.constant 3 : index
    %c0_21 = arith.constant 0 : index
    %c0_22 = arith.constant 0 : index
    %19 = vector.load %18[%c3, %c0_21, %c0_22] : memref<90x8x128xf32, #tpu.memory_space<vmem>>, vector<1x8x128xf32>
    %20 = vector.shape_cast %19 : vector<1x8x128xf32> to vector<8x128xf32>
    %c0_i32_23 = arith.constant 0 : i32
    %c0_i32_24 = arith.constant 0 : i32
    %c0_i32_25 = arith.constant 0 : i32
    %21 = tpu.memref_slice %arg2[%4, %c0_i32_23, %c0_i32_24, %c0_i32_25] : memref<1x90x8x128xf32, #tpu.memory_space<vmem>> -> memref<1x90x8x128xf32, #tpu.memory_space<vmem>>
    %22 = tpu.memref_squeeze %21 : memref<1x90x8x128xf32, #tpu.memory_space<vmem>> -> memref<90x8x128xf32, #tpu.memory_space<vmem>>
    %c4 = arith.constant 4 : index
    %c0_26 = arith.constant 0 : index
    %c0_27 = arith.constant 0 : index
    %23 = vector.load %22[%c4, %c0_26, %c0_27] : memref<90x8x128xf32, #tpu.memory_space<vmem>>, vector<1x8x128xf32>
    %24 = vector.shape_cast %23 : vector<1x8x128xf32> to vector<8x128xf32>
    %c0_i32_28 = arith.constant 0 : i32
    %c0_i32_29 = arith.constant 0 : i32
    %c0_i32_30 = arith.constant 0 : i32
    %25 = tpu.memref_slice %arg2[%4, %c0_i32_28, %c0_i32_29, %c0_i32_30] : memref<1x90x8x128xf32, #tpu.memory_space<vmem>> -> memref<1x90x8x128xf32, #tpu.memory_space<vmem>>
    %26 = tpu.memref_squeeze %25 : memref<1x90x8x128xf32, #tpu.memory_space<vmem>> -> memref<90x8x128xf32, #tpu.memory_space<vmem>>
    %c5 = arith.constant 5 : index
    %c0_31 = arith.constant 0 : index
    %c0_32 = arith.constant 0 : index
    %27 = vector.load %26[%c5, %c0_31, %c0_32] : memref<90x8x128xf32, #tpu.memory_space<vmem>>, vector<1x8x128xf32>
    %28 = vector.shape_cast %27 : vector<1x8x128xf32> to vector<8x128xf32>
    %29 = arith.mulf %8, %8 : vector<8x128xf32>
    %30 = arith.mulf %12, %12 : vector<8x128xf32>
    %31 = arith.addf %29, %30 : vector<8x128xf32>
    %32 = arith.mulf %16, %16 : vector<8x128xf32>
    %33 = arith.addf %31, %32 : vector<8x128xf32>
    %cst = arith.constant 1.000000e-24 : f32
    %34 = vector.broadcast %cst : f32 to vector<8x128xf32>
    %35 = arith.maximumf %33, %34 : vector<8x128xf32>
    %36 = math.rsqrt %35 : vector<8x128xf32>
    %37 = arith.mulf %8, %36 : vector<8x128xf32>
    %38 = arith.mulf %12, %36 : vector<8x128xf32>
    %39 = arith.mulf %16, %36 : vector<8x128xf32>
    %40 = arith.mulf %37, %20 : vector<8x128xf32>
    %41 = arith.mulf %38, %24 : vector<8x128xf32>
    %42 = arith.addf %40, %41 : vector<8x128xf32>
    %43 = arith.mulf %39, %28 : vector<8x128xf32>
    %44 = arith.addf %42, %43 : vector<8x128xf32>
    %45 = arith.mulf %44, %37 : vector<8x128xf32>
    %46 = arith.subf %20, %45 : vector<8x128xf32>
    %47 = arith.mulf %44, %38 : vector<8x128xf32>
    %48 = arith.subf %24, %47 : vector<8x128xf32>
    %49 = arith.mulf %44, %39 : vector<8x128xf32>
    %50 = arith.subf %28, %49 : vector<8x128xf32>
    %51 = arith.mulf %46, %46 : vector<8x128xf32>
    %52 = arith.mulf %48, %48 : vector<8x128xf32>
    %53 = arith.addf %51, %52 : vector<8x128xf32>
    %54 = arith.mulf %50, %50 : vector<8x128xf32>
    %55 = arith.addf %53, %54 : vector<8x128xf32>
    %cst_33 = arith.constant 1.000000e-24 : f32
    %56 = vector.broadcast %cst_33 : f32 to vector<8x128xf32>
    %57 = arith.maximumf %55, %56 : vector<8x128xf32>
    %58 = math.rsqrt %57 : vector<8x128xf32>
    %59 = arith.mulf %46, %58 : vector<8x128xf32>
    %60 = arith.mulf %48, %58 : vector<8x128xf32>
    %61 = arith.mulf %50, %58 : vector<8x128xf32>
    %62 = arith.mulf %38, %61 : vector<8x128xf32>
    %63 = arith.mulf %39, %60 : vector<8x128xf32>
    %64 = arith.subf %62, %63 : vector<8x128xf32>
    %65 = arith.mulf %39, %59 : vector<8x128xf32>
    %66 = arith.mulf %37, %61 : vector<8x128xf32>
    %67 = arith.subf %65, %66 : vector<8x128xf32>
    %68 = arith.mulf %37, %60 : vector<8x128xf32>
    %69 = arith.mulf %38, %59 : vector<8x128xf32>
    %70 = arith.subf %68, %69 : vector<8x128xf32>
    %c0_i32_34 = arith.constant 0 : i32
    %c0_i32_35 = arith.constant 0 : i32
    %c0_i32_36 = arith.constant 0 : i32
    %71 = tpu.memref_slice %arg3[%4, %c0_i32_34, %c0_i32_35, %c0_i32_36] : memref<1x99x8x128xf32, #tpu.memory_space<vmem>> -> memref<1x99x8x128xf32, #tpu.memory_space<vmem>>
    %72 = tpu.memref_squeeze %71 : memref<1x99x8x128xf32, #tpu.memory_space<vmem>> -> memref<99x8x128xf32, #tpu.memory_space<vmem>>
    %c90 = arith.constant 90 : index
    %c0_37 = arith.constant 0 : index
    %c0_38 = arith.constant 0 : index
    %73 = vector.load %72[%c90, %c0_37, %c0_38] : memref<99x8x128xf32, #tpu.memory_space<vmem>>, vector<1x8x128xf32>
    %74 = vector.shape_cast %73 : vector<1x8x128xf32> to vector<8x128xf32>
    %c0_i32_39 = arith.constant 0 : i32
    %c0_i32_40 = arith.constant 0 : i32
    %c0_i32_41 = arith.constant 0 : i32
    %75 = tpu.memref_slice %arg3[%4, %c0_i32_39, %c0_i32_40, %c0_i32_41] : memref<1x99x8x128xf32, #tpu.memory_space<vmem>> -> memref<1x99x8x128xf32, #tpu.memory_space<vmem>>
    %76 = tpu.memref_squeeze %75 : memref<1x99x8x128xf32, #tpu.memory_space<vmem>> -> memref<99x8x128xf32, #tpu.memory_space<vmem>>
    %c91 = arith.constant 91 : index
    %c0_42 = arith.constant 0 : index
    %c0_43 = arith.constant 0 : index
    %77 = vector.load %76[%c91, %c0_42, %c0_43] : memref<99x8x128xf32, #tpu.memory_space<vmem>>, vector<1x8x128xf32>
    %78 = vector.shape_cast %77 : vector<1x8x128xf32> to vector<8x128xf32>
    %c0_i32_44 = arith.constant 0 : i32
    %c0_i32_45 = arith.constant 0 : i32
    %c0_i32_46 = arith.constant 0 : i32
    %79 = tpu.memref_slice %arg3[%4, %c0_i32_44, %c0_i32_45, %c0_i32_46] : memref<1x99x8x128xf32, #tpu.memory_space<vmem>> -> memref<1x99x8x128xf32, #tpu.memory_space<vmem>>
    %80 = tpu.memref_squeeze %79 : memref<1x99x8x128xf32, #tpu.memory_space<vmem>> -> memref<99x8x128xf32, #tpu.memory_space<vmem>>
    %c92 = arith.constant 92 : index
    %c0_47 = arith.constant 0 : index
    %c0_48 = arith.constant 0 : index
    %81 = vector.load %80[%c92, %c0_47, %c0_48] : memref<99x8x128xf32, #tpu.memory_space<vmem>>, vector<1x8x128xf32>
    %82 = vector.shape_cast %81 : vector<1x8x128xf32> to vector<8x128xf32>
    %c0_i32_49 = arith.constant 0 : i32
    %c0_i32_50 = arith.constant 0 : i32
    %c0_i32_51 = arith.constant 0 : i32
    %83 = tpu.memref_slice %arg3[%4, %c0_i32_49, %c0_i32_50, %c0_i32_51] : memref<1x99x8x128xf32, #tpu.memory_space<vmem>> -> memref<1x99x8x128xf32, #tpu.memory_space<vmem>>
    %84 = tpu.memref_squeeze %83 : memref<1x99x8x128xf32, #tpu.memory_space<vmem>> -> memref<99x8x128xf32, #tpu.memory_space<vmem>>
    %c93 = arith.constant 93 : index
    %c0_52 = arith.constant 0 : index
    %c0_53 = arith.constant 0 : index
    %85 = vector.load %84[%c93, %c0_52, %c0_53] : memref<99x8x128xf32, #tpu.memory_space<vmem>>, vector<1x8x128xf32>
    %86 = vector.shape_cast %85 : vector<1x8x128xf32> to vector<8x128xf32>
    %c0_i32_54 = arith.constant 0 : i32
    %c0_i32_55 = arith.constant 0 : i32
    %c0_i32_56 = arith.constant 0 : i32
    %87 = tpu.memref_slice %arg3[%4, %c0_i32_54, %c0_i32_55, %c0_i32_56] : memref<1x99x8x128xf32, #tpu.memory_space<vmem>> -> memref<1x99x8x128xf32, #tpu.memory_space<vmem>>
    %88 = tpu.memref_squeeze %87 : memref<1x99x8x128xf32, #tpu.memory_space<vmem>> -> memref<99x8x128xf32, #tpu.memory_space<vmem>>
    %c94 = arith.constant 94 : index
    %c0_57 = arith.constant 0 : index
    %c0_58 = arith.constant 0 : index
    %89 = vector.load %88[%c94, %c0_57, %c0_58] : memref<99x8x128xf32, #tpu.memory_space<vmem>>, vector<1x8x128xf32>
    %90 = vector.shape_cast %89 : vector<1x8x128xf32> to vector<8x128xf32>
    %c0_i32_59 = arith.constant 0 : i32
    %c0_i32_60 = arith.constant 0 : i32
    %c0_i32_61 = arith.constant 0 : i32
    %91 = tpu.memref_slice %arg3[%4, %c0_i32_59, %c0_i32_60, %c0_i32_61] : memref<1x99x8x128xf32, #tpu.memory_space<vmem>> -> memref<1x99x8x128xf32, #tpu.memory_space<vmem>>
    %92 = tpu.memref_squeeze %91 : memref<1x99x8x128xf32, #tpu.memory_space<vmem>> -> memref<99x8x128xf32, #tpu.memory_space<vmem>>
    %c95 = arith.constant 95 : index
    %c0_62 = arith.constant 0 : index
    %c0_63 = arith.constant 0 : index
    %93 = vector.load %92[%c95, %c0_62, %c0_63] : memref<99x8x128xf32, #tpu.memory_space<vmem>>, vector<1x8x128xf32>
    %94 = vector.shape_cast %93 : vector<1x8x128xf32> to vector<8x128xf32>
    %c0_i32_64 = arith.constant 0 : i32
    %c0_i32_65 = arith.constant 0 : i32
    %c0_i32_66 = arith.constant 0 : i32
    %95 = tpu.memref_slice %arg3[%4, %c0_i32_64, %c0_i32_65, %c0_i32_66] : memref<1x99x8x128xf32, #tpu.memory_space<vmem>> -> memref<1x99x8x128xf32, #tpu.memory_space<vmem>>
    %96 = tpu.memref_squeeze %95 : memref<1x99x8x128xf32, #tpu.memory_space<vmem>> -> memref<99x8x128xf32, #tpu.memory_space<vmem>>
    %c96 = arith.constant 96 : index
    %c0_67 = arith.constant 0 : index
    %c0_68 = arith.constant 0 : index
    %97 = vector.load %96[%c96, %c0_67, %c0_68] : memref<99x8x128xf32, #tpu.memory_space<vmem>>, vector<1x8x128xf32>
    %98 = vector.shape_cast %97 : vector<1x8x128xf32> to vector<8x128xf32>
    %c0_i32_69 = arith.constant 0 : i32
    %c0_i32_70 = arith.constant 0 : i32
    %c0_i32_71 = arith.constant 0 : i32
    %99 = tpu.memref_slice %arg3[%4, %c0_i32_69, %c0_i32_70, %c0_i32_71] : memref<1x99x8x128xf32, #tpu.memory_space<vmem>> -> memref<1x99x8x128xf32, #tpu.memory_space<vmem>>
    %100 = tpu.memref_squeeze %99 : memref<1x99x8x128xf32, #tpu.memory_space<vmem>> -> memref<99x8x128xf32, #tpu.memory_space<vmem>>
    %c97 = arith.constant 97 : index
    %c0_72 = arith.constant 0 : index
    %c0_73 = arith.constant 0 : index
    %101 = vector.load %100[%c97, %c0_72, %c0_73] : memref<99x8x128xf32, #tpu.memory_space<vmem>>, vector<1x8x128xf32>
    %102 = vector.shape_cast %101 : vector<1x8x128xf32> to vector<8x128xf32>
    %c0_i32_74 = arith.constant 0 : i32
    %c0_i32_75 = arith.constant 0 : i32
    %c0_i32_76 = arith.constant 0 : i32
    %103 = tpu.memref_slice %arg3[%4, %c0_i32_74, %c0_i32_75, %c0_i32_76] : memref<1x99x8x128xf32, #tpu.memory_space<vmem>> -> memref<1x99x8x128xf32, #tpu.memory_space<vmem>>
    %104 = tpu.memref_squeeze %103 : memref<1x99x8x128xf32, #tpu.memory_space<vmem>> -> memref<99x8x128xf32, #tpu.memory_space<vmem>>
    %c98 = arith.constant 98 : index
    %c0_77 = arith.constant 0 : index
    %c0_78 = arith.constant 0 : index
    %105 = vector.load %104[%c98, %c0_77, %c0_78] : memref<99x8x128xf32, #tpu.memory_space<vmem>>, vector<1x8x128xf32>
    %106 = vector.shape_cast %105 : vector<1x8x128xf32> to vector<8x128xf32>
    %107 = arith.mulf %74, %37 : vector<8x128xf32>
    %108 = arith.mulf %78, %38 : vector<8x128xf32>
    %109 = arith.addf %107, %108 : vector<8x128xf32>
    %110 = arith.mulf %82, %39 : vector<8x128xf32>
    %111 = arith.addf %109, %110 : vector<8x128xf32>
    %112 = arith.mulf %74, %59 : vector<8x128xf32>
    %113 = arith.mulf %78, %60 : vector<8x128xf32>
    %114 = arith.addf %112, %113 : vector<8x128xf32>
    %115 = arith.mulf %82, %61 : vector<8x128xf32>
    %116 = arith.addf %114, %115 : vector<8x128xf32>
    %117 = arith.mulf %74, %64 : vector<8x128xf32>
    %118 = arith.mulf %78, %67 : vector<8x128xf32>
    %119 = arith.addf %117, %118 : vector<8x128xf32>
    %120 = arith.mulf %82, %70 : vector<8x128xf32>
    %121 = arith.addf %119, %120 : vector<8x128xf32>
    %122 = arith.mulf %86, %37 : vector<8x128xf32>
    %123 = arith.mulf %90, %38 : vector<8x128xf32>
    %124 = arith.addf %122, %123 : vector<8x128xf32>
    %125 = arith.mulf %94, %39 : vector<8x128xf32>
    %126 = arith.addf %124, %125 : vector<8x128xf32>
    %127 = arith.mulf %86, %59 : vector<8x128xf32>
    %128 = arith.mulf %90, %60 : vector<8x128xf32>
    %129 = arith.addf %127, %128 : vector<8x128xf32>
    %130 = arith.mulf %94, %61 : vector<8x128xf32>
    %131 = arith.addf %129, %130 : vector<8x128xf32>
    %132 = arith.mulf %86, %64 : vector<8x128xf32>
    %133 = arith.mulf %90, %67 : vector<8x128xf32>
    %134 = arith.addf %132, %133 : vector<8x128xf32>
    %135 = arith.mulf %94, %70 : vector<8x128xf32>
    %136 = arith.addf %134, %135 : vector<8x128xf32>
    %137 = arith.mulf %98, %37 : vector<8x128xf32>
    %138 = arith.mulf %102, %38 : vector<8x128xf32>
    %139 = arith.addf %137, %138 : vector<8x128xf32>
    %140 = arith.mulf %106, %39 : vector<8x128xf32>
    %141 = arith.addf %139, %140 : vector<8x128xf32>
    %142 = arith.mulf %98, %59 : vector<8x128xf32>
    %143 = arith.mulf %102, %60 : vector<8x128xf32>
    %144 = arith.addf %142, %143 : vector<8x128xf32>
    %145 = arith.mulf %106, %61 : vector<8x128xf32>
    %146 = arith.addf %144, %145 : vector<8x128xf32>
    %147 = arith.mulf %98, %64 : vector<8x128xf32>
    %148 = arith.mulf %102, %67 : vector<8x128xf32>
    %149 = arith.addf %147, %148 : vector<8x128xf32>
    %150 = arith.mulf %106, %70 : vector<8x128xf32>
    %151 = arith.addf %149, %150 : vector<8x128xf32>
    %c0_i32_79 = arith.constant 0 : i32
    %c0_i32_80 = arith.constant 0 : i32
    %c0_i32_81 = arith.constant 0 : i32
    %152 = tpu.memref_slice %arg3[%4, %c0_i32_79, %c0_i32_80, %c0_i32_81] : memref<1x99x8x128xf32, #tpu.memory_space<vmem>> -> memref<1x99x8x128xf32, #tpu.memory_space<vmem>>
    %153 = tpu.memref_squeeze %152 : memref<1x99x8x128xf32, #tpu.memory_space<vmem>> -> memref<99x8x128xf32, #tpu.memory_space<vmem>>
    %c45 = arith.constant 45 : index
    %c0_82 = arith.constant 0 : index
    %c0_83 = arith.constant 0 : index
    %154 = vector.load %153[%c45, %c0_82, %c0_83] : memref<99x8x128xf32, #tpu.memory_space<vmem>>, vector<1x8x128xf32>
    %155 = vector.shape_cast %154 : vector<1x8x128xf32> to vector<8x128xf32>
    %c0_i32_84 = arith.constant 0 : i32
    %c0_i32_85 = arith.constant 0 : i32
    %c0_i32_86 = arith.constant 0 : i32
    %156 = tpu.memref_slice %arg3[%4, %c0_i32_84, %c0_i32_85, %c0_i32_86] : memref<1x99x8x128xf32, #tpu.memory_space<vmem>> -> memref<1x99x8x128xf32, #tpu.memory_space<vmem>>
    %157 = tpu.memref_squeeze %156 : memref<1x99x8x128xf32, #tpu.memory_space<vmem>> -> memref<99x8x128xf32, #tpu.memory_space<vmem>>
    %c46 = arith.constant 46 : index
    %c0_87 = arith.constant 0 : index
    %c0_88 = arith.constant 0 : index
    %158 = vector.load %157[%c46, %c0_87, %c0_88] : memref<99x8x128xf32, #tpu.memory_space<vmem>>, vector<1x8x128xf32>
    %159 = vector.shape_cast %158 : vector<1x8x128xf32> to vector<8x128xf32>
    %c0_i32_89 = arith.constant 0 : i32
    %c0_i32_90 = arith.constant 0 : i32
    %c0_i32_91 = arith.constant 0 : i32
    %160 = tpu.memref_slice %arg3[%4, %c0_i32_89, %c0_i32_90, %c0_i32_91] : memref<1x99x8x128xf32, #tpu.memory_space<vmem>> -> memref<1x99x8x128xf32, #tpu.memory_space<vmem>>
    %161 = tpu.memref_squeeze %160 : memref<1x99x8x128xf32, #tpu.memory_space<vmem>> -> memref<99x8x128xf32, #tpu.memory_space<vmem>>
    %c47 = arith.constant 47 : index
    %c0_92 = arith.constant 0 : index
    %c0_93 = arith.constant 0 : index
    %162 = vector.load %161[%c47, %c0_92, %c0_93] : memref<99x8x128xf32, #tpu.memory_space<vmem>>, vector<1x8x128xf32>
    %163 = vector.shape_cast %162 : vector<1x8x128xf32> to vector<8x128xf32>
    %c0_i32_94 = arith.constant 0 : i32
    %c0_i32_95 = arith.constant 0 : i32
    %c0_i32_96 = arith.constant 0 : i32
    %164 = tpu.memref_slice %arg3[%4, %c0_i32_94, %c0_i32_95, %c0_i32_96] : memref<1x99x8x128xf32, #tpu.memory_space<vmem>> -> memref<1x99x8x128xf32, #tpu.memory_space<vmem>>
    %165 = tpu.memref_squeeze %164 : memref<1x99x8x128xf32, #tpu.memory_space<vmem>> -> memref<99x8x128xf32, #tpu.memory_space<vmem>>
    %c0_97 = arith.constant 0 : index
    %c0_98 = arith.constant 0 : index
    %c0_99 = arith.constant 0 : index
    %166 = vector.load %165[%c0_97, %c0_98, %c0_99] : memref<99x8x128xf32, #tpu.memory_space<vmem>>, vector<1x8x128xf32>
    %167 = vector.shape_cast %166 : vector<1x8x128xf32> to vector<8x128xf32>
    %c0_i32_100 = arith.constant 0 : i32
    %c0_i32_101 = arith.constant 0 : i32
    %c0_i32_102 = arith.constant 0 : i32
    %168 = tpu.memref_slice %arg3[%4, %c0_i32_100, %c0_i32_101, %c0_i32_102] : memref<1x99x8x128xf32, #tpu.memory_space<vmem>> -> memref<1x99x8x128xf32, #tpu.memory_space<vmem>>
    %169 = tpu.memref_squeeze %168 : memref<1x99x8x128xf32, #tpu.memory_space<vmem>> -> memref<99x8x128xf32, #tpu.memory_space<vmem>>
    %c0_103 = arith.constant 0 : index
    %c0_104 = arith.constant 0 : index
    %c0_105 = arith.constant 0 : index
    %170 = vector.load %169[%c0_103, %c0_104, %c0_105] : memref<99x8x128xf32, #tpu.memory_space<vmem>>, vector<1x8x128xf32>
    %171 = vector.shape_cast %170 : vector<1x8x128xf32> to vector<8x128xf32>
    %172 = arith.subf %167, %171 : vector<8x128xf32>
    %c0_i32_106 = arith.constant 0 : i32
    %c0_i32_107 = arith.constant 0 : i32
    %c0_i32_108 = arith.constant 0 : i32
    %173 = tpu.memref_slice %arg3[%4, %c0_i32_106, %c0_i32_107, %c0_i32_108] : memref<1x99x8x128xf32, #tpu.memory_space<vmem>> -> memref<1x99x8x128xf32, #tpu.memory_space<vmem>>
    %174 = tpu.memref_squeeze %173 : memref<1x99x8x128xf32, #tpu.memory_space<vmem>> -> memref<99x8x128xf32, #tpu.memory_space<vmem>>
    %c1_109 = arith.constant 1 : index
    %c0_110 = arith.constant 0 : index
    %c0_111 = arith.constant 0 : index
    %175 = vector.load %174[%c1_109, %c0_110, %c0_111] : memref<99x8x128xf32, #tpu.memory_space<vmem>>, vector<1x8x128xf32>
    %176 = vector.shape_cast %175 : vector<1x8x128xf32> to vector<8x128xf32>
    %c0_i32_112 = arith.constant 0 : i32
    %c0_i32_113 = arith.constant 0 : i32
    %c0_i32_114 = arith.constant 0 : i32
    %177 = tpu.memref_slice %arg3[%4, %c0_i32_112, %c0_i32_113, %c0_i32_114] : memref<1x99x8x128xf32, #tpu.memory_space<vmem>> -> memref<1x99x8x128xf32, #tpu.memory_space<vmem>>
    %178 = tpu.memref_squeeze %177 : memref<1x99x8x128xf32, #tpu.memory_space<vmem>> -> memref<99x8x128xf32, #tpu.memory_space<vmem>>
    %c1_115 = arith.constant 1 : index
    %c0_116 = arith.constant 0 : index
    %c0_117 = arith.constant 0 : index
    %179 = vector.load %178[%c1_115, %c0_116, %c0_117] : memref<99x8x128xf32, #tpu.memory_space<vmem>>, vector<1x8x128xf32>
    %180 = vector.shape_cast %179 : vector<1x8x128xf32> to vector<8x128xf32>
    %181 = arith.subf %176, %180 : vector<8x128xf32>
    %c0_i32_118 = arith.constant 0 : i32
    %c0_i32_119 = arith.constant 0 : i32
    %c0_i32_120 = arith.constant 0 : i32
    %182 = tpu.memref_slice %arg3[%4, %c0_i32_118, %c0_i32_119, %c0_i32_120] : memref<1x99x8x128xf32, #tpu.memory_space<vmem>> -> memref<1x99x8x128xf32, #tpu.memory_space<vmem>>
    %183 = tpu.memref_squeeze %182 : memref<1x99x8x128xf32, #tpu.memory_space<vmem>> -> memref<99x8x128xf32, #tpu.memory_space<vmem>>
    %c2_121 = arith.constant 2 : index
    %c0_122 = arith.constant 0 : index
    %c0_123 = arith.constant 0 : index
    %184 = vector.load %183[%c2_121, %c0_122, %c0_123] : memref<99x8x128xf32, #tpu.memory_space<vmem>>, vector<1x8x128xf32>
    %185 = vector.shape_cast %184 : vector<1x8x128xf32> to vector<8x128xf32>
    %c0_i32_124 = arith.constant 0 : i32
    %c0_i32_125 = arith.constant 0 : i32
    %c0_i32_126 = arith.constant 0 : i32
    %186 = tpu.memref_slice %arg3[%4, %c0_i32_124, %c0_i32_125, %c0_i32_126] : memref<1x99x8x128xf32, #tpu.memory_space<vmem>> -> memref<1x99x8x128xf32, #tpu.memory_space<vmem>>
    %187 = tpu.memref_squeeze %186 : memref<1x99x8x128xf32, #tpu.memory_space<vmem>> -> memref<99x8x128xf32, #tpu.memory_space<vmem>>
    %c2_127 = arith.constant 2 : index
    %c0_128 = arith.constant 0 : index
    %c0_129 = arith.constant 0 : index
    %188 = vector.load %187[%c2_127, %c0_128, %c0_129] : memref<99x8x128xf32, #tpu.memory_space<vmem>>, vector<1x8x128xf32>
    %189 = vector.shape_cast %188 : vector<1x8x128xf32> to vector<8x128xf32>
    %190 = arith.subf %185, %189 : vector<8x128xf32>
    %191 = arith.subf %155, %155 : vector<8x128xf32>
    %192 = arith.subf %159, %159 : vector<8x128xf32>
    %193 = arith.subf %163, %163 : vector<8x128xf32>
    %194 = arith.mulf %172, %191 : vector<8x128xf32>
    %195 = arith.mulf %181, %192 : vector<8x128xf32>
    %196 = arith.addf %194, %195 : vector<8x128xf32>
    %197 = arith.mulf %190, %193 : vector<8x128xf32>
    %198 = arith.addf %196, %197 : vector<8x128xf32>
    %199 = arith.mulf %172, %172 : vector<8x128xf32>
    %200 = arith.mulf %181, %181 : vector<8x128xf32>
    %201 = arith.addf %199, %200 : vector<8x128xf32>
    %202 = arith.mulf %190, %190 : vector<8x128xf32>
    %203 = arith.addf %201, %202 : vector<8x128xf32>
    %204 = arith.mulf %191, %191 : vector<8x128xf32>
    %205 = arith.mulf %192, %192 : vector<8x128xf32>
    %206 = arith.addf %204, %205 : vector<8x128xf32>
    %207 = arith.mulf %193, %193 : vector<8x128xf32>
    %208 = arith.addf %206, %207 : vector<8x128xf32>
    %209 = arith.mulf %203, %208 : vector<8x128xf32>
    %cst_130 = arith.constant 1.000000e-16 : f32
    %210 = vector.broadcast %cst_130 : f32 to vector<8x128xf32>
    %211 = arith.maximumf %209, %210 : vector<8x128xf32>
    %212 = math.rsqrt %211 : vector<8x128xf32>
    %213 = arith.mulf %198, %212 : vector<8x128xf32>
    %c0_131 = arith.constant 0 : index
    %c0_132 = arith.constant 0 : index
    %c0_133 = arith.constant 0 : index
    %214 = vector.load %arg5[%c0_131, %c0_132, %c0_133] : memref<15x8x128xf32, #tpu.memory_space<vmem>>, vector<1x8x128xf32>
    %215 = vector.shape_cast %214 : vector<1x8x128xf32> to vector<8x128xf32>
    %216 = arith.addf %215, %213 : vector<8x128xf32>
    %c0_134 = arith.constant 0 : index
    %c0_135 = arith.constant 0 : index
    %c0_136 = arith.constant 0 : index
    %217 = vector.load %arg5[%c0_134, %c0_135, %c0_136] : memref<15x8x128xf32, #tpu.memory_space<vmem>>, vector<1x8x128xf32>
    %218 = vector.shape_cast %217 : vector<1x8x128xf32> to vector<8x128xf32>
    %219 = vector.shape_cast %216 : vector<8x128xf32> to vector<1x8x128xf32>
    tpu.vector_store %arg5[%c0_134, %c0_135, %c0_136], %219 {strides = array<i32>} : memref<15x8x128xf32, #tpu.memory_space<vmem>>, vector<1x8x128xf32>,
    %c0_i32_137 = arith.constant 0 : i32
    %c0_i32_138 = arith.constant 0 : i32
    %c0_i32_139 = arith.constant 0 : i32
    %220 = tpu.memref_slice %arg2[%4, %c0_i32_137, %c0_i32_138, %c0_i32_139] : memref<1x90x8x128xf32, #tpu.memory_space<vmem>> -> memref<1x90x8x128xf32, #tpu.memory_space<vmem>>
    %221 = tpu.memref_squeeze %220 : memref<1x90x8x128xf32, #tpu.memory_space<vmem>> -> memref<90x8x128xf32, #tpu.memory_space<vmem>>
    %c6 = arith.constant 6 : index
    %c0_140 = arith.constant 0 : index
    %c0_141 = arith.constant 0 : index
    %222 = vector.load %221[%c6, %c0_140, %c0_141] : memref<90x8x128xf32, #tpu.memory_space<vmem>>, vector<1x8x128xf32>
    %223 = vector.shape_cast %222 : vector<1x8x128xf32> to vector<8x128xf32>
    %c0_i32_142 = arith.constant 0 : i32
    %c0_i32_143 = arith.constant 0 : i32
    %c0_i32_144 = arith.constant 0 : i32
    %224 = tpu.memref_slice %arg2[%4, %c0_i32_142, %c0_i32_143, %c0_i32_144] : memref<1x90x8x128xf32, #tpu.memory_space<vmem>> -> memref<1x90x8x128xf32, #tpu.memory_space<vmem>>
    %225 = tpu.memref_squeeze %224 : memref<1x90x8x128xf32, #tpu.memory_space<vmem>> -> memref<90x8x128xf32, #tpu.memory_space<vmem>>
    %c7 = arith.constant 7 : index
    %c0_145 = arith.constant 0 : index
    %c0_146 = arith.constant 0 : index
    %226 = vector.load %225[%c7, %c0_145, %c0_146] : memref<90x8x128xf32, #tpu.memory_space<vmem>>, vector<1x8x128xf32>
    %227 = vector.shape_cast %226 : vector<1x8x128xf32> to vector<8x128xf32>
    %c0_i32_147 = arith.constant 0 : i32
    %c0_i32_148 = arith.constant 0 : i32
    %c0_i32_149 = arith.constant 0 : i32
    %228 = tpu.memref_slice %arg2[%4, %c0_i32_147, %c0_i32_148, %c0_i32_149] : memref<1x90x8x128xf32, #tpu.memory_space<vmem>> -> memref<1x90x8x128xf32, #tpu.memory_space<vmem>>
    %229 = tpu.memref_squeeze %228 : memref<1x90x8x128xf32, #tpu.memory_space<vmem>> -> memref<90x8x128xf32, #tpu.memory_space<vmem>>
    %c8 = arith.constant 8 : index
    %c0_150 = arith.constant 0 : index
    %c0_151 = arith.constant 0 : index
    %230 = vector.load %229[%c8, %c0_150, %c0_151] : memref<90x8x128xf32, #tpu.memory_space<vmem>>, vector<1x8x128xf32>
    %231 = vector.shape_cast %230 : vector<1x8x128xf32> to vector<8x128xf32>
    %c0_i32_152 = arith.constant 0 : i32
    %c0_i32_153 = arith.constant 0 : i32
    %c0_i32_154 = arith.constant 0 : i32
    %232 = tpu.memref_slice %arg2[%4, %c0_i32_152, %c0_i32_153, %c0_i32_154] : memref<1x90x8x128xf32, #tpu.memory_space<vmem>> -> memref<1x90x8x128xf32, #tpu.memory_space<vmem>>
    %233 = tpu.memref_squeeze %232 : memref<1x90x8x128xf32, #tpu.memory_space<vmem>> -> memref<90x8x128xf32, #tpu.memory_space<vmem>>
    %c9 = arith.constant 9 : index
    %c0_155 = arith.constant 0 : index
    %c0_156 = arith.constant 0 : index
    %234 = vector.load %233[%c9, %c0_155, %c0_156] : memref<90x8x128xf32, #tpu.memory_space<vmem>>, vector<1x8x128xf32>
    %235 = vector.shape_cast %234 : vector<1x8x128xf32> to vector<8x128xf32>
    %c0_i32_157 = arith.constant 0 : i32
    %c0_i32_158 = arith.constant 0 : i32
    %c0_i32_159 = arith.constant 0 : i32
    %236 = tpu.memref_slice %arg2[%4, %c0_i32_157, %c0_i32_158, %c0_i32_159] : memref<1x90x8x128xf32, #tpu.memory_space<vmem>> -> memref<1x90x8x128xf32, #tpu.memory_space<vmem>>
    %237 = tpu.memref_squeeze %236 : memref<1x90x8x128xf32, #tpu.memory_space<vmem>> -> memref<90x8x128xf32, #tpu.memory_space<vmem>>
    %c10 = arith.constant 10 : index
    %c0_160 = arith.constant 0 : index
    %c0_161 = arith.constant 0 : index
    %238 = vector.load %237[%c10, %c0_160, %c0_161] : memref<90x8x128xf32, #tpu.memory_space<vmem>>, vector<1x8x128xf32>
    %239 = vector.shape_cast %238 : vector<1x8x128xf32> to vector<8x128xf32>
    %c0_i32_162 = arith.constant 0 : i32
    %c0_i32_163 = arith.constant 0 : i32
    %c0_i32_164 = arith.constant 0 : i32
    %240 = tpu.memref_slice %arg2[%4, %c0_i32_162, %c0_i32_163, %c0_i32_164] : memref<1x90x8x128xf32, #tpu.memory_space<vmem>> -> memref<1x90x8x128xf32, #tpu.memory_space<vmem>>
    %241 = tpu.memref_squeeze %240 : memref<1x90x8x128xf32, #tpu.memory_space<vmem>> -> memref<90x8x128xf32, #tpu.memory_space<vmem>>
    %c11 = arith.constant 11 : index
    %c0_165 = arith.constant 0 : index
    %c0_166 = arith.constant 0 : index
    %242 = vector.load %241[%c11, %c0_165, %c0_166] : memref<90x8x128xf32, #tpu.memory_space<vmem>>, vector<1x8x128xf32>
    %243 = vector.shape_cast %242 : vector<1x8x128xf32> to vector<8x128xf32>
    %244 = arith.mulf %223, %223 : vector<8x128xf32>
    %245 = arith.mulf %227, %227 : vector<8x128xf32>
    %246 = arith.addf %244, %245 : vector<8x128xf32>
    %247 = arith.mulf %231, %231 : vector<8x128xf32>
    %248 = arith.addf %246, %247 : vector<8x128xf32>
    %cst_167 = arith.constant 1.000000e-24 : f32
    %249 = vector.broadcast %cst_167 : f32 to vector<8x128xf32>
    %250 = arith.maximumf %248, %249 : vector<8x128xf32>
    %251 = math.rsqrt %250 : vector<8x128xf32>
    %252 = arith.mulf %223, %251 : vector<8x128xf32>
    %253 = arith.mulf %227, %251 : vector<8x128xf32>
    %254 = arith.mulf %231, %251 : vector<8x128xf32>
    %255 = arith.mulf %252, %235 : vector<8x128xf32>
    %256 = arith.mulf %253, %239 : vector<8x128xf32>
    %257 = arith.addf %255, %256 : vector<8x128xf32>
    %258 = arith.mulf %254, %243 : vector<8x128xf32>
    %259 = arith.addf %257, %258 : vector<8x128xf32>
    %260 = arith.mulf %259, %252 : vector<8x128xf32>
    %261 = arith.subf %235, %260 : vector<8x128xf32>
    %262 = arith.mulf %259, %253 : vector<8x128xf32>
    %263 = arith.subf %239, %262 : vector<8x128xf32>
    %264 = arith.mulf %259, %254 : vector<8x128xf32>
    %265 = arith.subf %243, %264 : vector<8x128xf32>
    %266 = arith.mulf %261, %261 : vector<8x128xf32>
    %267 = arith.mulf %263, %263 : vector<8x128xf32>
    %268 = arith.addf %266, %267 : vector<8x128xf32>
    %269 = arith.mulf %265, %265 : vector<8x128xf32>
    %270 = arith.addf %268, %269 : vector<8x128xf32>
    %cst_168 = arith.constant 1.000000e-24 : f32
    %271 = vector.broadcast %cst_168 : f32 to vector<8x128xf32>
    %272 = arith.maximumf %270, %271 : vector<8x128xf32>
    %273 = math.rsqrt %272 : vector<8x128xf32>
    %274 = arith.mulf %261, %273 : vector<8x128xf32>
    %275 = arith.mulf %263, %273 : vector<8x128xf32>
    %276 = arith.mulf %265, %273 : vector<8x128xf32>
    %277 = arith.mulf %253, %276 : vector<8x128xf32>
    %278 = arith.mulf %254, %275 : vector<8x128xf32>
    %279 = arith.subf %277, %278 : vector<8x128xf32>
    %280 = arith.mulf %254, %274 : vector<8x128xf32>
    %281 = arith.mulf %252, %276 : vector<8x128xf32>
    %282 = arith.subf %280, %281 : vector<8x128xf32>
    %283 = arith.mulf %252, %275 : vector<8x128xf32>
    %284 = arith.mulf %253, %274 : vector<8x128xf32>
    %285 = arith.subf %283, %284 : vector<8x128xf32>
    %286 = arith.mulf %111, %252 : vector<8x128xf32>
    %287 = arith.mulf %116, %253 : vector<8x128xf32>
    %288 = arith.addf %286, %287 : vector<8x128xf32>
    %289 = arith.mulf %121, %254 : vector<8x128xf32>
    %290 = arith.addf %288, %289 : vector<8x128xf32>
    %291 = arith.mulf %111, %274 : vector<8x128xf32>
    %292 = arith.mulf %116, %275 : vector<8x128xf32>
    %293 = arith.addf %291, %292 : vector<8x128xf32>
    %294 = arith.mulf %121, %276 : vector<8x128xf32>
    %295 = arith.addf %293, %294 : vector<8x128xf32>
    %296 = arith.mulf %111, %279 : vector<8x128xf32>
    %297 = arith.mulf %116, %282 : vector<8x128xf32>
    %298 = arith.addf %296, %297 : vector<8x128xf32>
    %299 = arith.mulf %121, %285 : vector<8x128xf32>
    %300 = arith.addf %298, %299 : vector<8x128xf32>
    %301 = arith.mulf %126, %252 : vector<8x128xf32>
    %302 = arith.mulf %131, %253 : vector<8x128xf32>
    %303 = arith.addf %301, %302 : vector<8x128xf32>
    %304 = arith.mulf %136, %254 : vector<8x128xf32>
    %305 = arith.addf %303, %304 : vector<8x128xf32>
    %306 = arith.mulf %126, %274 : vector<8x128xf32>
    %307 = arith.mulf %131, %275 : vector<8x128xf32>
    %308 = arith.addf %306, %307 : vector<8x128xf32>
    %309 = arith.mulf %136, %276 : vector<8x128xf32>
    %310 = arith.addf %308, %309 : vector<8x128xf32>
    %311 = arith.mulf %126, %279 : vector<8x128xf32>
    %312 = arith.mulf %131, %282 : vector<8x128xf32>
    %313 = arith.addf %311, %312 : vector<8x128xf32>
    %314 = arith.mulf %136, %285 : vector<8x128xf32>
    %315 = arith.addf %313, %314 : vector<8x128xf32>
    %316 = arith.mulf %141, %252 : vector<8x128xf32>
    %317 = arith.mulf %146, %253 : vector<8x128xf32>
    %318 = arith.addf %316, %317 : vector<8x128xf32>
    %319 = arith.mulf %151, %254 : vector<8x128xf32>
    %320 = arith.addf %318, %319 : vector<8x128xf32>
    %321 = arith.mulf %141, %274 : vector<8x128xf32>
    %322 = arith.mulf %146, %275 : vector<8x128xf32>
    %323 = arith.addf %321, %322 : vector<8x128xf32>
    %324 = arith.mulf %151, %276 : vector<8x128xf32>
    %325 = arith.addf %323, %324 : vector<8x128xf32>
    %326 = arith.mulf %141, %279 : vector<8x128xf32>
    %327 = arith.mulf %146, %282 : vector<8x128xf32>
    %328 = arith.addf %326, %327 : vector<8x128xf32>
    %329 = arith.mulf %151, %285 : vector<8x128xf32>
    %330 = arith.addf %328, %329 : vector<8x128xf32>
    %c0_i32_169 = arith.constant 0 : i32
    %c0_i32_170 = arith.constant 0 : i32
    %c0_i32_171 = arith.constant 0 : i32
    %331 = tpu.memref_slice %arg3[%4, %c0_i32_169, %c0_i32_170, %c0_i32_171] : memref<1x99x8x128xf32, #tpu.memory_space<vmem>> -> memref<1x99x8x128xf32, #tpu.memory_space<vmem>>
    %332 = tpu.memref_squeeze %331 : memref<1x99x8x128xf32, #tpu.memory_space<vmem>> -> memref<99x8x128xf32, #tpu.memory_space<vmem>>
    %c48 = arith.constant 48 : index
    %c0_172 = arith.constant 0 : index
    %c0_173 = arith.constant 0 : index
    %333 = vector.load %332[%c48, %c0_172, %c0_173] : memref<99x8x128xf32, #tpu.memory_space<vmem>>, vector<1x8x128xf32>
    %334 = vector.shape_cast %333 : vector<1x8x128xf32> to vector<8x128xf32>
    %c0_i32_174 = arith.constant 0 : i32
    %c0_i32_175 = arith.constant 0 : i32
    %c0_i32_176 = arith.constant 0 : i32
    %335 = tpu.memref_slice %arg3[%4, %c0_i32_174, %c0_i32_175, %c0_i32_176] : memref<1x99x8x128xf32, #tpu.memory_space<vmem>> -> memref<1x99x8x128xf32, #tpu.memory_space<vmem>>
    %336 = tpu.memref_squeeze %335 : memref<1x99x8x128xf32, #tpu.memory_space<vmem>> -> memref<99x8x128xf32, #tpu.memory_space<vmem>>
    %c49 = arith.constant 49 : index
    %c0_177 = arith.constant 0 : index
    %c0_178 = arith.constant 0 : index
    %337 = vector.load %336[%c49, %c0_177, %c0_178] : memref<99x8x128xf32, #tpu.memory_space<vmem>>, vector<1x8x128xf32>
    %338 = vector.shape_cast %337 : vector<1x8x128xf32> to vector<8x128xf32>
    %c0_i32_179 = arith.constant 0 : i32
    %c0_i32_180 = arith.constant 0 : i32
    %c0_i32_181 = arith.constant 0 : i32
    %339 = tpu.memref_slice %arg3[%4, %c0_i32_179, %c0_i32_180, %c0_i32_181] : memref<1x99x8x128xf32, #tpu.memory_space<vmem>> -> memref<1x99x8x128xf32, #tpu.memory_space<vmem>>
    %340 = tpu.memref_squeeze %339 : memref<1x99x8x128xf32, #tpu.memory_space<vmem>> -> memref<99x8x128xf32, #tpu.memory_space<vmem>>
    %c50 = arith.constant 50 : index
    %c0_182 = arith.constant 0 : index
    %c0_183 = arith.constant 0 : index
    %341 = vector.load %340[%c50, %c0_182, %c0_183] : memref<99x8x128xf32, #tpu.memory_space<vmem>>, vector<1x8x128xf32>
    %342 = vector.shape_cast %341 : vector<1x8x128xf32> to vector<8x128xf32>
    %343 = arith.mulf %290, %334 : vector<8x128xf32>
    %344 = arith.mulf %295, %338 : vector<8x128xf32>
    %345 = arith.addf %343, %344 : vector<8x128xf32>
    %346 = arith.mulf %300, %342 : vector<8x128xf32>
    %347 = arith.addf %345, %346 : vector<8x128xf32>
    %348 = arith.mulf %305, %334 : vector<8x128xf32>
    %349 = arith.mulf %310, %338 : vector<8x128xf32>
    %350 = arith.addf %348, %349 : vector<8x128xf32>
    %351 = arith.mulf %315, %342 : vector<8x128xf32>
    %352 = arith.addf %350, %351 : vector<8x128xf32>
    %353 = arith.mulf %320, %334 : vector<8x128xf32>
    %354 = arith.mulf %325, %338 : vector<8x128xf32>
    %355 = arith.addf %353, %354 : vector<8x128xf32>
    %356 = arith.mulf %330, %342 : vector<8x128xf32>
    %357 = arith.addf %355, %356 : vector<8x128xf32>
    %358 = arith.addf %155, %347 : vector<8x128xf32>
    %359 = arith.addf %159, %352 : vector<8x128xf32>
    %360 = arith.addf %163, %357 : vector<8x128xf32>
    %c0_i32_184 = arith.constant 0 : i32
    %c0_i32_185 = arith.constant 0 : i32
    %c0_i32_186 = arith.constant 0 : i32
    %361 = tpu.memref_slice %arg3[%4, %c0_i32_184, %c0_i32_185, %c0_i32_186] : memref<1x99x8x128xf32, #tpu.memory_space<vmem>> -> memref<1x99x8x128xf32, #tpu.memory_space<vmem>>
    %362 = tpu.memref_squeeze %361 : memref<1x99x8x128xf32, #tpu.memory_space<vmem>> -> memref<99x8x128xf32, #tpu.memory_space<vmem>>
    %c3_187 = arith.constant 3 : index
    %c0_188 = arith.constant 0 : index
    %c0_189 = arith.constant 0 : index
    %363 = vector.load %362[%c3_187, %c0_188, %c0_189] : memref<99x8x128xf32, #tpu.memory_space<vmem>>, vector<1x8x128xf32>
    %364 = vector.shape_cast %363 : vector<1x8x128xf32> to vector<8x128xf32>
    %c0_i32_190 = arith.constant 0 : i32
    %c0_i32_191 = arith.constant 0 : i32
    %c0_i32_192 = arith.constant 0 : i32
    %365 = tpu.memref_slice %arg3[%4, %c0_i32_190, %c0_i32_191, %c0_i32_192] : memref<1x99x8x128xf32, #tpu.memory_space<vmem>> -> memref<1x99x8x128xf32, #tpu.memory_space<vmem>>
    %366 = tpu.memref_squeeze %365 : memref<1x99x8x128xf32, #tpu.memory_space<vmem>> -> memref<99x8x128xf32, #tpu.memory_space<vmem>>
    %c0_193 = arith.constant 0 : index
    %c0_194 = arith.constant 0 : index
    %c0_195 = arith.constant 0 : index
    %367 = vector.load %366[%c0_193, %c0_194, %c0_195] : memref<99x8x128xf32, #tpu.memory_space<vmem>>, vector<1x8x128xf32>
    %368 = vector.shape_cast %367 : vector<1x8x128xf32> to vector<8x128xf32>
    %369 = arith.subf %364, %368 : vector<8x128xf32>
    %c0_i32_196 = arith.constant 0 : i32
    %c0_i32_197 = arith.constant 0 : i32
    %c0_i32_198 = arith.constant 0 : i32
    %370 = tpu.memref_slice %arg3[%4, %c0_i32_196, %c0_i32_197, %c0_i32_198] : memref<1x99x8x128xf32, #tpu.memory_space<vmem>> -> memref<1x99x8x128xf32, #tpu.memory_space<vmem>>
    %371 = tpu.memref_squeeze %370 : memref<1x99x8x128xf32, #tpu.memory_space<vmem>> -> memref<99x8x128xf32, #tpu.memory_space<vmem>>
    %c4_199 = arith.constant 4 : index
    %c0_200 = arith.constant 0 : index
    %c0_201 = arith.constant 0 : index
    %372 = vector.load %371[%c4_199, %c0_200, %c0_201] : memref<99x8x128xf32, #tpu.memory_space<vmem>>, vector<1x8x128xf32>
    %373 = vector.shape_cast %372 : vector<1x8x128xf32> to vector<8x128xf32>
    %c0_i32_202 = arith.constant 0 : i32
    %c0_i32_203 = arith.constant 0 : i32
    %c0_i32_204 = arith.constant 0 : i32
    %374 = tpu.memref_slice %arg3[%4, %c0_i32_202, %c0_i32_203, %c0_i32_204] : memref<1x99x8x128xf32, #tpu.memory_space<vmem>> -> memref<1x99x8x128xf32, #tpu.memory_space<vmem>>
    %375 = tpu.memref_squeeze %374 : memref<1x99x8x128xf32, #tpu.memory_space<vmem>> -> memref<99x8x128xf32, #tpu.memory_space<vmem>>
    %c1_205 = arith.constant 1 : index
    %c0_206 = arith.constant 0 : index
    %c0_207 = arith.constant 0 : index
    %376 = vector.load %375[%c1_205, %c0_206, %c0_207] : memref<99x8x128xf32, #tpu.memory_space<vmem>>, vector<1x8x128xf32>
    %377 = vector.shape_cast %376 : vector<1x8x128xf32> to vector<8x128xf32>
    %378 = arith.subf %373, %377 : vector<8x128xf32>
    %c0_i32_208 = arith.constant 0 : i32
    %c0_i32_209 = arith.constant 0 : i32
    %c0_i32_210 = arith.constant 0 : i32
    %379 = tpu.memref_slice %arg3[%4, %c0_i32_208, %c0_i32_209, %c0_i32_210] : memref<1x99x8x128xf32, #tpu.memory_space<vmem>> -> memref<1x99x8x128xf32, #tpu.memory_space<vmem>>
    %380 = tpu.memref_squeeze %379 : memref<1x99x8x128xf32, #tpu.memory_space<vmem>> -> memref<99x8x128xf32, #tpu.memory_space<vmem>>
    %c5_211 = arith.constant 5 : index
    %c0_212 = arith.constant 0 : index
    %c0_213 = arith.constant 0 : index
    %381 = vector.load %380[%c5_211, %c0_212, %c0_213] : memref<99x8x128xf32, #tpu.memory_space<vmem>>, vector<1x8x128xf32>
    %382 = vector.shape_cast %381 : vector<1x8x128xf32> to vector<8x128xf32>
    %c0_i32_214 = arith.constant 0 : i32
    %c0_i32_215 = arith.constant 0 : i32
    %c0_i32_216 = arith.constant 0 : i32
    %383 = tpu.memref_slice %arg3[%4, %c0_i32_214, %c0_i32_215, %c0_i32_216] : memref<1x99x8x128xf32, #tpu.memory_space<vmem>> -> memref<1x99x8x128xf32, #tpu.memory_space<vmem>>
    %384 = tpu.memref_squeeze %383 : memref<1x99x8x128xf32, #tpu.memory_space<vmem>> -> memref<99x8x128xf32, #tpu.memory_space<vmem>>
    %c2_217 = arith.constant 2 : index
    %c0_218 = arith.constant 0 : index
    %c0_219 = arith.constant 0 : index
    %385 = vector.load %384[%c2_217, %c0_218, %c0_219] : memref<99x8x128xf32, #tpu.memory_space<vmem>>, vector<1x8x128xf32>
    %386 = vector.shape_cast %385 : vector<1x8x128xf32> to vector<8x128xf32>
    %387 = arith.subf %382, %386 : vector<8x128xf32>
    %388 = arith.subf %358, %155 : vector<8x128xf32>
    %389 = arith.subf %359, %159 : vector<8x128xf32>
    %390 = arith.subf %360, %163 : vector<8x128xf32>
    %391 = arith.mulf %369, %388 : vector<8x128xf32>
    %392 = arith.mulf %378, %389 : vector<8x128xf32>
    %393 = arith.addf %391, %392 : vector<8x128xf32>
    %394 = arith.mulf %387, %390 : vector<8x128xf32>
    %395 = arith.addf %393, %394 : vector<8x128xf32>
    %396 = arith.mulf %369, %369 : vector<8x128xf32>
    %397 = arith.mulf %378, %378 : vector<8x128xf32>
    %398 = arith.addf %396, %397 : vector<8x128xf32>
    %399 = arith.mulf %387, %387 : vector<8x128xf32>
    %400 = arith.addf %398, %399 : vector<8x128xf32>
    %401 = arith.mulf %388, %388 : vector<8x128xf32>
    %402 = arith.mulf %389, %389 : vector<8x128xf32>
    %403 = arith.addf %401, %402 : vector<8x128xf32>
    %404 = arith.mulf %390, %390 : vector<8x128xf32>
    %405 = arith.addf %403, %404 : vector<8x128xf32>
    %406 = arith.mulf %400, %405 : vector<8x128xf32>
    %cst_220 = arith.constant 1.000000e-16 : f32
    %407 = vector.broadcast %cst_220 : f32 to vector<8x128xf32>
    %408 = arith.maximumf %406, %407 : vector<8x128xf32>
    %409 = math.rsqrt %408 : vector<8x128xf32>
    %410 = arith.mulf %395, %409 : vector<8x128xf32>
    %c1_221 = arith.constant 1 : index
    %c0_222 = arith.constant 0 : index
    %c0_223 = arith.constant 0 : index
    %411 = vector.load %arg5[%c1_221, %c0_222, %c0_223] : memref<15x8x128xf32, #tpu.memory_space<vmem>>, vector<1x8x128xf32>
    %412 = vector.shape_cast %411 : vector<1x8x128xf32> to vector<8x128xf32>
    %413 = arith.addf %412, %410 : vector<8x128xf32>
    %c1_224 = arith.constant 1 : index
    %c0_225 = arith.constant 0 : index
    %c0_226 = arith.constant 0 : index
    %414 = vector.load %arg5[%c1_224, %c0_225, %c0_226] : memref<15x8x128xf32, #tpu.memory_space<vmem>>, vector<1x8x128xf32>
    %415 = vector.shape_cast %414 : vector<1x8x128xf32> to vector<8x128xf32>
    %416 = vector.shape_cast %413 : vector<8x128xf32> to vector<1x8x128xf32>
    tpu.vector_store %arg5[%c1_224, %c0_225, %c0_226], %416 {strides = array<i32>} : memref<15x8x128xf32, #tpu.memory_space<vmem>>, vector<1x8x128xf32>,
    %c0_i32_227 = arith.constant 0 : i32
    %c0_i32_228 = arith.constant 0 : i32
    %c0_i32_229 = arith.constant 0 : i32
    %417 = tpu.memref_slice %arg2[%4, %c0_i32_227, %c0_i32_228, %c0_i32_229] : memref<1x90x8x128xf32, #tpu.memory_space<vmem>> -> memref<1x90x8x128xf32, #tpu.memory_space<vmem>>
    %418 = tpu.memref_squeeze %417 : memref<1x90x8x128xf32, #tpu.memory_space<vmem>> -> memref<90x8x128xf32, #tpu.memory_space<vmem>>
    %c12 = arith.constant 12 : index
    %c0_230 = arith.constant 0 : index
    %c0_231 = arith.constant 0 : index
    %419 = vector.load %418[%c12, %c0_230, %c0_231] : memref<90x8x128xf32, #tpu.memory_space<vmem>>, vector<1x8x128xf32>
    %420 = vector.shape_cast %419 : vector<1x8x128xf32> to vector<8x128xf32>
    %c0_i32_232 = arith.constant 0 : i32
    %c0_i32_233 = arith.constant 0 : i32
    %c0_i32_234 = arith.constant 0 : i32
    %421 = tpu.memref_slice %arg2[%4, %c0_i32_232, %c0_i32_233, %c0_i32_234] : memref<1x90x8x128xf32, #tpu.memory_space<vmem>> -> memref<1x90x8x128xf32, #tpu.memory_space<vmem>>
    %422 = tpu.memref_squeeze %421 : memref<1x90x8x128xf32, #tpu.memory_space<vmem>> -> memref<90x8x128xf32, #tpu.memory_space<vmem>>
    %c13 = arith.constant 13 : index
    %c0_235 = arith.constant 0 : index
    %c0_236 = arith.constant 0 : index
    %423 = vector.load %422[%c13, %c0_235, %c0_236] : memref<90x8x128xf32, #tpu.memory_space<vmem>>, vector<1x8x128xf32>
    %424 = vector.shape_cast %423 : vector<1x8x128xf32> to vector<8x128xf32>
    %c0_i32_237 = arith.constant 0 : i32
    %c0_i32_238 = arith.constant 0 : i32
    %c0_i32_239 = arith.constant 0 : i32
    %425 = tpu.memref_slice %arg2[%4, %c0_i32_237, %c0_i32_238, %c0_i32_239] : memref<1x90x8x128xf32, #tpu.memory_space<vmem>> -> memref<1x90x8x128xf32, #tpu.memory_space<vmem>>
    %426 = tpu.memref_squeeze %425 : memref<1x90x8x128xf32, #tpu.memory_space<vmem>> -> memref<90x8x128xf32, #tpu.memory_space<vmem>>
    %c14 = arith.constant 14 : index
    %c0_240 = arith.constant 0 : index
    %c0_241 = arith.constant 0 : index
    %427 = vector.load %426[%c14, %c0_240, %c0_241] : memref<90x8x128xf32, #tpu.memory_space<vmem>>, vector<1x8x128xf32>
    %428 = vector.shape_cast %427 : vector<1x8x128xf32> to vector<8x128xf32>
    %c0_i32_242 = arith.constant 0 : i32
    %c0_i32_243 = arith.constant 0 : i32
    %c0_i32_244 = arith.constant 0 : i32
    %429 = tpu.memref_slice %arg2[%4, %c0_i32_242, %c0_i32_243, %c0_i32_244] : memref<1x90x8x128xf32, #tpu.memory_space<vmem>> -> memref<1x90x8x128xf32, #tpu.memory_space<vmem>>
    %430 = tpu.memref_squeeze %429 : memref<1x90x8x128xf32, #tpu.memory_space<vmem>> -> memref<90x8x128xf32, #tpu.memory_space<vmem>>
    %c15 = arith.constant 15 : index
    %c0_245 = arith.constant 0 : index
    %c0_246 = arith.constant 0 : index
    %431 = vector.load %430[%c15, %c0_245, %c0_246] : memref<90x8x128xf32, #tpu.memory_space<vmem>>, vector<1x8x128xf32>
    %432 = vector.shape_cast %431 : vector<1x8x128xf32> to vector<8x128xf32>
    %c0_i32_247 = arith.constant 0 : i32
    %c0_i32_248 = arith.constant 0 : i32
    %c0_i32_249 = arith.constant 0 : i32
    %433 = tpu.memref_slice %arg2[%4, %c0_i32_247, %c0_i32_248, %c0_i32_249] : memref<1x90x8x128xf32, #tpu.memory_space<vmem>> -> memref<1x90x8x128xf32, #tpu.memory_space<vmem>>
    %434 = tpu.memref_squeeze %433 : memref<1x90x8x128xf32, #tpu.memory_space<vmem>> -> memref<90x8x128xf32, #tpu.memory_space<vmem>>
    %c16 = arith.constant 16 : index
    %c0_250 = arith.constant 0 : index
    %c0_251 = arith.constant 0 : index
    %435 = vector.load %434[%c16, %c0_250, %c0_251] : memref<90x8x128xf32, #tpu.memory_space<vmem>>, vector<1x8x128xf32>
    %436 = vector.shape_cast %435 : vector<1x8x128xf32> to vector<8x128xf32>
    %c0_i32_252 = arith.constant 0 : i32
    %c0_i32_253 = arith.constant 0 : i32
    %c0_i32_254 = arith.constant 0 : i32
    %437 = tpu.memref_slice %arg2[%4, %c0_i32_252, %c0_i32_253, %c0_i32_254] : memref<1x90x8x128xf32, #tpu.memory_space<vmem>> -> memref<1x90x8x128xf32, #tpu.memory_space<vmem>>
    %438 = tpu.memref_squeeze %437 : memref<1x90x8x128xf32, #tpu.memory_space<vmem>> -> memref<90x8x128xf32, #tpu.memory_space<vmem>>
    %c17 = arith.constant 17 : index
    %c0_255 = arith.constant 0 : index
    %c0_256 = arith.constant 0 : index
    %439 = vector.load %438[%c17, %c0_255, %c0_256] : memref<90x8x128xf32, #tpu.memory_space<vmem>>, vector<1x8x128xf32>
    %440 = vector.shape_cast %439 : vector<1x8x128xf32> to vector<8x128xf32>
    %441 = arith.mulf %420, %420 : vector<8x128xf32>
    %442 = arith.mulf %424, %424 : vector<8x128xf32>
    %443 = arith.addf %441, %442 : vector<8x128xf32>
    %444 = arith.mulf %428, %428 : vector<8x128xf32>
    %445 = arith.addf %443, %444 : vector<8x128xf32>
    %cst_257 = arith.constant 1.000000e-24 : f32
    %446 = vector.broadcast %cst_257 : f32 to vector<8x128xf32>
    %447 = arith.maximumf %445, %446 : vector<8x128xf32>
    %448 = math.rsqrt %447 : vector<8x128xf32>
    %449 = arith.mulf %420, %448 : vector<8x128xf32>
    %450 = arith.mulf %424, %448 : vector<8x128xf32>
    %451 = arith.mulf %428, %448 : vector<8x128xf32>
    %452 = arith.mulf %449, %432 : vector<8x128xf32>
    %453 = arith.mulf %450, %436 : vector<8x128xf32>
    %454 = arith.addf %452, %453 : vector<8x128xf32>
    %455 = arith.mulf %451, %440 : vector<8x128xf32>
    %456 = arith.addf %454, %455 : vector<8x128xf32>
    %457 = arith.mulf %456, %449 : vector<8x128xf32>
    %458 = arith.subf %432, %457 : vector<8x128xf32>
    %459 = arith.mulf %456, %450 : vector<8x128xf32>
    %460 = arith.subf %436, %459 : vector<8x128xf32>
    %461 = arith.mulf %456, %451 : vector<8x128xf32>
    %462 = arith.subf %440, %461 : vector<8x128xf32>
    %463 = arith.mulf %458, %458 : vector<8x128xf32>
    %464 = arith.mulf %460, %460 : vector<8x128xf32>
    %465 = arith.addf %463, %464 : vector<8x128xf32>
    %466 = arith.mulf %462, %462 : vector<8x128xf32>
    %467 = arith.addf %465, %466 : vector<8x128xf32>
    %cst_258 = arith.constant 1.000000e-24 : f32
    %468 = vector.broadcast %cst_258 : f32 to vector<8x128xf32>
    %469 = arith.maximumf %467, %468 : vector<8x128xf32>
    %470 = math.rsqrt %469 : vector<8x128xf32>
    %471 = arith.mulf %458, %470 : vector<8x128xf32>
    %472 = arith.mulf %460, %470 : vector<8x128xf32>
    %473 = arith.mulf %462, %470 : vector<8x128xf32>
    %474 = arith.mulf %450, %473 : vector<8x128xf32>
    %475 = arith.mulf %451, %472 : vector<8x128xf32>
    %476 = arith.subf %474, %475 : vector<8x128xf32>
    %477 = arith.mulf %451, %471 : vector<8x128xf32>
    %478 = arith.mulf %449, %473 : vector<8x128xf32>
    %479 = arith.subf %477, %478 : vector<8x128xf32>
    %480 = arith.mulf %449, %472 : vector<8x128xf32>
    %481 = arith.mulf %450, %471 : vector<8x128xf32>
    %482 = arith.subf %480, %481 : vector<8x128xf32>
    %483 = arith.mulf %290, %449 : vector<8x128xf32>
    %484 = arith.mulf %295, %450 : vector<8x128xf32>
    %485 = arith.addf %483, %484 : vector<8x128xf32>
    %486 = arith.mulf %300, %451 : vector<8x128xf32>
    %487 = arith.addf %485, %486 : vector<8x128xf32>
    %488 = arith.mulf %290, %471 : vector<8x128xf32>
    %489 = arith.mulf %295, %472 : vector<8x128xf32>
    %490 = arith.addf %488, %489 : vector<8x128xf32>
    %491 = arith.mulf %300, %473 : vector<8x128xf32>
    %492 = arith.addf %490, %491 : vector<8x128xf32>
    %493 = arith.mulf %290, %476 : vector<8x128xf32>
    %494 = arith.mulf %295, %479 : vector<8x128xf32>
    %495 = arith.addf %493, %494 : vector<8x128xf32>
    %496 = arith.mulf %300, %482 : vector<8x128xf32>
    %497 = arith.addf %495, %496 : vector<8x128xf32>
    %498 = arith.mulf %305, %449 : vector<8x128xf32>
    %499 = arith.mulf %310, %450 : vector<8x128xf32>
    %500 = arith.addf %498, %499 : vector<8x128xf32>
    %501 = arith.mulf %315, %451 : vector<8x128xf32>
    %502 = arith.addf %500, %501 : vector<8x128xf32>
    %503 = arith.mulf %305, %471 : vector<8x128xf32>
    %504 = arith.mulf %310, %472 : vector<8x128xf32>
    %505 = arith.addf %503, %504 : vector<8x128xf32>
    %506 = arith.mulf %315, %473 : vector<8x128xf32>
    %507 = arith.addf %505, %506 : vector<8x128xf32>
    %508 = arith.mulf %305, %476 : vector<8x128xf32>
    %509 = arith.mulf %310, %479 : vector<8x128xf32>
    %510 = arith.addf %508, %509 : vector<8x128xf32>
    %511 = arith.mulf %315, %482 : vector<8x128xf32>
    %512 = arith.addf %510, %511 : vector<8x128xf32>
    %513 = arith.mulf %320, %449 : vector<8x128xf32>
    %514 = arith.mulf %325, %450 : vector<8x128xf32>
    %515 = arith.addf %513, %514 : vector<8x128xf32>
    %516 = arith.mulf %330, %451 : vector<8x128xf32>
    %517 = arith.addf %515, %516 : vector<8x128xf32>
    %518 = arith.mulf %320, %471 : vector<8x128xf32>
    %519 = arith.mulf %325, %472 : vector<8x128xf32>
    %520 = arith.addf %518, %519 : vector<8x128xf32>
    %521 = arith.mulf %330, %473 : vector<8x128xf32>
    %522 = arith.addf %520, %521 : vector<8x128xf32>
    %523 = arith.mulf %320, %476 : vector<8x128xf32>
    %524 = arith.mulf %325, %479 : vector<8x128xf32>
    %525 = arith.addf %523, %524 : vector<8x128xf32>
    %526 = arith.mulf %330, %482 : vector<8x128xf32>
    %527 = arith.addf %525, %526 : vector<8x128xf32>
    %c0_i32_259 = arith.constant 0 : i32
    %c0_i32_260 = arith.constant 0 : i32
    %c0_i32_261 = arith.constant 0 : i32
    %528 = tpu.memref_slice %arg3[%4, %c0_i32_259, %c0_i32_260, %c0_i32_261] : memref<1x99x8x128xf32, #tpu.memory_space<vmem>> -> memref<1x99x8x128xf32, #tpu.memory_space<vmem>>
    %529 = tpu.memref_squeeze %528 : memref<1x99x8x128xf32, #tpu.memory_space<vmem>> -> memref<99x8x128xf32, #tpu.memory_space<vmem>>
    %c51 = arith.constant 51 : index
    %c0_262 = arith.constant 0 : index
    %c0_263 = arith.constant 0 : index
    %530 = vector.load %529[%c51, %c0_262, %c0_263] : memref<99x8x128xf32, #tpu.memory_space<vmem>>, vector<1x8x128xf32>
    %531 = vector.shape_cast %530 : vector<1x8x128xf32> to vector<8x128xf32>
    %c0_i32_264 = arith.constant 0 : i32
    %c0_i32_265 = arith.constant 0 : i32
    %c0_i32_266 = arith.constant 0 : i32
    %532 = tpu.memref_slice %arg3[%4, %c0_i32_264, %c0_i32_265, %c0_i32_266] : memref<1x99x8x128xf32, #tpu.memory_space<vmem>> -> memref<1x99x8x128xf32, #tpu.memory_space<vmem>>
    %533 = tpu.memref_squeeze %532 : memref<1x99x8x128xf32, #tpu.memory_space<vmem>> -> memref<99x8x128xf32, #tpu.memory_space<vmem>>
    %c52 = arith.constant 52 : index
    %c0_267 = arith.constant 0 : index
    %c0_268 = arith.constant 0 : index
    %534 = vector.load %533[%c52, %c0_267, %c0_268] : memref<99x8x128xf32, #tpu.memory_space<vmem>>, vector<1x8x128xf32>
    %535 = vector.shape_cast %534 : vector<1x8x128xf32> to vector<8x128xf32>
    %c0_i32_269 = arith.constant 0 : i32
    %c0_i32_270 = arith.constant 0 : i32
    %c0_i32_271 = arith.constant 0 : i32
    %536 = tpu.memref_slice %arg3[%4, %c0_i32_269, %c0_i32_270, %c0_i32_271] : memref<1x99x8x128xf32, #tpu.memory_space<vmem>> -> memref<1x99x8x128xf32, #tpu.memory_space<vmem>>
    %537 = tpu.memref_squeeze %536 : memref<1x99x8x128xf32, #tpu.memory_space<vmem>> -> memref<99x8x128xf32, #tpu.memory_space<vmem>>
    %c53 = arith.constant 53 : index
    %c0_272 = arith.constant 0 : index
    %c0_273 = arith.constant 0 : index
    %538 = vector.load %537[%c53, %c0_272, %c0_273] : memref<99x8x128xf32, #tpu.memory_space<vmem>>, vector<1x8x128xf32>
    %539 = vector.shape_cast %538 : vector<1x8x128xf32> to vector<8x128xf32>
    %540 = arith.mulf %487, %531 : vector<8x128xf32>
    %541 = arith.mulf %492, %535 : vector<8x128xf32>
    %542 = arith.addf %540, %541 : vector<8x128xf32>
    %543 = arith.mulf %497, %539 : vector<8x128xf32>
    %544 = arith.addf %542, %543 : vector<8x128xf32>
    %545 = arith.mulf %502, %531 : vector<8x128xf32>
    %546 = arith.mulf %507, %535 : vector<8x128xf32>
    %547 = arith.addf %545, %546 : vector<8x128xf32>
    %548 = arith.mulf %512, %539 : vector<8x128xf32>
    %549 = arith.addf %547, %548 : vector<8x128xf32>
    %550 = arith.mulf %517, %531 : vector<8x128xf32>
    %551 = arith.mulf %522, %535 : vector<8x128xf32>
    %552 = arith.addf %550, %551 : vector<8x128xf32>
    %553 = arith.mulf %527, %539 : vector<8x128xf32>
    %554 = arith.addf %552, %553 : vector<8x128xf32>
    %555 = arith.addf %358, %544 : vector<8x128xf32>
    %556 = arith.addf %359, %549 : vector<8x128xf32>
    %557 = arith.addf %360, %554 : vector<8x128xf32>
    %c0_i32_274 = arith.constant 0 : i32
    %c0_i32_275 = arith.constant 0 : i32
    %c0_i32_276 = arith.constant 0 : i32
    %558 = tpu.memref_slice %arg3[%4, %c0_i32_274, %c0_i32_275, %c0_i32_276] : memref<1x99x8x128xf32, #tpu.memory_space<vmem>> -> memref<1x99x8x128xf32, #tpu.memory_space<vmem>>
    %559 = tpu.memref_squeeze %558 : memref<1x99x8x128xf32, #tpu.memory_space<vmem>> -> memref<99x8x128xf32, #tpu.memory_space<vmem>>
    %c6_277 = arith.constant 6 : index
    %c0_278 = arith.constant 0 : index
    %c0_279 = arith.constant 0 : index
    %560 = vector.load %559[%c6_277, %c0_278, %c0_279] : memref<99x8x128xf32, #tpu.memory_space<vmem>>, vector<1x8x128xf32>
    %561 = vector.shape_cast %560 : vector<1x8x128xf32> to vector<8x128xf32>
    %c0_i32_280 = arith.constant 0 : i32
    %c0_i32_281 = arith.constant 0 : i32
    %c0_i32_282 = arith.constant 0 : i32
    %562 = tpu.memref_slice %arg3[%4, %c0_i32_280, %c0_i32_281, %c0_i32_282] : memref<1x99x8x128xf32, #tpu.memory_space<vmem>> -> memref<1x99x8x128xf32, #tpu.memory_space<vmem>>
    %563 = tpu.memref_squeeze %562 : memref<1x99x8x128xf32, #tpu.memory_space<vmem>> -> memref<99x8x128xf32, #tpu.memory_space<vmem>>
    %c3_283 = arith.constant 3 : index
    %c0_284 = arith.constant 0 : index
    %c0_285 = arith.constant 0 : index
    %564 = vector.load %563[%c3_283, %c0_284, %c0_285] : memref<99x8x128xf32, #tpu.memory_space<vmem>>, vector<1x8x128xf32>
    %565 = vector.shape_cast %564 : vector<1x8x128xf32> to vector<8x128xf32>
    %566 = arith.subf %561, %565 : vector<8x128xf32>
    %c0_i32_286 = arith.constant 0 : i32
    %c0_i32_287 = arith.constant 0 : i32
    %c0_i32_288 = arith.constant 0 : i32
    %567 = tpu.memref_slice %arg3[%4, %c0_i32_286, %c0_i32_287, %c0_i32_288] : memref<1x99x8x128xf32, #tpu.memory_space<vmem>> -> memref<1x99x8x128xf32, #tpu.memory_space<vmem>>
    %568 = tpu.memref_squeeze %567 : memref<1x99x8x128xf32, #tpu.memory_space<vmem>> -> memref<99x8x128xf32, #tpu.memory_space<vmem>>
    %c7_289 = arith.constant 7 : index
    %c0_290 = arith.constant 0 : index
    %c0_291 = arith.constant 0 : index
    %569 = vector.load %568[%c7_289, %c0_290, %c0_291] : memref<99x8x128xf32, #tpu.memory_space<vmem>>, vector<1x8x128xf32>
    %570 = vector.shape_cast %569 : vector<1x8x128xf32> to vector<8x128xf32>
    %c0_i32_292 = arith.constant 0 : i32
    %c0_i32_293 = arith.constant 0 : i32
    %c0_i32_294 = arith.constant 0 : i32
    %571 = tpu.memref_slice %arg3[%4, %c0_i32_292, %c0_i32_293, %c0_i32_294] : memref<1x99x8x128xf32, #tpu.memory_space<vmem>> -> memref<1x99x8x128xf32, #tpu.memory_space<vmem>>
    %572 = tpu.memref_squeeze %571 : memref<1x99x8x128xf32, #tpu.memory_space<vmem>> -> memref<99x8x128xf32, #tpu.memory_space<vmem>>
    %c4_295 = arith.constant 4 : index
    %c0_296 = arith.constant 0 : index
    %c0_297 = arith.constant 0 : index
    %573 = vector.load %572[%c4_295, %c0_296, %c0_297] : memref<99x8x128xf32, #tpu.memory_space<vmem>>, vector<1x8x128xf32>
    %574 = vector.shape_cast %573 : vector<1x8x128xf32> to vector<8x128xf32>
    %575 = arith.subf %570, %574 : vector<8x128xf32>
    %c0_i32_298 = arith.constant 0 : i32
    %c0_i32_299 = arith.constant 0 : i32
    %c0_i32_300 = arith.constant 0 : i32
    %576 = tpu.memref_slice %arg3[%4, %c0_i32_298, %c0_i32_299, %c0_i32_300] : memref<1x99x8x128xf32, #tpu.memory_space<vmem>> -> memref<1x99x8x128xf32, #tpu.memory_space<vmem>>
    %577 = tpu.memref_squeeze %576 : memref<1x99x8x128xf32, #tpu.memory_space<vmem>> -> memref<99x8x128xf32, #tpu.memory_space<vmem>>
    %c8_301 = arith.constant 8 : index
    %c0_302 = arith.constant 0 : index
    %c0_303 = arith.constant 0 : index
    %578 = vector.load %577[%c8_301, %c0_302, %c0_303] : memref<99x8x128xf32, #tpu.memory_space<vmem>>, vector<1x8x128xf32>
    %579 = vector.shape_cast %578 : vector<1x8x128xf32> to vector<8x128xf32>
    %c0_i32_304 = arith.constant 0 : i32
    %c0_i32_305 = arith.constant 0 : i32
    %c0_i32_306 = arith.constant 0 : i32
    %580 = tpu.memref_slice %arg3[%4, %c0_i32_304, %c0_i32_305, %c0_i32_306] : memref<1x99x8x128xf32, #tpu.memory_space<vmem>> -> memref<1x99x8x128xf32, #tpu.memory_space<vmem>>
    %581 = tpu.memref_squeeze %580 : memref<1x99x8x128xf32, #tpu.memory_space<vmem>> -> memref<99x8x128xf32, #tpu.memory_space<vmem>>
    %c5_307 = arith.constant 5 : index
    %c0_308 = arith.constant 0 : index
    %c0_309 = arith.constant 0 : index
    %582 = vector.load %581[%c5_307, %c0_308, %c0_309] : memref<99x8x128xf32, #tpu.memory_space<vmem>>, vector<1x8x128xf32>
    %583 = vector.shape_cast %582 : vector<1x8x128xf32> to vector<8x128xf32>
    %584 = arith.subf %579, %583 : vector<8x128xf32>
    %585 = arith.subf %555, %358 : vector<8x128xf32>
    %586 = arith.subf %556, %359 : vector<8x128xf32>
    %587 = arith.subf %557, %360 : vector<8x128xf32>
    %588 = arith.mulf %566, %585 : vector<8x128xf32>
    %589 = arith.mulf %575, %586 : vector<8x128xf32>
    %590 = arith.addf %588, %589 : vector<8x128xf32>
    %591 = arith.mulf %584, %587 : vector<8x128xf32>
    %592 = arith.addf %590, %591 : vector<8x128xf32>
    %593 = arith.mulf %566, %566 : vector<8x128xf32>
    %594 = arith.mulf %575, %575 : vector<8x128xf32>
    %595 = arith.addf %593, %594 : vector<8x128xf32>
    %596 = arith.mulf %584, %584 : vector<8x128xf32>
    %597 = arith.addf %595, %596 : vector<8x128xf32>
    %598 = arith.mulf %585, %585 : vector<8x128xf32>
    %599 = arith.mulf %586, %586 : vector<8x128xf32>
    %600 = arith.addf %598, %599 : vector<8x128xf32>
    %601 = arith.mulf %587, %587 : vector<8x128xf32>
    %602 = arith.addf %600, %601 : vector<8x128xf32>
    %603 = arith.mulf %597, %602 : vector<8x128xf32>
    %cst_310 = arith.constant 1.000000e-16 : f32
    %604 = vector.broadcast %cst_310 : f32 to vector<8x128xf32>
    %605 = arith.maximumf %603, %604 : vector<8x128xf32>
    %606 = math.rsqrt %605 : vector<8x128xf32>
    %607 = arith.mulf %592, %606 : vector<8x128xf32>
    %c2_311 = arith.constant 2 : index
    %c0_312 = arith.constant 0 : index
    %c0_313 = arith.constant 0 : index
    %608 = vector.load %arg5[%c2_311, %c0_312, %c0_313] : memref<15x8x128xf32, #tpu.memory_space<vmem>>, vector<1x8x128xf32>
    %609 = vector.shape_cast %608 : vector<1x8x128xf32> to vector<8x128xf32>
    %610 = arith.addf %609, %607 : vector<8x128xf32>
    %c2_314 = arith.constant 2 : index
    %c0_315 = arith.constant 0 : index
    %c0_316 = arith.constant 0 : index
    %611 = vector.load %arg5[%c2_314, %c0_315, %c0_316] : memref<15x8x128xf32, #tpu.memory_space<vmem>>, vector<1x8x128xf32>
    %612 = vector.shape_cast %611 : vector<1x8x128xf32> to vector<8x128xf32>
    %613 = vector.shape_cast %610 : vector<8x128xf32> to vector<1x8x128xf32>
    tpu.vector_store %arg5[%c2_314, %c0_315, %c0_316], %613 {strides = array<i32>} : memref<15x8x128xf32, #tpu.memory_space<vmem>>, vector<1x8x128xf32>,
    %c0_i32_317 = arith.constant 0 : i32
    %c0_i32_318 = arith.constant 0 : i32
    %c0_i32_319 = arith.constant 0 : i32
    %614 = tpu.memref_slice %arg2[%4, %c0_i32_317, %c0_i32_318, %c0_i32_319] : memref<1x90x8x128xf32, #tpu.memory_space<vmem>> -> memref<1x90x8x128xf32, #tpu.memory_space<vmem>>
    %615 = tpu.memref_squeeze %614 : memref<1x90x8x128xf32, #tpu.memory_space<vmem>> -> memref<90x8x128xf32, #tpu.memory_space<vmem>>
    %c18 = arith.constant 18 : index
    %c0_320 = arith.constant 0 : index
    %c0_321 = arith.constant 0 : index
    %616 = vector.load %615[%c18, %c0_320, %c0_321] : memref<90x8x128xf32, #tpu.memory_space<vmem>>, vector<1x8x128xf32>
    %617 = vector.shape_cast %616 : vector<1x8x128xf32> to vector<8x128xf32>
    %c0_i32_322 = arith.constant 0 : i32
    %c0_i32_323 = arith.constant 0 : i32
    %c0_i32_324 = arith.constant 0 : i32
    %618 = tpu.memref_slice %arg2[%4, %c0_i32_322, %c0_i32_323, %c0_i32_324] : memref<1x90x8x128xf32, #tpu.memory_space<vmem>> -> memref<1x90x8x128xf32, #tpu.memory_space<vmem>>
    %619 = tpu.memref_squeeze %618 : memref<1x90x8x128xf32, #tpu.memory_space<vmem>> -> memref<90x8x128xf32, #tpu.memory_space<vmem>>
    %c19 = arith.constant 19 : index
    %c0_325 = arith.constant 0 : index
    %c0_326 = arith.constant 0 : index
    %620 = vector.load %619[%c19, %c0_325, %c0_326] : memref<90x8x128xf32, #tpu.memory_space<vmem>>, vector<1x8x128xf32>
    %621 = vector.shape_cast %620 : vector<1x8x128xf32> to vector<8x128xf32>
    %c0_i32_327 = arith.constant 0 : i32
    %c0_i32_328 = arith.constant 0 : i32
    %c0_i32_329 = arith.constant 0 : i32
    %622 = tpu.memref_slice %arg2[%4, %c0_i32_327, %c0_i32_328, %c0_i32_329] : memref<1x90x8x128xf32, #tpu.memory_space<vmem>> -> memref<1x90x8x128xf32, #tpu.memory_space<vmem>>
    %623 = tpu.memref_squeeze %622 : memref<1x90x8x128xf32, #tpu.memory_space<vmem>> -> memref<90x8x128xf32, #tpu.memory_space<vmem>>
    %c20 = arith.constant 20 : index
    %c0_330 = arith.constant 0 : index
    %c0_331 = arith.constant 0 : index
    %624 = vector.load %623[%c20, %c0_330, %c0_331] : memref<90x8x128xf32, #tpu.memory_space<vmem>>, vector<1x8x128xf32>
    %625 = vector.shape_cast %624 : vector<1x8x128xf32> to vector<8x128xf32>
    %c0_i32_332 = arith.constant 0 : i32
    %c0_i32_333 = arith.constant 0 : i32
    %c0_i32_334 = arith.constant 0 : i32
    %626 = tpu.memref_slice %arg2[%4, %c0_i32_332, %c0_i32_333, %c0_i32_334] : memref<1x90x8x128xf32, #tpu.memory_space<vmem>> -> memref<1x90x8x128xf32, #tpu.memory_space<vmem>>
    %627 = tpu.memref_squeeze %626 : memref<1x90x8x128xf32, #tpu.memory_space<vmem>> -> memref<90x8x128xf32, #tpu.memory_space<vmem>>
    %c21 = arith.constant 21 : index
    %c0_335 = arith.constant 0 : index
    %c0_336 = arith.constant 0 : index
    %628 = vector.load %627[%c21, %c0_335, %c0_336] : memref<90x8x128xf32, #tpu.memory_space<vmem>>, vector<1x8x128xf32>
    %629 = vector.shape_cast %628 : vector<1x8x128xf32> to vector<8x128xf32>
    %c0_i32_337 = arith.constant 0 : i32
    %c0_i32_338 = arith.constant 0 : i32
    %c0_i32_339 = arith.constant 0 : i32
    %630 = tpu.memref_slice %arg2[%4, %c0_i32_337, %c0_i32_338, %c0_i32_339] : memref<1x90x8x128xf32, #tpu.memory_space<vmem>> -> memref<1x90x8x128xf32, #tpu.memory_space<vmem>>
    %631 = tpu.memref_squeeze %630 : memref<1x90x8x128xf32, #tpu.memory_space<vmem>> -> memref<90x8x128xf32, #tpu.memory_space<vmem>>
    %c22 = arith.constant 22 : index
    %c0_340 = arith.constant 0 : index
    %c0_341 = arith.constant 0 : index
    %632 = vector.load %631[%c22, %c0_340, %c0_341] : memref<90x8x128xf32, #tpu.memory_space<vmem>>, vector<1x8x128xf32>
    %633 = vector.shape_cast %632 : vector<1x8x128xf32> to vector<8x128xf32>
    %c0_i32_342 = arith.constant 0 : i32
    %c0_i32_343 = arith.constant 0 : i32
    %c0_i32_344 = arith.constant 0 : i32
    %634 = tpu.memref_slice %arg2[%4, %c0_i32_342, %c0_i32_343, %c0_i32_344] : memref<1x90x8x128xf32, #tpu.memory_space<vmem>> -> memref<1x90x8x128xf32, #tpu.memory_space<vmem>>
    %635 = tpu.memref_squeeze %634 : memref<1x90x8x128xf32, #tpu.memory_space<vmem>> -> memref<90x8x128xf32, #tpu.memory_space<vmem>>
    %c23 = arith.constant 23 : index
    %c0_345 = arith.constant 0 : index
    %c0_346 = arith.constant 0 : index
    %636 = vector.load %635[%c23, %c0_345, %c0_346] : memref<90x8x128xf32, #tpu.memory_space<vmem>>, vector<1x8x128xf32>
    %637 = vector.shape_cast %636 : vector<1x8x128xf32> to vector<8x128xf32>
    %638 = arith.mulf %617, %617 : vector<8x128xf32>
    %639 = arith.mulf %621, %621 : vector<8x128xf32>
    %640 = arith.addf %638, %639 : vector<8x128xf32>
    %641 = arith.mulf %625, %625 : vector<8x128xf32>
    %642 = arith.addf %640, %641 : vector<8x128xf32>
    %cst_347 = arith.constant 1.000000e-24 : f32
    %643 = vector.broadcast %cst_347 : f32 to vector<8x128xf32>
    %644 = arith.maximumf %642, %643 : vector<8x128xf32>
    %645 = math.rsqrt %644 : vector<8x128xf32>
    %646 = arith.mulf %617, %645 : vector<8x128xf32>
    %647 = arith.mulf %621, %645 : vector<8x128xf32>
    %648 = arith.mulf %625, %645 : vector<8x128xf32>
    %649 = arith.mulf %646, %629 : vector<8x128xf32>
    %650 = arith.mulf %647, %633 : vector<8x128xf32>
    %651 = arith.addf %649, %650 : vector<8x128xf32>
    %652 = arith.mulf %648, %637 : vector<8x128xf32>
    %653 = arith.addf %651, %652 : vector<8x128xf32>
    %654 = arith.mulf %653, %646 : vector<8x128xf32>
    %655 = arith.subf %629, %654 : vector<8x128xf32>
    %656 = arith.mulf %653, %647 : vector<8x128xf32>
    %657 = arith.subf %633, %656 : vector<8x128xf32>
    %658 = arith.mulf %653, %648 : vector<8x128xf32>
    %659 = arith.subf %637, %658 : vector<8x128xf32>
    %660 = arith.mulf %655, %655 : vector<8x128xf32>
    %661 = arith.mulf %657, %657 : vector<8x128xf32>
    %662 = arith.addf %660, %661 : vector<8x128xf32>
    %663 = arith.mulf %659, %659 : vector<8x128xf32>
    %664 = arith.addf %662, %663 : vector<8x128xf32>
    %cst_348 = arith.constant 1.000000e-24 : f32
    %665 = vector.broadcast %cst_348 : f32 to vector<8x128xf32>
    %666 = arith.maximumf %664, %665 : vector<8x128xf32>
    %667 = math.rsqrt %666 : vector<8x128xf32>
    %668 = arith.mulf %655, %667 : vector<8x128xf32>
    %669 = arith.mulf %657, %667 : vector<8x128xf32>
    %670 = arith.mulf %659, %667 : vector<8x128xf32>
    %671 = arith.mulf %647, %670 : vector<8x128xf32>
    %672 = arith.mulf %648, %669 : vector<8x128xf32>
    %673 = arith.subf %671, %672 : vector<8x128xf32>
    %674 = arith.mulf %648, %668 : vector<8x128xf32>
    %675 = arith.mulf %646, %670 : vector<8x128xf32>
    %676 = arith.subf %674, %675 : vector<8x128xf32>
    %677 = arith.mulf %646, %669 : vector<8x128xf32>
    %678 = arith.mulf %647, %668 : vector<8x128xf32>
    %679 = arith.subf %677, %678 : vector<8x128xf32>
    %680 = arith.mulf %487, %646 : vector<8x128xf32>
    %681 = arith.mulf %492, %647 : vector<8x128xf32>
    %682 = arith.addf %680, %681 : vector<8x128xf32>
    %683 = arith.mulf %497, %648 : vector<8x128xf32>
    %684 = arith.addf %682, %683 : vector<8x128xf32>
    %685 = arith.mulf %487, %668 : vector<8x128xf32>
    %686 = arith.mulf %492, %669 : vector<8x128xf32>
    %687 = arith.addf %685, %686 : vector<8x128xf32>
    %688 = arith.mulf %497, %670 : vector<8x128xf32>
    %689 = arith.addf %687, %688 : vector<8x128xf32>
    %690 = arith.mulf %487, %673 : vector<8x128xf32>
    %691 = arith.mulf %492, %676 : vector<8x128xf32>
    %692 = arith.addf %690, %691 : vector<8x128xf32>
    %693 = arith.mulf %497, %679 : vector<8x128xf32>
    %694 = arith.addf %692, %693 : vector<8x128xf32>
    %695 = arith.mulf %502, %646 : vector<8x128xf32>
    %696 = arith.mulf %507, %647 : vector<8x128xf32>
    %697 = arith.addf %695, %696 : vector<8x128xf32>
    %698 = arith.mulf %512, %648 : vector<8x128xf32>
    %699 = arith.addf %697, %698 : vector<8x128xf32>
    %700 = arith.mulf %502, %668 : vector<8x128xf32>
    %701 = arith.mulf %507, %669 : vector<8x128xf32>
    %702 = arith.addf %700, %701 : vector<8x128xf32>
    %703 = arith.mulf %512, %670 : vector<8x128xf32>
    %704 = arith.addf %702, %703 : vector<8x128xf32>
    %705 = arith.mulf %502, %673 : vector<8x128xf32>
    %706 = arith.mulf %507, %676 : vector<8x128xf32>
    %707 = arith.addf %705, %706 : vector<8x128xf32>
    %708 = arith.mulf %512, %679 : vector<8x128xf32>
    %709 = arith.addf %707, %708 : vector<8x128xf32>
    %710 = arith.mulf %517, %646 : vector<8x128xf32>
    %711 = arith.mulf %522, %647 : vector<8x128xf32>
    %712 = arith.addf %710, %711 : vector<8x128xf32>
    %713 = arith.mulf %527, %648 : vector<8x128xf32>
    %714 = arith.addf %712, %713 : vector<8x128xf32>
    %715 = arith.mulf %517, %668 : vector<8x128xf32>
    %716 = arith.mulf %522, %669 : vector<8x128xf32>
    %717 = arith.addf %715, %716 : vector<8x128xf32>
    %718 = arith.mulf %527, %670 : vector<8x128xf32>
    %719 = arith.addf %717, %718 : vector<8x128xf32>
    %720 = arith.mulf %517, %673 : vector<8x128xf32>
    %721 = arith.mulf %522, %676 : vector<8x128xf32>
    %722 = arith.addf %720, %721 : vector<8x128xf32>
    %723 = arith.mulf %527, %679 : vector<8x128xf32>
    %724 = arith.addf %722, %723 : vector<8x128xf32>
    %c0_i32_349 = arith.constant 0 : i32
    %c0_i32_350 = arith.constant 0 : i32
    %c0_i32_351 = arith.constant 0 : i32
    %725 = tpu.memref_slice %arg3[%4, %c0_i32_349, %c0_i32_350, %c0_i32_351] : memref<1x99x8x128xf32, #tpu.memory_space<vmem>> -> memref<1x99x8x128xf32, #tpu.memory_space<vmem>>
    %726 = tpu.memref_squeeze %725 : memref<1x99x8x128xf32, #tpu.memory_space<vmem>> -> memref<99x8x128xf32, #tpu.memory_space<vmem>>
    %c54 = arith.constant 54 : index
    %c0_352 = arith.constant 0 : index
    %c0_353 = arith.constant 0 : index
    %727 = vector.load %726[%c54, %c0_352, %c0_353] : memref<99x8x128xf32, #tpu.memory_space<vmem>>, vector<1x8x128xf32>
    %728 = vector.shape_cast %727 : vector<1x8x128xf32> to vector<8x128xf32>
    %c0_i32_354 = arith.constant 0 : i32
    %c0_i32_355 = arith.constant 0 : i32
    %c0_i32_356 = arith.constant 0 : i32
    %729 = tpu.memref_slice %arg3[%4, %c0_i32_354, %c0_i32_355, %c0_i32_356] : memref<1x99x8x128xf32, #tpu.memory_space<vmem>> -> memref<1x99x8x128xf32, #tpu.memory_space<vmem>>
    %730 = tpu.memref_squeeze %729 : memref<1x99x8x128xf32, #tpu.memory_space<vmem>> -> memref<99x8x128xf32, #tpu.memory_space<vmem>>
    %c55 = arith.constant 55 : index
    %c0_357 = arith.constant 0 : index
    %c0_358 = arith.constant 0 : index
    %731 = vector.load %730[%c55, %c0_357, %c0_358] : memref<99x8x128xf32, #tpu.memory_space<vmem>>, vector<1x8x128xf32>
    %732 = vector.shape_cast %731 : vector<1x8x128xf32> to vector<8x128xf32>
    %c0_i32_359 = arith.constant 0 : i32
    %c0_i32_360 = arith.constant 0 : i32
    %c0_i32_361 = arith.constant 0 : i32
    %733 = tpu.memref_slice %arg3[%4, %c0_i32_359, %c0_i32_360, %c0_i32_361] : memref<1x99x8x128xf32, #tpu.memory_space<vmem>> -> memref<1x99x8x128xf32, #tpu.memory_space<vmem>>
    %734 = tpu.memref_squeeze %733 : memref<1x99x8x128xf32, #tpu.memory_space<vmem>> -> memref<99x8x128xf32, #tpu.memory_space<vmem>>
    %c56 = arith.constant 56 : index
    %c0_362 = arith.constant 0 : index
    %c0_363 = arith.constant 0 : index
    %735 = vector.load %734[%c56, %c0_362, %c0_363] : memref<99x8x128xf32, #tpu.memory_space<vmem>>, vector<1x8x128xf32>
    %736 = vector.shape_cast %735 : vector<1x8x128xf32> to vector<8x128xf32>
    %737 = arith.mulf %684, %728 : vector<8x128xf32>
    %738 = arith.mulf %689, %732 : vector<8x128xf32>
    %739 = arith.addf %737, %738 : vector<8x128xf32>
    %740 = arith.mulf %694, %736 : vector<8x128xf32>
    %741 = arith.addf %739, %740 : vector<8x128xf32>
    %742 = arith.mulf %699, %728 : vector<8x128xf32>
    %743 = arith.mulf %704, %732 : vector<8x128xf32>
    %744 = arith.addf %742, %743 : vector<8x128xf32>
    %745 = arith.mulf %709, %736 : vector<8x128xf32>
    %746 = arith.addf %744, %745 : vector<8x128xf32>
    %747 = arith.mulf %714, %728 : vector<8x128xf32>
    %748 = arith.mulf %719, %732 : vector<8x128xf32>
    %749 = arith.addf %747, %748 : vector<8x128xf32>
    %750 = arith.mulf %724, %736 : vector<8x128xf32>
    %751 = arith.addf %749, %750 : vector<8x128xf32>
    %752 = arith.addf %555, %741 : vector<8x128xf32>
    %753 = arith.addf %556, %746 : vector<8x128xf32>
    %754 = arith.addf %557, %751 : vector<8x128xf32>
    %c0_i32_364 = arith.constant 0 : i32
    %c0_i32_365 = arith.constant 0 : i32
    %c0_i32_366 = arith.constant 0 : i32
    %755 = tpu.memref_slice %arg3[%4, %c0_i32_364, %c0_i32_365, %c0_i32_366] : memref<1x99x8x128xf32, #tpu.memory_space<vmem>> -> memref<1x99x8x128xf32, #tpu.memory_space<vmem>>
    %756 = tpu.memref_squeeze %755 : memref<1x99x8x128xf32, #tpu.memory_space<vmem>> -> memref<99x8x128xf32, #tpu.memory_space<vmem>>
    %c9_367 = arith.constant 9 : index
    %c0_368 = arith.constant 0 : index
    %c0_369 = arith.constant 0 : index
    %757 = vector.load %756[%c9_367, %c0_368, %c0_369] : memref<99x8x128xf32, #tpu.memory_space<vmem>>, vector<1x8x128xf32>
    %758 = vector.shape_cast %757 : vector<1x8x128xf32> to vector<8x128xf32>
    %c0_i32_370 = arith.constant 0 : i32
    %c0_i32_371 = arith.constant 0 : i32
    %c0_i32_372 = arith.constant 0 : i32
    %759 = tpu.memref_slice %arg3[%4, %c0_i32_370, %c0_i32_371, %c0_i32_372] : memref<1x99x8x128xf32, #tpu.memory_space<vmem>> -> memref<1x99x8x128xf32, #tpu.memory_space<vmem>>
    %760 = tpu.memref_squeeze %759 : memref<1x99x8x128xf32, #tpu.memory_space<vmem>> -> memref<99x8x128xf32, #tpu.memory_space<vmem>>
    %c6_373 = arith.constant 6 : index
    %c0_374 = arith.constant 0 : index
    %c0_375 = arith.constant 0 : index
    %761 = vector.load %760[%c6_373, %c0_374, %c0_375] : memref<99x8x128xf32, #tpu.memory_space<vmem>>, vector<1x8x128xf32>
    %762 = vector.shape_cast %761 : vector<1x8x128xf32> to vector<8x128xf32>
    %763 = arith.subf %758, %762 : vector<8x128xf32>
    %c0_i32_376 = arith.constant 0 : i32
    %c0_i32_377 = arith.constant 0 : i32
    %c0_i32_378 = arith.constant 0 : i32
    %764 = tpu.memref_slice %arg3[%4, %c0_i32_376, %c0_i32_377, %c0_i32_378] : memref<1x99x8x128xf32, #tpu.memory_space<vmem>> -> memref<1x99x8x128xf32, #tpu.memory_space<vmem>>
    %765 = tpu.memref_squeeze %764 : memref<1x99x8x128xf32, #tpu.memory_space<vmem>> -> memref<99x8x128xf32, #tpu.memory_space<vmem>>
    %c10_379 = arith.constant 10 : index
    %c0_380 = arith.constant 0 : index
    %c0_381 = arith.constant 0 : index
    %766 = vector.load %765[%c10_379, %c0_380, %c0_381] : memref<99x8x128xf32, #tpu.memory_space<vmem>>, vector<1x8x128xf32>
    %767 = vector.shape_cast %766 : vector<1x8x128xf32> to vector<8x128xf32>
    %c0_i32_382 = arith.constant 0 : i32
    %c0_i32_383 = arith.constant 0 : i32
    %c0_i32_384 = arith.constant 0 : i32
    %768 = tpu.memref_slice %arg3[%4, %c0_i32_382, %c0_i32_383, %c0_i32_384] : memref<1x99x8x128xf32, #tpu.memory_space<vmem>> -> memref<1x99x8x128xf32, #tpu.memory_space<vmem>>
    %769 = tpu.memref_squeeze %768 : memref<1x99x8x128xf32, #tpu.memory_space<vmem>> -> memref<99x8x128xf32, #tpu.memory_space<vmem>>
    %c7_385 = arith.constant 7 : index
    %c0_386 = arith.constant 0 : index
    %c0_387 = arith.constant 0 : index
    %770 = vector.load %769[%c7_385, %c0_386, %c0_387] : memref<99x8x128xf32, #tpu.memory_space<vmem>>, vector<1x8x128xf32>
    %771 = vector.shape_cast %770 : vector<1x8x128xf32> to vector<8x128xf32>
    %772 = arith.subf %767, %771 : vector<8x128xf32>
    %c0_i32_388 = arith.constant 0 : i32
    %c0_i32_389 = arith.constant 0 : i32
    %c0_i32_390 = arith.constant 0 : i32
    %773 = tpu.memref_slice %arg3[%4, %c0_i32_388, %c0_i32_389, %c0_i32_390] : memref<1x99x8x128xf32, #tpu.memory_space<vmem>> -> memref<1x99x8x128xf32, #tpu.memory_space<vmem>>
    %774 = tpu.memref_squeeze %773 : memref<1x99x8x128xf32, #tpu.memory_space<vmem>> -> memref<99x8x128xf32, #tpu.memory_space<vmem>>
    %c11_391 = arith.constant 11 : index
    %c0_392 = arith.constant 0 : index
    %c0_393 = arith.constant 0 : index
    %775 = vector.load %774[%c11_391, %c0_392, %c0_393] : memref<99x8x128xf32, #tpu.memory_space<vmem>>, vector<1x8x128xf32>
    %776 = vector.shape_cast %775 : vector<1x8x128xf32> to vector<8x128xf32>
    %c0_i32_394 = arith.constant 0 : i32
    %c0_i32_395 = arith.constant 0 : i32
    %c0_i32_396 = arith.constant 0 : i32
    %777 = tpu.memref_slice %arg3[%4, %c0_i32_394, %c0_i32_395, %c0_i32_396] : memref<1x99x8x128xf32, #tpu.memory_space<vmem>> -> memref<1x99x8x128xf32, #tpu.memory_space<vmem>>
    %778 = tpu.memref_squeeze %777 : memref<1x99x8x128xf32, #tpu.memory_space<vmem>> -> memref<99x8x128xf32, #tpu.memory_space<vmem>>
    %c8_397 = arith.constant 8 : index
    %c0_398 = arith.constant 0 : index
    %c0_399 = arith.constant 0 : index
    %779 = vector.load %778[%c8_397, %c0_398, %c0_399] : memref<99x8x128xf32, #tpu.memory_space<vmem>>, vector<1x8x128xf32>
    %780 = vector.shape_cast %779 : vector<1x8x128xf32> to vector<8x128xf32>
    %781 = arith.subf %776, %780 : vector<8x128xf32>
    %782 = arith.subf %752, %555 : vector<8x128xf32>
    %783 = arith.subf %753, %556 : vector<8x128xf32>
    %784 = arith.subf %754, %557 : vector<8x128xf32>
    %785 = arith.mulf %763, %782 : vector<8x128xf32>
    %786 = arith.mulf %772, %783 : vector<8x128xf32>
    %787 = arith.addf %785, %786 : vector<8x128xf32>
    %788 = arith.mulf %781, %784 : vector<8x128xf32>
    %789 = arith.addf %787, %788 : vector<8x128xf32>
    %790 = arith.mulf %763, %763 : vector<8x128xf32>
    %791 = arith.mulf %772, %772 : vector<8x128xf32>
    %792 = arith.addf %790, %791 : vector<8x128xf32>
    %793 = arith.mulf %781, %781 : vector<8x128xf32>
    %794 = arith.addf %792, %793 : vector<8x128xf32>
    %795 = arith.mulf %782, %782 : vector<8x128xf32>
    %796 = arith.mulf %783, %783 : vector<8x128xf32>
    %797 = arith.addf %795, %796 : vector<8x128xf32>
    %798 = arith.mulf %784, %784 : vector<8x128xf32>
    %799 = arith.addf %797, %798 : vector<8x128xf32>
    %800 = arith.mulf %794, %799 : vector<8x128xf32>
    %cst_400 = arith.constant 1.000000e-16 : f32
    %801 = vector.broadcast %cst_400 : f32 to vector<8x128xf32>
    %802 = arith.maximumf %800, %801 : vector<8x128xf32>
    %803 = math.rsqrt %802 : vector<8x128xf32>
    %804 = arith.mulf %789, %803 : vector<8x128xf32>
    %c3_401 = arith.constant 3 : index
    %c0_402 = arith.constant 0 : index
    %c0_403 = arith.constant 0 : index
    %805 = vector.load %arg5[%c3_401, %c0_402, %c0_403] : memref<15x8x128xf32, #tpu.memory_space<vmem>>, vector<1x8x128xf32>
    %806 = vector.shape_cast %805 : vector<1x8x128xf32> to vector<8x128xf32>
    %807 = arith.addf %806, %804 : vector<8x128xf32>
    %c3_404 = arith.constant 3 : index
    %c0_405 = arith.constant 0 : index
    %c0_406 = arith.constant 0 : index
    %808 = vector.load %arg5[%c3_404, %c0_405, %c0_406] : memref<15x8x128xf32, #tpu.memory_space<vmem>>, vector<1x8x128xf32>
    %809 = vector.shape_cast %808 : vector<1x8x128xf32> to vector<8x128xf32>
    %810 = vector.shape_cast %807 : vector<8x128xf32> to vector<1x8x128xf32>
    tpu.vector_store %arg5[%c3_404, %c0_405, %c0_406], %810 {strides = array<i32>} : memref<15x8x128xf32, #tpu.memory_space<vmem>>, vector<1x8x128xf32>,
    %c0_i32_407 = arith.constant 0 : i32
    %c0_i32_408 = arith.constant 0 : i32
    %c0_i32_409 = arith.constant 0 : i32
    %811 = tpu.memref_slice %arg2[%4, %c0_i32_407, %c0_i32_408, %c0_i32_409] : memref<1x90x8x128xf32, #tpu.memory_space<vmem>> -> memref<1x90x8x128xf32, #tpu.memory_space<vmem>>
    %812 = tpu.memref_squeeze %811 : memref<1x90x8x128xf32, #tpu.memory_space<vmem>> -> memref<90x8x128xf32, #tpu.memory_space<vmem>>
    %c24 = arith.constant 24 : index
    %c0_410 = arith.constant 0 : index
    %c0_411 = arith.constant 0 : index
    %813 = vector.load %812[%c24, %c0_410, %c0_411] : memref<90x8x128xf32, #tpu.memory_space<vmem>>, vector<1x8x128xf32>
    %814 = vector.shape_cast %813 : vector<1x8x128xf32> to vector<8x128xf32>
    %c0_i32_412 = arith.constant 0 : i32
    %c0_i32_413 = arith.constant 0 : i32
    %c0_i32_414 = arith.constant 0 : i32
    %815 = tpu.memref_slice %arg2[%4, %c0_i32_412, %c0_i32_413, %c0_i32_414] : memref<1x90x8x128xf32, #tpu.memory_space<vmem>> -> memref<1x90x8x128xf32, #tpu.memory_space<vmem>>
    %816 = tpu.memref_squeeze %815 : memref<1x90x8x128xf32, #tpu.memory_space<vmem>> -> memref<90x8x128xf32, #tpu.memory_space<vmem>>
    %c25 = arith.constant 25 : index
    %c0_415 = arith.constant 0 : index
    %c0_416 = arith.constant 0 : index
    %817 = vector.load %816[%c25, %c0_415, %c0_416] : memref<90x8x128xf32, #tpu.memory_space<vmem>>, vector<1x8x128xf32>
    %818 = vector.shape_cast %817 : vector<1x8x128xf32> to vector<8x128xf32>
    %c0_i32_417 = arith.constant 0 : i32
    %c0_i32_418 = arith.constant 0 : i32
    %c0_i32_419 = arith.constant 0 : i32
    %819 = tpu.memref_slice %arg2[%4, %c0_i32_417, %c0_i32_418, %c0_i32_419] : memref<1x90x8x128xf32, #tpu.memory_space<vmem>> -> memref<1x90x8x128xf32, #tpu.memory_space<vmem>>
    %820 = tpu.memref_squeeze %819 : memref<1x90x8x128xf32, #tpu.memory_space<vmem>> -> memref<90x8x128xf32, #tpu.memory_space<vmem>>
    %c26 = arith.constant 26 : index
    %c0_420 = arith.constant 0 : index
    %c0_421 = arith.constant 0 : index
    %821 = vector.load %820[%c26, %c0_420, %c0_421] : memref<90x8x128xf32, #tpu.memory_space<vmem>>, vector<1x8x128xf32>
    %822 = vector.shape_cast %821 : vector<1x8x128xf32> to vector<8x128xf32>
    %c0_i32_422 = arith.constant 0 : i32
    %c0_i32_423 = arith.constant 0 : i32
    %c0_i32_424 = arith.constant 0 : i32
    %823 = tpu.memref_slice %arg2[%4, %c0_i32_422, %c0_i32_423, %c0_i32_424] : memref<1x90x8x128xf32, #tpu.memory_space<vmem>> -> memref<1x90x8x128xf32, #tpu.memory_space<vmem>>
    %824 = tpu.memref_squeeze %823 : memref<1x90x8x128xf32, #tpu.memory_space<vmem>> -> memref<90x8x128xf32, #tpu.memory_space<vmem>>
    %c27 = arith.constant 27 : index
    %c0_425 = arith.constant 0 : index
    %c0_426 = arith.constant 0 : index
    %825 = vector.load %824[%c27, %c0_425, %c0_426] : memref<90x8x128xf32, #tpu.memory_space<vmem>>, vector<1x8x128xf32>
    %826 = vector.shape_cast %825 : vector<1x8x128xf32> to vector<8x128xf32>
    %c0_i32_427 = arith.constant 0 : i32
    %c0_i32_428 = arith.constant 0 : i32
    %c0_i32_429 = arith.constant 0 : i32
    %827 = tpu.memref_slice %arg2[%4, %c0_i32_427, %c0_i32_428, %c0_i32_429] : memref<1x90x8x128xf32, #tpu.memory_space<vmem>> -> memref<1x90x8x128xf32, #tpu.memory_space<vmem>>
    %828 = tpu.memref_squeeze %827 : memref<1x90x8x128xf32, #tpu.memory_space<vmem>> -> memref<90x8x128xf32, #tpu.memory_space<vmem>>
    %c28 = arith.constant 28 : index
    %c0_430 = arith.constant 0 : index
    %c0_431 = arith.constant 0 : index
    %829 = vector.load %828[%c28, %c0_430, %c0_431] : memref<90x8x128xf32, #tpu.memory_space<vmem>>, vector<1x8x128xf32>
    %830 = vector.shape_cast %829 : vector<1x8x128xf32> to vector<8x128xf32>
    %c0_i32_432 = arith.constant 0 : i32
    %c0_i32_433 = arith.constant 0 : i32
    %c0_i32_434 = arith.constant 0 : i32
    %831 = tpu.memref_slice %arg2[%4, %c0_i32_432, %c0_i32_433, %c0_i32_434] : memref<1x90x8x128xf32, #tpu.memory_space<vmem>> -> memref<1x90x8x128xf32, #tpu.memory_space<vmem>>
    %832 = tpu.memref_squeeze %831 : memref<1x90x8x128xf32, #tpu.memory_space<vmem>> -> memref<90x8x128xf32, #tpu.memory_space<vmem>>
    %c29 = arith.constant 29 : index
    %c0_435 = arith.constant 0 : index
    %c0_436 = arith.constant 0 : index
    %833 = vector.load %832[%c29, %c0_435, %c0_436] : memref<90x8x128xf32, #tpu.memory_space<vmem>>, vector<1x8x128xf32>
    %834 = vector.shape_cast %833 : vector<1x8x128xf32> to vector<8x128xf32>
    %835 = arith.mulf %814, %814 : vector<8x128xf32>
    %836 = arith.mulf %818, %818 : vector<8x128xf32>
    %837 = arith.addf %835, %836 : vector<8x128xf32>
    %838 = arith.mulf %822, %822 : vector<8x128xf32>
    %839 = arith.addf %837, %838 : vector<8x128xf32>
    %cst_437 = arith.constant 1.000000e-24 : f32
    %840 = vector.broadcast %cst_437 : f32 to vector<8x128xf32>
    %841 = arith.maximumf %839, %840 : vector<8x128xf32>
    %842 = math.rsqrt %841 : vector<8x128xf32>
    %843 = arith.mulf %814, %842 : vector<8x128xf32>
    %844 = arith.mulf %818, %842 : vector<8x128xf32>
    %845 = arith.mulf %822, %842 : vector<8x128xf32>
    %846 = arith.mulf %843, %826 : vector<8x128xf32>
    %847 = arith.mulf %844, %830 : vector<8x128xf32>
    %848 = arith.addf %846, %847 : vector<8x128xf32>
    %849 = arith.mulf %845, %834 : vector<8x128xf32>
    %850 = arith.addf %848, %849 : vector<8x128xf32>
    %851 = arith.mulf %850, %843 : vector<8x128xf32>
    %852 = arith.subf %826, %851 : vector<8x128xf32>
    %853 = arith.mulf %850, %844 : vector<8x128xf32>
    %854 = arith.subf %830, %853 : vector<8x128xf32>
    %855 = arith.mulf %850, %845 : vector<8x128xf32>
    %856 = arith.subf %834, %855 : vector<8x128xf32>
    %857 = arith.mulf %852, %852 : vector<8x128xf32>
    %858 = arith.mulf %854, %854 : vector<8x128xf32>
    %859 = arith.addf %857, %858 : vector<8x128xf32>
    %860 = arith.mulf %856, %856 : vector<8x128xf32>
    %861 = arith.addf %859, %860 : vector<8x128xf32>
    %cst_438 = arith.constant 1.000000e-24 : f32
    %862 = vector.broadcast %cst_438 : f32 to vector<8x128xf32>
    %863 = arith.maximumf %861, %862 : vector<8x128xf32>
    %864 = math.rsqrt %863 : vector<8x128xf32>
    %865 = arith.mulf %852, %864 : vector<8x128xf32>
    %866 = arith.mulf %854, %864 : vector<8x128xf32>
    %867 = arith.mulf %856, %864 : vector<8x128xf32>
    %868 = arith.mulf %844, %867 : vector<8x128xf32>
    %869 = arith.mulf %845, %866 : vector<8x128xf32>
    %870 = arith.subf %868, %869 : vector<8x128xf32>
    %871 = arith.mulf %845, %865 : vector<8x128xf32>
    %872 = arith.mulf %843, %867 : vector<8x128xf32>
    %873 = arith.subf %871, %872 : vector<8x128xf32>
    %874 = arith.mulf %843, %866 : vector<8x128xf32>
    %875 = arith.mulf %844, %865 : vector<8x128xf32>
    %876 = arith.subf %874, %875 : vector<8x128xf32>
    %877 = arith.mulf %684, %843 : vector<8x128xf32>
    %878 = arith.mulf %689, %844 : vector<8x128xf32>
    %879 = arith.addf %877, %878 : vector<8x128xf32>
    %880 = arith.mulf %694, %845 : vector<8x128xf32>
    %881 = arith.addf %879, %880 : vector<8x128xf32>
    %882 = arith.mulf %684, %865 : vector<8x128xf32>
    %883 = arith.mulf %689, %866 : vector<8x128xf32>
    %884 = arith.addf %882, %883 : vector<8x128xf32>
    %885 = arith.mulf %694, %867 : vector<8x128xf32>
    %886 = arith.addf %884, %885 : vector<8x128xf32>
    %887 = arith.mulf %684, %870 : vector<8x128xf32>
    %888 = arith.mulf %689, %873 : vector<8x128xf32>
    %889 = arith.addf %887, %888 : vector<8x128xf32>
    %890 = arith.mulf %694, %876 : vector<8x128xf32>
    %891 = arith.addf %889, %890 : vector<8x128xf32>
    %892 = arith.mulf %699, %843 : vector<8x128xf32>
    %893 = arith.mulf %704, %844 : vector<8x128xf32>
    %894 = arith.addf %892, %893 : vector<8x128xf32>
    %895 = arith.mulf %709, %845 : vector<8x128xf32>
    %896 = arith.addf %894, %895 : vector<8x128xf32>
    %897 = arith.mulf %699, %865 : vector<8x128xf32>
    %898 = arith.mulf %704, %866 : vector<8x128xf32>
    %899 = arith.addf %897, %898 : vector<8x128xf32>
    %900 = arith.mulf %709, %867 : vector<8x128xf32>
    %901 = arith.addf %899, %900 : vector<8x128xf32>
    %902 = arith.mulf %699, %870 : vector<8x128xf32>
    %903 = arith.mulf %704, %873 : vector<8x128xf32>
    %904 = arith.addf %902, %903 : vector<8x128xf32>
    %905 = arith.mulf %709, %876 : vector<8x128xf32>
    %906 = arith.addf %904, %905 : vector<8x128xf32>
    %907 = arith.mulf %714, %843 : vector<8x128xf32>
    %908 = arith.mulf %719, %844 : vector<8x128xf32>
    %909 = arith.addf %907, %908 : vector<8x128xf32>
    %910 = arith.mulf %724, %845 : vector<8x128xf32>
    %911 = arith.addf %909, %910 : vector<8x128xf32>
    %912 = arith.mulf %714, %865 : vector<8x128xf32>
    %913 = arith.mulf %719, %866 : vector<8x128xf32>
    %914 = arith.addf %912, %913 : vector<8x128xf32>
    %915 = arith.mulf %724, %867 : vector<8x128xf32>
    %916 = arith.addf %914, %915 : vector<8x128xf32>
    %917 = arith.mulf %714, %870 : vector<8x128xf32>
    %918 = arith.mulf %719, %873 : vector<8x128xf32>
    %919 = arith.addf %917, %918 : vector<8x128xf32>
    %920 = arith.mulf %724, %876 : vector<8x128xf32>
    %921 = arith.addf %919, %920 : vector<8x128xf32>
    %c0_i32_439 = arith.constant 0 : i32
    %c0_i32_440 = arith.constant 0 : i32
    %c0_i32_441 = arith.constant 0 : i32
    %922 = tpu.memref_slice %arg3[%4, %c0_i32_439, %c0_i32_440, %c0_i32_441] : memref<1x99x8x128xf32, #tpu.memory_space<vmem>> -> memref<1x99x8x128xf32, #tpu.memory_space<vmem>>
    %923 = tpu.memref_squeeze %922 : memref<1x99x8x128xf32, #tpu.memory_space<vmem>> -> memref<99x8x128xf32, #tpu.memory_space<vmem>>
    %c57 = arith.constant 57 : index
    %c0_442 = arith.constant 0 : index
    %c0_443 = arith.constant 0 : index
    %924 = vector.load %923[%c57, %c0_442, %c0_443] : memref<99x8x128xf32, #tpu.memory_space<vmem>>, vector<1x8x128xf32>
    %925 = vector.shape_cast %924 : vector<1x8x128xf32> to vector<8x128xf32>
    %c0_i32_444 = arith.constant 0 : i32
    %c0_i32_445 = arith.constant 0 : i32
    %c0_i32_446 = arith.constant 0 : i32
    %926 = tpu.memref_slice %arg3[%4, %c0_i32_444, %c0_i32_445, %c0_i32_446] : memref<1x99x8x128xf32, #tpu.memory_space<vmem>> -> memref<1x99x8x128xf32, #tpu.memory_space<vmem>>
    %927 = tpu.memref_squeeze %926 : memref<1x99x8x128xf32, #tpu.memory_space<vmem>> -> memref<99x8x128xf32, #tpu.memory_space<vmem>>
    %c58 = arith.constant 58 : index
    %c0_447 = arith.constant 0 : index
    %c0_448 = arith.constant 0 : index
    %928 = vector.load %927[%c58, %c0_447, %c0_448] : memref<99x8x128xf32, #tpu.memory_space<vmem>>, vector<1x8x128xf32>
    %929 = vector.shape_cast %928 : vector<1x8x128xf32> to vector<8x128xf32>
    %c0_i32_449 = arith.constant 0 : i32
    %c0_i32_450 = arith.constant 0 : i32
    %c0_i32_451 = arith.constant 0 : i32
    %930 = tpu.memref_slice %arg3[%4, %c0_i32_449, %c0_i32_450, %c0_i32_451] : memref<1x99x8x128xf32, #tpu.memory_space<vmem>> -> memref<1x99x8x128xf32, #tpu.memory_space<vmem>>
    %931 = tpu.memref_squeeze %930 : memref<1x99x8x128xf32, #tpu.memory_space<vmem>> -> memref<99x8x128xf32, #tpu.memory_space<vmem>>
    %c59 = arith.constant 59 : index
    %c0_452 = arith.constant 0 : index
    %c0_453 = arith.constant 0 : index
    %932 = vector.load %931[%c59, %c0_452, %c0_453] : memref<99x8x128xf32, #tpu.memory_space<vmem>>, vector<1x8x128xf32>
    %933 = vector.shape_cast %932 : vector<1x8x128xf32> to vector<8x128xf32>
    %934 = arith.mulf %881, %925 : vector<8x128xf32>
    %935 = arith.mulf %886, %929 : vector<8x128xf32>
    %936 = arith.addf %934, %935 : vector<8x128xf32>
    %937 = arith.mulf %891, %933 : vector<8x128xf32>
    %938 = arith.addf %936, %937 : vector<8x128xf32>
    %939 = arith.mulf %896, %925 : vector<8x128xf32>
    %940 = arith.mulf %901, %929 : vector<8x128xf32>
    %941 = arith.addf %939, %940 : vector<8x128xf32>
    %942 = arith.mulf %906, %933 : vector<8x128xf32>
    %943 = arith.addf %941, %942 : vector<8x128xf32>
    %944 = arith.mulf %911, %925 : vector<8x128xf32>
    %945 = arith.mulf %916, %929 : vector<8x128xf32>
    %946 = arith.addf %944, %945 : vector<8x128xf32>
    %947 = arith.mulf %921, %933 : vector<8x128xf32>
    %948 = arith.addf %946, %947 : vector<8x128xf32>
    %949 = arith.addf %752, %938 : vector<8x128xf32>
    %950 = arith.addf %753, %943 : vector<8x128xf32>
    %951 = arith.addf %754, %948 : vector<8x128xf32>
    %c0_i32_454 = arith.constant 0 : i32
    %c0_i32_455 = arith.constant 0 : i32
    %c0_i32_456 = arith.constant 0 : i32
    %952 = tpu.memref_slice %arg3[%4, %c0_i32_454, %c0_i32_455, %c0_i32_456] : memref<1x99x8x128xf32, #tpu.memory_space<vmem>> -> memref<1x99x8x128xf32, #tpu.memory_space<vmem>>
    %953 = tpu.memref_squeeze %952 : memref<1x99x8x128xf32, #tpu.memory_space<vmem>> -> memref<99x8x128xf32, #tpu.memory_space<vmem>>
    %c12_457 = arith.constant 12 : index
    %c0_458 = arith.constant 0 : index
    %c0_459 = arith.constant 0 : index
    %954 = vector.load %953[%c12_457, %c0_458, %c0_459] : memref<99x8x128xf32, #tpu.memory_space<vmem>>, vector<1x8x128xf32>
    %955 = vector.shape_cast %954 : vector<1x8x128xf32> to vector<8x128xf32>
    %c0_i32_460 = arith.constant 0 : i32
    %c0_i32_461 = arith.constant 0 : i32
    %c0_i32_462 = arith.constant 0 : i32
    %956 = tpu.memref_slice %arg3[%4, %c0_i32_460, %c0_i32_461, %c0_i32_462] : memref<1x99x8x128xf32, #tpu.memory_space<vmem>> -> memref<1x99x8x128xf32, #tpu.memory_space<vmem>>
    %957 = tpu.memref_squeeze %956 : memref<1x99x8x128xf32, #tpu.memory_space<vmem>> -> memref<99x8x128xf32, #tpu.memory_space<vmem>>
    %c9_463 = arith.constant 9 : index
    %c0_464 = arith.constant 0 : index
    %c0_465 = arith.constant 0 : index
    %958 = vector.load %957[%c9_463, %c0_464, %c0_465] : memref<99x8x128xf32, #tpu.memory_space<vmem>>, vector<1x8x128xf32>
    %959 = vector.shape_cast %958 : vector<1x8x128xf32> to vector<8x128xf32>
    %960 = arith.subf %955, %959 : vector<8x128xf32>
    %c0_i32_466 = arith.constant 0 : i32
    %c0_i32_467 = arith.constant 0 : i32
    %c0_i32_468 = arith.constant 0 : i32
    %961 = tpu.memref_slice %arg3[%4, %c0_i32_466, %c0_i32_467, %c0_i32_468] : memref<1x99x8x128xf32, #tpu.memory_space<vmem>> -> memref<1x99x8x128xf32, #tpu.memory_space<vmem>>
    %962 = tpu.memref_squeeze %961 : memref<1x99x8x128xf32, #tpu.memory_space<vmem>> -> memref<99x8x128xf32, #tpu.memory_space<vmem>>
    %c13_469 = arith.constant 13 : index
    %c0_470 = arith.constant 0 : index
    %c0_471 = arith.constant 0 : index
    %963 = vector.load %962[%c13_469, %c0_470, %c0_471] : memref<99x8x128xf32, #tpu.memory_space<vmem>>, vector<1x8x128xf32>
    %964 = vector.shape_cast %963 : vector<1x8x128xf32> to vector<8x128xf32>
    %c0_i32_472 = arith.constant 0 : i32
    %c0_i32_473 = arith.constant 0 : i32
    %c0_i32_474 = arith.constant 0 : i32
    %965 = tpu.memref_slice %arg3[%4, %c0_i32_472, %c0_i32_473, %c0_i32_474] : memref<1x99x8x128xf32, #tpu.memory_space<vmem>> -> memref<1x99x8x128xf32, #tpu.memory_space<vmem>>
    %966 = tpu.memref_squeeze %965 : memref<1x99x8x128xf32, #tpu.memory_space<vmem>> -> memref<99x8x128xf32, #tpu.memory_space<vmem>>
    %c10_475 = arith.constant 10 : index
    %c0_476 = arith.constant 0 : index
    %c0_477 = arith.constant 0 : index
    %967 = vector.load %966[%c10_475, %c0_476, %c0_477] : memref<99x8x128xf32, #tpu.memory_space<vmem>>, vector<1x8x128xf32>
    %968 = vector.shape_cast %967 : vector<1x8x128xf32> to vector<8x128xf32>
    %969 = arith.subf %964, %968 : vector<8x128xf32>
    %c0_i32_478 = arith.constant 0 : i32
    %c0_i32_479 = arith.constant 0 : i32
    %c0_i32_480 = arith.constant 0 : i32
    %970 = tpu.memref_slice %arg3[%4, %c0_i32_478, %c0_i32_479, %c0_i32_480] : memref<1x99x8x128xf32, #tpu.memory_space<vmem>> -> memref<1x99x8x128xf32, #tpu.memory_space<vmem>>
    %971 = tpu.memref_squeeze %970 : memref<1x99x8x128xf32, #tpu.memory_space<vmem>> -> memref<99x8x128xf32, #tpu.memory_space<vmem>>
    %c14_481 = arith.constant 14 : index
    %c0_482 = arith.constant 0 : index
    %c0_483 = arith.constant 0 : index
    %972 = vector.load %971[%c14_481, %c0_482, %c0_483] : memref<99x8x128xf32, #tpu.memory_space<vmem>>, vector<1x8x128xf32>
    %973 = vector.shape_cast %972 : vector<1x8x128xf32> to vector<8x128xf32>
    %c0_i32_484 = arith.constant 0 : i32
    %c0_i32_485 = arith.constant 0 : i32
    %c0_i32_486 = arith.constant 0 : i32
    %974 = tpu.memref_slice %arg3[%4, %c0_i32_484, %c0_i32_485, %c0_i32_486] : memref<1x99x8x128xf32, #tpu.memory_space<vmem>> -> memref<1x99x8x128xf32, #tpu.memory_space<vmem>>
    %975 = tpu.memref_squeeze %974 : memref<1x99x8x128xf32, #tpu.memory_space<vmem>> -> memref<99x8x128xf32, #tpu.memory_space<vmem>>
    %c11_487 = arith.constant 11 : index
    %c0_488 = arith.constant 0 : index
    %c0_489 = arith.constant 0 : index
    %976 = vector.load %975[%c11_487, %c0_488, %c0_489] : memref<99x8x128xf32, #tpu.memory_space<vmem>>, vector<1x8x128xf32>
    %977 = vector.shape_cast %976 : vector<1x8x128xf32> to vector<8x128xf32>
    %978 = arith.subf %973, %977 : vector<8x128xf32>
    %979 = arith.subf %949, %752 : vector<8x128xf32>
    %980 = arith.subf %950, %753 : vector<8x128xf32>
    %981 = arith.subf %951, %754 : vector<8x128xf32>
    %982 = arith.mulf %960, %979 : vector<8x128xf32>
    %983 = arith.mulf %969, %980 : vector<8x128xf32>
    %984 = arith.addf %982, %983 : vector<8x128xf32>
    %985 = arith.mulf %978, %981 : vector<8x128xf32>
    %986 = arith.addf %984, %985 : vector<8x128xf32>
    %987 = arith.mulf %960, %960 : vector<8x128xf32>
    %988 = arith.mulf %969, %969 : vector<8x128xf32>
    %989 = arith.addf %987, %988 : vector<8x128xf32>
    %990 = arith.mulf %978, %978 : vector<8x128xf32>
    %991 = arith.addf %989, %990 : vector<8x128xf32>
    %992 = arith.mulf %979, %979 : vector<8x128xf32>
    %993 = arith.mulf %980, %980 : vector<8x128xf32>
    %994 = arith.addf %992, %993 : vector<8x128xf32>
    %995 = arith.mulf %981, %981 : vector<8x128xf32>
    %996 = arith.addf %994, %995 : vector<8x128xf32>
    %997 = arith.mulf %991, %996 : vector<8x128xf32>
    %cst_490 = arith.constant 1.000000e-16 : f32
    %998 = vector.broadcast %cst_490 : f32 to vector<8x128xf32>
    %999 = arith.maximumf %997, %998 : vector<8x128xf32>
    %1000 = math.rsqrt %999 : vector<8x128xf32>
    %1001 = arith.mulf %986, %1000 : vector<8x128xf32>
    %c4_491 = arith.constant 4 : index
    %c0_492 = arith.constant 0 : index
    %c0_493 = arith.constant 0 : index
    %1002 = vector.load %arg5[%c4_491, %c0_492, %c0_493] : memref<15x8x128xf32, #tpu.memory_space<vmem>>, vector<1x8x128xf32>
    %1003 = vector.shape_cast %1002 : vector<1x8x128xf32> to vector<8x128xf32>
    %1004 = arith.addf %1003, %1001 : vector<8x128xf32>
    %c4_494 = arith.constant 4 : index
    %c0_495 = arith.constant 0 : index
    %c0_496 = arith.constant 0 : index
    %1005 = vector.load %arg5[%c4_494, %c0_495, %c0_496] : memref<15x8x128xf32, #tpu.memory_space<vmem>>, vector<1x8x128xf32>
    %1006 = vector.shape_cast %1005 : vector<1x8x128xf32> to vector<8x128xf32>
    %1007 = vector.shape_cast %1004 : vector<8x128xf32> to vector<1x8x128xf32>
    tpu.vector_store %arg5[%c4_494, %c0_495, %c0_496], %1007 {strides = array<i32>} : memref<15x8x128xf32, #tpu.memory_space<vmem>>, vector<1x8x128xf32>,
    %c0_i32_497 = arith.constant 0 : i32
    %c0_i32_498 = arith.constant 0 : i32
    %c0_i32_499 = arith.constant 0 : i32
    %1008 = tpu.memref_slice %arg2[%4, %c0_i32_497, %c0_i32_498, %c0_i32_499] : memref<1x90x8x128xf32, #tpu.memory_space<vmem>> -> memref<1x90x8x128xf32, #tpu.memory_space<vmem>>
    %1009 = tpu.memref_squeeze %1008 : memref<1x90x8x128xf32, #tpu.memory_space<vmem>> -> memref<90x8x128xf32, #tpu.memory_space<vmem>>
    %c30 = arith.constant 30 : index
    %c0_500 = arith.constant 0 : index
    %c0_501 = arith.constant 0 : index
    %1010 = vector.load %1009[%c30, %c0_500, %c0_501] : memref<90x8x128xf32, #tpu.memory_space<vmem>>, vector<1x8x128xf32>
    %1011 = vector.shape_cast %1010 : vector<1x8x128xf32> to vector<8x128xf32>
    %c0_i32_502 = arith.constant 0 : i32
    %c0_i32_503 = arith.constant 0 : i32
    %c0_i32_504 = arith.constant 0 : i32
    %1012 = tpu.memref_slice %arg2[%4, %c0_i32_502, %c0_i32_503, %c0_i32_504] : memref<1x90x8x128xf32, #tpu.memory_space<vmem>> -> memref<1x90x8x128xf32, #tpu.memory_space<vmem>>
    %1013 = tpu.memref_squeeze %1012 : memref<1x90x8x128xf32, #tpu.memory_space<vmem>> -> memref<90x8x128xf32, #tpu.memory_space<vmem>>
    %c31 = arith.constant 31 : index
    %c0_505 = arith.constant 0 : index
    %c0_506 = arith.constant 0 : index
    %1014 = vector.load %1013[%c31, %c0_505, %c0_506] : memref<90x8x128xf32, #tpu.memory_space<vmem>>, vector<1x8x128xf32>
    %1015 = vector.shape_cast %1014 : vector<1x8x128xf32> to vector<8x128xf32>
    %c0_i32_507 = arith.constant 0 : i32
    %c0_i32_508 = arith.constant 0 : i32
    %c0_i32_509 = arith.constant 0 : i32
    %1016 = tpu.memref_slice %arg2[%4, %c0_i32_507, %c0_i32_508, %c0_i32_509] : memref<1x90x8x128xf32, #tpu.memory_space<vmem>> -> memref<1x90x8x128xf32, #tpu.memory_space<vmem>>
    %1017 = tpu.memref_squeeze %1016 : memref<1x90x8x128xf32, #tpu.memory_space<vmem>> -> memref<90x8x128xf32, #tpu.memory_space<vmem>>
    %c32 = arith.constant 32 : index
    %c0_510 = arith.constant 0 : index
    %c0_511 = arith.constant 0 : index
    %1018 = vector.load %1017[%c32, %c0_510, %c0_511] : memref<90x8x128xf32, #tpu.memory_space<vmem>>, vector<1x8x128xf32>
    %1019 = vector.shape_cast %1018 : vector<1x8x128xf32> to vector<8x128xf32>
    %c0_i32_512 = arith.constant 0 : i32
    %c0_i32_513 = arith.constant 0 : i32
    %c0_i32_514 = arith.constant 0 : i32
    %1020 = tpu.memref_slice %arg2[%4, %c0_i32_512, %c0_i32_513, %c0_i32_514] : memref<1x90x8x128xf32, #tpu.memory_space<vmem>> -> memref<1x90x8x128xf32, #tpu.memory_space<vmem>>
    %1021 = tpu.memref_squeeze %1020 : memref<1x90x8x128xf32, #tpu.memory_space<vmem>> -> memref<90x8x128xf32, #tpu.memory_space<vmem>>
    %c33 = arith.constant 33 : index
    %c0_515 = arith.constant 0 : index
    %c0_516 = arith.constant 0 : index
    %1022 = vector.load %1021[%c33, %c0_515, %c0_516] : memref<90x8x128xf32, #tpu.memory_space<vmem>>, vector<1x8x128xf32>
    %1023 = vector.shape_cast %1022 : vector<1x8x128xf32> to vector<8x128xf32>
    %c0_i32_517 = arith.constant 0 : i32
    %c0_i32_518 = arith.constant 0 : i32
    %c0_i32_519 = arith.constant 0 : i32
    %1024 = tpu.memref_slice %arg2[%4, %c0_i32_517, %c0_i32_518, %c0_i32_519] : memref<1x90x8x128xf32, #tpu.memory_space<vmem>> -> memref<1x90x8x128xf32, #tpu.memory_space<vmem>>
    %1025 = tpu.memref_squeeze %1024 : memref<1x90x8x128xf32, #tpu.memory_space<vmem>> -> memref<90x8x128xf32, #tpu.memory_space<vmem>>
    %c34 = arith.constant 34 : index
    %c0_520 = arith.constant 0 : index
    %c0_521 = arith.constant 0 : index
    %1026 = vector.load %1025[%c34, %c0_520, %c0_521] : memref<90x8x128xf32, #tpu.memory_space<vmem>>, vector<1x8x128xf32>
    %1027 = vector.shape_cast %1026 : vector<1x8x128xf32> to vector<8x128xf32>
    %c0_i32_522 = arith.constant 0 : i32
    %c0_i32_523 = arith.constant 0 : i32
    %c0_i32_524 = arith.constant 0 : i32
    %1028 = tpu.memref_slice %arg2[%4, %c0_i32_522, %c0_i32_523, %c0_i32_524] : memref<1x90x8x128xf32, #tpu.memory_space<vmem>> -> memref<1x90x8x128xf32, #tpu.memory_space<vmem>>
    %1029 = tpu.memref_squeeze %1028 : memref<1x90x8x128xf32, #tpu.memory_space<vmem>> -> memref<90x8x128xf32, #tpu.memory_space<vmem>>
    %c35 = arith.constant 35 : index
    %c0_525 = arith.constant 0 : index
    %c0_526 = arith.constant 0 : index
    %1030 = vector.load %1029[%c35, %c0_525, %c0_526] : memref<90x8x128xf32, #tpu.memory_space<vmem>>, vector<1x8x128xf32>
    %1031 = vector.shape_cast %1030 : vector<1x8x128xf32> to vector<8x128xf32>
    %1032 = arith.mulf %1011, %1011 : vector<8x128xf32>
    %1033 = arith.mulf %1015, %1015 : vector<8x128xf32>
    %1034 = arith.addf %1032, %1033 : vector<8x128xf32>
    %1035 = arith.mulf %1019, %1019 : vector<8x128xf32>
    %1036 = arith.addf %1034, %1035 : vector<8x128xf32>
    %cst_527 = arith.constant 1.000000e-24 : f32
    %1037 = vector.broadcast %cst_527 : f32 to vector<8x128xf32>
    %1038 = arith.maximumf %1036, %1037 : vector<8x128xf32>
    %1039 = math.rsqrt %1038 : vector<8x128xf32>
    %1040 = arith.mulf %1011, %1039 : vector<8x128xf32>
    %1041 = arith.mulf %1015, %1039 : vector<8x128xf32>
    %1042 = arith.mulf %1019, %1039 : vector<8x128xf32>
    %1043 = arith.mulf %1040, %1023 : vector<8x128xf32>
    %1044 = arith.mulf %1041, %1027 : vector<8x128xf32>
    %1045 = arith.addf %1043, %1044 : vector<8x128xf32>
    %1046 = arith.mulf %1042, %1031 : vector<8x128xf32>
    %1047 = arith.addf %1045, %1046 : vector<8x128xf32>
    %1048 = arith.mulf %1047, %1040 : vector<8x128xf32>
    %1049 = arith.subf %1023, %1048 : vector<8x128xf32>
    %1050 = arith.mulf %1047, %1041 : vector<8x128xf32>
    %1051 = arith.subf %1027, %1050 : vector<8x128xf32>
    %1052 = arith.mulf %1047, %1042 : vector<8x128xf32>
    %1053 = arith.subf %1031, %1052 : vector<8x128xf32>
    %1054 = arith.mulf %1049, %1049 : vector<8x128xf32>
    %1055 = arith.mulf %1051, %1051 : vector<8x128xf32>
    %1056 = arith.addf %1054, %1055 : vector<8x128xf32>
    %1057 = arith.mulf %1053, %1053 : vector<8x128xf32>
    %1058 = arith.addf %1056, %1057 : vector<8x128xf32>
    %cst_528 = arith.constant 1.000000e-24 : f32
    %1059 = vector.broadcast %cst_528 : f32 to vector<8x128xf32>
    %1060 = arith.maximumf %1058, %1059 : vector<8x128xf32>
    %1061 = math.rsqrt %1060 : vector<8x128xf32>
    %1062 = arith.mulf %1049, %1061 : vector<8x128xf32>
    %1063 = arith.mulf %1051, %1061 : vector<8x128xf32>
    %1064 = arith.mulf %1053, %1061 : vector<8x128xf32>
    %1065 = arith.mulf %1041, %1064 : vector<8x128xf32>
    %1066 = arith.mulf %1042, %1063 : vector<8x128xf32>
    %1067 = arith.subf %1065, %1066 : vector<8x128xf32>
    %1068 = arith.mulf %1042, %1062 : vector<8x128xf32>
    %1069 = arith.mulf %1040, %1064 : vector<8x128xf32>
    %1070 = arith.subf %1068, %1069 : vector<8x128xf32>
    %1071 = arith.mulf %1040, %1063 : vector<8x128xf32>
    %1072 = arith.mulf %1041, %1062 : vector<8x128xf32>
    %1073 = arith.subf %1071, %1072 : vector<8x128xf32>
    %1074 = arith.mulf %290, %1040 : vector<8x128xf32>
    %1075 = arith.mulf %295, %1041 : vector<8x128xf32>
    %1076 = arith.addf %1074, %1075 : vector<8x128xf32>
    %1077 = arith.mulf %300, %1042 : vector<8x128xf32>
    %1078 = arith.addf %1076, %1077 : vector<8x128xf32>
    %1079 = arith.mulf %290, %1062 : vector<8x128xf32>
    %1080 = arith.mulf %295, %1063 : vector<8x128xf32>
    %1081 = arith.addf %1079, %1080 : vector<8x128xf32>
    %1082 = arith.mulf %300, %1064 : vector<8x128xf32>
    %1083 = arith.addf %1081, %1082 : vector<8x128xf32>
    %1084 = arith.mulf %290, %1067 : vector<8x128xf32>
    %1085 = arith.mulf %295, %1070 : vector<8x128xf32>
    %1086 = arith.addf %1084, %1085 : vector<8x128xf32>
    %1087 = arith.mulf %300, %1073 : vector<8x128xf32>
    %1088 = arith.addf %1086, %1087 : vector<8x128xf32>
    %1089 = arith.mulf %305, %1040 : vector<8x128xf32>
    %1090 = arith.mulf %310, %1041 : vector<8x128xf32>
    %1091 = arith.addf %1089, %1090 : vector<8x128xf32>
    %1092 = arith.mulf %315, %1042 : vector<8x128xf32>
    %1093 = arith.addf %1091, %1092 : vector<8x128xf32>
    %1094 = arith.mulf %305, %1062 : vector<8x128xf32>
    %1095 = arith.mulf %310, %1063 : vector<8x128xf32>
    %1096 = arith.addf %1094, %1095 : vector<8x128xf32>
    %1097 = arith.mulf %315, %1064 : vector<8x128xf32>
    %1098 = arith.addf %1096, %1097 : vector<8x128xf32>
    %1099 = arith.mulf %305, %1067 : vector<8x128xf32>
    %1100 = arith.mulf %310, %1070 : vector<8x128xf32>
    %1101 = arith.addf %1099, %1100 : vector<8x128xf32>
    %1102 = arith.mulf %315, %1073 : vector<8x128xf32>
    %1103 = arith.addf %1101, %1102 : vector<8x128xf32>
    %1104 = arith.mulf %320, %1040 : vector<8x128xf32>
    %1105 = arith.mulf %325, %1041 : vector<8x128xf32>
    %1106 = arith.addf %1104, %1105 : vector<8x128xf32>
    %1107 = arith.mulf %330, %1042 : vector<8x128xf32>
    %1108 = arith.addf %1106, %1107 : vector<8x128xf32>
    %1109 = arith.mulf %320, %1062 : vector<8x128xf32>
    %1110 = arith.mulf %325, %1063 : vector<8x128xf32>
    %1111 = arith.addf %1109, %1110 : vector<8x128xf32>
    %1112 = arith.mulf %330, %1064 : vector<8x128xf32>
    %1113 = arith.addf %1111, %1112 : vector<8x128xf32>
    %1114 = arith.mulf %320, %1067 : vector<8x128xf32>
    %1115 = arith.mulf %325, %1070 : vector<8x128xf32>
    %1116 = arith.addf %1114, %1115 : vector<8x128xf32>
    %1117 = arith.mulf %330, %1073 : vector<8x128xf32>
    %1118 = arith.addf %1116, %1117 : vector<8x128xf32>
    %c0_i32_529 = arith.constant 0 : i32
    %c0_i32_530 = arith.constant 0 : i32
    %c0_i32_531 = arith.constant 0 : i32
    %1119 = tpu.memref_slice %arg3[%4, %c0_i32_529, %c0_i32_530, %c0_i32_531] : memref<1x99x8x128xf32, #tpu.memory_space<vmem>> -> memref<1x99x8x128xf32, #tpu.memory_space<vmem>>
    %1120 = tpu.memref_squeeze %1119 : memref<1x99x8x128xf32, #tpu.memory_space<vmem>> -> memref<99x8x128xf32, #tpu.memory_space<vmem>>
    %c60 = arith.constant 60 : index
    %c0_532 = arith.constant 0 : index
    %c0_533 = arith.constant 0 : index
    %1121 = vector.load %1120[%c60, %c0_532, %c0_533] : memref<99x8x128xf32, #tpu.memory_space<vmem>>, vector<1x8x128xf32>
    %1122 = vector.shape_cast %1121 : vector<1x8x128xf32> to vector<8x128xf32>
    %c0_i32_534 = arith.constant 0 : i32
    %c0_i32_535 = arith.constant 0 : i32
    %c0_i32_536 = arith.constant 0 : i32
    %1123 = tpu.memref_slice %arg3[%4, %c0_i32_534, %c0_i32_535, %c0_i32_536] : memref<1x99x8x128xf32, #tpu.memory_space<vmem>> -> memref<1x99x8x128xf32, #tpu.memory_space<vmem>>
    %1124 = tpu.memref_squeeze %1123 : memref<1x99x8x128xf32, #tpu.memory_space<vmem>> -> memref<99x8x128xf32, #tpu.memory_space<vmem>>
    %c61 = arith.constant 61 : index
    %c0_537 = arith.constant 0 : index
    %c0_538 = arith.constant 0 : index
    %1125 = vector.load %1124[%c61, %c0_537, %c0_538] : memref<99x8x128xf32, #tpu.memory_space<vmem>>, vector<1x8x128xf32>
    %1126 = vector.shape_cast %1125 : vector<1x8x128xf32> to vector<8x128xf32>
    %c0_i32_539 = arith.constant 0 : i32
    %c0_i32_540 = arith.constant 0 : i32
    %c0_i32_541 = arith.constant 0 : i32
    %1127 = tpu.memref_slice %arg3[%4, %c0_i32_539, %c0_i32_540, %c0_i32_541] : memref<1x99x8x128xf32, #tpu.memory_space<vmem>> -> memref<1x99x8x128xf32, #tpu.memory_space<vmem>>
    %1128 = tpu.memref_squeeze %1127 : memref<1x99x8x128xf32, #tpu.memory_space<vmem>> -> memref<99x8x128xf32, #tpu.memory_space<vmem>>
    %c62 = arith.constant 62 : index
    %c0_542 = arith.constant 0 : index
    %c0_543 = arith.constant 0 : index
    %1129 = vector.load %1128[%c62, %c0_542, %c0_543] : memref<99x8x128xf32, #tpu.memory_space<vmem>>, vector<1x8x128xf32>
    %1130 = vector.shape_cast %1129 : vector<1x8x128xf32> to vector<8x128xf32>
    %1131 = arith.mulf %1078, %1122 : vector<8x128xf32>
    %1132 = arith.mulf %1083, %1126 : vector<8x128xf32>
    %1133 = arith.addf %1131, %1132 : vector<8x128xf32>
    %1134 = arith.mulf %1088, %1130 : vector<8x128xf32>
    %1135 = arith.addf %1133, %1134 : vector<8x128xf32>
    %1136 = arith.mulf %1093, %1122 : vector<8x128xf32>
    %1137 = arith.mulf %1098, %1126 : vector<8x128xf32>
    %1138 = arith.addf %1136, %1137 : vector<8x128xf32>
    %1139 = arith.mulf %1103, %1130 : vector<8x128xf32>
    %1140 = arith.addf %1138, %1139 : vector<8x128xf32>
    %1141 = arith.mulf %1108, %1122 : vector<8x128xf32>
    %1142 = arith.mulf %1113, %1126 : vector<8x128xf32>
    %1143 = arith.addf %1141, %1142 : vector<8x128xf32>
    %1144 = arith.mulf %1118, %1130 : vector<8x128xf32>
    %1145 = arith.addf %1143, %1144 : vector<8x128xf32>
    %1146 = arith.addf %358, %1135 : vector<8x128xf32>
    %1147 = arith.addf %359, %1140 : vector<8x128xf32>
    %1148 = arith.addf %360, %1145 : vector<8x128xf32>
    %c0_i32_544 = arith.constant 0 : i32
    %c0_i32_545 = arith.constant 0 : i32
    %c0_i32_546 = arith.constant 0 : i32
    %1149 = tpu.memref_slice %arg3[%4, %c0_i32_544, %c0_i32_545, %c0_i32_546] : memref<1x99x8x128xf32, #tpu.memory_space<vmem>> -> memref<1x99x8x128xf32, #tpu.memory_space<vmem>>
    %1150 = tpu.memref_squeeze %1149 : memref<1x99x8x128xf32, #tpu.memory_space<vmem>> -> memref<99x8x128xf32, #tpu.memory_space<vmem>>
    %c15_547 = arith.constant 15 : index
    %c0_548 = arith.constant 0 : index
    %c0_549 = arith.constant 0 : index
    %1151 = vector.load %1150[%c15_547, %c0_548, %c0_549] : memref<99x8x128xf32, #tpu.memory_space<vmem>>, vector<1x8x128xf32>
    %1152 = vector.shape_cast %1151 : vector<1x8x128xf32> to vector<8x128xf32>
    %c0_i32_550 = arith.constant 0 : i32
    %c0_i32_551 = arith.constant 0 : i32
    %c0_i32_552 = arith.constant 0 : i32
    %1153 = tpu.memref_slice %arg3[%4, %c0_i32_550, %c0_i32_551, %c0_i32_552] : memref<1x99x8x128xf32, #tpu.memory_space<vmem>> -> memref<1x99x8x128xf32, #tpu.memory_space<vmem>>
    %1154 = tpu.memref_squeeze %1153 : memref<1x99x8x128xf32, #tpu.memory_space<vmem>> -> memref<99x8x128xf32, #tpu.memory_space<vmem>>
    %c3_553 = arith.constant 3 : index
    %c0_554 = arith.constant 0 : index
    %c0_555 = arith.constant 0 : index
    %1155 = vector.load %1154[%c3_553, %c0_554, %c0_555] : memref<99x8x128xf32, #tpu.memory_space<vmem>>, vector<1x8x128xf32>
    %1156 = vector.shape_cast %1155 : vector<1x8x128xf32> to vector<8x128xf32>
    %1157 = arith.subf %1152, %1156 : vector<8x128xf32>
    %c0_i32_556 = arith.constant 0 : i32
    %c0_i32_557 = arith.constant 0 : i32
    %c0_i32_558 = arith.constant 0 : i32
    %1158 = tpu.memref_slice %arg3[%4, %c0_i32_556, %c0_i32_557, %c0_i32_558] : memref<1x99x8x128xf32, #tpu.memory_space<vmem>> -> memref<1x99x8x128xf32, #tpu.memory_space<vmem>>
    %1159 = tpu.memref_squeeze %1158 : memref<1x99x8x128xf32, #tpu.memory_space<vmem>> -> memref<99x8x128xf32, #tpu.memory_space<vmem>>
    %c16_559 = arith.constant 16 : index
    %c0_560 = arith.constant 0 : index
    %c0_561 = arith.constant 0 : index
    %1160 = vector.load %1159[%c16_559, %c0_560, %c0_561] : memref<99x8x128xf32, #tpu.memory_space<vmem>>, vector<1x8x128xf32>
    %1161 = vector.shape_cast %1160 : vector<1x8x128xf32> to vector<8x128xf32>
    %c0_i32_562 = arith.constant 0 : i32
    %c0_i32_563 = arith.constant 0 : i32
    %c0_i32_564 = arith.constant 0 : i32
    %1162 = tpu.memref_slice %arg3[%4, %c0_i32_562, %c0_i32_563, %c0_i32_564] : memref<1x99x8x128xf32, #tpu.memory_space<vmem>> -> memref<1x99x8x128xf32, #tpu.memory_space<vmem>>
    %1163 = tpu.memref_squeeze %1162 : memref<1x99x8x128xf32, #tpu.memory_space<vmem>> -> memref<99x8x128xf32, #tpu.memory_space<vmem>>
    %c4_565 = arith.constant 4 : index
    %c0_566 = arith.constant 0 : index
    %c0_567 = arith.constant 0 : index
    %1164 = vector.load %1163[%c4_565, %c0_566, %c0_567] : memref<99x8x128xf32, #tpu.memory_space<vmem>>, vector<1x8x128xf32>
    %1165 = vector.shape_cast %1164 : vector<1x8x128xf32> to vector<8x128xf32>
    %1166 = arith.subf %1161, %1165 : vector<8x128xf32>
    %c0_i32_568 = arith.constant 0 : i32
    %c0_i32_569 = arith.constant 0 : i32
    %c0_i32_570 = arith.constant 0 : i32
    %1167 = tpu.memref_slice %arg3[%4, %c0_i32_568, %c0_i32_569, %c0_i32_570] : memref<1x99x8x128xf32, #tpu.memory_space<vmem>> -> memref<1x99x8x128xf32, #tpu.memory_space<vmem>>
    %1168 = tpu.memref_squeeze %1167 : memref<1x99x8x128xf32, #tpu.memory_space<vmem>> -> memref<99x8x128xf32, #tpu.memory_space<vmem>>
    %c17_571 = arith.constant 17 : index
    %c0_572 = arith.constant 0 : index
    %c0_573 = arith.constant 0 : index
    %1169 = vector.load %1168[%c17_571, %c0_572, %c0_573] : memref<99x8x128xf32, #tpu.memory_space<vmem>>, vector<1x8x128xf32>
    %1170 = vector.shape_cast %1169 : vector<1x8x128xf32> to vector<8x128xf32>
    %c0_i32_574 = arith.constant 0 : i32
    %c0_i32_575 = arith.constant 0 : i32
    %c0_i32_576 = arith.constant 0 : i32
    %1171 = tpu.memref_slice %arg3[%4, %c0_i32_574, %c0_i32_575, %c0_i32_576] : memref<1x99x8x128xf32, #tpu.memory_space<vmem>> -> memref<1x99x8x128xf32, #tpu.memory_space<vmem>>
    %1172 = tpu.memref_squeeze %1171 : memref<1x99x8x128xf32, #tpu.memory_space<vmem>> -> memref<99x8x128xf32, #tpu.memory_space<vmem>>
    %c5_577 = arith.constant 5 : index
    %c0_578 = arith.constant 0 : index
    %c0_579 = arith.constant 0 : index
    %1173 = vector.load %1172[%c5_577, %c0_578, %c0_579] : memref<99x8x128xf32, #tpu.memory_space<vmem>>, vector<1x8x128xf32>
    %1174 = vector.shape_cast %1173 : vector<1x8x128xf32> to vector<8x128xf32>
    %1175 = arith.subf %1170, %1174 : vector<8x128xf32>
    %1176 = arith.subf %1146, %358 : vector<8x128xf32>
    %1177 = arith.subf %1147, %359 : vector<8x128xf32>
    %1178 = arith.subf %1148, %360 : vector<8x128xf32>
    %1179 = arith.mulf %1157, %1176 : vector<8x128xf32>
    %1180 = arith.mulf %1166, %1177 : vector<8x128xf32>
    %1181 = arith.addf %1179, %1180 : vector<8x128xf32>
    %1182 = arith.mulf %1175, %1178 : vector<8x128xf32>
    %1183 = arith.addf %1181, %1182 : vector<8x128xf32>
    %1184 = arith.mulf %1157, %1157 : vector<8x128xf32>
    %1185 = arith.mulf %1166, %1166 : vector<8x128xf32>
    %1186 = arith.addf %1184, %1185 : vector<8x128xf32>
    %1187 = arith.mulf %1175, %1175 : vector<8x128xf32>
    %1188 = arith.addf %1186, %1187 : vector<8x128xf32>
    %1189 = arith.mulf %1176, %1176 : vector<8x128xf32>
    %1190 = arith.mulf %1177, %1177 : vector<8x128xf32>
    %1191 = arith.addf %1189, %1190 : vector<8x128xf32>
    %1192 = arith.mulf %1178, %1178 : vector<8x128xf32>
    %1193 = arith.addf %1191, %1192 : vector<8x128xf32>
    %1194 = arith.mulf %1188, %1193 : vector<8x128xf32>
    %cst_580 = arith.constant 1.000000e-16 : f32
    %1195 = vector.broadcast %cst_580 : f32 to vector<8x128xf32>
    %1196 = arith.maximumf %1194, %1195 : vector<8x128xf32>
    %1197 = math.rsqrt %1196 : vector<8x128xf32>
    %1198 = arith.mulf %1183, %1197 : vector<8x128xf32>
    %c5_581 = arith.constant 5 : index
    %c0_582 = arith.constant 0 : index
    %c0_583 = arith.constant 0 : index
    %1199 = vector.load %arg5[%c5_581, %c0_582, %c0_583] : memref<15x8x128xf32, #tpu.memory_space<vmem>>, vector<1x8x128xf32>
    %1200 = vector.shape_cast %1199 : vector<1x8x128xf32> to vector<8x128xf32>
    %1201 = arith.addf %1200, %1198 : vector<8x128xf32>
    %c5_584 = arith.constant 5 : index
    %c0_585 = arith.constant 0 : index
    %c0_586 = arith.constant 0 : index
    %1202 = vector.load %arg5[%c5_584, %c0_585, %c0_586] : memref<15x8x128xf32, #tpu.memory_space<vmem>>, vector<1x8x128xf32>
    %1203 = vector.shape_cast %1202 : vector<1x8x128xf32> to vector<8x128xf32>
    %1204 = vector.shape_cast %1201 : vector<8x128xf32> to vector<1x8x128xf32>
    tpu.vector_store %arg5[%c5_584, %c0_585, %c0_586], %1204 {strides = array<i32>} : memref<15x8x128xf32, #tpu.memory_space<vmem>>, vector<1x8x128xf32>,
    %c0_i32_587 = arith.constant 0 : i32
    %c0_i32_588 = arith.constant 0 : i32
    %c0_i32_589 = arith.constant 0 : i32
    %1205 = tpu.memref_slice %arg2[%4, %c0_i32_587, %c0_i32_588, %c0_i32_589] : memref<1x90x8x128xf32, #tpu.memory_space<vmem>> -> memref<1x90x8x128xf32, #tpu.memory_space<vmem>>
    %1206 = tpu.memref_squeeze %1205 : memref<1x90x8x128xf32, #tpu.memory_space<vmem>> -> memref<90x8x128xf32, #tpu.memory_space<vmem>>
    %c36 = arith.constant 36 : index
    %c0_590 = arith.constant 0 : index
    %c0_591 = arith.constant 0 : index
    %1207 = vector.load %1206[%c36, %c0_590, %c0_591] : memref<90x8x128xf32, #tpu.memory_space<vmem>>, vector<1x8x128xf32>
    %1208 = vector.shape_cast %1207 : vector<1x8x128xf32> to vector<8x128xf32>
    %c0_i32_592 = arith.constant 0 : i32
    %c0_i32_593 = arith.constant 0 : i32
    %c0_i32_594 = arith.constant 0 : i32
    %1209 = tpu.memref_slice %arg2[%4, %c0_i32_592, %c0_i32_593, %c0_i32_594] : memref<1x90x8x128xf32, #tpu.memory_space<vmem>> -> memref<1x90x8x128xf32, #tpu.memory_space<vmem>>
    %1210 = tpu.memref_squeeze %1209 : memref<1x90x8x128xf32, #tpu.memory_space<vmem>> -> memref<90x8x128xf32, #tpu.memory_space<vmem>>
    %c37 = arith.constant 37 : index
    %c0_595 = arith.constant 0 : index
    %c0_596 = arith.constant 0 : index
    %1211 = vector.load %1210[%c37, %c0_595, %c0_596] : memref<90x8x128xf32, #tpu.memory_space<vmem>>, vector<1x8x128xf32>
    %1212 = vector.shape_cast %1211 : vector<1x8x128xf32> to vector<8x128xf32>
    %c0_i32_597 = arith.constant 0 : i32
    %c0_i32_598 = arith.constant 0 : i32
    %c0_i32_599 = arith.constant 0 : i32
    %1213 = tpu.memref_slice %arg2[%4, %c0_i32_597, %c0_i32_598, %c0_i32_599] : memref<1x90x8x128xf32, #tpu.memory_space<vmem>> -> memref<1x90x8x128xf32, #tpu.memory_space<vmem>>
    %1214 = tpu.memref_squeeze %1213 : memref<1x90x8x128xf32, #tpu.memory_space<vmem>> -> memref<90x8x128xf32, #tpu.memory_space<vmem>>
    %c38 = arith.constant 38 : index
    %c0_600 = arith.constant 0 : index
    %c0_601 = arith.constant 0 : index
    %1215 = vector.load %1214[%c38, %c0_600, %c0_601] : memref<90x8x128xf32, #tpu.memory_space<vmem>>, vector<1x8x128xf32>
    %1216 = vector.shape_cast %1215 : vector<1x8x128xf32> to vector<8x128xf32>
    %c0_i32_602 = arith.constant 0 : i32
    %c0_i32_603 = arith.constant 0 : i32
    %c0_i32_604 = arith.constant 0 : i32
    %1217 = tpu.memref_slice %arg2[%4, %c0_i32_602, %c0_i32_603, %c0_i32_604] : memref<1x90x8x128xf32, #tpu.memory_space<vmem>> -> memref<1x90x8x128xf32, #tpu.memory_space<vmem>>
    %1218 = tpu.memref_squeeze %1217 : memref<1x90x8x128xf32, #tpu.memory_space<vmem>> -> memref<90x8x128xf32, #tpu.memory_space<vmem>>
    %c39 = arith.constant 39 : index
    %c0_605 = arith.constant 0 : index
    %c0_606 = arith.constant 0 : index
    %1219 = vector.load %1218[%c39, %c0_605, %c0_606] : memref<90x8x128xf32, #tpu.memory_space<vmem>>, vector<1x8x128xf32>
    %1220 = vector.shape_cast %1219 : vector<1x8x128xf32> to vector<8x128xf32>
    %c0_i32_607 = arith.constant 0 : i32
    %c0_i32_608 = arith.constant 0 : i32
    %c0_i32_609 = arith.constant 0 : i32
    %1221 = tpu.memref_slice %arg2[%4, %c0_i32_607, %c0_i32_608, %c0_i32_609] : memref<1x90x8x128xf32, #tpu.memory_space<vmem>> -> memref<1x90x8x128xf32, #tpu.memory_space<vmem>>
    %1222 = tpu.memref_squeeze %1221 : memref<1x90x8x128xf32, #tpu.memory_space<vmem>> -> memref<90x8x128xf32, #tpu.memory_space<vmem>>
    %c40 = arith.constant 40 : index
    %c0_610 = arith.constant 0 : index
    %c0_611 = arith.constant 0 : index
    %1223 = vector.load %1222[%c40, %c0_610, %c0_611] : memref<90x8x128xf32, #tpu.memory_space<vmem>>, vector<1x8x128xf32>
    %1224 = vector.shape_cast %1223 : vector<1x8x128xf32> to vector<8x128xf32>
    %c0_i32_612 = arith.constant 0 : i32
    %c0_i32_613 = arith.constant 0 : i32
    %c0_i32_614 = arith.constant 0 : i32
    %1225 = tpu.memref_slice %arg2[%4, %c0_i32_612, %c0_i32_613, %c0_i32_614] : memref<1x90x8x128xf32, #tpu.memory_space<vmem>> -> memref<1x90x8x128xf32, #tpu.memory_space<vmem>>
    %1226 = tpu.memref_squeeze %1225 : memref<1x90x8x128xf32, #tpu.memory_space<vmem>> -> memref<90x8x128xf32, #tpu.memory_space<vmem>>
    %c41 = arith.constant 41 : index
    %c0_615 = arith.constant 0 : index
    %c0_616 = arith.constant 0 : index
    %1227 = vector.load %1226[%c41, %c0_615, %c0_616] : memref<90x8x128xf32, #tpu.memory_space<vmem>>, vector<1x8x128xf32>
    %1228 = vector.shape_cast %1227 : vector<1x8x128xf32> to vector<8x128xf32>
    %1229 = arith.mulf %1208, %1208 : vector<8x128xf32>
    %1230 = arith.mulf %1212, %1212 : vector<8x128xf32>
    %1231 = arith.addf %1229, %1230 : vector<8x128xf32>
    %1232 = arith.mulf %1216, %1216 : vector<8x128xf32>
    %1233 = arith.addf %1231, %1232 : vector<8x128xf32>
    %cst_617 = arith.constant 1.000000e-24 : f32
    %1234 = vector.broadcast %cst_617 : f32 to vector<8x128xf32>
    %1235 = arith.maximumf %1233, %1234 : vector<8x128xf32>
    %1236 = math.rsqrt %1235 : vector<8x128xf32>
    %1237 = arith.mulf %1208, %1236 : vector<8x128xf32>
    %1238 = arith.mulf %1212, %1236 : vector<8x128xf32>
    %1239 = arith.mulf %1216, %1236 : vector<8x128xf32>
    %1240 = arith.mulf %1237, %1220 : vector<8x128xf32>
    %1241 = arith.mulf %1238, %1224 : vector<8x128xf32>
    %1242 = arith.addf %1240, %1241 : vector<8x128xf32>
    %1243 = arith.mulf %1239, %1228 : vector<8x128xf32>
    %1244 = arith.addf %1242, %1243 : vector<8x128xf32>
    %1245 = arith.mulf %1244, %1237 : vector<8x128xf32>
    %1246 = arith.subf %1220, %1245 : vector<8x128xf32>
    %1247 = arith.mulf %1244, %1238 : vector<8x128xf32>
    %1248 = arith.subf %1224, %1247 : vector<8x128xf32>
    %1249 = arith.mulf %1244, %1239 : vector<8x128xf32>
    %1250 = arith.subf %1228, %1249 : vector<8x128xf32>
    %1251 = arith.mulf %1246, %1246 : vector<8x128xf32>
    %1252 = arith.mulf %1248, %1248 : vector<8x128xf32>
    %1253 = arith.addf %1251, %1252 : vector<8x128xf32>
    %1254 = arith.mulf %1250, %1250 : vector<8x128xf32>
    %1255 = arith.addf %1253, %1254 : vector<8x128xf32>
    %cst_618 = arith.constant 1.000000e-24 : f32
    %1256 = vector.broadcast %cst_618 : f32 to vector<8x128xf32>
    %1257 = arith.maximumf %1255, %1256 : vector<8x128xf32>
    %1258 = math.rsqrt %1257 : vector<8x128xf32>
    %1259 = arith.mulf %1246, %1258 : vector<8x128xf32>
    %1260 = arith.mulf %1248, %1258 : vector<8x128xf32>
    %1261 = arith.mulf %1250, %1258 : vector<8x128xf32>
    %1262 = arith.mulf %1238, %1261 : vector<8x128xf32>
    %1263 = arith.mulf %1239, %1260 : vector<8x128xf32>
    %1264 = arith.subf %1262, %1263 : vector<8x128xf32>
    %1265 = arith.mulf %1239, %1259 : vector<8x128xf32>
    %1266 = arith.mulf %1237, %1261 : vector<8x128xf32>
    %1267 = arith.subf %1265, %1266 : vector<8x128xf32>
    %1268 = arith.mulf %1237, %1260 : vector<8x128xf32>
    %1269 = arith.mulf %1238, %1259 : vector<8x128xf32>
    %1270 = arith.subf %1268, %1269 : vector<8x128xf32>
    %1271 = arith.mulf %1078, %1237 : vector<8x128xf32>
    %1272 = arith.mulf %1083, %1238 : vector<8x128xf32>
    %1273 = arith.addf %1271, %1272 : vector<8x128xf32>
    %1274 = arith.mulf %1088, %1239 : vector<8x128xf32>
    %1275 = arith.addf %1273, %1274 : vector<8x128xf32>
    %1276 = arith.mulf %1078, %1259 : vector<8x128xf32>
    %1277 = arith.mulf %1083, %1260 : vector<8x128xf32>
    %1278 = arith.addf %1276, %1277 : vector<8x128xf32>
    %1279 = arith.mulf %1088, %1261 : vector<8x128xf32>
    %1280 = arith.addf %1278, %1279 : vector<8x128xf32>
    %1281 = arith.mulf %1078, %1264 : vector<8x128xf32>
    %1282 = arith.mulf %1083, %1267 : vector<8x128xf32>
    %1283 = arith.addf %1281, %1282 : vector<8x128xf32>
    %1284 = arith.mulf %1088, %1270 : vector<8x128xf32>
    %1285 = arith.addf %1283, %1284 : vector<8x128xf32>
    %1286 = arith.mulf %1093, %1237 : vector<8x128xf32>
    %1287 = arith.mulf %1098, %1238 : vector<8x128xf32>
    %1288 = arith.addf %1286, %1287 : vector<8x128xf32>
    %1289 = arith.mulf %1103, %1239 : vector<8x128xf32>
    %1290 = arith.addf %1288, %1289 : vector<8x128xf32>
    %1291 = arith.mulf %1093, %1259 : vector<8x128xf32>
    %1292 = arith.mulf %1098, %1260 : vector<8x128xf32>
    %1293 = arith.addf %1291, %1292 : vector<8x128xf32>
    %1294 = arith.mulf %1103, %1261 : vector<8x128xf32>
    %1295 = arith.addf %1293, %1294 : vector<8x128xf32>
    %1296 = arith.mulf %1093, %1264 : vector<8x128xf32>
    %1297 = arith.mulf %1098, %1267 : vector<8x128xf32>
    %1298 = arith.addf %1296, %1297 : vector<8x128xf32>
    %1299 = arith.mulf %1103, %1270 : vector<8x128xf32>
    %1300 = arith.addf %1298, %1299 : vector<8x128xf32>
    %1301 = arith.mulf %1108, %1237 : vector<8x128xf32>
    %1302 = arith.mulf %1113, %1238 : vector<8x128xf32>
    %1303 = arith.addf %1301, %1302 : vector<8x128xf32>
    %1304 = arith.mulf %1118, %1239 : vector<8x128xf32>
    %1305 = arith.addf %1303, %1304 : vector<8x128xf32>
    %1306 = arith.mulf %1108, %1259 : vector<8x128xf32>
    %1307 = arith.mulf %1113, %1260 : vector<8x128xf32>
    %1308 = arith.addf %1306, %1307 : vector<8x128xf32>
    %1309 = arith.mulf %1118, %1261 : vector<8x128xf32>
    %1310 = arith.addf %1308, %1309 : vector<8x128xf32>
    %1311 = arith.mulf %1108, %1264 : vector<8x128xf32>
    %1312 = arith.mulf %1113, %1267 : vector<8x128xf32>
    %1313 = arith.addf %1311, %1312 : vector<8x128xf32>
    %1314 = arith.mulf %1118, %1270 : vector<8x128xf32>
    %1315 = arith.addf %1313, %1314 : vector<8x128xf32>
    %c0_i32_619 = arith.constant 0 : i32
    %c0_i32_620 = arith.constant 0 : i32
    %c0_i32_621 = arith.constant 0 : i32
    %1316 = tpu.memref_slice %arg3[%4, %c0_i32_619, %c0_i32_620, %c0_i32_621] : memref<1x99x8x128xf32, #tpu.memory_space<vmem>> -> memref<1x99x8x128xf32, #tpu.memory_space<vmem>>
    %1317 = tpu.memref_squeeze %1316 : memref<1x99x8x128xf32, #tpu.memory_space<vmem>> -> memref<99x8x128xf32, #tpu.memory_space<vmem>>
    %c63 = arith.constant 63 : index
    %c0_622 = arith.constant 0 : index
    %c0_623 = arith.constant 0 : index
    %1318 = vector.load %1317[%c63, %c0_622, %c0_623] : memref<99x8x128xf32, #tpu.memory_space<vmem>>, vector<1x8x128xf32>
    %1319 = vector.shape_cast %1318 : vector<1x8x128xf32> to vector<8x128xf32>
    %c0_i32_624 = arith.constant 0 : i32
    %c0_i32_625 = arith.constant 0 : i32
    %c0_i32_626 = arith.constant 0 : i32
    %1320 = tpu.memref_slice %arg3[%4, %c0_i32_624, %c0_i32_625, %c0_i32_626] : memref<1x99x8x128xf32, #tpu.memory_space<vmem>> -> memref<1x99x8x128xf32, #tpu.memory_space<vmem>>
    %1321 = tpu.memref_squeeze %1320 : memref<1x99x8x128xf32, #tpu.memory_space<vmem>> -> memref<99x8x128xf32, #tpu.memory_space<vmem>>
    %c64 = arith.constant 64 : index
    %c0_627 = arith.constant 0 : index
    %c0_628 = arith.constant 0 : index
    %1322 = vector.load %1321[%c64, %c0_627, %c0_628] : memref<99x8x128xf32, #tpu.memory_space<vmem>>, vector<1x8x128xf32>
    %1323 = vector.shape_cast %1322 : vector<1x8x128xf32> to vector<8x128xf32>
    %c0_i32_629 = arith.constant 0 : i32
    %c0_i32_630 = arith.constant 0 : i32
    %c0_i32_631 = arith.constant 0 : i32
    %1324 = tpu.memref_slice %arg3[%4, %c0_i32_629, %c0_i32_630, %c0_i32_631] : memref<1x99x8x128xf32, #tpu.memory_space<vmem>> -> memref<1x99x8x128xf32, #tpu.memory_space<vmem>>
    %1325 = tpu.memref_squeeze %1324 : memref<1x99x8x128xf32, #tpu.memory_space<vmem>> -> memref<99x8x128xf32, #tpu.memory_space<vmem>>
    %c65 = arith.constant 65 : index
    %c0_632 = arith.constant 0 : index
    %c0_633 = arith.constant 0 : index
    %1326 = vector.load %1325[%c65, %c0_632, %c0_633] : memref<99x8x128xf32, #tpu.memory_space<vmem>>, vector<1x8x128xf32>
    %1327 = vector.shape_cast %1326 : vector<1x8x128xf32> to vector<8x128xf32>
    %1328 = arith.mulf %1275, %1319 : vector<8x128xf32>
    %1329 = arith.mulf %1280, %1323 : vector<8x128xf32>
    %1330 = arith.addf %1328, %1329 : vector<8x128xf32>
    %1331 = arith.mulf %1285, %1327 : vector<8x128xf32>
    %1332 = arith.addf %1330, %1331 : vector<8x128xf32>
    %1333 = arith.mulf %1290, %1319 : vector<8x128xf32>
    %1334 = arith.mulf %1295, %1323 : vector<8x128xf32>
    %1335 = arith.addf %1333, %1334 : vector<8x128xf32>
    %1336 = arith.mulf %1300, %1327 : vector<8x128xf32>
    %1337 = arith.addf %1335, %1336 : vector<8x128xf32>
    %1338 = arith.mulf %1305, %1319 : vector<8x128xf32>
    %1339 = arith.mulf %1310, %1323 : vector<8x128xf32>
    %1340 = arith.addf %1338, %1339 : vector<8x128xf32>
    %1341 = arith.mulf %1315, %1327 : vector<8x128xf32>
    %1342 = arith.addf %1340, %1341 : vector<8x128xf32>
    %1343 = arith.addf %1146, %1332 : vector<8x128xf32>
    %1344 = arith.addf %1147, %1337 : vector<8x128xf32>
    %1345 = arith.addf %1148, %1342 : vector<8x128xf32>
    %c0_i32_634 = arith.constant 0 : i32
    %c0_i32_635 = arith.constant 0 : i32
    %c0_i32_636 = arith.constant 0 : i32
    %1346 = tpu.memref_slice %arg3[%4, %c0_i32_634, %c0_i32_635, %c0_i32_636] : memref<1x99x8x128xf32, #tpu.memory_space<vmem>> -> memref<1x99x8x128xf32, #tpu.memory_space<vmem>>
    %1347 = tpu.memref_squeeze %1346 : memref<1x99x8x128xf32, #tpu.memory_space<vmem>> -> memref<99x8x128xf32, #tpu.memory_space<vmem>>
    %c18_637 = arith.constant 18 : index
    %c0_638 = arith.constant 0 : index
    %c0_639 = arith.constant 0 : index
    %1348 = vector.load %1347[%c18_637, %c0_638, %c0_639] : memref<99x8x128xf32, #tpu.memory_space<vmem>>, vector<1x8x128xf32>
    %1349 = vector.shape_cast %1348 : vector<1x8x128xf32> to vector<8x128xf32>
    %c0_i32_640 = arith.constant 0 : i32
    %c0_i32_641 = arith.constant 0 : i32
    %c0_i32_642 = arith.constant 0 : i32
    %1350 = tpu.memref_slice %arg3[%4, %c0_i32_640, %c0_i32_641, %c0_i32_642] : memref<1x99x8x128xf32, #tpu.memory_space<vmem>> -> memref<1x99x8x128xf32, #tpu.memory_space<vmem>>
    %1351 = tpu.memref_squeeze %1350 : memref<1x99x8x128xf32, #tpu.memory_space<vmem>> -> memref<99x8x128xf32, #tpu.memory_space<vmem>>
    %c15_643 = arith.constant 15 : index
    %c0_644 = arith.constant 0 : index
    %c0_645 = arith.constant 0 : index
    %1352 = vector.load %1351[%c15_643, %c0_644, %c0_645] : memref<99x8x128xf32, #tpu.memory_space<vmem>>, vector<1x8x128xf32>
    %1353 = vector.shape_cast %1352 : vector<1x8x128xf32> to vector<8x128xf32>
    %1354 = arith.subf %1349, %1353 : vector<8x128xf32>
    %c0_i32_646 = arith.constant 0 : i32
    %c0_i32_647 = arith.constant 0 : i32
    %c0_i32_648 = arith.constant 0 : i32
    %1355 = tpu.memref_slice %arg3[%4, %c0_i32_646, %c0_i32_647, %c0_i32_648] : memref<1x99x8x128xf32, #tpu.memory_space<vmem>> -> memref<1x99x8x128xf32, #tpu.memory_space<vmem>>
    %1356 = tpu.memref_squeeze %1355 : memref<1x99x8x128xf32, #tpu.memory_space<vmem>> -> memref<99x8x128xf32, #tpu.memory_space<vmem>>
    %c19_649 = arith.constant 19 : index
    %c0_650 = arith.constant 0 : index
    %c0_651 = arith.constant 0 : index
    %1357 = vector.load %1356[%c19_649, %c0_650, %c0_651] : memref<99x8x128xf32, #tpu.memory_space<vmem>>, vector<1x8x128xf32>
    %1358 = vector.shape_cast %1357 : vector<1x8x128xf32> to vector<8x128xf32>
    %c0_i32_652 = arith.constant 0 : i32
    %c0_i32_653 = arith.constant 0 : i32
    %c0_i32_654 = arith.constant 0 : i32
    %1359 = tpu.memref_slice %arg3[%4, %c0_i32_652, %c0_i32_653, %c0_i32_654] : memref<1x99x8x128xf32, #tpu.memory_space<vmem>> -> memref<1x99x8x128xf32, #tpu.memory_space<vmem>>
    %1360 = tpu.memref_squeeze %1359 : memref<1x99x8x128xf32, #tpu.memory_space<vmem>> -> memref<99x8x128xf32, #tpu.memory_space<vmem>>
    %c16_655 = arith.constant 16 : index
    %c0_656 = arith.constant 0 : index
    %c0_657 = arith.constant 0 : index
    %1361 = vector.load %1360[%c16_655, %c0_656, %c0_657] : memref<99x8x128xf32, #tpu.memory_space<vmem>>, vector<1x8x128xf32>
    %1362 = vector.shape_cast %1361 : vector<1x8x128xf32> to vector<8x128xf32>
    %1363 = arith.subf %1358, %1362 : vector<8x128xf32>
    %c0_i32_658 = arith.constant 0 : i32
    %c0_i32_659 = arith.constant 0 : i32
    %c0_i32_660 = arith.constant 0 : i32
    %1364 = tpu.memref_slice %arg3[%4, %c0_i32_658, %c0_i32_659, %c0_i32_660] : memref<1x99x8x128xf32, #tpu.memory_space<vmem>> -> memref<1x99x8x128xf32, #tpu.memory_space<vmem>>
    %1365 = tpu.memref_squeeze %1364 : memref<1x99x8x128xf32, #tpu.memory_space<vmem>> -> memref<99x8x128xf32, #tpu.memory_space<vmem>>
    %c20_661 = arith.constant 20 : index
    %c0_662 = arith.constant 0 : index
    %c0_663 = arith.constant 0 : index
    %1366 = vector.load %1365[%c20_661, %c0_662, %c0_663] : memref<99x8x128xf32, #tpu.memory_space<vmem>>, vector<1x8x128xf32>
    %1367 = vector.shape_cast %1366 : vector<1x8x128xf32> to vector<8x128xf32>
    %c0_i32_664 = arith.constant 0 : i32
    %c0_i32_665 = arith.constant 0 : i32
    %c0_i32_666 = arith.constant 0 : i32
    %1368 = tpu.memref_slice %arg3[%4, %c0_i32_664, %c0_i32_665, %c0_i32_666] : memref<1x99x8x128xf32, #tpu.memory_space<vmem>> -> memref<1x99x8x128xf32, #tpu.memory_space<vmem>>
    %1369 = tpu.memref_squeeze %1368 : memref<1x99x8x128xf32, #tpu.memory_space<vmem>> -> memref<99x8x128xf32, #tpu.memory_space<vmem>>
    %c17_667 = arith.constant 17 : index
    %c0_668 = arith.constant 0 : index
    %c0_669 = arith.constant 0 : index
    %1370 = vector.load %1369[%c17_667, %c0_668, %c0_669] : memref<99x8x128xf32, #tpu.memory_space<vmem>>, vector<1x8x128xf32>
    %1371 = vector.shape_cast %1370 : vector<1x8x128xf32> to vector<8x128xf32>
    %1372 = arith.subf %1367, %1371 : vector<8x128xf32>
    %1373 = arith.subf %1343, %1146 : vector<8x128xf32>
    %1374 = arith.subf %1344, %1147 : vector<8x128xf32>
    %1375 = arith.subf %1345, %1148 : vector<8x128xf32>
    %1376 = arith.mulf %1354, %1373 : vector<8x128xf32>
    %1377 = arith.mulf %1363, %1374 : vector<8x128xf32>
    %1378 = arith.addf %1376, %1377 : vector<8x128xf32>
    %1379 = arith.mulf %1372, %1375 : vector<8x128xf32>
    %1380 = arith.addf %1378, %1379 : vector<8x128xf32>
    %1381 = arith.mulf %1354, %1354 : vector<8x128xf32>
    %1382 = arith.mulf %1363, %1363 : vector<8x128xf32>
    %1383 = arith.addf %1381, %1382 : vector<8x128xf32>
    %1384 = arith.mulf %1372, %1372 : vector<8x128xf32>
    %1385 = arith.addf %1383, %1384 : vector<8x128xf32>
    %1386 = arith.mulf %1373, %1373 : vector<8x128xf32>
    %1387 = arith.mulf %1374, %1374 : vector<8x128xf32>
    %1388 = arith.addf %1386, %1387 : vector<8x128xf32>
    %1389 = arith.mulf %1375, %1375 : vector<8x128xf32>
    %1390 = arith.addf %1388, %1389 : vector<8x128xf32>
    %1391 = arith.mulf %1385, %1390 : vector<8x128xf32>
    %cst_670 = arith.constant 1.000000e-16 : f32
    %1392 = vector.broadcast %cst_670 : f32 to vector<8x128xf32>
    %1393 = arith.maximumf %1391, %1392 : vector<8x128xf32>
    %1394 = math.rsqrt %1393 : vector<8x128xf32>
    %1395 = arith.mulf %1380, %1394 : vector<8x128xf32>
    %c6_671 = arith.constant 6 : index
    %c0_672 = arith.constant 0 : index
    %c0_673 = arith.constant 0 : index
    %1396 = vector.load %arg5[%c6_671, %c0_672, %c0_673] : memref<15x8x128xf32, #tpu.memory_space<vmem>>, vector<1x8x128xf32>
    %1397 = vector.shape_cast %1396 : vector<1x8x128xf32> to vector<8x128xf32>
    %1398 = arith.addf %1397, %1395 : vector<8x128xf32>
    %c6_674 = arith.constant 6 : index
    %c0_675 = arith.constant 0 : index
    %c0_676 = arith.constant 0 : index
    %1399 = vector.load %arg5[%c6_674, %c0_675, %c0_676] : memref<15x8x128xf32, #tpu.memory_space<vmem>>, vector<1x8x128xf32>
    %1400 = vector.shape_cast %1399 : vector<1x8x128xf32> to vector<8x128xf32>
    %1401 = vector.shape_cast %1398 : vector<8x128xf32> to vector<1x8x128xf32>
    tpu.vector_store %arg5[%c6_674, %c0_675, %c0_676], %1401 {strides = array<i32>} : memref<15x8x128xf32, #tpu.memory_space<vmem>>, vector<1x8x128xf32>,
    %c0_i32_677 = arith.constant 0 : i32
    %c0_i32_678 = arith.constant 0 : i32
    %c0_i32_679 = arith.constant 0 : i32
    %1402 = tpu.memref_slice %arg2[%4, %c0_i32_677, %c0_i32_678, %c0_i32_679] : memref<1x90x8x128xf32, #tpu.memory_space<vmem>> -> memref<1x90x8x128xf32, #tpu.memory_space<vmem>>
    %1403 = tpu.memref_squeeze %1402 : memref<1x90x8x128xf32, #tpu.memory_space<vmem>> -> memref<90x8x128xf32, #tpu.memory_space<vmem>>
    %c42 = arith.constant 42 : index
    %c0_680 = arith.constant 0 : index
    %c0_681 = arith.constant 0 : index
    %1404 = vector.load %1403[%c42, %c0_680, %c0_681] : memref<90x8x128xf32, #tpu.memory_space<vmem>>, vector<1x8x128xf32>
    %1405 = vector.shape_cast %1404 : vector<1x8x128xf32> to vector<8x128xf32>
    %c0_i32_682 = arith.constant 0 : i32
    %c0_i32_683 = arith.constant 0 : i32
    %c0_i32_684 = arith.constant 0 : i32
    %1406 = tpu.memref_slice %arg2[%4, %c0_i32_682, %c0_i32_683, %c0_i32_684] : memref<1x90x8x128xf32, #tpu.memory_space<vmem>> -> memref<1x90x8x128xf32, #tpu.memory_space<vmem>>
    %1407 = tpu.memref_squeeze %1406 : memref<1x90x8x128xf32, #tpu.memory_space<vmem>> -> memref<90x8x128xf32, #tpu.memory_space<vmem>>
    %c43 = arith.constant 43 : index
    %c0_685 = arith.constant 0 : index
    %c0_686 = arith.constant 0 : index
    %1408 = vector.load %1407[%c43, %c0_685, %c0_686] : memref<90x8x128xf32, #tpu.memory_space<vmem>>, vector<1x8x128xf32>
    %1409 = vector.shape_cast %1408 : vector<1x8x128xf32> to vector<8x128xf32>
    %c0_i32_687 = arith.constant 0 : i32
    %c0_i32_688 = arith.constant 0 : i32
    %c0_i32_689 = arith.constant 0 : i32
    %1410 = tpu.memref_slice %arg2[%4, %c0_i32_687, %c0_i32_688, %c0_i32_689] : memref<1x90x8x128xf32, #tpu.memory_space<vmem>> -> memref<1x90x8x128xf32, #tpu.memory_space<vmem>>
    %1411 = tpu.memref_squeeze %1410 : memref<1x90x8x128xf32, #tpu.memory_space<vmem>> -> memref<90x8x128xf32, #tpu.memory_space<vmem>>
    %c44 = arith.constant 44 : index
    %c0_690 = arith.constant 0 : index
    %c0_691 = arith.constant 0 : index
    %1412 = vector.load %1411[%c44, %c0_690, %c0_691] : memref<90x8x128xf32, #tpu.memory_space<vmem>>, vector<1x8x128xf32>
    %1413 = vector.shape_cast %1412 : vector<1x8x128xf32> to vector<8x128xf32>
    %c0_i32_692 = arith.constant 0 : i32
    %c0_i32_693 = arith.constant 0 : i32
    %c0_i32_694 = arith.constant 0 : i32
    %1414 = tpu.memref_slice %arg2[%4, %c0_i32_692, %c0_i32_693, %c0_i32_694] : memref<1x90x8x128xf32, #tpu.memory_space<vmem>> -> memref<1x90x8x128xf32, #tpu.memory_space<vmem>>
    %1415 = tpu.memref_squeeze %1414 : memref<1x90x8x128xf32, #tpu.memory_space<vmem>> -> memref<90x8x128xf32, #tpu.memory_space<vmem>>
    %c45_695 = arith.constant 45 : index
    %c0_696 = arith.constant 0 : index
    %c0_697 = arith.constant 0 : index
    %1416 = vector.load %1415[%c45_695, %c0_696, %c0_697] : memref<90x8x128xf32, #tpu.memory_space<vmem>>, vector<1x8x128xf32>
    %1417 = vector.shape_cast %1416 : vector<1x8x128xf32> to vector<8x128xf32>
    %c0_i32_698 = arith.constant 0 : i32
    %c0_i32_699 = arith.constant 0 : i32
    %c0_i32_700 = arith.constant 0 : i32
    %1418 = tpu.memref_slice %arg2[%4, %c0_i32_698, %c0_i32_699, %c0_i32_700] : memref<1x90x8x128xf32, #tpu.memory_space<vmem>> -> memref<1x90x8x128xf32, #tpu.memory_space<vmem>>
    %1419 = tpu.memref_squeeze %1418 : memref<1x90x8x128xf32, #tpu.memory_space<vmem>> -> memref<90x8x128xf32, #tpu.memory_space<vmem>>
    %c46_701 = arith.constant 46 : index
    %c0_702 = arith.constant 0 : index
    %c0_703 = arith.constant 0 : index
    %1420 = vector.load %1419[%c46_701, %c0_702, %c0_703] : memref<90x8x128xf32, #tpu.memory_space<vmem>>, vector<1x8x128xf32>
    %1421 = vector.shape_cast %1420 : vector<1x8x128xf32> to vector<8x128xf32>
    %c0_i32_704 = arith.constant 0 : i32
    %c0_i32_705 = arith.constant 0 : i32
    %c0_i32_706 = arith.constant 0 : i32
    %1422 = tpu.memref_slice %arg2[%4, %c0_i32_704, %c0_i32_705, %c0_i32_706] : memref<1x90x8x128xf32, #tpu.memory_space<vmem>> -> memref<1x90x8x128xf32, #tpu.memory_space<vmem>>
    %1423 = tpu.memref_squeeze %1422 : memref<1x90x8x128xf32, #tpu.memory_space<vmem>> -> memref<90x8x128xf32, #tpu.memory_space<vmem>>
    %c47_707 = arith.constant 47 : index
    %c0_708 = arith.constant 0 : index
    %c0_709 = arith.constant 0 : index
    %1424 = vector.load %1423[%c47_707, %c0_708, %c0_709] : memref<90x8x128xf32, #tpu.memory_space<vmem>>, vector<1x8x128xf32>
    %1425 = vector.shape_cast %1424 : vector<1x8x128xf32> to vector<8x128xf32>
    %1426 = arith.mulf %1405, %1405 : vector<8x128xf32>
    %1427 = arith.mulf %1409, %1409 : vector<8x128xf32>
    %1428 = arith.addf %1426, %1427 : vector<8x128xf32>
    %1429 = arith.mulf %1413, %1413 : vector<8x128xf32>
    %1430 = arith.addf %1428, %1429 : vector<8x128xf32>
    %cst_710 = arith.constant 1.000000e-24 : f32
    %1431 = vector.broadcast %cst_710 : f32 to vector<8x128xf32>
    %1432 = arith.maximumf %1430, %1431 : vector<8x128xf32>
    %1433 = math.rsqrt %1432 : vector<8x128xf32>
    %1434 = arith.mulf %1405, %1433 : vector<8x128xf32>
    %1435 = arith.mulf %1409, %1433 : vector<8x128xf32>
    %1436 = arith.mulf %1413, %1433 : vector<8x128xf32>
    %1437 = arith.mulf %1434, %1417 : vector<8x128xf32>
    %1438 = arith.mulf %1435, %1421 : vector<8x128xf32>
    %1439 = arith.addf %1437, %1438 : vector<8x128xf32>
    %1440 = arith.mulf %1436, %1425 : vector<8x128xf32>
    %1441 = arith.addf %1439, %1440 : vector<8x128xf32>
    %1442 = arith.mulf %1441, %1434 : vector<8x128xf32>
    %1443 = arith.subf %1417, %1442 : vector<8x128xf32>
    %1444 = arith.mulf %1441, %1435 : vector<8x128xf32>
    %1445 = arith.subf %1421, %1444 : vector<8x128xf32>
    %1446 = arith.mulf %1441, %1436 : vector<8x128xf32>
    %1447 = arith.subf %1425, %1446 : vector<8x128xf32>
    %1448 = arith.mulf %1443, %1443 : vector<8x128xf32>
    %1449 = arith.mulf %1445, %1445 : vector<8x128xf32>
    %1450 = arith.addf %1448, %1449 : vector<8x128xf32>
    %1451 = arith.mulf %1447, %1447 : vector<8x128xf32>
    %1452 = arith.addf %1450, %1451 : vector<8x128xf32>
    %cst_711 = arith.constant 1.000000e-24 : f32
    %1453 = vector.broadcast %cst_711 : f32 to vector<8x128xf32>
    %1454 = arith.maximumf %1452, %1453 : vector<8x128xf32>
    %1455 = math.rsqrt %1454 : vector<8x128xf32>
    %1456 = arith.mulf %1443, %1455 : vector<8x128xf32>
    %1457 = arith.mulf %1445, %1455 : vector<8x128xf32>
    %1458 = arith.mulf %1447, %1455 : vector<8x128xf32>
    %1459 = arith.mulf %1435, %1458 : vector<8x128xf32>
    %1460 = arith.mulf %1436, %1457 : vector<8x128xf32>
    %1461 = arith.subf %1459, %1460 : vector<8x128xf32>
    %1462 = arith.mulf %1436, %1456 : vector<8x128xf32>
    %1463 = arith.mulf %1434, %1458 : vector<8x128xf32>
    %1464 = arith.subf %1462, %1463 : vector<8x128xf32>
    %1465 = arith.mulf %1434, %1457 : vector<8x128xf32>
    %1466 = arith.mulf %1435, %1456 : vector<8x128xf32>
    %1467 = arith.subf %1465, %1466 : vector<8x128xf32>
    %1468 = arith.mulf %1275, %1434 : vector<8x128xf32>
    %1469 = arith.mulf %1280, %1435 : vector<8x128xf32>
    %1470 = arith.addf %1468, %1469 : vector<8x128xf32>
    %1471 = arith.mulf %1285, %1436 : vector<8x128xf32>
    %1472 = arith.addf %1470, %1471 : vector<8x128xf32>
    %1473 = arith.mulf %1275, %1456 : vector<8x128xf32>
    %1474 = arith.mulf %1280, %1457 : vector<8x128xf32>
    %1475 = arith.addf %1473, %1474 : vector<8x128xf32>
    %1476 = arith.mulf %1285, %1458 : vector<8x128xf32>
    %1477 = arith.addf %1475, %1476 : vector<8x128xf32>
    %1478 = arith.mulf %1275, %1461 : vector<8x128xf32>
    %1479 = arith.mulf %1280, %1464 : vector<8x128xf32>
    %1480 = arith.addf %1478, %1479 : vector<8x128xf32>
    %1481 = arith.mulf %1285, %1467 : vector<8x128xf32>
    %1482 = arith.addf %1480, %1481 : vector<8x128xf32>
    %1483 = arith.mulf %1290, %1434 : vector<8x128xf32>
    %1484 = arith.mulf %1295, %1435 : vector<8x128xf32>
    %1485 = arith.addf %1483, %1484 : vector<8x128xf32>
    %1486 = arith.mulf %1300, %1436 : vector<8x128xf32>
    %1487 = arith.addf %1485, %1486 : vector<8x128xf32>
    %1488 = arith.mulf %1290, %1456 : vector<8x128xf32>
    %1489 = arith.mulf %1295, %1457 : vector<8x128xf32>
    %1490 = arith.addf %1488, %1489 : vector<8x128xf32>
    %1491 = arith.mulf %1300, %1458 : vector<8x128xf32>
    %1492 = arith.addf %1490, %1491 : vector<8x128xf32>
    %1493 = arith.mulf %1290, %1461 : vector<8x128xf32>
    %1494 = arith.mulf %1295, %1464 : vector<8x128xf32>
    %1495 = arith.addf %1493, %1494 : vector<8x128xf32>
    %1496 = arith.mulf %1300, %1467 : vector<8x128xf32>
    %1497 = arith.addf %1495, %1496 : vector<8x128xf32>
    %1498 = arith.mulf %1305, %1434 : vector<8x128xf32>
    %1499 = arith.mulf %1310, %1435 : vector<8x128xf32>
    %1500 = arith.addf %1498, %1499 : vector<8x128xf32>
    %1501 = arith.mulf %1315, %1436 : vector<8x128xf32>
    %1502 = arith.addf %1500, %1501 : vector<8x128xf32>
    %1503 = arith.mulf %1305, %1456 : vector<8x128xf32>
    %1504 = arith.mulf %1310, %1457 : vector<8x128xf32>
    %1505 = arith.addf %1503, %1504 : vector<8x128xf32>
    %1506 = arith.mulf %1315, %1458 : vector<8x128xf32>
    %1507 = arith.addf %1505, %1506 : vector<8x128xf32>
    %1508 = arith.mulf %1305, %1461 : vector<8x128xf32>
    %1509 = arith.mulf %1310, %1464 : vector<8x128xf32>
    %1510 = arith.addf %1508, %1509 : vector<8x128xf32>
    %1511 = arith.mulf %1315, %1467 : vector<8x128xf32>
    %1512 = arith.addf %1510, %1511 : vector<8x128xf32>
    %c0_i32_712 = arith.constant 0 : i32
    %c0_i32_713 = arith.constant 0 : i32
    %c0_i32_714 = arith.constant 0 : i32
    %1513 = tpu.memref_slice %arg3[%4, %c0_i32_712, %c0_i32_713, %c0_i32_714] : memref<1x99x8x128xf32, #tpu.memory_space<vmem>> -> memref<1x99x8x128xf32, #tpu.memory_space<vmem>>
    %1514 = tpu.memref_squeeze %1513 : memref<1x99x8x128xf32, #tpu.memory_space<vmem>> -> memref<99x8x128xf32, #tpu.memory_space<vmem>>
    %c66 = arith.constant 66 : index
    %c0_715 = arith.constant 0 : index
    %c0_716 = arith.constant 0 : index
    %1515 = vector.load %1514[%c66, %c0_715, %c0_716] : memref<99x8x128xf32, #tpu.memory_space<vmem>>, vector<1x8x128xf32>
    %1516 = vector.shape_cast %1515 : vector<1x8x128xf32> to vector<8x128xf32>
    %c0_i32_717 = arith.constant 0 : i32
    %c0_i32_718 = arith.constant 0 : i32
    %c0_i32_719 = arith.constant 0 : i32
    %1517 = tpu.memref_slice %arg3[%4, %c0_i32_717, %c0_i32_718, %c0_i32_719] : memref<1x99x8x128xf32, #tpu.memory_space<vmem>> -> memref<1x99x8x128xf32, #tpu.memory_space<vmem>>
    %1518 = tpu.memref_squeeze %1517 : memref<1x99x8x128xf32, #tpu.memory_space<vmem>> -> memref<99x8x128xf32, #tpu.memory_space<vmem>>
    %c67 = arith.constant 67 : index
    %c0_720 = arith.constant 0 : index
    %c0_721 = arith.constant 0 : index
    %1519 = vector.load %1518[%c67, %c0_720, %c0_721] : memref<99x8x128xf32, #tpu.memory_space<vmem>>, vector<1x8x128xf32>
    %1520 = vector.shape_cast %1519 : vector<1x8x128xf32> to vector<8x128xf32>
    %c0_i32_722 = arith.constant 0 : i32
    %c0_i32_723 = arith.constant 0 : i32
    %c0_i32_724 = arith.constant 0 : i32
    %1521 = tpu.memref_slice %arg3[%4, %c0_i32_722, %c0_i32_723, %c0_i32_724] : memref<1x99x8x128xf32, #tpu.memory_space<vmem>> -> memref<1x99x8x128xf32, #tpu.memory_space<vmem>>
    %1522 = tpu.memref_squeeze %1521 : memref<1x99x8x128xf32, #tpu.memory_space<vmem>> -> memref<99x8x128xf32, #tpu.memory_space<vmem>>
    %c68 = arith.constant 68 : index
    %c0_725 = arith.constant 0 : index
    %c0_726 = arith.constant 0 : index
    %1523 = vector.load %1522[%c68, %c0_725, %c0_726] : memref<99x8x128xf32, #tpu.memory_space<vmem>>, vector<1x8x128xf32>
    %1524 = vector.shape_cast %1523 : vector<1x8x128xf32> to vector<8x128xf32>
    %1525 = arith.mulf %1472, %1516 : vector<8x128xf32>
    %1526 = arith.mulf %1477, %1520 : vector<8x128xf32>
    %1527 = arith.addf %1525, %1526 : vector<8x128xf32>
    %1528 = arith.mulf %1482, %1524 : vector<8x128xf32>
    %1529 = arith.addf %1527, %1528 : vector<8x128xf32>
    %1530 = arith.mulf %1487, %1516 : vector<8x128xf32>
    %1531 = arith.mulf %1492, %1520 : vector<8x128xf32>
    %1532 = arith.addf %1530, %1531 : vector<8x128xf32>
    %1533 = arith.mulf %1497, %1524 : vector<8x128xf32>
    %1534 = arith.addf %1532, %1533 : vector<8x128xf32>
    %1535 = arith.mulf %1502, %1516 : vector<8x128xf32>
    %1536 = arith.mulf %1507, %1520 : vector<8x128xf32>
    %1537 = arith.addf %1535, %1536 : vector<8x128xf32>
    %1538 = arith.mulf %1512, %1524 : vector<8x128xf32>
    %1539 = arith.addf %1537, %1538 : vector<8x128xf32>
    %1540 = arith.addf %1343, %1529 : vector<8x128xf32>
    %1541 = arith.addf %1344, %1534 : vector<8x128xf32>
    %1542 = arith.addf %1345, %1539 : vector<8x128xf32>
    %c0_i32_727 = arith.constant 0 : i32
    %c0_i32_728 = arith.constant 0 : i32
    %c0_i32_729 = arith.constant 0 : i32
    %1543 = tpu.memref_slice %arg3[%4, %c0_i32_727, %c0_i32_728, %c0_i32_729] : memref<1x99x8x128xf32, #tpu.memory_space<vmem>> -> memref<1x99x8x128xf32, #tpu.memory_space<vmem>>
    %1544 = tpu.memref_squeeze %1543 : memref<1x99x8x128xf32, #tpu.memory_space<vmem>> -> memref<99x8x128xf32, #tpu.memory_space<vmem>>
    %c21_730 = arith.constant 21 : index
    %c0_731 = arith.constant 0 : index
    %c0_732 = arith.constant 0 : index
    %1545 = vector.load %1544[%c21_730, %c0_731, %c0_732] : memref<99x8x128xf32, #tpu.memory_space<vmem>>, vector<1x8x128xf32>
    %1546 = vector.shape_cast %1545 : vector<1x8x128xf32> to vector<8x128xf32>
    %c0_i32_733 = arith.constant 0 : i32
    %c0_i32_734 = arith.constant 0 : i32
    %c0_i32_735 = arith.constant 0 : i32
    %1547 = tpu.memref_slice %arg3[%4, %c0_i32_733, %c0_i32_734, %c0_i32_735] : memref<1x99x8x128xf32, #tpu.memory_space<vmem>> -> memref<1x99x8x128xf32, #tpu.memory_space<vmem>>
    %1548 = tpu.memref_squeeze %1547 : memref<1x99x8x128xf32, #tpu.memory_space<vmem>> -> memref<99x8x128xf32, #tpu.memory_space<vmem>>
    %c18_736 = arith.constant 18 : index
    %c0_737 = arith.constant 0 : index
    %c0_738 = arith.constant 0 : index
    %1549 = vector.load %1548[%c18_736, %c0_737, %c0_738] : memref<99x8x128xf32, #tpu.memory_space<vmem>>, vector<1x8x128xf32>
    %1550 = vector.shape_cast %1549 : vector<1x8x128xf32> to vector<8x128xf32>
    %1551 = arith.subf %1546, %1550 : vector<8x128xf32>
    %c0_i32_739 = arith.constant 0 : i32
    %c0_i32_740 = arith.constant 0 : i32
    %c0_i32_741 = arith.constant 0 : i32
    %1552 = tpu.memref_slice %arg3[%4, %c0_i32_739, %c0_i32_740, %c0_i32_741] : memref<1x99x8x128xf32, #tpu.memory_space<vmem>> -> memref<1x99x8x128xf32, #tpu.memory_space<vmem>>
    %1553 = tpu.memref_squeeze %1552 : memref<1x99x8x128xf32, #tpu.memory_space<vmem>> -> memref<99x8x128xf32, #tpu.memory_space<vmem>>
    %c22_742 = arith.constant 22 : index
    %c0_743 = arith.constant 0 : index
    %c0_744 = arith.constant 0 : index
    %1554 = vector.load %1553[%c22_742, %c0_743, %c0_744] : memref<99x8x128xf32, #tpu.memory_space<vmem>>, vector<1x8x128xf32>
    %1555 = vector.shape_cast %1554 : vector<1x8x128xf32> to vector<8x128xf32>
    %c0_i32_745 = arith.constant 0 : i32
    %c0_i32_746 = arith.constant 0 : i32
    %c0_i32_747 = arith.constant 0 : i32
    %1556 = tpu.memref_slice %arg3[%4, %c0_i32_745, %c0_i32_746, %c0_i32_747] : memref<1x99x8x128xf32, #tpu.memory_space<vmem>> -> memref<1x99x8x128xf32, #tpu.memory_space<vmem>>
    %1557 = tpu.memref_squeeze %1556 : memref<1x99x8x128xf32, #tpu.memory_space<vmem>> -> memref<99x8x128xf32, #tpu.memory_space<vmem>>
    %c19_748 = arith.constant 19 : index
    %c0_749 = arith.constant 0 : index
    %c0_750 = arith.constant 0 : index
    %1558 = vector.load %1557[%c19_748, %c0_749, %c0_750] : memref<99x8x128xf32, #tpu.memory_space<vmem>>, vector<1x8x128xf32>
    %1559 = vector.shape_cast %1558 : vector<1x8x128xf32> to vector<8x128xf32>
    %1560 = arith.subf %1555, %1559 : vector<8x128xf32>
    %c0_i32_751 = arith.constant 0 : i32
    %c0_i32_752 = arith.constant 0 : i32
    %c0_i32_753 = arith.constant 0 : i32
    %1561 = tpu.memref_slice %arg3[%4, %c0_i32_751, %c0_i32_752, %c0_i32_753] : memref<1x99x8x128xf32, #tpu.memory_space<vmem>> -> memref<1x99x8x128xf32, #tpu.memory_space<vmem>>
    %1562 = tpu.memref_squeeze %1561 : memref<1x99x8x128xf32, #tpu.memory_space<vmem>> -> memref<99x8x128xf32, #tpu.memory_space<vmem>>
    %c23_754 = arith.constant 23 : index
    %c0_755 = arith.constant 0 : index
    %c0_756 = arith.constant 0 : index
    %1563 = vector.load %1562[%c23_754, %c0_755, %c0_756] : memref<99x8x128xf32, #tpu.memory_space<vmem>>, vector<1x8x128xf32>
    %1564 = vector.shape_cast %1563 : vector<1x8x128xf32> to vector<8x128xf32>
    %c0_i32_757 = arith.constant 0 : i32
    %c0_i32_758 = arith.constant 0 : i32
    %c0_i32_759 = arith.constant 0 : i32
    %1565 = tpu.memref_slice %arg3[%4, %c0_i32_757, %c0_i32_758, %c0_i32_759] : memref<1x99x8x128xf32, #tpu.memory_space<vmem>> -> memref<1x99x8x128xf32, #tpu.memory_space<vmem>>
    %1566 = tpu.memref_squeeze %1565 : memref<1x99x8x128xf32, #tpu.memory_space<vmem>> -> memref<99x8x128xf32, #tpu.memory_space<vmem>>
    %c20_760 = arith.constant 20 : index
    %c0_761 = arith.constant 0 : index
    %c0_762 = arith.constant 0 : index
    %1567 = vector.load %1566[%c20_760, %c0_761, %c0_762] : memref<99x8x128xf32, #tpu.memory_space<vmem>>, vector<1x8x128xf32>
    %1568 = vector.shape_cast %1567 : vector<1x8x128xf32> to vector<8x128xf32>
    %1569 = arith.subf %1564, %1568 : vector<8x128xf32>
    %1570 = arith.subf %1540, %1343 : vector<8x128xf32>
    %1571 = arith.subf %1541, %1344 : vector<8x128xf32>
    %1572 = arith.subf %1542, %1345 : vector<8x128xf32>
    %1573 = arith.mulf %1551, %1570 : vector<8x128xf32>
    %1574 = arith.mulf %1560, %1571 : vector<8x128xf32>
    %1575 = arith.addf %1573, %1574 : vector<8x128xf32>
    %1576 = arith.mulf %1569, %1572 : vector<8x128xf32>
    %1577 = arith.addf %1575, %1576 : vector<8x128xf32>
    %1578 = arith.mulf %1551, %1551 : vector<8x128xf32>
    %1579 = arith.mulf %1560, %1560 : vector<8x128xf32>
    %1580 = arith.addf %1578, %1579 : vector<8x128xf32>
    %1581 = arith.mulf %1569, %1569 : vector<8x128xf32>
    %1582 = arith.addf %1580, %1581 : vector<8x128xf32>
    %1583 = arith.mulf %1570, %1570 : vector<8x128xf32>
    %1584 = arith.mulf %1571, %1571 : vector<8x128xf32>
    %1585 = arith.addf %1583, %1584 : vector<8x128xf32>
    %1586 = arith.mulf %1572, %1572 : vector<8x128xf32>
    %1587 = arith.addf %1585, %1586 : vector<8x128xf32>
    %1588 = arith.mulf %1582, %1587 : vector<8x128xf32>
    %cst_763 = arith.constant 1.000000e-16 : f32
    %1589 = vector.broadcast %cst_763 : f32 to vector<8x128xf32>
    %1590 = arith.maximumf %1588, %1589 : vector<8x128xf32>
    %1591 = math.rsqrt %1590 : vector<8x128xf32>
    %1592 = arith.mulf %1577, %1591 : vector<8x128xf32>
    %c7_764 = arith.constant 7 : index
    %c0_765 = arith.constant 0 : index
    %c0_766 = arith.constant 0 : index
    %1593 = vector.load %arg5[%c7_764, %c0_765, %c0_766] : memref<15x8x128xf32, #tpu.memory_space<vmem>>, vector<1x8x128xf32>
    %1594 = vector.shape_cast %1593 : vector<1x8x128xf32> to vector<8x128xf32>
    %1595 = arith.addf %1594, %1592 : vector<8x128xf32>
    %c7_767 = arith.constant 7 : index
    %c0_768 = arith.constant 0 : index
    %c0_769 = arith.constant 0 : index
    %1596 = vector.load %arg5[%c7_767, %c0_768, %c0_769] : memref<15x8x128xf32, #tpu.memory_space<vmem>>, vector<1x8x128xf32>
    %1597 = vector.shape_cast %1596 : vector<1x8x128xf32> to vector<8x128xf32>
    %1598 = vector.shape_cast %1595 : vector<8x128xf32> to vector<1x8x128xf32>
    tpu.vector_store %arg5[%c7_767, %c0_768, %c0_769], %1598 {strides = array<i32>} : memref<15x8x128xf32, #tpu.memory_space<vmem>>, vector<1x8x128xf32>,
    %c0_i32_770 = arith.constant 0 : i32
    %c0_i32_771 = arith.constant 0 : i32
    %c0_i32_772 = arith.constant 0 : i32
    %1599 = tpu.memref_slice %arg2[%4, %c0_i32_770, %c0_i32_771, %c0_i32_772] : memref<1x90x8x128xf32, #tpu.memory_space<vmem>> -> memref<1x90x8x128xf32, #tpu.memory_space<vmem>>
    %1600 = tpu.memref_squeeze %1599 : memref<1x90x8x128xf32, #tpu.memory_space<vmem>> -> memref<90x8x128xf32, #tpu.memory_space<vmem>>
    %c48_773 = arith.constant 48 : index
    %c0_774 = arith.constant 0 : index
    %c0_775 = arith.constant 0 : index
    %1601 = vector.load %1600[%c48_773, %c0_774, %c0_775] : memref<90x8x128xf32, #tpu.memory_space<vmem>>, vector<1x8x128xf32>
    %1602 = vector.shape_cast %1601 : vector<1x8x128xf32> to vector<8x128xf32>
    %c0_i32_776 = arith.constant 0 : i32
    %c0_i32_777 = arith.constant 0 : i32
    %c0_i32_778 = arith.constant 0 : i32
    %1603 = tpu.memref_slice %arg2[%4, %c0_i32_776, %c0_i32_777, %c0_i32_778] : memref<1x90x8x128xf32, #tpu.memory_space<vmem>> -> memref<1x90x8x128xf32, #tpu.memory_space<vmem>>
    %1604 = tpu.memref_squeeze %1603 : memref<1x90x8x128xf32, #tpu.memory_space<vmem>> -> memref<90x8x128xf32, #tpu.memory_space<vmem>>
    %c49_779 = arith.constant 49 : index
    %c0_780 = arith.constant 0 : index
    %c0_781 = arith.constant 0 : index
    %1605 = vector.load %1604[%c49_779, %c0_780, %c0_781] : memref<90x8x128xf32, #tpu.memory_space<vmem>>, vector<1x8x128xf32>
    %1606 = vector.shape_cast %1605 : vector<1x8x128xf32> to vector<8x128xf32>
    %c0_i32_782 = arith.constant 0 : i32
    %c0_i32_783 = arith.constant 0 : i32
    %c0_i32_784 = arith.constant 0 : i32
    %1607 = tpu.memref_slice %arg2[%4, %c0_i32_782, %c0_i32_783, %c0_i32_784] : memref<1x90x8x128xf32, #tpu.memory_space<vmem>> -> memref<1x90x8x128xf32, #tpu.memory_space<vmem>>
    %1608 = tpu.memref_squeeze %1607 : memref<1x90x8x128xf32, #tpu.memory_space<vmem>> -> memref<90x8x128xf32, #tpu.memory_space<vmem>>
    %c50_785 = arith.constant 50 : index
    %c0_786 = arith.constant 0 : index
    %c0_787 = arith.constant 0 : index
    %1609 = vector.load %1608[%c50_785, %c0_786, %c0_787] : memref<90x8x128xf32, #tpu.memory_space<vmem>>, vector<1x8x128xf32>
    %1610 = vector.shape_cast %1609 : vector<1x8x128xf32> to vector<8x128xf32>
    %c0_i32_788 = arith.constant 0 : i32
    %c0_i32_789 = arith.constant 0 : i32
    %c0_i32_790 = arith.constant 0 : i32
    %1611 = tpu.memref_slice %arg2[%4, %c0_i32_788, %c0_i32_789, %c0_i32_790] : memref<1x90x8x128xf32, #tpu.memory_space<vmem>> -> memref<1x90x8x128xf32, #tpu.memory_space<vmem>>
    %1612 = tpu.memref_squeeze %1611 : memref<1x90x8x128xf32, #tpu.memory_space<vmem>> -> memref<90x8x128xf32, #tpu.memory_space<vmem>>
    %c51_791 = arith.constant 51 : index
    %c0_792 = arith.constant 0 : index
    %c0_793 = arith.constant 0 : index
    %1613 = vector.load %1612[%c51_791, %c0_792, %c0_793] : memref<90x8x128xf32, #tpu.memory_space<vmem>>, vector<1x8x128xf32>
    %1614 = vector.shape_cast %1613 : vector<1x8x128xf32> to vector<8x128xf32>
    %c0_i32_794 = arith.constant 0 : i32
    %c0_i32_795 = arith.constant 0 : i32
    %c0_i32_796 = arith.constant 0 : i32
    %1615 = tpu.memref_slice %arg2[%4, %c0_i32_794, %c0_i32_795, %c0_i32_796] : memref<1x90x8x128xf32, #tpu.memory_space<vmem>> -> memref<1x90x8x128xf32, #tpu.memory_space<vmem>>
    %1616 = tpu.memref_squeeze %1615 : memref<1x90x8x128xf32, #tpu.memory_space<vmem>> -> memref<90x8x128xf32, #tpu.memory_space<vmem>>
    %c52_797 = arith.constant 52 : index
    %c0_798 = arith.constant 0 : index
    %c0_799 = arith.constant 0 : index
    %1617 = vector.load %1616[%c52_797, %c0_798, %c0_799] : memref<90x8x128xf32, #tpu.memory_space<vmem>>, vector<1x8x128xf32>
    %1618 = vector.shape_cast %1617 : vector<1x8x128xf32> to vector<8x128xf32>
    %c0_i32_800 = arith.constant 0 : i32
    %c0_i32_801 = arith.constant 0 : i32
    %c0_i32_802 = arith.constant 0 : i32
    %1619 = tpu.memref_slice %arg2[%4, %c0_i32_800, %c0_i32_801, %c0_i32_802] : memref<1x90x8x128xf32, #tpu.memory_space<vmem>> -> memref<1x90x8x128xf32, #tpu.memory_space<vmem>>
    %1620 = tpu.memref_squeeze %1619 : memref<1x90x8x128xf32, #tpu.memory_space<vmem>> -> memref<90x8x128xf32, #tpu.memory_space<vmem>>
    %c53_803 = arith.constant 53 : index
    %c0_804 = arith.constant 0 : index
    %c0_805 = arith.constant 0 : index
    %1621 = vector.load %1620[%c53_803, %c0_804, %c0_805] : memref<90x8x128xf32, #tpu.memory_space<vmem>>, vector<1x8x128xf32>
    %1622 = vector.shape_cast %1621 : vector<1x8x128xf32> to vector<8x128xf32>
    %1623 = arith.mulf %1602, %1602 : vector<8x128xf32>
    %1624 = arith.mulf %1606, %1606 : vector<8x128xf32>
    %1625 = arith.addf %1623, %1624 : vector<8x128xf32>
    %1626 = arith.mulf %1610, %1610 : vector<8x128xf32>
    %1627 = arith.addf %1625, %1626 : vector<8x128xf32>
    %cst_806 = arith.constant 1.000000e-24 : f32
    %1628 = vector.broadcast %cst_806 : f32 to vector<8x128xf32>
    %1629 = arith.maximumf %1627, %1628 : vector<8x128xf32>
    %1630 = math.rsqrt %1629 : vector<8x128xf32>
    %1631 = arith.mulf %1602, %1630 : vector<8x128xf32>
    %1632 = arith.mulf %1606, %1630 : vector<8x128xf32>
    %1633 = arith.mulf %1610, %1630 : vector<8x128xf32>
    %1634 = arith.mulf %1631, %1614 : vector<8x128xf32>
    %1635 = arith.mulf %1632, %1618 : vector<8x128xf32>
    %1636 = arith.addf %1634, %1635 : vector<8x128xf32>
    %1637 = arith.mulf %1633, %1622 : vector<8x128xf32>
    %1638 = arith.addf %1636, %1637 : vector<8x128xf32>
    %1639 = arith.mulf %1638, %1631 : vector<8x128xf32>
    %1640 = arith.subf %1614, %1639 : vector<8x128xf32>
    %1641 = arith.mulf %1638, %1632 : vector<8x128xf32>
    %1642 = arith.subf %1618, %1641 : vector<8x128xf32>
    %1643 = arith.mulf %1638, %1633 : vector<8x128xf32>
    %1644 = arith.subf %1622, %1643 : vector<8x128xf32>
    %1645 = arith.mulf %1640, %1640 : vector<8x128xf32>
    %1646 = arith.mulf %1642, %1642 : vector<8x128xf32>
    %1647 = arith.addf %1645, %1646 : vector<8x128xf32>
    %1648 = arith.mulf %1644, %1644 : vector<8x128xf32>
    %1649 = arith.addf %1647, %1648 : vector<8x128xf32>
    %cst_807 = arith.constant 1.000000e-24 : f32
    %1650 = vector.broadcast %cst_807 : f32 to vector<8x128xf32>
    %1651 = arith.maximumf %1649, %1650 : vector<8x128xf32>
    %1652 = math.rsqrt %1651 : vector<8x128xf32>
    %1653 = arith.mulf %1640, %1652 : vector<8x128xf32>
    %1654 = arith.mulf %1642, %1652 : vector<8x128xf32>
    %1655 = arith.mulf %1644, %1652 : vector<8x128xf32>
    %1656 = arith.mulf %1632, %1655 : vector<8x128xf32>
    %1657 = arith.mulf %1633, %1654 : vector<8x128xf32>
    %1658 = arith.subf %1656, %1657 : vector<8x128xf32>
    %1659 = arith.mulf %1633, %1653 : vector<8x128xf32>
    %1660 = arith.mulf %1631, %1655 : vector<8x128xf32>
    %1661 = arith.subf %1659, %1660 : vector<8x128xf32>
    %1662 = arith.mulf %1631, %1654 : vector<8x128xf32>
    %1663 = arith.mulf %1632, %1653 : vector<8x128xf32>
    %1664 = arith.subf %1662, %1663 : vector<8x128xf32>
    %1665 = arith.mulf %111, %1631 : vector<8x128xf32>
    %1666 = arith.mulf %116, %1632 : vector<8x128xf32>
    %1667 = arith.addf %1665, %1666 : vector<8x128xf32>
    %1668 = arith.mulf %121, %1633 : vector<8x128xf32>
    %1669 = arith.addf %1667, %1668 : vector<8x128xf32>
    %1670 = arith.mulf %111, %1653 : vector<8x128xf32>
    %1671 = arith.mulf %116, %1654 : vector<8x128xf32>
    %1672 = arith.addf %1670, %1671 : vector<8x128xf32>
    %1673 = arith.mulf %121, %1655 : vector<8x128xf32>
    %1674 = arith.addf %1672, %1673 : vector<8x128xf32>
    %1675 = arith.mulf %111, %1658 : vector<8x128xf32>
    %1676 = arith.mulf %116, %1661 : vector<8x128xf32>
    %1677 = arith.addf %1675, %1676 : vector<8x128xf32>
    %1678 = arith.mulf %121, %1664 : vector<8x128xf32>
    %1679 = arith.addf %1677, %1678 : vector<8x128xf32>
    %1680 = arith.mulf %126, %1631 : vector<8x128xf32>
    %1681 = arith.mulf %131, %1632 : vector<8x128xf32>
    %1682 = arith.addf %1680, %1681 : vector<8x128xf32>
    %1683 = arith.mulf %136, %1633 : vector<8x128xf32>
    %1684 = arith.addf %1682, %1683 : vector<8x128xf32>
    %1685 = arith.mulf %126, %1653 : vector<8x128xf32>
    %1686 = arith.mulf %131, %1654 : vector<8x128xf32>
    %1687 = arith.addf %1685, %1686 : vector<8x128xf32>
    %1688 = arith.mulf %136, %1655 : vector<8x128xf32>
    %1689 = arith.addf %1687, %1688 : vector<8x128xf32>
    %1690 = arith.mulf %126, %1658 : vector<8x128xf32>
    %1691 = arith.mulf %131, %1661 : vector<8x128xf32>
    %1692 = arith.addf %1690, %1691 : vector<8x128xf32>
    %1693 = arith.mulf %136, %1664 : vector<8x128xf32>
    %1694 = arith.addf %1692, %1693 : vector<8x128xf32>
    %1695 = arith.mulf %141, %1631 : vector<8x128xf32>
    %1696 = arith.mulf %146, %1632 : vector<8x128xf32>
    %1697 = arith.addf %1695, %1696 : vector<8x128xf32>
    %1698 = arith.mulf %151, %1633 : vector<8x128xf32>
    %1699 = arith.addf %1697, %1698 : vector<8x128xf32>
    %1700 = arith.mulf %141, %1653 : vector<8x128xf32>
    %1701 = arith.mulf %146, %1654 : vector<8x128xf32>
    %1702 = arith.addf %1700, %1701 : vector<8x128xf32>
    %1703 = arith.mulf %151, %1655 : vector<8x128xf32>
    %1704 = arith.addf %1702, %1703 : vector<8x128xf32>
    %1705 = arith.mulf %141, %1658 : vector<8x128xf32>
    %1706 = arith.mulf %146, %1661 : vector<8x128xf32>
    %1707 = arith.addf %1705, %1706 : vector<8x128xf32>
    %1708 = arith.mulf %151, %1664 : vector<8x128xf32>
    %1709 = arith.addf %1707, %1708 : vector<8x128xf32>
    %c0_i32_808 = arith.constant 0 : i32
    %c0_i32_809 = arith.constant 0 : i32
    %c0_i32_810 = arith.constant 0 : i32
    %1710 = tpu.memref_slice %arg3[%4, %c0_i32_808, %c0_i32_809, %c0_i32_810] : memref<1x99x8x128xf32, #tpu.memory_space<vmem>> -> memref<1x99x8x128xf32, #tpu.memory_space<vmem>>
    %1711 = tpu.memref_squeeze %1710 : memref<1x99x8x128xf32, #tpu.memory_space<vmem>> -> memref<99x8x128xf32, #tpu.memory_space<vmem>>
    %c69 = arith.constant 69 : index
    %c0_811 = arith.constant 0 : index
    %c0_812 = arith.constant 0 : index
    %1712 = vector.load %1711[%c69, %c0_811, %c0_812] : memref<99x8x128xf32, #tpu.memory_space<vmem>>, vector<1x8x128xf32>
    %1713 = vector.shape_cast %1712 : vector<1x8x128xf32> to vector<8x128xf32>
    %c0_i32_813 = arith.constant 0 : i32
    %c0_i32_814 = arith.constant 0 : i32
    %c0_i32_815 = arith.constant 0 : i32
    %1714 = tpu.memref_slice %arg3[%4, %c0_i32_813, %c0_i32_814, %c0_i32_815] : memref<1x99x8x128xf32, #tpu.memory_space<vmem>> -> memref<1x99x8x128xf32, #tpu.memory_space<vmem>>
    %1715 = tpu.memref_squeeze %1714 : memref<1x99x8x128xf32, #tpu.memory_space<vmem>> -> memref<99x8x128xf32, #tpu.memory_space<vmem>>
    %c70 = arith.constant 70 : index
    %c0_816 = arith.constant 0 : index
    %c0_817 = arith.constant 0 : index
    %1716 = vector.load %1715[%c70, %c0_816, %c0_817] : memref<99x8x128xf32, #tpu.memory_space<vmem>>, vector<1x8x128xf32>
    %1717 = vector.shape_cast %1716 : vector<1x8x128xf32> to vector<8x128xf32>
    %c0_i32_818 = arith.constant 0 : i32
    %c0_i32_819 = arith.constant 0 : i32
    %c0_i32_820 = arith.constant 0 : i32
    %1718 = tpu.memref_slice %arg3[%4, %c0_i32_818, %c0_i32_819, %c0_i32_820] : memref<1x99x8x128xf32, #tpu.memory_space<vmem>> -> memref<1x99x8x128xf32, #tpu.memory_space<vmem>>
    %1719 = tpu.memref_squeeze %1718 : memref<1x99x8x128xf32, #tpu.memory_space<vmem>> -> memref<99x8x128xf32, #tpu.memory_space<vmem>>
    %c71 = arith.constant 71 : index
    %c0_821 = arith.constant 0 : index
    %c0_822 = arith.constant 0 : index
    %1720 = vector.load %1719[%c71, %c0_821, %c0_822] : memref<99x8x128xf32, #tpu.memory_space<vmem>>, vector<1x8x128xf32>
    %1721 = vector.shape_cast %1720 : vector<1x8x128xf32> to vector<8x128xf32>
    %1722 = arith.mulf %1669, %1713 : vector<8x128xf32>
    %1723 = arith.mulf %1674, %1717 : vector<8x128xf32>
    %1724 = arith.addf %1722, %1723 : vector<8x128xf32>
    %1725 = arith.mulf %1679, %1721 : vector<8x128xf32>
    %1726 = arith.addf %1724, %1725 : vector<8x128xf32>
    %1727 = arith.mulf %1684, %1713 : vector<8x128xf32>
    %1728 = arith.mulf %1689, %1717 : vector<8x128xf32>
    %1729 = arith.addf %1727, %1728 : vector<8x128xf32>
    %1730 = arith.mulf %1694, %1721 : vector<8x128xf32>
    %1731 = arith.addf %1729, %1730 : vector<8x128xf32>
    %1732 = arith.mulf %1699, %1713 : vector<8x128xf32>
    %1733 = arith.mulf %1704, %1717 : vector<8x128xf32>
    %1734 = arith.addf %1732, %1733 : vector<8x128xf32>
    %1735 = arith.mulf %1709, %1721 : vector<8x128xf32>
    %1736 = arith.addf %1734, %1735 : vector<8x128xf32>
    %1737 = arith.addf %155, %1726 : vector<8x128xf32>
    %1738 = arith.addf %159, %1731 : vector<8x128xf32>
    %1739 = arith.addf %163, %1736 : vector<8x128xf32>
    %c0_i32_823 = arith.constant 0 : i32
    %c0_i32_824 = arith.constant 0 : i32
    %c0_i32_825 = arith.constant 0 : i32
    %1740 = tpu.memref_slice %arg3[%4, %c0_i32_823, %c0_i32_824, %c0_i32_825] : memref<1x99x8x128xf32, #tpu.memory_space<vmem>> -> memref<1x99x8x128xf32, #tpu.memory_space<vmem>>
    %1741 = tpu.memref_squeeze %1740 : memref<1x99x8x128xf32, #tpu.memory_space<vmem>> -> memref<99x8x128xf32, #tpu.memory_space<vmem>>
    %c24_826 = arith.constant 24 : index
    %c0_827 = arith.constant 0 : index
    %c0_828 = arith.constant 0 : index
    %1742 = vector.load %1741[%c24_826, %c0_827, %c0_828] : memref<99x8x128xf32, #tpu.memory_space<vmem>>, vector<1x8x128xf32>
    %1743 = vector.shape_cast %1742 : vector<1x8x128xf32> to vector<8x128xf32>
    %c0_i32_829 = arith.constant 0 : i32
    %c0_i32_830 = arith.constant 0 : i32
    %c0_i32_831 = arith.constant 0 : i32
    %1744 = tpu.memref_slice %arg3[%4, %c0_i32_829, %c0_i32_830, %c0_i32_831] : memref<1x99x8x128xf32, #tpu.memory_space<vmem>> -> memref<1x99x8x128xf32, #tpu.memory_space<vmem>>
    %1745 = tpu.memref_squeeze %1744 : memref<1x99x8x128xf32, #tpu.memory_space<vmem>> -> memref<99x8x128xf32, #tpu.memory_space<vmem>>
    %c0_832 = arith.constant 0 : index
    %c0_833 = arith.constant 0 : index
    %c0_834 = arith.constant 0 : index
    %1746 = vector.load %1745[%c0_832, %c0_833, %c0_834] : memref<99x8x128xf32, #tpu.memory_space<vmem>>, vector<1x8x128xf32>
    %1747 = vector.shape_cast %1746 : vector<1x8x128xf32> to vector<8x128xf32>
    %1748 = arith.subf %1743, %1747 : vector<8x128xf32>
    %c0_i32_835 = arith.constant 0 : i32
    %c0_i32_836 = arith.constant 0 : i32
    %c0_i32_837 = arith.constant 0 : i32
    %1749 = tpu.memref_slice %arg3[%4, %c0_i32_835, %c0_i32_836, %c0_i32_837] : memref<1x99x8x128xf32, #tpu.memory_space<vmem>> -> memref<1x99x8x128xf32, #tpu.memory_space<vmem>>
    %1750 = tpu.memref_squeeze %1749 : memref<1x99x8x128xf32, #tpu.memory_space<vmem>> -> memref<99x8x128xf32, #tpu.memory_space<vmem>>
    %c25_838 = arith.constant 25 : index
    %c0_839 = arith.constant 0 : index
    %c0_840 = arith.constant 0 : index
    %1751 = vector.load %1750[%c25_838, %c0_839, %c0_840] : memref<99x8x128xf32, #tpu.memory_space<vmem>>, vector<1x8x128xf32>
    %1752 = vector.shape_cast %1751 : vector<1x8x128xf32> to vector<8x128xf32>
    %c0_i32_841 = arith.constant 0 : i32
    %c0_i32_842 = arith.constant 0 : i32
    %c0_i32_843 = arith.constant 0 : i32
    %1753 = tpu.memref_slice %arg3[%4, %c0_i32_841, %c0_i32_842, %c0_i32_843] : memref<1x99x8x128xf32, #tpu.memory_space<vmem>> -> memref<1x99x8x128xf32, #tpu.memory_space<vmem>>
    %1754 = tpu.memref_squeeze %1753 : memref<1x99x8x128xf32, #tpu.memory_space<vmem>> -> memref<99x8x128xf32, #tpu.memory_space<vmem>>
    %c1_844 = arith.constant 1 : index
    %c0_845 = arith.constant 0 : index
    %c0_846 = arith.constant 0 : index
    %1755 = vector.load %1754[%c1_844, %c0_845, %c0_846] : memref<99x8x128xf32, #tpu.memory_space<vmem>>, vector<1x8x128xf32>
    %1756 = vector.shape_cast %1755 : vector<1x8x128xf32> to vector<8x128xf32>
    %1757 = arith.subf %1752, %1756 : vector<8x128xf32>
    %c0_i32_847 = arith.constant 0 : i32
    %c0_i32_848 = arith.constant 0 : i32
    %c0_i32_849 = arith.constant 0 : i32
    %1758 = tpu.memref_slice %arg3[%4, %c0_i32_847, %c0_i32_848, %c0_i32_849] : memref<1x99x8x128xf32, #tpu.memory_space<vmem>> -> memref<1x99x8x128xf32, #tpu.memory_space<vmem>>
    %1759 = tpu.memref_squeeze %1758 : memref<1x99x8x128xf32, #tpu.memory_space<vmem>> -> memref<99x8x128xf32, #tpu.memory_space<vmem>>
    %c26_850 = arith.constant 26 : index
    %c0_851 = arith.constant 0 : index
    %c0_852 = arith.constant 0 : index
    %1760 = vector.load %1759[%c26_850, %c0_851, %c0_852] : memref<99x8x128xf32, #tpu.memory_space<vmem>>, vector<1x8x128xf32>
    %1761 = vector.shape_cast %1760 : vector<1x8x128xf32> to vector<8x128xf32>
    %c0_i32_853 = arith.constant 0 : i32
    %c0_i32_854 = arith.constant 0 : i32
    %c0_i32_855 = arith.constant 0 : i32
    %1762 = tpu.memref_slice %arg3[%4, %c0_i32_853, %c0_i32_854, %c0_i32_855] : memref<1x99x8x128xf32, #tpu.memory_space<vmem>> -> memref<1x99x8x128xf32, #tpu.memory_space<vmem>>
    %1763 = tpu.memref_squeeze %1762 : memref<1x99x8x128xf32, #tpu.memory_space<vmem>> -> memref<99x8x128xf32, #tpu.memory_space<vmem>>
    %c2_856 = arith.constant 2 : index
    %c0_857 = arith.constant 0 : index
    %c0_858 = arith.constant 0 : index
    %1764 = vector.load %1763[%c2_856, %c0_857, %c0_858] : memref<99x8x128xf32, #tpu.memory_space<vmem>>, vector<1x8x128xf32>
    %1765 = vector.shape_cast %1764 : vector<1x8x128xf32> to vector<8x128xf32>
    %1766 = arith.subf %1761, %1765 : vector<8x128xf32>
    %1767 = arith.subf %1737, %155 : vector<8x128xf32>
    %1768 = arith.subf %1738, %159 : vector<8x128xf32>
    %1769 = arith.subf %1739, %163 : vector<8x128xf32>
    %1770 = arith.mulf %1748, %1767 : vector<8x128xf32>
    %1771 = arith.mulf %1757, %1768 : vector<8x128xf32>
    %1772 = arith.addf %1770, %1771 : vector<8x128xf32>
    %1773 = arith.mulf %1766, %1769 : vector<8x128xf32>
    %1774 = arith.addf %1772, %1773 : vector<8x128xf32>
    %1775 = arith.mulf %1748, %1748 : vector<8x128xf32>
    %1776 = arith.mulf %1757, %1757 : vector<8x128xf32>
    %1777 = arith.addf %1775, %1776 : vector<8x128xf32>
    %1778 = arith.mulf %1766, %1766 : vector<8x128xf32>
    %1779 = arith.addf %1777, %1778 : vector<8x128xf32>
    %1780 = arith.mulf %1767, %1767 : vector<8x128xf32>
    %1781 = arith.mulf %1768, %1768 : vector<8x128xf32>
    %1782 = arith.addf %1780, %1781 : vector<8x128xf32>
    %1783 = arith.mulf %1769, %1769 : vector<8x128xf32>
    %1784 = arith.addf %1782, %1783 : vector<8x128xf32>
    %1785 = arith.mulf %1779, %1784 : vector<8x128xf32>
    %cst_859 = arith.constant 1.000000e-16 : f32
    %1786 = vector.broadcast %cst_859 : f32 to vector<8x128xf32>
    %1787 = arith.maximumf %1785, %1786 : vector<8x128xf32>
    %1788 = math.rsqrt %1787 : vector<8x128xf32>
    %1789 = arith.mulf %1774, %1788 : vector<8x128xf32>
    %c8_860 = arith.constant 8 : index
    %c0_861 = arith.constant 0 : index
    %c0_862 = arith.constant 0 : index
    %1790 = vector.load %arg5[%c8_860, %c0_861, %c0_862] : memref<15x8x128xf32, #tpu.memory_space<vmem>>, vector<1x8x128xf32>
    %1791 = vector.shape_cast %1790 : vector<1x8x128xf32> to vector<8x128xf32>
    %1792 = arith.addf %1791, %1789 : vector<8x128xf32>
    %c8_863 = arith.constant 8 : index
    %c0_864 = arith.constant 0 : index
    %c0_865 = arith.constant 0 : index
    %1793 = vector.load %arg5[%c8_863, %c0_864, %c0_865] : memref<15x8x128xf32, #tpu.memory_space<vmem>>, vector<1x8x128xf32>
    %1794 = vector.shape_cast %1793 : vector<1x8x128xf32> to vector<8x128xf32>
    %1795 = vector.shape_cast %1792 : vector<8x128xf32> to vector<1x8x128xf32>
    tpu.vector_store %arg5[%c8_863, %c0_864, %c0_865], %1795 {strides = array<i32>} : memref<15x8x128xf32, #tpu.memory_space<vmem>>, vector<1x8x128xf32>,
    %c0_i32_866 = arith.constant 0 : i32
    %c0_i32_867 = arith.constant 0 : i32
    %c0_i32_868 = arith.constant 0 : i32
    %1796 = tpu.memref_slice %arg2[%4, %c0_i32_866, %c0_i32_867, %c0_i32_868] : memref<1x90x8x128xf32, #tpu.memory_space<vmem>> -> memref<1x90x8x128xf32, #tpu.memory_space<vmem>>
    %1797 = tpu.memref_squeeze %1796 : memref<1x90x8x128xf32, #tpu.memory_space<vmem>> -> memref<90x8x128xf32, #tpu.memory_space<vmem>>
    %c54_869 = arith.constant 54 : index
    %c0_870 = arith.constant 0 : index
    %c0_871 = arith.constant 0 : index
    %1798 = vector.load %1797[%c54_869, %c0_870, %c0_871] : memref<90x8x128xf32, #tpu.memory_space<vmem>>, vector<1x8x128xf32>
    %1799 = vector.shape_cast %1798 : vector<1x8x128xf32> to vector<8x128xf32>
    %c0_i32_872 = arith.constant 0 : i32
    %c0_i32_873 = arith.constant 0 : i32
    %c0_i32_874 = arith.constant 0 : i32
    %1800 = tpu.memref_slice %arg2[%4, %c0_i32_872, %c0_i32_873, %c0_i32_874] : memref<1x90x8x128xf32, #tpu.memory_space<vmem>> -> memref<1x90x8x128xf32, #tpu.memory_space<vmem>>
    %1801 = tpu.memref_squeeze %1800 : memref<1x90x8x128xf32, #tpu.memory_space<vmem>> -> memref<90x8x128xf32, #tpu.memory_space<vmem>>
    %c55_875 = arith.constant 55 : index
    %c0_876 = arith.constant 0 : index
    %c0_877 = arith.constant 0 : index
    %1802 = vector.load %1801[%c55_875, %c0_876, %c0_877] : memref<90x8x128xf32, #tpu.memory_space<vmem>>, vector<1x8x128xf32>
    %1803 = vector.shape_cast %1802 : vector<1x8x128xf32> to vector<8x128xf32>
    %c0_i32_878 = arith.constant 0 : i32
    %c0_i32_879 = arith.constant 0 : i32
    %c0_i32_880 = arith.constant 0 : i32
    %1804 = tpu.memref_slice %arg2[%4, %c0_i32_878, %c0_i32_879, %c0_i32_880] : memref<1x90x8x128xf32, #tpu.memory_space<vmem>> -> memref<1x90x8x128xf32, #tpu.memory_space<vmem>>
    %1805 = tpu.memref_squeeze %1804 : memref<1x90x8x128xf32, #tpu.memory_space<vmem>> -> memref<90x8x128xf32, #tpu.memory_space<vmem>>
    %c56_881 = arith.constant 56 : index
    %c0_882 = arith.constant 0 : index
    %c0_883 = arith.constant 0 : index
    %1806 = vector.load %1805[%c56_881, %c0_882, %c0_883] : memref<90x8x128xf32, #tpu.memory_space<vmem>>, vector<1x8x128xf32>
    %1807 = vector.shape_cast %1806 : vector<1x8x128xf32> to vector<8x128xf32>
    %c0_i32_884 = arith.constant 0 : i32
    %c0_i32_885 = arith.constant 0 : i32
    %c0_i32_886 = arith.constant 0 : i32
    %1808 = tpu.memref_slice %arg2[%4, %c0_i32_884, %c0_i32_885, %c0_i32_886] : memref<1x90x8x128xf32, #tpu.memory_space<vmem>> -> memref<1x90x8x128xf32, #tpu.memory_space<vmem>>
    %1809 = tpu.memref_squeeze %1808 : memref<1x90x8x128xf32, #tpu.memory_space<vmem>> -> memref<90x8x128xf32, #tpu.memory_space<vmem>>
    %c57_887 = arith.constant 57 : index
    %c0_888 = arith.constant 0 : index
    %c0_889 = arith.constant 0 : index
    %1810 = vector.load %1809[%c57_887, %c0_888, %c0_889] : memref<90x8x128xf32, #tpu.memory_space<vmem>>, vector<1x8x128xf32>
    %1811 = vector.shape_cast %1810 : vector<1x8x128xf32> to vector<8x128xf32>
    %c0_i32_890 = arith.constant 0 : i32
    %c0_i32_891 = arith.constant 0 : i32
    %c0_i32_892 = arith.constant 0 : i32
    %1812 = tpu.memref_slice %arg2[%4, %c0_i32_890, %c0_i32_891, %c0_i32_892] : memref<1x90x8x128xf32, #tpu.memory_space<vmem>> -> memref<1x90x8x128xf32, #tpu.memory_space<vmem>>
    %1813 = tpu.memref_squeeze %1812 : memref<1x90x8x128xf32, #tpu.memory_space<vmem>> -> memref<90x8x128xf32, #tpu.memory_space<vmem>>
    %c58_893 = arith.constant 58 : index
    %c0_894 = arith.constant 0 : index
    %c0_895 = arith.constant 0 : index
    %1814 = vector.load %1813[%c58_893, %c0_894, %c0_895] : memref<90x8x128xf32, #tpu.memory_space<vmem>>, vector<1x8x128xf32>
    %1815 = vector.shape_cast %1814 : vector<1x8x128xf32> to vector<8x128xf32>
    %c0_i32_896 = arith.constant 0 : i32
    %c0_i32_897 = arith.constant 0 : i32
    %c0_i32_898 = arith.constant 0 : i32
    %1816 = tpu.memref_slice %arg2[%4, %c0_i32_896, %c0_i32_897, %c0_i32_898] : memref<1x90x8x128xf32, #tpu.memory_space<vmem>> -> memref<1x90x8x128xf32, #tpu.memory_space<vmem>>
    %1817 = tpu.memref_squeeze %1816 : memref<1x90x8x128xf32, #tpu.memory_space<vmem>> -> memref<90x8x128xf32, #tpu.memory_space<vmem>>
    %c59_899 = arith.constant 59 : index
    %c0_900 = arith.constant 0 : index
    %c0_901 = arith.constant 0 : index
    %1818 = vector.load %1817[%c59_899, %c0_900, %c0_901] : memref<90x8x128xf32, #tpu.memory_space<vmem>>, vector<1x8x128xf32>
    %1819 = vector.shape_cast %1818 : vector<1x8x128xf32> to vector<8x128xf32>
    %1820 = arith.mulf %1799, %1799 : vector<8x128xf32>
    %1821 = arith.mulf %1803, %1803 : vector<8x128xf32>
    %1822 = arith.addf %1820, %1821 : vector<8x128xf32>
    %1823 = arith.mulf %1807, %1807 : vector<8x128xf32>
    %1824 = arith.addf %1822, %1823 : vector<8x128xf32>
    %cst_902 = arith.constant 1.000000e-24 : f32
    %1825 = vector.broadcast %cst_902 : f32 to vector<8x128xf32>
    %1826 = arith.maximumf %1824, %1825 : vector<8x128xf32>
    %1827 = math.rsqrt %1826 : vector<8x128xf32>
    %1828 = arith.mulf %1799, %1827 : vector<8x128xf32>
    %1829 = arith.mulf %1803, %1827 : vector<8x128xf32>
    %1830 = arith.mulf %1807, %1827 : vector<8x128xf32>
    %1831 = arith.mulf %1828, %1811 : vector<8x128xf32>
    %1832 = arith.mulf %1829, %1815 : vector<8x128xf32>
    %1833 = arith.addf %1831, %1832 : vector<8x128xf32>
    %1834 = arith.mulf %1830, %1819 : vector<8x128xf32>
    %1835 = arith.addf %1833, %1834 : vector<8x128xf32>
    %1836 = arith.mulf %1835, %1828 : vector<8x128xf32>
    %1837 = arith.subf %1811, %1836 : vector<8x128xf32>
    %1838 = arith.mulf %1835, %1829 : vector<8x128xf32>
    %1839 = arith.subf %1815, %1838 : vector<8x128xf32>
    %1840 = arith.mulf %1835, %1830 : vector<8x128xf32>
    %1841 = arith.subf %1819, %1840 : vector<8x128xf32>
    %1842 = arith.mulf %1837, %1837 : vector<8x128xf32>
    %1843 = arith.mulf %1839, %1839 : vector<8x128xf32>
    %1844 = arith.addf %1842, %1843 : vector<8x128xf32>
    %1845 = arith.mulf %1841, %1841 : vector<8x128xf32>
    %1846 = arith.addf %1844, %1845 : vector<8x128xf32>
    %cst_903 = arith.constant 1.000000e-24 : f32
    %1847 = vector.broadcast %cst_903 : f32 to vector<8x128xf32>
    %1848 = arith.maximumf %1846, %1847 : vector<8x128xf32>
    %1849 = math.rsqrt %1848 : vector<8x128xf32>
    %1850 = arith.mulf %1837, %1849 : vector<8x128xf32>
    %1851 = arith.mulf %1839, %1849 : vector<8x128xf32>
    %1852 = arith.mulf %1841, %1849 : vector<8x128xf32>
    %1853 = arith.mulf %1829, %1852 : vector<8x128xf32>
    %1854 = arith.mulf %1830, %1851 : vector<8x128xf32>
    %1855 = arith.subf %1853, %1854 : vector<8x128xf32>
    %1856 = arith.mulf %1830, %1850 : vector<8x128xf32>
    %1857 = arith.mulf %1828, %1852 : vector<8x128xf32>
    %1858 = arith.subf %1856, %1857 : vector<8x128xf32>
    %1859 = arith.mulf %1828, %1851 : vector<8x128xf32>
    %1860 = arith.mulf %1829, %1850 : vector<8x128xf32>
    %1861 = arith.subf %1859, %1860 : vector<8x128xf32>
    %1862 = arith.mulf %1669, %1828 : vector<8x128xf32>
    %1863 = arith.mulf %1674, %1829 : vector<8x128xf32>
    %1864 = arith.addf %1862, %1863 : vector<8x128xf32>
    %1865 = arith.mulf %1679, %1830 : vector<8x128xf32>
    %1866 = arith.addf %1864, %1865 : vector<8x128xf32>
    %1867 = arith.mulf %1669, %1850 : vector<8x128xf32>
    %1868 = arith.mulf %1674, %1851 : vector<8x128xf32>
    %1869 = arith.addf %1867, %1868 : vector<8x128xf32>
    %1870 = arith.mulf %1679, %1852 : vector<8x128xf32>
    %1871 = arith.addf %1869, %1870 : vector<8x128xf32>
    %1872 = arith.mulf %1669, %1855 : vector<8x128xf32>
    %1873 = arith.mulf %1674, %1858 : vector<8x128xf32>
    %1874 = arith.addf %1872, %1873 : vector<8x128xf32>
    %1875 = arith.mulf %1679, %1861 : vector<8x128xf32>
    %1876 = arith.addf %1874, %1875 : vector<8x128xf32>
    %1877 = arith.mulf %1684, %1828 : vector<8x128xf32>
    %1878 = arith.mulf %1689, %1829 : vector<8x128xf32>
    %1879 = arith.addf %1877, %1878 : vector<8x128xf32>
    %1880 = arith.mulf %1694, %1830 : vector<8x128xf32>
    %1881 = arith.addf %1879, %1880 : vector<8x128xf32>
    %1882 = arith.mulf %1684, %1850 : vector<8x128xf32>
    %1883 = arith.mulf %1689, %1851 : vector<8x128xf32>
    %1884 = arith.addf %1882, %1883 : vector<8x128xf32>
    %1885 = arith.mulf %1694, %1852 : vector<8x128xf32>
    %1886 = arith.addf %1884, %1885 : vector<8x128xf32>
    %1887 = arith.mulf %1684, %1855 : vector<8x128xf32>
    %1888 = arith.mulf %1689, %1858 : vector<8x128xf32>
    %1889 = arith.addf %1887, %1888 : vector<8x128xf32>
    %1890 = arith.mulf %1694, %1861 : vector<8x128xf32>
    %1891 = arith.addf %1889, %1890 : vector<8x128xf32>
    %1892 = arith.mulf %1699, %1828 : vector<8x128xf32>
    %1893 = arith.mulf %1704, %1829 : vector<8x128xf32>
    %1894 = arith.addf %1892, %1893 : vector<8x128xf32>
    %1895 = arith.mulf %1709, %1830 : vector<8x128xf32>
    %1896 = arith.addf %1894, %1895 : vector<8x128xf32>
    %1897 = arith.mulf %1699, %1850 : vector<8x128xf32>
    %1898 = arith.mulf %1704, %1851 : vector<8x128xf32>
    %1899 = arith.addf %1897, %1898 : vector<8x128xf32>
    %1900 = arith.mulf %1709, %1852 : vector<8x128xf32>
    %1901 = arith.addf %1899, %1900 : vector<8x128xf32>
    %1902 = arith.mulf %1699, %1855 : vector<8x128xf32>
    %1903 = arith.mulf %1704, %1858 : vector<8x128xf32>
    %1904 = arith.addf %1902, %1903 : vector<8x128xf32>
    %1905 = arith.mulf %1709, %1861 : vector<8x128xf32>
    %1906 = arith.addf %1904, %1905 : vector<8x128xf32>
    %c0_i32_904 = arith.constant 0 : i32
    %c0_i32_905 = arith.constant 0 : i32
    %c0_i32_906 = arith.constant 0 : i32
    %1907 = tpu.memref_slice %arg3[%4, %c0_i32_904, %c0_i32_905, %c0_i32_906] : memref<1x99x8x128xf32, #tpu.memory_space<vmem>> -> memref<1x99x8x128xf32, #tpu.memory_space<vmem>>
    %1908 = tpu.memref_squeeze %1907 : memref<1x99x8x128xf32, #tpu.memory_space<vmem>> -> memref<99x8x128xf32, #tpu.memory_space<vmem>>
    %c72 = arith.constant 72 : index
    %c0_907 = arith.constant 0 : index
    %c0_908 = arith.constant 0 : index
    %1909 = vector.load %1908[%c72, %c0_907, %c0_908] : memref<99x8x128xf32, #tpu.memory_space<vmem>>, vector<1x8x128xf32>
    %1910 = vector.shape_cast %1909 : vector<1x8x128xf32> to vector<8x128xf32>
    %c0_i32_909 = arith.constant 0 : i32
    %c0_i32_910 = arith.constant 0 : i32
    %c0_i32_911 = arith.constant 0 : i32
    %1911 = tpu.memref_slice %arg3[%4, %c0_i32_909, %c0_i32_910, %c0_i32_911] : memref<1x99x8x128xf32, #tpu.memory_space<vmem>> -> memref<1x99x8x128xf32, #tpu.memory_space<vmem>>
    %1912 = tpu.memref_squeeze %1911 : memref<1x99x8x128xf32, #tpu.memory_space<vmem>> -> memref<99x8x128xf32, #tpu.memory_space<vmem>>
    %c73 = arith.constant 73 : index
    %c0_912 = arith.constant 0 : index
    %c0_913 = arith.constant 0 : index
    %1913 = vector.load %1912[%c73, %c0_912, %c0_913] : memref<99x8x128xf32, #tpu.memory_space<vmem>>, vector<1x8x128xf32>
    %1914 = vector.shape_cast %1913 : vector<1x8x128xf32> to vector<8x128xf32>
    %c0_i32_914 = arith.constant 0 : i32
    %c0_i32_915 = arith.constant 0 : i32
    %c0_i32_916 = arith.constant 0 : i32
    %1915 = tpu.memref_slice %arg3[%4, %c0_i32_914, %c0_i32_915, %c0_i32_916] : memref<1x99x8x128xf32, #tpu.memory_space<vmem>> -> memref<1x99x8x128xf32, #tpu.memory_space<vmem>>
    %1916 = tpu.memref_squeeze %1915 : memref<1x99x8x128xf32, #tpu.memory_space<vmem>> -> memref<99x8x128xf32, #tpu.memory_space<vmem>>
    %c74 = arith.constant 74 : index
    %c0_917 = arith.constant 0 : index
    %c0_918 = arith.constant 0 : index
    %1917 = vector.load %1916[%c74, %c0_917, %c0_918] : memref<99x8x128xf32, #tpu.memory_space<vmem>>, vector<1x8x128xf32>
    %1918 = vector.shape_cast %1917 : vector<1x8x128xf32> to vector<8x128xf32>
    %1919 = arith.mulf %1866, %1910 : vector<8x128xf32>
    %1920 = arith.mulf %1871, %1914 : vector<8x128xf32>
    %1921 = arith.addf %1919, %1920 : vector<8x128xf32>
    %1922 = arith.mulf %1876, %1918 : vector<8x128xf32>
    %1923 = arith.addf %1921, %1922 : vector<8x128xf32>
    %1924 = arith.mulf %1881, %1910 : vector<8x128xf32>
    %1925 = arith.mulf %1886, %1914 : vector<8x128xf32>
    %1926 = arith.addf %1924, %1925 : vector<8x128xf32>
    %1927 = arith.mulf %1891, %1918 : vector<8x128xf32>
    %1928 = arith.addf %1926, %1927 : vector<8x128xf32>
    %1929 = arith.mulf %1896, %1910 : vector<8x128xf32>
    %1930 = arith.mulf %1901, %1914 : vector<8x128xf32>
    %1931 = arith.addf %1929, %1930 : vector<8x128xf32>
    %1932 = arith.mulf %1906, %1918 : vector<8x128xf32>
    %1933 = arith.addf %1931, %1932 : vector<8x128xf32>
    %1934 = arith.addf %1737, %1923 : vector<8x128xf32>
    %1935 = arith.addf %1738, %1928 : vector<8x128xf32>
    %1936 = arith.addf %1739, %1933 : vector<8x128xf32>
    %c0_i32_919 = arith.constant 0 : i32
    %c0_i32_920 = arith.constant 0 : i32
    %c0_i32_921 = arith.constant 0 : i32
    %1937 = tpu.memref_slice %arg3[%4, %c0_i32_919, %c0_i32_920, %c0_i32_921] : memref<1x99x8x128xf32, #tpu.memory_space<vmem>> -> memref<1x99x8x128xf32, #tpu.memory_space<vmem>>
    %1938 = tpu.memref_squeeze %1937 : memref<1x99x8x128xf32, #tpu.memory_space<vmem>> -> memref<99x8x128xf32, #tpu.memory_space<vmem>>
    %c27_922 = arith.constant 27 : index
    %c0_923 = arith.constant 0 : index
    %c0_924 = arith.constant 0 : index
    %1939 = vector.load %1938[%c27_922, %c0_923, %c0_924] : memref<99x8x128xf32, #tpu.memory_space<vmem>>, vector<1x8x128xf32>
    %1940 = vector.shape_cast %1939 : vector<1x8x128xf32> to vector<8x128xf32>
    %c0_i32_925 = arith.constant 0 : i32
    %c0_i32_926 = arith.constant 0 : i32
    %c0_i32_927 = arith.constant 0 : i32
    %1941 = tpu.memref_slice %arg3[%4, %c0_i32_925, %c0_i32_926, %c0_i32_927] : memref<1x99x8x128xf32, #tpu.memory_space<vmem>> -> memref<1x99x8x128xf32, #tpu.memory_space<vmem>>
    %1942 = tpu.memref_squeeze %1941 : memref<1x99x8x128xf32, #tpu.memory_space<vmem>> -> memref<99x8x128xf32, #tpu.memory_space<vmem>>
    %c24_928 = arith.constant 24 : index
    %c0_929 = arith.constant 0 : index
    %c0_930 = arith.constant 0 : index
    %1943 = vector.load %1942[%c24_928, %c0_929, %c0_930] : memref<99x8x128xf32, #tpu.memory_space<vmem>>, vector<1x8x128xf32>
    %1944 = vector.shape_cast %1943 : vector<1x8x128xf32> to vector<8x128xf32>
    %1945 = arith.subf %1940, %1944 : vector<8x128xf32>
    %c0_i32_931 = arith.constant 0 : i32
    %c0_i32_932 = arith.constant 0 : i32
    %c0_i32_933 = arith.constant 0 : i32
    %1946 = tpu.memref_slice %arg3[%4, %c0_i32_931, %c0_i32_932, %c0_i32_933] : memref<1x99x8x128xf32, #tpu.memory_space<vmem>> -> memref<1x99x8x128xf32, #tpu.memory_space<vmem>>
    %1947 = tpu.memref_squeeze %1946 : memref<1x99x8x128xf32, #tpu.memory_space<vmem>> -> memref<99x8x128xf32, #tpu.memory_space<vmem>>
    %c28_934 = arith.constant 28 : index
    %c0_935 = arith.constant 0 : index
    %c0_936 = arith.constant 0 : index
    %1948 = vector.load %1947[%c28_934, %c0_935, %c0_936] : memref<99x8x128xf32, #tpu.memory_space<vmem>>, vector<1x8x128xf32>
    %1949 = vector.shape_cast %1948 : vector<1x8x128xf32> to vector<8x128xf32>
    %c0_i32_937 = arith.constant 0 : i32
    %c0_i32_938 = arith.constant 0 : i32
    %c0_i32_939 = arith.constant 0 : i32
    %1950 = tpu.memref_slice %arg3[%4, %c0_i32_937, %c0_i32_938, %c0_i32_939] : memref<1x99x8x128xf32, #tpu.memory_space<vmem>> -> memref<1x99x8x128xf32, #tpu.memory_space<vmem>>
    %1951 = tpu.memref_squeeze %1950 : memref<1x99x8x128xf32, #tpu.memory_space<vmem>> -> memref<99x8x128xf32, #tpu.memory_space<vmem>>
    %c25_940 = arith.constant 25 : index
    %c0_941 = arith.constant 0 : index
    %c0_942 = arith.constant 0 : index
    %1952 = vector.load %1951[%c25_940, %c0_941, %c0_942] : memref<99x8x128xf32, #tpu.memory_space<vmem>>, vector<1x8x128xf32>
    %1953 = vector.shape_cast %1952 : vector<1x8x128xf32> to vector<8x128xf32>
    %1954 = arith.subf %1949, %1953 : vector<8x128xf32>
    %c0_i32_943 = arith.constant 0 : i32
    %c0_i32_944 = arith.constant 0 : i32
    %c0_i32_945 = arith.constant 0 : i32
    %1955 = tpu.memref_slice %arg3[%4, %c0_i32_943, %c0_i32_944, %c0_i32_945] : memref<1x99x8x128xf32, #tpu.memory_space<vmem>> -> memref<1x99x8x128xf32, #tpu.memory_space<vmem>>
    %1956 = tpu.memref_squeeze %1955 : memref<1x99x8x128xf32, #tpu.memory_space<vmem>> -> memref<99x8x128xf32, #tpu.memory_space<vmem>>
    %c29_946 = arith.constant 29 : index
    %c0_947 = arith.constant 0 : index
    %c0_948 = arith.constant 0 : index
    %1957 = vector.load %1956[%c29_946, %c0_947, %c0_948] : memref<99x8x128xf32, #tpu.memory_space<vmem>>, vector<1x8x128xf32>
    %1958 = vector.shape_cast %1957 : vector<1x8x128xf32> to vector<8x128xf32>
    %c0_i32_949 = arith.constant 0 : i32
    %c0_i32_950 = arith.constant 0 : i32
    %c0_i32_951 = arith.constant 0 : i32
    %1959 = tpu.memref_slice %arg3[%4, %c0_i32_949, %c0_i32_950, %c0_i32_951] : memref<1x99x8x128xf32, #tpu.memory_space<vmem>> -> memref<1x99x8x128xf32, #tpu.memory_space<vmem>>
    %1960 = tpu.memref_squeeze %1959 : memref<1x99x8x128xf32, #tpu.memory_space<vmem>> -> memref<99x8x128xf32, #tpu.memory_space<vmem>>
    %c26_952 = arith.constant 26 : index
    %c0_953 = arith.constant 0 : index
    %c0_954 = arith.constant 0 : index
    %1961 = vector.load %1960[%c26_952, %c0_953, %c0_954] : memref<99x8x128xf32, #tpu.memory_space<vmem>>, vector<1x8x128xf32>
    %1962 = vector.shape_cast %1961 : vector<1x8x128xf32> to vector<8x128xf32>
    %1963 = arith.subf %1958, %1962 : vector<8x128xf32>
    %1964 = arith.subf %1934, %1737 : vector<8x128xf32>
    %1965 = arith.subf %1935, %1738 : vector<8x128xf32>
    %1966 = arith.subf %1936, %1739 : vector<8x128xf32>
    %1967 = arith.mulf %1945, %1964 : vector<8x128xf32>
    %1968 = arith.mulf %1954, %1965 : vector<8x128xf32>
    %1969 = arith.addf %1967, %1968 : vector<8x128xf32>
    %1970 = arith.mulf %1963, %1966 : vector<8x128xf32>
    %1971 = arith.addf %1969, %1970 : vector<8x128xf32>
    %1972 = arith.mulf %1945, %1945 : vector<8x128xf32>
    %1973 = arith.mulf %1954, %1954 : vector<8x128xf32>
    %1974 = arith.addf %1972, %1973 : vector<8x128xf32>
    %1975 = arith.mulf %1963, %1963 : vector<8x128xf32>
    %1976 = arith.addf %1974, %1975 : vector<8x128xf32>
    %1977 = arith.mulf %1964, %1964 : vector<8x128xf32>
    %1978 = arith.mulf %1965, %1965 : vector<8x128xf32>
    %1979 = arith.addf %1977, %1978 : vector<8x128xf32>
    %1980 = arith.mulf %1966, %1966 : vector<8x128xf32>
    %1981 = arith.addf %1979, %1980 : vector<8x128xf32>
    %1982 = arith.mulf %1976, %1981 : vector<8x128xf32>
    %cst_955 = arith.constant 1.000000e-16 : f32
    %1983 = vector.broadcast %cst_955 : f32 to vector<8x128xf32>
    %1984 = arith.maximumf %1982, %1983 : vector<8x128xf32>
    %1985 = math.rsqrt %1984 : vector<8x128xf32>
    %1986 = arith.mulf %1971, %1985 : vector<8x128xf32>
    %c9_956 = arith.constant 9 : index
    %c0_957 = arith.constant 0 : index
    %c0_958 = arith.constant 0 : index
    %1987 = vector.load %arg5[%c9_956, %c0_957, %c0_958] : memref<15x8x128xf32, #tpu.memory_space<vmem>>, vector<1x8x128xf32>
    %1988 = vector.shape_cast %1987 : vector<1x8x128xf32> to vector<8x128xf32>
    %1989 = arith.addf %1988, %1986 : vector<8x128xf32>
    %c9_959 = arith.constant 9 : index
    %c0_960 = arith.constant 0 : index
    %c0_961 = arith.constant 0 : index
    %1990 = vector.load %arg5[%c9_959, %c0_960, %c0_961] : memref<15x8x128xf32, #tpu.memory_space<vmem>>, vector<1x8x128xf32>
    %1991 = vector.shape_cast %1990 : vector<1x8x128xf32> to vector<8x128xf32>
    %1992 = vector.shape_cast %1989 : vector<8x128xf32> to vector<1x8x128xf32>
    tpu.vector_store %arg5[%c9_959, %c0_960, %c0_961], %1992 {strides = array<i32>} : memref<15x8x128xf32, #tpu.memory_space<vmem>>, vector<1x8x128xf32>,
    %c0_i32_962 = arith.constant 0 : i32
    %c0_i32_963 = arith.constant 0 : i32
    %c0_i32_964 = arith.constant 0 : i32
    %1993 = tpu.memref_slice %arg2[%4, %c0_i32_962, %c0_i32_963, %c0_i32_964] : memref<1x90x8x128xf32, #tpu.memory_space<vmem>> -> memref<1x90x8x128xf32, #tpu.memory_space<vmem>>
    %1994 = tpu.memref_squeeze %1993 : memref<1x90x8x128xf32, #tpu.memory_space<vmem>> -> memref<90x8x128xf32, #tpu.memory_space<vmem>>
    %c60_965 = arith.constant 60 : index
    %c0_966 = arith.constant 0 : index
    %c0_967 = arith.constant 0 : index
    %1995 = vector.load %1994[%c60_965, %c0_966, %c0_967] : memref<90x8x128xf32, #tpu.memory_space<vmem>>, vector<1x8x128xf32>
    %1996 = vector.shape_cast %1995 : vector<1x8x128xf32> to vector<8x128xf32>
    %c0_i32_968 = arith.constant 0 : i32
    %c0_i32_969 = arith.constant 0 : i32
    %c0_i32_970 = arith.constant 0 : i32
    %1997 = tpu.memref_slice %arg2[%4, %c0_i32_968, %c0_i32_969, %c0_i32_970] : memref<1x90x8x128xf32, #tpu.memory_space<vmem>> -> memref<1x90x8x128xf32, #tpu.memory_space<vmem>>
    %1998 = tpu.memref_squeeze %1997 : memref<1x90x8x128xf32, #tpu.memory_space<vmem>> -> memref<90x8x128xf32, #tpu.memory_space<vmem>>
    %c61_971 = arith.constant 61 : index
    %c0_972 = arith.constant 0 : index
    %c0_973 = arith.constant 0 : index
    %1999 = vector.load %1998[%c61_971, %c0_972, %c0_973] : memref<90x8x128xf32, #tpu.memory_space<vmem>>, vector<1x8x128xf32>
    %2000 = vector.shape_cast %1999 : vector<1x8x128xf32> to vector<8x128xf32>
    %c0_i32_974 = arith.constant 0 : i32
    %c0_i32_975 = arith.constant 0 : i32
    %c0_i32_976 = arith.constant 0 : i32
    %2001 = tpu.memref_slice %arg2[%4, %c0_i32_974, %c0_i32_975, %c0_i32_976] : memref<1x90x8x128xf32, #tpu.memory_space<vmem>> -> memref<1x90x8x128xf32, #tpu.memory_space<vmem>>
    %2002 = tpu.memref_squeeze %2001 : memref<1x90x8x128xf32, #tpu.memory_space<vmem>> -> memref<90x8x128xf32, #tpu.memory_space<vmem>>
    %c62_977 = arith.constant 62 : index
    %c0_978 = arith.constant 0 : index
    %c0_979 = arith.constant 0 : index
    %2003 = vector.load %2002[%c62_977, %c0_978, %c0_979] : memref<90x8x128xf32, #tpu.memory_space<vmem>>, vector<1x8x128xf32>
    %2004 = vector.shape_cast %2003 : vector<1x8x128xf32> to vector<8x128xf32>
    %c0_i32_980 = arith.constant 0 : i32
    %c0_i32_981 = arith.constant 0 : i32
    %c0_i32_982 = arith.constant 0 : i32
    %2005 = tpu.memref_slice %arg2[%4, %c0_i32_980, %c0_i32_981, %c0_i32_982] : memref<1x90x8x128xf32, #tpu.memory_space<vmem>> -> memref<1x90x8x128xf32, #tpu.memory_space<vmem>>
    %2006 = tpu.memref_squeeze %2005 : memref<1x90x8x128xf32, #tpu.memory_space<vmem>> -> memref<90x8x128xf32, #tpu.memory_space<vmem>>
    %c63_983 = arith.constant 63 : index
    %c0_984 = arith.constant 0 : index
    %c0_985 = arith.constant 0 : index
    %2007 = vector.load %2006[%c63_983, %c0_984, %c0_985] : memref<90x8x128xf32, #tpu.memory_space<vmem>>, vector<1x8x128xf32>
    %2008 = vector.shape_cast %2007 : vector<1x8x128xf32> to vector<8x128xf32>
    %c0_i32_986 = arith.constant 0 : i32
    %c0_i32_987 = arith.constant 0 : i32
    %c0_i32_988 = arith.constant 0 : i32
    %2009 = tpu.memref_slice %arg2[%4, %c0_i32_986, %c0_i32_987, %c0_i32_988] : memref<1x90x8x128xf32, #tpu.memory_space<vmem>> -> memref<1x90x8x128xf32, #tpu.memory_space<vmem>>
    %2010 = tpu.memref_squeeze %2009 : memref<1x90x8x128xf32, #tpu.memory_space<vmem>> -> memref<90x8x128xf32, #tpu.memory_space<vmem>>
    %c64_989 = arith.constant 64 : index
    %c0_990 = arith.constant 0 : index
    %c0_991 = arith.constant 0 : index
    %2011 = vector.load %2010[%c64_989, %c0_990, %c0_991] : memref<90x8x128xf32, #tpu.memory_space<vmem>>, vector<1x8x128xf32>
    %2012 = vector.shape_cast %2011 : vector<1x8x128xf32> to vector<8x128xf32>
    %c0_i32_992 = arith.constant 0 : i32
    %c0_i32_993 = arith.constant 0 : i32
    %c0_i32_994 = arith.constant 0 : i32
    %2013 = tpu.memref_slice %arg2[%4, %c0_i32_992, %c0_i32_993, %c0_i32_994] : memref<1x90x8x128xf32, #tpu.memory_space<vmem>> -> memref<1x90x8x128xf32, #tpu.memory_space<vmem>>
    %2014 = tpu.memref_squeeze %2013 : memref<1x90x8x128xf32, #tpu.memory_space<vmem>> -> memref<90x8x128xf32, #tpu.memory_space<vmem>>
    %c65_995 = arith.constant 65 : index
    %c0_996 = arith.constant 0 : index
    %c0_997 = arith.constant 0 : index
    %2015 = vector.load %2014[%c65_995, %c0_996, %c0_997] : memref<90x8x128xf32, #tpu.memory_space<vmem>>, vector<1x8x128xf32>
    %2016 = vector.shape_cast %2015 : vector<1x8x128xf32> to vector<8x128xf32>
    %2017 = arith.mulf %1996, %1996 : vector<8x128xf32>
    %2018 = arith.mulf %2000, %2000 : vector<8x128xf32>
    %2019 = arith.addf %2017, %2018 : vector<8x128xf32>
    %2020 = arith.mulf %2004, %2004 : vector<8x128xf32>
    %2021 = arith.addf %2019, %2020 : vector<8x128xf32>
    %cst_998 = arith.constant 1.000000e-24 : f32
    %2022 = vector.broadcast %cst_998 : f32 to vector<8x128xf32>
    %2023 = arith.maximumf %2021, %2022 : vector<8x128xf32>
    %2024 = math.rsqrt %2023 : vector<8x128xf32>
    %2025 = arith.mulf %1996, %2024 : vector<8x128xf32>
    %2026 = arith.mulf %2000, %2024 : vector<8x128xf32>
    %2027 = arith.mulf %2004, %2024 : vector<8x128xf32>
    %2028 = arith.mulf %2025, %2008 : vector<8x128xf32>
    %2029 = arith.mulf %2026, %2012 : vector<8x128xf32>
    %2030 = arith.addf %2028, %2029 : vector<8x128xf32>
    %2031 = arith.mulf %2027, %2016 : vector<8x128xf32>
    %2032 = arith.addf %2030, %2031 : vector<8x128xf32>
    %2033 = arith.mulf %2032, %2025 : vector<8x128xf32>
    %2034 = arith.subf %2008, %2033 : vector<8x128xf32>
    %2035 = arith.mulf %2032, %2026 : vector<8x128xf32>
    %2036 = arith.subf %2012, %2035 : vector<8x128xf32>
    %2037 = arith.mulf %2032, %2027 : vector<8x128xf32>
    %2038 = arith.subf %2016, %2037 : vector<8x128xf32>
    %2039 = arith.mulf %2034, %2034 : vector<8x128xf32>
    %2040 = arith.mulf %2036, %2036 : vector<8x128xf32>
    %2041 = arith.addf %2039, %2040 : vector<8x128xf32>
    %2042 = arith.mulf %2038, %2038 : vector<8x128xf32>
    %2043 = arith.addf %2041, %2042 : vector<8x128xf32>
    %cst_999 = arith.constant 1.000000e-24 : f32
    %2044 = vector.broadcast %cst_999 : f32 to vector<8x128xf32>
    %2045 = arith.maximumf %2043, %2044 : vector<8x128xf32>
    %2046 = math.rsqrt %2045 : vector<8x128xf32>
    %2047 = arith.mulf %2034, %2046 : vector<8x128xf32>
    %2048 = arith.mulf %2036, %2046 : vector<8x128xf32>
    %2049 = arith.mulf %2038, %2046 : vector<8x128xf32>
    %2050 = arith.mulf %2026, %2049 : vector<8x128xf32>
    %2051 = arith.mulf %2027, %2048 : vector<8x128xf32>
    %2052 = arith.subf %2050, %2051 : vector<8x128xf32>
    %2053 = arith.mulf %2027, %2047 : vector<8x128xf32>
    %2054 = arith.mulf %2025, %2049 : vector<8x128xf32>
    %2055 = arith.subf %2053, %2054 : vector<8x128xf32>
    %2056 = arith.mulf %2025, %2048 : vector<8x128xf32>
    %2057 = arith.mulf %2026, %2047 : vector<8x128xf32>
    %2058 = arith.subf %2056, %2057 : vector<8x128xf32>
    %2059 = arith.mulf %1866, %2025 : vector<8x128xf32>
    %2060 = arith.mulf %1871, %2026 : vector<8x128xf32>
    %2061 = arith.addf %2059, %2060 : vector<8x128xf32>
    %2062 = arith.mulf %1876, %2027 : vector<8x128xf32>
    %2063 = arith.addf %2061, %2062 : vector<8x128xf32>
    %2064 = arith.mulf %1866, %2047 : vector<8x128xf32>
    %2065 = arith.mulf %1871, %2048 : vector<8x128xf32>
    %2066 = arith.addf %2064, %2065 : vector<8x128xf32>
    %2067 = arith.mulf %1876, %2049 : vector<8x128xf32>
    %2068 = arith.addf %2066, %2067 : vector<8x128xf32>
    %2069 = arith.mulf %1866, %2052 : vector<8x128xf32>
    %2070 = arith.mulf %1871, %2055 : vector<8x128xf32>
    %2071 = arith.addf %2069, %2070 : vector<8x128xf32>
    %2072 = arith.mulf %1876, %2058 : vector<8x128xf32>
    %2073 = arith.addf %2071, %2072 : vector<8x128xf32>
    %2074 = arith.mulf %1881, %2025 : vector<8x128xf32>
    %2075 = arith.mulf %1886, %2026 : vector<8x128xf32>
    %2076 = arith.addf %2074, %2075 : vector<8x128xf32>
    %2077 = arith.mulf %1891, %2027 : vector<8x128xf32>
    %2078 = arith.addf %2076, %2077 : vector<8x128xf32>
    %2079 = arith.mulf %1881, %2047 : vector<8x128xf32>
    %2080 = arith.mulf %1886, %2048 : vector<8x128xf32>
    %2081 = arith.addf %2079, %2080 : vector<8x128xf32>
    %2082 = arith.mulf %1891, %2049 : vector<8x128xf32>
    %2083 = arith.addf %2081, %2082 : vector<8x128xf32>
    %2084 = arith.mulf %1881, %2052 : vector<8x128xf32>
    %2085 = arith.mulf %1886, %2055 : vector<8x128xf32>
    %2086 = arith.addf %2084, %2085 : vector<8x128xf32>
    %2087 = arith.mulf %1891, %2058 : vector<8x128xf32>
    %2088 = arith.addf %2086, %2087 : vector<8x128xf32>
    %2089 = arith.mulf %1896, %2025 : vector<8x128xf32>
    %2090 = arith.mulf %1901, %2026 : vector<8x128xf32>
    %2091 = arith.addf %2089, %2090 : vector<8x128xf32>
    %2092 = arith.mulf %1906, %2027 : vector<8x128xf32>
    %2093 = arith.addf %2091, %2092 : vector<8x128xf32>
    %2094 = arith.mulf %1896, %2047 : vector<8x128xf32>
    %2095 = arith.mulf %1901, %2048 : vector<8x128xf32>
    %2096 = arith.addf %2094, %2095 : vector<8x128xf32>
    %2097 = arith.mulf %1906, %2049 : vector<8x128xf32>
    %2098 = arith.addf %2096, %2097 : vector<8x128xf32>
    %2099 = arith.mulf %1896, %2052 : vector<8x128xf32>
    %2100 = arith.mulf %1901, %2055 : vector<8x128xf32>
    %2101 = arith.addf %2099, %2100 : vector<8x128xf32>
    %2102 = arith.mulf %1906, %2058 : vector<8x128xf32>
    %2103 = arith.addf %2101, %2102 : vector<8x128xf32>
    %c0_i32_1000 = arith.constant 0 : i32
    %c0_i32_1001 = arith.constant 0 : i32
    %c0_i32_1002 = arith.constant 0 : i32
    %2104 = tpu.memref_slice %arg3[%4, %c0_i32_1000, %c0_i32_1001, %c0_i32_1002] : memref<1x99x8x128xf32, #tpu.memory_space<vmem>> -> memref<1x99x8x128xf32, #tpu.memory_space<vmem>>
    %2105 = tpu.memref_squeeze %2104 : memref<1x99x8x128xf32, #tpu.memory_space<vmem>> -> memref<99x8x128xf32, #tpu.memory_space<vmem>>
    %c75 = arith.constant 75 : index
    %c0_1003 = arith.constant 0 : index
    %c0_1004 = arith.constant 0 : index
    %2106 = vector.load %2105[%c75, %c0_1003, %c0_1004] : memref<99x8x128xf32, #tpu.memory_space<vmem>>, vector<1x8x128xf32>
    %2107 = vector.shape_cast %2106 : vector<1x8x128xf32> to vector<8x128xf32>
    %c0_i32_1005 = arith.constant 0 : i32
    %c0_i32_1006 = arith.constant 0 : i32
    %c0_i32_1007 = arith.constant 0 : i32
    %2108 = tpu.memref_slice %arg3[%4, %c0_i32_1005, %c0_i32_1006, %c0_i32_1007] : memref<1x99x8x128xf32, #tpu.memory_space<vmem>> -> memref<1x99x8x128xf32, #tpu.memory_space<vmem>>
    %2109 = tpu.memref_squeeze %2108 : memref<1x99x8x128xf32, #tpu.memory_space<vmem>> -> memref<99x8x128xf32, #tpu.memory_space<vmem>>
    %c76 = arith.constant 76 : index
    %c0_1008 = arith.constant 0 : index
    %c0_1009 = arith.constant 0 : index
    %2110 = vector.load %2109[%c76, %c0_1008, %c0_1009] : memref<99x8x128xf32, #tpu.memory_space<vmem>>, vector<1x8x128xf32>
    %2111 = vector.shape_cast %2110 : vector<1x8x128xf32> to vector<8x128xf32>
    %c0_i32_1010 = arith.constant 0 : i32
    %c0_i32_1011 = arith.constant 0 : i32
    %c0_i32_1012 = arith.constant 0 : i32
    %2112 = tpu.memref_slice %arg3[%4, %c0_i32_1010, %c0_i32_1011, %c0_i32_1012] : memref<1x99x8x128xf32, #tpu.memory_space<vmem>> -> memref<1x99x8x128xf32, #tpu.memory_space<vmem>>
    %2113 = tpu.memref_squeeze %2112 : memref<1x99x8x128xf32, #tpu.memory_space<vmem>> -> memref<99x8x128xf32, #tpu.memory_space<vmem>>
    %c77 = arith.constant 77 : index
    %c0_1013 = arith.constant 0 : index
    %c0_1014 = arith.constant 0 : index
    %2114 = vector.load %2113[%c77, %c0_1013, %c0_1014] : memref<99x8x128xf32, #tpu.memory_space<vmem>>, vector<1x8x128xf32>
    %2115 = vector.shape_cast %2114 : vector<1x8x128xf32> to vector<8x128xf32>
    %2116 = arith.mulf %2063, %2107 : vector<8x128xf32>
    %2117 = arith.mulf %2068, %2111 : vector<8x128xf32>
    %2118 = arith.addf %2116, %2117 : vector<8x128xf32>
    %2119 = arith.mulf %2073, %2115 : vector<8x128xf32>
    %2120 = arith.addf %2118, %2119 : vector<8x128xf32>
    %2121 = arith.mulf %2078, %2107 : vector<8x128xf32>
    %2122 = arith.mulf %2083, %2111 : vector<8x128xf32>
    %2123 = arith.addf %2121, %2122 : vector<8x128xf32>
    %2124 = arith.mulf %2088, %2115 : vector<8x128xf32>
    %2125 = arith.addf %2123, %2124 : vector<8x128xf32>
    %2126 = arith.mulf %2093, %2107 : vector<8x128xf32>
    %2127 = arith.mulf %2098, %2111 : vector<8x128xf32>
    %2128 = arith.addf %2126, %2127 : vector<8x128xf32>
    %2129 = arith.mulf %2103, %2115 : vector<8x128xf32>
    %2130 = arith.addf %2128, %2129 : vector<8x128xf32>
    %2131 = arith.addf %1934, %2120 : vector<8x128xf32>
    %2132 = arith.addf %1935, %2125 : vector<8x128xf32>
    %2133 = arith.addf %1936, %2130 : vector<8x128xf32>
    %c0_i32_1015 = arith.constant 0 : i32
    %c0_i32_1016 = arith.constant 0 : i32
    %c0_i32_1017 = arith.constant 0 : i32
    %2134 = tpu.memref_slice %arg3[%4, %c0_i32_1015, %c0_i32_1016, %c0_i32_1017] : memref<1x99x8x128xf32, #tpu.memory_space<vmem>> -> memref<1x99x8x128xf32, #tpu.memory_space<vmem>>
    %2135 = tpu.memref_squeeze %2134 : memref<1x99x8x128xf32, #tpu.memory_space<vmem>> -> memref<99x8x128xf32, #tpu.memory_space<vmem>>
    %c30_1018 = arith.constant 30 : index
    %c0_1019 = arith.constant 0 : index
    %c0_1020 = arith.constant 0 : index
    %2136 = vector.load %2135[%c30_1018, %c0_1019, %c0_1020] : memref<99x8x128xf32, #tpu.memory_space<vmem>>, vector<1x8x128xf32>
    %2137 = vector.shape_cast %2136 : vector<1x8x128xf32> to vector<8x128xf32>
    %c0_i32_1021 = arith.constant 0 : i32
    %c0_i32_1022 = arith.constant 0 : i32
    %c0_i32_1023 = arith.constant 0 : i32
    %2138 = tpu.memref_slice %arg3[%4, %c0_i32_1021, %c0_i32_1022, %c0_i32_1023] : memref<1x99x8x128xf32, #tpu.memory_space<vmem>> -> memref<1x99x8x128xf32, #tpu.memory_space<vmem>>
    %2139 = tpu.memref_squeeze %2138 : memref<1x99x8x128xf32, #tpu.memory_space<vmem>> -> memref<99x8x128xf32, #tpu.memory_space<vmem>>
    %c27_1024 = arith.constant 27 : index
    %c0_1025 = arith.constant 0 : index
    %c0_1026 = arith.constant 0 : index
    %2140 = vector.load %2139[%c27_1024, %c0_1025, %c0_1026] : memref<99x8x128xf32, #tpu.memory_space<vmem>>, vector<1x8x128xf32>
    %2141 = vector.shape_cast %2140 : vector<1x8x128xf32> to vector<8x128xf32>
    %2142 = arith.subf %2137, %2141 : vector<8x128xf32>
    %c0_i32_1027 = arith.constant 0 : i32
    %c0_i32_1028 = arith.constant 0 : i32
    %c0_i32_1029 = arith.constant 0 : i32
    %2143 = tpu.memref_slice %arg3[%4, %c0_i32_1027, %c0_i32_1028, %c0_i32_1029] : memref<1x99x8x128xf32, #tpu.memory_space<vmem>> -> memref<1x99x8x128xf32, #tpu.memory_space<vmem>>
    %2144 = tpu.memref_squeeze %2143 : memref<1x99x8x128xf32, #tpu.memory_space<vmem>> -> memref<99x8x128xf32, #tpu.memory_space<vmem>>
    %c31_1030 = arith.constant 31 : index
    %c0_1031 = arith.constant 0 : index
    %c0_1032 = arith.constant 0 : index
    %2145 = vector.load %2144[%c31_1030, %c0_1031, %c0_1032] : memref<99x8x128xf32, #tpu.memory_space<vmem>>, vector<1x8x128xf32>
    %2146 = vector.shape_cast %2145 : vector<1x8x128xf32> to vector<8x128xf32>
    %c0_i32_1033 = arith.constant 0 : i32
    %c0_i32_1034 = arith.constant 0 : i32
    %c0_i32_1035 = arith.constant 0 : i32
    %2147 = tpu.memref_slice %arg3[%4, %c0_i32_1033, %c0_i32_1034, %c0_i32_1035] : memref<1x99x8x128xf32, #tpu.memory_space<vmem>> -> memref<1x99x8x128xf32, #tpu.memory_space<vmem>>
    %2148 = tpu.memref_squeeze %2147 : memref<1x99x8x128xf32, #tpu.memory_space<vmem>> -> memref<99x8x128xf32, #tpu.memory_space<vmem>>
    %c28_1036 = arith.constant 28 : index
    %c0_1037 = arith.constant 0 : index
    %c0_1038 = arith.constant 0 : index
    %2149 = vector.load %2148[%c28_1036, %c0_1037, %c0_1038] : memref<99x8x128xf32, #tpu.memory_space<vmem>>, vector<1x8x128xf32>
    %2150 = vector.shape_cast %2149 : vector<1x8x128xf32> to vector<8x128xf32>
    %2151 = arith.subf %2146, %2150 : vector<8x128xf32>
    %c0_i32_1039 = arith.constant 0 : i32
    %c0_i32_1040 = arith.constant 0 : i32
    %c0_i32_1041 = arith.constant 0 : i32
    %2152 = tpu.memref_slice %arg3[%4, %c0_i32_1039, %c0_i32_1040, %c0_i32_1041] : memref<1x99x8x128xf32, #tpu.memory_space<vmem>> -> memref<1x99x8x128xf32, #tpu.memory_space<vmem>>
    %2153 = tpu.memref_squeeze %2152 : memref<1x99x8x128xf32, #tpu.memory_space<vmem>> -> memref<99x8x128xf32, #tpu.memory_space<vmem>>
    %c32_1042 = arith.constant 32 : index
    %c0_1043 = arith.constant 0 : index
    %c0_1044 = arith.constant 0 : index
    %2154 = vector.load %2153[%c32_1042, %c0_1043, %c0_1044] : memref<99x8x128xf32, #tpu.memory_space<vmem>>, vector<1x8x128xf32>
    %2155 = vector.shape_cast %2154 : vector<1x8x128xf32> to vector<8x128xf32>
    %c0_i32_1045 = arith.constant 0 : i32
    %c0_i32_1046 = arith.constant 0 : i32
    %c0_i32_1047 = arith.constant 0 : i32
    %2156 = tpu.memref_slice %arg3[%4, %c0_i32_1045, %c0_i32_1046, %c0_i32_1047] : memref<1x99x8x128xf32, #tpu.memory_space<vmem>> -> memref<1x99x8x128xf32, #tpu.memory_space<vmem>>
    %2157 = tpu.memref_squeeze %2156 : memref<1x99x8x128xf32, #tpu.memory_space<vmem>> -> memref<99x8x128xf32, #tpu.memory_space<vmem>>
    %c29_1048 = arith.constant 29 : index
    %c0_1049 = arith.constant 0 : index
    %c0_1050 = arith.constant 0 : index
    %2158 = vector.load %2157[%c29_1048, %c0_1049, %c0_1050] : memref<99x8x128xf32, #tpu.memory_space<vmem>>, vector<1x8x128xf32>
    %2159 = vector.shape_cast %2158 : vector<1x8x128xf32> to vector<8x128xf32>
    %2160 = arith.subf %2155, %2159 : vector<8x128xf32>
    %2161 = arith.subf %2131, %1934 : vector<8x128xf32>
    %2162 = arith.subf %2132, %1935 : vector<8x128xf32>
    %2163 = arith.subf %2133, %1936 : vector<8x128xf32>
    %2164 = arith.mulf %2142, %2161 : vector<8x128xf32>
    %2165 = arith.mulf %2151, %2162 : vector<8x128xf32>
    %2166 = arith.addf %2164, %2165 : vector<8x128xf32>
    %2167 = arith.mulf %2160, %2163 : vector<8x128xf32>
    %2168 = arith.addf %2166, %2167 : vector<8x128xf32>
    %2169 = arith.mulf %2142, %2142 : vector<8x128xf32>
    %2170 = arith.mulf %2151, %2151 : vector<8x128xf32>
    %2171 = arith.addf %2169, %2170 : vector<8x128xf32>
    %2172 = arith.mulf %2160, %2160 : vector<8x128xf32>
    %2173 = arith.addf %2171, %2172 : vector<8x128xf32>
    %2174 = arith.mulf %2161, %2161 : vector<8x128xf32>
    %2175 = arith.mulf %2162, %2162 : vector<8x128xf32>
    %2176 = arith.addf %2174, %2175 : vector<8x128xf32>
    %2177 = arith.mulf %2163, %2163 : vector<8x128xf32>
    %2178 = arith.addf %2176, %2177 : vector<8x128xf32>
    %2179 = arith.mulf %2173, %2178 : vector<8x128xf32>
    %cst_1051 = arith.constant 1.000000e-16 : f32
    %2180 = vector.broadcast %cst_1051 : f32 to vector<8x128xf32>
    %2181 = arith.maximumf %2179, %2180 : vector<8x128xf32>
    %2182 = math.rsqrt %2181 : vector<8x128xf32>
    %2183 = arith.mulf %2168, %2182 : vector<8x128xf32>
    %c10_1052 = arith.constant 10 : index
    %c0_1053 = arith.constant 0 : index
    %c0_1054 = arith.constant 0 : index
    %2184 = vector.load %arg5[%c10_1052, %c0_1053, %c0_1054] : memref<15x8x128xf32, #tpu.memory_space<vmem>>, vector<1x8x128xf32>
    %2185 = vector.shape_cast %2184 : vector<1x8x128xf32> to vector<8x128xf32>
    %2186 = arith.addf %2185, %2183 : vector<8x128xf32>
    %c10_1055 = arith.constant 10 : index
    %c0_1056 = arith.constant 0 : index
    %c0_1057 = arith.constant 0 : index
    %2187 = vector.load %arg5[%c10_1055, %c0_1056, %c0_1057] : memref<15x8x128xf32, #tpu.memory_space<vmem>>, vector<1x8x128xf32>
    %2188 = vector.shape_cast %2187 : vector<1x8x128xf32> to vector<8x128xf32>
    %2189 = vector.shape_cast %2186 : vector<8x128xf32> to vector<1x8x128xf32>
    tpu.vector_store %arg5[%c10_1055, %c0_1056, %c0_1057], %2189 {strides = array<i32>} : memref<15x8x128xf32, #tpu.memory_space<vmem>>, vector<1x8x128xf32>,
    %c0_i32_1058 = arith.constant 0 : i32
    %c0_i32_1059 = arith.constant 0 : i32
    %c0_i32_1060 = arith.constant 0 : i32
    %2190 = tpu.memref_slice %arg2[%4, %c0_i32_1058, %c0_i32_1059, %c0_i32_1060] : memref<1x90x8x128xf32, #tpu.memory_space<vmem>> -> memref<1x90x8x128xf32, #tpu.memory_space<vmem>>
    %2191 = tpu.memref_squeeze %2190 : memref<1x90x8x128xf32, #tpu.memory_space<vmem>> -> memref<90x8x128xf32, #tpu.memory_space<vmem>>
    %c66_1061 = arith.constant 66 : index
    %c0_1062 = arith.constant 0 : index
    %c0_1063 = arith.constant 0 : index
    %2192 = vector.load %2191[%c66_1061, %c0_1062, %c0_1063] : memref<90x8x128xf32, #tpu.memory_space<vmem>>, vector<1x8x128xf32>
    %2193 = vector.shape_cast %2192 : vector<1x8x128xf32> to vector<8x128xf32>
    %c0_i32_1064 = arith.constant 0 : i32
    %c0_i32_1065 = arith.constant 0 : i32
    %c0_i32_1066 = arith.constant 0 : i32
    %2194 = tpu.memref_slice %arg2[%4, %c0_i32_1064, %c0_i32_1065, %c0_i32_1066] : memref<1x90x8x128xf32, #tpu.memory_space<vmem>> -> memref<1x90x8x128xf32, #tpu.memory_space<vmem>>
    %2195 = tpu.memref_squeeze %2194 : memref<1x90x8x128xf32, #tpu.memory_space<vmem>> -> memref<90x8x128xf32, #tpu.memory_space<vmem>>
    %c67_1067 = arith.constant 67 : index
    %c0_1068 = arith.constant 0 : index
    %c0_1069 = arith.constant 0 : index
    %2196 = vector.load %2195[%c67_1067, %c0_1068, %c0_1069] : memref<90x8x128xf32, #tpu.memory_space<vmem>>, vector<1x8x128xf32>
    %2197 = vector.shape_cast %2196 : vector<1x8x128xf32> to vector<8x128xf32>
    %c0_i32_1070 = arith.constant 0 : i32
    %c0_i32_1071 = arith.constant 0 : i32
    %c0_i32_1072 = arith.constant 0 : i32
    %2198 = tpu.memref_slice %arg2[%4, %c0_i32_1070, %c0_i32_1071, %c0_i32_1072] : memref<1x90x8x128xf32, #tpu.memory_space<vmem>> -> memref<1x90x8x128xf32, #tpu.memory_space<vmem>>
    %2199 = tpu.memref_squeeze %2198 : memref<1x90x8x128xf32, #tpu.memory_space<vmem>> -> memref<90x8x128xf32, #tpu.memory_space<vmem>>
    %c68_1073 = arith.constant 68 : index
    %c0_1074 = arith.constant 0 : index
    %c0_1075 = arith.constant 0 : index
    %2200 = vector.load %2199[%c68_1073, %c0_1074, %c0_1075] : memref<90x8x128xf32, #tpu.memory_space<vmem>>, vector<1x8x128xf32>
    %2201 = vector.shape_cast %2200 : vector<1x8x128xf32> to vector<8x128xf32>
    %c0_i32_1076 = arith.constant 0 : i32
    %c0_i32_1077 = arith.constant 0 : i32
    %c0_i32_1078 = arith.constant 0 : i32
    %2202 = tpu.memref_slice %arg2[%4, %c0_i32_1076, %c0_i32_1077, %c0_i32_1078] : memref<1x90x8x128xf32, #tpu.memory_space<vmem>> -> memref<1x90x8x128xf32, #tpu.memory_space<vmem>>
    %2203 = tpu.memref_squeeze %2202 : memref<1x90x8x128xf32, #tpu.memory_space<vmem>> -> memref<90x8x128xf32, #tpu.memory_space<vmem>>
    %c69_1079 = arith.constant 69 : index
    %c0_1080 = arith.constant 0 : index
    %c0_1081 = arith.constant 0 : index
    %2204 = vector.load %2203[%c69_1079, %c0_1080, %c0_1081] : memref<90x8x128xf32, #tpu.memory_space<vmem>>, vector<1x8x128xf32>
    %2205 = vector.shape_cast %2204 : vector<1x8x128xf32> to vector<8x128xf32>
    %c0_i32_1082 = arith.constant 0 : i32
    %c0_i32_1083 = arith.constant 0 : i32
    %c0_i32_1084 = arith.constant 0 : i32
    %2206 = tpu.memref_slice %arg2[%4, %c0_i32_1082, %c0_i32_1083, %c0_i32_1084] : memref<1x90x8x128xf32, #tpu.memory_space<vmem>> -> memref<1x90x8x128xf32, #tpu.memory_space<vmem>>
    %2207 = tpu.memref_squeeze %2206 : memref<1x90x8x128xf32, #tpu.memory_space<vmem>> -> memref<90x8x128xf32, #tpu.memory_space<vmem>>
    %c70_1085 = arith.constant 70 : index
    %c0_1086 = arith.constant 0 : index
    %c0_1087 = arith.constant 0 : index
    %2208 = vector.load %2207[%c70_1085, %c0_1086, %c0_1087] : memref<90x8x128xf32, #tpu.memory_space<vmem>>, vector<1x8x128xf32>
    %2209 = vector.shape_cast %2208 : vector<1x8x128xf32> to vector<8x128xf32>
    %c0_i32_1088 = arith.constant 0 : i32
    %c0_i32_1089 = arith.constant 0 : i32
    %c0_i32_1090 = arith.constant 0 : i32
    %2210 = tpu.memref_slice %arg2[%4, %c0_i32_1088, %c0_i32_1089, %c0_i32_1090] : memref<1x90x8x128xf32, #tpu.memory_space<vmem>> -> memref<1x90x8x128xf32, #tpu.memory_space<vmem>>
    %2211 = tpu.memref_squeeze %2210 : memref<1x90x8x128xf32, #tpu.memory_space<vmem>> -> memref<90x8x128xf32, #tpu.memory_space<vmem>>
    %c71_1091 = arith.constant 71 : index
    %c0_1092 = arith.constant 0 : index
    %c0_1093 = arith.constant 0 : index
    %2212 = vector.load %2211[%c71_1091, %c0_1092, %c0_1093] : memref<90x8x128xf32, #tpu.memory_space<vmem>>, vector<1x8x128xf32>
    %2213 = vector.shape_cast %2212 : vector<1x8x128xf32> to vector<8x128xf32>
    %2214 = arith.mulf %2193, %2193 : vector<8x128xf32>
    %2215 = arith.mulf %2197, %2197 : vector<8x128xf32>
    %2216 = arith.addf %2214, %2215 : vector<8x128xf32>
    %2217 = arith.mulf %2201, %2201 : vector<8x128xf32>
    %2218 = arith.addf %2216, %2217 : vector<8x128xf32>
    %cst_1094 = arith.constant 1.000000e-24 : f32
    %2219 = vector.broadcast %cst_1094 : f32 to vector<8x128xf32>
    %2220 = arith.maximumf %2218, %2219 : vector<8x128xf32>
    %2221 = math.rsqrt %2220 : vector<8x128xf32>
    %2222 = arith.mulf %2193, %2221 : vector<8x128xf32>
    %2223 = arith.mulf %2197, %2221 : vector<8x128xf32>
    %2224 = arith.mulf %2201, %2221 : vector<8x128xf32>
    %2225 = arith.mulf %2222, %2205 : vector<8x128xf32>
    %2226 = arith.mulf %2223, %2209 : vector<8x128xf32>
    %2227 = arith.addf %2225, %2226 : vector<8x128xf32>
    %2228 = arith.mulf %2224, %2213 : vector<8x128xf32>
    %2229 = arith.addf %2227, %2228 : vector<8x128xf32>
    %2230 = arith.mulf %2229, %2222 : vector<8x128xf32>
    %2231 = arith.subf %2205, %2230 : vector<8x128xf32>
    %2232 = arith.mulf %2229, %2223 : vector<8x128xf32>
    %2233 = arith.subf %2209, %2232 : vector<8x128xf32>
    %2234 = arith.mulf %2229, %2224 : vector<8x128xf32>
    %2235 = arith.subf %2213, %2234 : vector<8x128xf32>
    %2236 = arith.mulf %2231, %2231 : vector<8x128xf32>
    %2237 = arith.mulf %2233, %2233 : vector<8x128xf32>
    %2238 = arith.addf %2236, %2237 : vector<8x128xf32>
    %2239 = arith.mulf %2235, %2235 : vector<8x128xf32>
    %2240 = arith.addf %2238, %2239 : vector<8x128xf32>
    %cst_1095 = arith.constant 1.000000e-24 : f32
    %2241 = vector.broadcast %cst_1095 : f32 to vector<8x128xf32>
    %2242 = arith.maximumf %2240, %2241 : vector<8x128xf32>
    %2243 = math.rsqrt %2242 : vector<8x128xf32>
    %2244 = arith.mulf %2231, %2243 : vector<8x128xf32>
    %2245 = arith.mulf %2233, %2243 : vector<8x128xf32>
    %2246 = arith.mulf %2235, %2243 : vector<8x128xf32>
    %2247 = arith.mulf %2223, %2246 : vector<8x128xf32>
    %2248 = arith.mulf %2224, %2245 : vector<8x128xf32>
    %2249 = arith.subf %2247, %2248 : vector<8x128xf32>
    %2250 = arith.mulf %2224, %2244 : vector<8x128xf32>
    %2251 = arith.mulf %2222, %2246 : vector<8x128xf32>
    %2252 = arith.subf %2250, %2251 : vector<8x128xf32>
    %2253 = arith.mulf %2222, %2245 : vector<8x128xf32>
    %2254 = arith.mulf %2223, %2244 : vector<8x128xf32>
    %2255 = arith.subf %2253, %2254 : vector<8x128xf32>
    %2256 = arith.mulf %111, %2222 : vector<8x128xf32>
    %2257 = arith.mulf %116, %2223 : vector<8x128xf32>
    %2258 = arith.addf %2256, %2257 : vector<8x128xf32>
    %2259 = arith.mulf %121, %2224 : vector<8x128xf32>
    %2260 = arith.addf %2258, %2259 : vector<8x128xf32>
    %2261 = arith.mulf %111, %2244 : vector<8x128xf32>
    %2262 = arith.mulf %116, %2245 : vector<8x128xf32>
    %2263 = arith.addf %2261, %2262 : vector<8x128xf32>
    %2264 = arith.mulf %121, %2246 : vector<8x128xf32>
    %2265 = arith.addf %2263, %2264 : vector<8x128xf32>
    %2266 = arith.mulf %111, %2249 : vector<8x128xf32>
    %2267 = arith.mulf %116, %2252 : vector<8x128xf32>
    %2268 = arith.addf %2266, %2267 : vector<8x128xf32>
    %2269 = arith.mulf %121, %2255 : vector<8x128xf32>
    %2270 = arith.addf %2268, %2269 : vector<8x128xf32>
    %2271 = arith.mulf %126, %2222 : vector<8x128xf32>
    %2272 = arith.mulf %131, %2223 : vector<8x128xf32>
    %2273 = arith.addf %2271, %2272 : vector<8x128xf32>
    %2274 = arith.mulf %136, %2224 : vector<8x128xf32>
    %2275 = arith.addf %2273, %2274 : vector<8x128xf32>
    %2276 = arith.mulf %126, %2244 : vector<8x128xf32>
    %2277 = arith.mulf %131, %2245 : vector<8x128xf32>
    %2278 = arith.addf %2276, %2277 : vector<8x128xf32>
    %2279 = arith.mulf %136, %2246 : vector<8x128xf32>
    %2280 = arith.addf %2278, %2279 : vector<8x128xf32>
    %2281 = arith.mulf %126, %2249 : vector<8x128xf32>
    %2282 = arith.mulf %131, %2252 : vector<8x128xf32>
    %2283 = arith.addf %2281, %2282 : vector<8x128xf32>
    %2284 = arith.mulf %136, %2255 : vector<8x128xf32>
    %2285 = arith.addf %2283, %2284 : vector<8x128xf32>
    %2286 = arith.mulf %141, %2222 : vector<8x128xf32>
    %2287 = arith.mulf %146, %2223 : vector<8x128xf32>
    %2288 = arith.addf %2286, %2287 : vector<8x128xf32>
    %2289 = arith.mulf %151, %2224 : vector<8x128xf32>
    %2290 = arith.addf %2288, %2289 : vector<8x128xf32>
    %2291 = arith.mulf %141, %2244 : vector<8x128xf32>
    %2292 = arith.mulf %146, %2245 : vector<8x128xf32>
    %2293 = arith.addf %2291, %2292 : vector<8x128xf32>
    %2294 = arith.mulf %151, %2246 : vector<8x128xf32>
    %2295 = arith.addf %2293, %2294 : vector<8x128xf32>
    %2296 = arith.mulf %141, %2249 : vector<8x128xf32>
    %2297 = arith.mulf %146, %2252 : vector<8x128xf32>
    %2298 = arith.addf %2296, %2297 : vector<8x128xf32>
    %2299 = arith.mulf %151, %2255 : vector<8x128xf32>
    %2300 = arith.addf %2298, %2299 : vector<8x128xf32>
    %c0_i32_1096 = arith.constant 0 : i32
    %c0_i32_1097 = arith.constant 0 : i32
    %c0_i32_1098 = arith.constant 0 : i32
    %2301 = tpu.memref_slice %arg3[%4, %c0_i32_1096, %c0_i32_1097, %c0_i32_1098] : memref<1x99x8x128xf32, #tpu.memory_space<vmem>> -> memref<1x99x8x128xf32, #tpu.memory_space<vmem>>
    %2302 = tpu.memref_squeeze %2301 : memref<1x99x8x128xf32, #tpu.memory_space<vmem>> -> memref<99x8x128xf32, #tpu.memory_space<vmem>>
    %c78 = arith.constant 78 : index
    %c0_1099 = arith.constant 0 : index
    %c0_1100 = arith.constant 0 : index
    %2303 = vector.load %2302[%c78, %c0_1099, %c0_1100] : memref<99x8x128xf32, #tpu.memory_space<vmem>>, vector<1x8x128xf32>
    %2304 = vector.shape_cast %2303 : vector<1x8x128xf32> to vector<8x128xf32>
    %c0_i32_1101 = arith.constant 0 : i32
    %c0_i32_1102 = arith.constant 0 : i32
    %c0_i32_1103 = arith.constant 0 : i32
    %2305 = tpu.memref_slice %arg3[%4, %c0_i32_1101, %c0_i32_1102, %c0_i32_1103] : memref<1x99x8x128xf32, #tpu.memory_space<vmem>> -> memref<1x99x8x128xf32, #tpu.memory_space<vmem>>
    %2306 = tpu.memref_squeeze %2305 : memref<1x99x8x128xf32, #tpu.memory_space<vmem>> -> memref<99x8x128xf32, #tpu.memory_space<vmem>>
    %c79 = arith.constant 79 : index
    %c0_1104 = arith.constant 0 : index
    %c0_1105 = arith.constant 0 : index
    %2307 = vector.load %2306[%c79, %c0_1104, %c0_1105] : memref<99x8x128xf32, #tpu.memory_space<vmem>>, vector<1x8x128xf32>
    %2308 = vector.shape_cast %2307 : vector<1x8x128xf32> to vector<8x128xf32>
    %c0_i32_1106 = arith.constant 0 : i32
    %c0_i32_1107 = arith.constant 0 : i32
    %c0_i32_1108 = arith.constant 0 : i32
    %2309 = tpu.memref_slice %arg3[%4, %c0_i32_1106, %c0_i32_1107, %c0_i32_1108] : memref<1x99x8x128xf32, #tpu.memory_space<vmem>> -> memref<1x99x8x128xf32, #tpu.memory_space<vmem>>
    %2310 = tpu.memref_squeeze %2309 : memref<1x99x8x128xf32, #tpu.memory_space<vmem>> -> memref<99x8x128xf32, #tpu.memory_space<vmem>>
    %c80 = arith.constant 80 : index
    %c0_1109 = arith.constant 0 : index
    %c0_1110 = arith.constant 0 : index
    %2311 = vector.load %2310[%c80, %c0_1109, %c0_1110] : memref<99x8x128xf32, #tpu.memory_space<vmem>>, vector<1x8x128xf32>
    %2312 = vector.shape_cast %2311 : vector<1x8x128xf32> to vector<8x128xf32>
    %2313 = arith.mulf %2260, %2304 : vector<8x128xf32>
    %2314 = arith.mulf %2265, %2308 : vector<8x128xf32>
    %2315 = arith.addf %2313, %2314 : vector<8x128xf32>
    %2316 = arith.mulf %2270, %2312 : vector<8x128xf32>
    %2317 = arith.addf %2315, %2316 : vector<8x128xf32>
    %2318 = arith.mulf %2275, %2304 : vector<8x128xf32>
    %2319 = arith.mulf %2280, %2308 : vector<8x128xf32>
    %2320 = arith.addf %2318, %2319 : vector<8x128xf32>
    %2321 = arith.mulf %2285, %2312 : vector<8x128xf32>
    %2322 = arith.addf %2320, %2321 : vector<8x128xf32>
    %2323 = arith.mulf %2290, %2304 : vector<8x128xf32>
    %2324 = arith.mulf %2295, %2308 : vector<8x128xf32>
    %2325 = arith.addf %2323, %2324 : vector<8x128xf32>
    %2326 = arith.mulf %2300, %2312 : vector<8x128xf32>
    %2327 = arith.addf %2325, %2326 : vector<8x128xf32>
    %2328 = arith.addf %155, %2317 : vector<8x128xf32>
    %2329 = arith.addf %159, %2322 : vector<8x128xf32>
    %2330 = arith.addf %163, %2327 : vector<8x128xf32>
    %c0_i32_1111 = arith.constant 0 : i32
    %c0_i32_1112 = arith.constant 0 : i32
    %c0_i32_1113 = arith.constant 0 : i32
    %2331 = tpu.memref_slice %arg3[%4, %c0_i32_1111, %c0_i32_1112, %c0_i32_1113] : memref<1x99x8x128xf32, #tpu.memory_space<vmem>> -> memref<1x99x8x128xf32, #tpu.memory_space<vmem>>
    %2332 = tpu.memref_squeeze %2331 : memref<1x99x8x128xf32, #tpu.memory_space<vmem>> -> memref<99x8x128xf32, #tpu.memory_space<vmem>>
    %c33_1114 = arith.constant 33 : index
    %c0_1115 = arith.constant 0 : index
    %c0_1116 = arith.constant 0 : index
    %2333 = vector.load %2332[%c33_1114, %c0_1115, %c0_1116] : memref<99x8x128xf32, #tpu.memory_space<vmem>>, vector<1x8x128xf32>
    %2334 = vector.shape_cast %2333 : vector<1x8x128xf32> to vector<8x128xf32>
    %c0_i32_1117 = arith.constant 0 : i32
    %c0_i32_1118 = arith.constant 0 : i32
    %c0_i32_1119 = arith.constant 0 : i32
    %2335 = tpu.memref_slice %arg3[%4, %c0_i32_1117, %c0_i32_1118, %c0_i32_1119] : memref<1x99x8x128xf32, #tpu.memory_space<vmem>> -> memref<1x99x8x128xf32, #tpu.memory_space<vmem>>
    %2336 = tpu.memref_squeeze %2335 : memref<1x99x8x128xf32, #tpu.memory_space<vmem>> -> memref<99x8x128xf32, #tpu.memory_space<vmem>>
    %c0_1120 = arith.constant 0 : index
    %c0_1121 = arith.constant 0 : index
    %c0_1122 = arith.constant 0 : index
    %2337 = vector.load %2336[%c0_1120, %c0_1121, %c0_1122] : memref<99x8x128xf32, #tpu.memory_space<vmem>>, vector<1x8x128xf32>
    %2338 = vector.shape_cast %2337 : vector<1x8x128xf32> to vector<8x128xf32>
    %2339 = arith.subf %2334, %2338 : vector<8x128xf32>
    %c0_i32_1123 = arith.constant 0 : i32
    %c0_i32_1124 = arith.constant 0 : i32
    %c0_i32_1125 = arith.constant 0 : i32
    %2340 = tpu.memref_slice %arg3[%4, %c0_i32_1123, %c0_i32_1124, %c0_i32_1125] : memref<1x99x8x128xf32, #tpu.memory_space<vmem>> -> memref<1x99x8x128xf32, #tpu.memory_space<vmem>>
    %2341 = tpu.memref_squeeze %2340 : memref<1x99x8x128xf32, #tpu.memory_space<vmem>> -> memref<99x8x128xf32, #tpu.memory_space<vmem>>
    %c34_1126 = arith.constant 34 : index
    %c0_1127 = arith.constant 0 : index
    %c0_1128 = arith.constant 0 : index
    %2342 = vector.load %2341[%c34_1126, %c0_1127, %c0_1128] : memref<99x8x128xf32, #tpu.memory_space<vmem>>, vector<1x8x128xf32>
    %2343 = vector.shape_cast %2342 : vector<1x8x128xf32> to vector<8x128xf32>
    %c0_i32_1129 = arith.constant 0 : i32
    %c0_i32_1130 = arith.constant 0 : i32
    %c0_i32_1131 = arith.constant 0 : i32
    %2344 = tpu.memref_slice %arg3[%4, %c0_i32_1129, %c0_i32_1130, %c0_i32_1131] : memref<1x99x8x128xf32, #tpu.memory_space<vmem>> -> memref<1x99x8x128xf32, #tpu.memory_space<vmem>>
    %2345 = tpu.memref_squeeze %2344 : memref<1x99x8x128xf32, #tpu.memory_space<vmem>> -> memref<99x8x128xf32, #tpu.memory_space<vmem>>
    %c1_1132 = arith.constant 1 : index
    %c0_1133 = arith.constant 0 : index
    %c0_1134 = arith.constant 0 : index
    %2346 = vector.load %2345[%c1_1132, %c0_1133, %c0_1134] : memref<99x8x128xf32, #tpu.memory_space<vmem>>, vector<1x8x128xf32>
    %2347 = vector.shape_cast %2346 : vector<1x8x128xf32> to vector<8x128xf32>
    %2348 = arith.subf %2343, %2347 : vector<8x128xf32>
    %c0_i32_1135 = arith.constant 0 : i32
    %c0_i32_1136 = arith.constant 0 : i32
    %c0_i32_1137 = arith.constant 0 : i32
    %2349 = tpu.memref_slice %arg3[%4, %c0_i32_1135, %c0_i32_1136, %c0_i32_1137] : memref<1x99x8x128xf32, #tpu.memory_space<vmem>> -> memref<1x99x8x128xf32, #tpu.memory_space<vmem>>
    %2350 = tpu.memref_squeeze %2349 : memref<1x99x8x128xf32, #tpu.memory_space<vmem>> -> memref<99x8x128xf32, #tpu.memory_space<vmem>>
    %c35_1138 = arith.constant 35 : index
    %c0_1139 = arith.constant 0 : index
    %c0_1140 = arith.constant 0 : index
    %2351 = vector.load %2350[%c35_1138, %c0_1139, %c0_1140] : memref<99x8x128xf32, #tpu.memory_space<vmem>>, vector<1x8x128xf32>
    %2352 = vector.shape_cast %2351 : vector<1x8x128xf32> to vector<8x128xf32>
    %c0_i32_1141 = arith.constant 0 : i32
    %c0_i32_1142 = arith.constant 0 : i32
    %c0_i32_1143 = arith.constant 0 : i32
    %2353 = tpu.memref_slice %arg3[%4, %c0_i32_1141, %c0_i32_1142, %c0_i32_1143] : memref<1x99x8x128xf32, #tpu.memory_space<vmem>> -> memref<1x99x8x128xf32, #tpu.memory_space<vmem>>
    %2354 = tpu.memref_squeeze %2353 : memref<1x99x8x128xf32, #tpu.memory_space<vmem>> -> memref<99x8x128xf32, #tpu.memory_space<vmem>>
    %c2_1144 = arith.constant 2 : index
    %c0_1145 = arith.constant 0 : index
    %c0_1146 = arith.constant 0 : index
    %2355 = vector.load %2354[%c2_1144, %c0_1145, %c0_1146] : memref<99x8x128xf32, #tpu.memory_space<vmem>>, vector<1x8x128xf32>
    %2356 = vector.shape_cast %2355 : vector<1x8x128xf32> to vector<8x128xf32>
    %2357 = arith.subf %2352, %2356 : vector<8x128xf32>
    %2358 = arith.subf %2328, %155 : vector<8x128xf32>
    %2359 = arith.subf %2329, %159 : vector<8x128xf32>
    %2360 = arith.subf %2330, %163 : vector<8x128xf32>
    %2361 = arith.mulf %2339, %2358 : vector<8x128xf32>
    %2362 = arith.mulf %2348, %2359 : vector<8x128xf32>
    %2363 = arith.addf %2361, %2362 : vector<8x128xf32>
    %2364 = arith.mulf %2357, %2360 : vector<8x128xf32>
    %2365 = arith.addf %2363, %2364 : vector<8x128xf32>
    %2366 = arith.mulf %2339, %2339 : vector<8x128xf32>
    %2367 = arith.mulf %2348, %2348 : vector<8x128xf32>
    %2368 = arith.addf %2366, %2367 : vector<8x128xf32>
    %2369 = arith.mulf %2357, %2357 : vector<8x128xf32>
    %2370 = arith.addf %2368, %2369 : vector<8x128xf32>
    %2371 = arith.mulf %2358, %2358 : vector<8x128xf32>
    %2372 = arith.mulf %2359, %2359 : vector<8x128xf32>
    %2373 = arith.addf %2371, %2372 : vector<8x128xf32>
    %2374 = arith.mulf %2360, %2360 : vector<8x128xf32>
    %2375 = arith.addf %2373, %2374 : vector<8x128xf32>
    %2376 = arith.mulf %2370, %2375 : vector<8x128xf32>
    %cst_1147 = arith.constant 1.000000e-16 : f32
    %2377 = vector.broadcast %cst_1147 : f32 to vector<8x128xf32>
    %2378 = arith.maximumf %2376, %2377 : vector<8x128xf32>
    %2379 = math.rsqrt %2378 : vector<8x128xf32>
    %2380 = arith.mulf %2365, %2379 : vector<8x128xf32>
    %c11_1148 = arith.constant 11 : index
    %c0_1149 = arith.constant 0 : index
    %c0_1150 = arith.constant 0 : index
    %2381 = vector.load %arg5[%c11_1148, %c0_1149, %c0_1150] : memref<15x8x128xf32, #tpu.memory_space<vmem>>, vector<1x8x128xf32>
    %2382 = vector.shape_cast %2381 : vector<1x8x128xf32> to vector<8x128xf32>
    %2383 = arith.addf %2382, %2380 : vector<8x128xf32>
    %c11_1151 = arith.constant 11 : index
    %c0_1152 = arith.constant 0 : index
    %c0_1153 = arith.constant 0 : index
    %2384 = vector.load %arg5[%c11_1151, %c0_1152, %c0_1153] : memref<15x8x128xf32, #tpu.memory_space<vmem>>, vector<1x8x128xf32>
    %2385 = vector.shape_cast %2384 : vector<1x8x128xf32> to vector<8x128xf32>
    %2386 = vector.shape_cast %2383 : vector<8x128xf32> to vector<1x8x128xf32>
    tpu.vector_store %arg5[%c11_1151, %c0_1152, %c0_1153], %2386 {strides = array<i32>} : memref<15x8x128xf32, #tpu.memory_space<vmem>>, vector<1x8x128xf32>,
    %c0_i32_1154 = arith.constant 0 : i32
    %c0_i32_1155 = arith.constant 0 : i32
    %c0_i32_1156 = arith.constant 0 : i32
    %2387 = tpu.memref_slice %arg2[%4, %c0_i32_1154, %c0_i32_1155, %c0_i32_1156] : memref<1x90x8x128xf32, #tpu.memory_space<vmem>> -> memref<1x90x8x128xf32, #tpu.memory_space<vmem>>
    %2388 = tpu.memref_squeeze %2387 : memref<1x90x8x128xf32, #tpu.memory_space<vmem>> -> memref<90x8x128xf32, #tpu.memory_space<vmem>>
    %c72_1157 = arith.constant 72 : index
    %c0_1158 = arith.constant 0 : index
    %c0_1159 = arith.constant 0 : index
    %2389 = vector.load %2388[%c72_1157, %c0_1158, %c0_1159] : memref<90x8x128xf32, #tpu.memory_space<vmem>>, vector<1x8x128xf32>
    %2390 = vector.shape_cast %2389 : vector<1x8x128xf32> to vector<8x128xf32>
    %c0_i32_1160 = arith.constant 0 : i32
    %c0_i32_1161 = arith.constant 0 : i32
    %c0_i32_1162 = arith.constant 0 : i32
    %2391 = tpu.memref_slice %arg2[%4, %c0_i32_1160, %c0_i32_1161, %c0_i32_1162] : memref<1x90x8x128xf32, #tpu.memory_space<vmem>> -> memref<1x90x8x128xf32, #tpu.memory_space<vmem>>
    %2392 = tpu.memref_squeeze %2391 : memref<1x90x8x128xf32, #tpu.memory_space<vmem>> -> memref<90x8x128xf32, #tpu.memory_space<vmem>>
    %c73_1163 = arith.constant 73 : index
    %c0_1164 = arith.constant 0 : index
    %c0_1165 = arith.constant 0 : index
    %2393 = vector.load %2392[%c73_1163, %c0_1164, %c0_1165] : memref<90x8x128xf32, #tpu.memory_space<vmem>>, vector<1x8x128xf32>
    %2394 = vector.shape_cast %2393 : vector<1x8x128xf32> to vector<8x128xf32>
    %c0_i32_1166 = arith.constant 0 : i32
    %c0_i32_1167 = arith.constant 0 : i32
    %c0_i32_1168 = arith.constant 0 : i32
    %2395 = tpu.memref_slice %arg2[%4, %c0_i32_1166, %c0_i32_1167, %c0_i32_1168] : memref<1x90x8x128xf32, #tpu.memory_space<vmem>> -> memref<1x90x8x128xf32, #tpu.memory_space<vmem>>
    %2396 = tpu.memref_squeeze %2395 : memref<1x90x8x128xf32, #tpu.memory_space<vmem>> -> memref<90x8x128xf32, #tpu.memory_space<vmem>>
    %c74_1169 = arith.constant 74 : index
    %c0_1170 = arith.constant 0 : index
    %c0_1171 = arith.constant 0 : index
    %2397 = vector.load %2396[%c74_1169, %c0_1170, %c0_1171] : memref<90x8x128xf32, #tpu.memory_space<vmem>>, vector<1x8x128xf32>
    %2398 = vector.shape_cast %2397 : vector<1x8x128xf32> to vector<8x128xf32>
    %c0_i32_1172 = arith.constant 0 : i32
    %c0_i32_1173 = arith.constant 0 : i32
    %c0_i32_1174 = arith.constant 0 : i32
    %2399 = tpu.memref_slice %arg2[%4, %c0_i32_1172, %c0_i32_1173, %c0_i32_1174] : memref<1x90x8x128xf32, #tpu.memory_space<vmem>> -> memref<1x90x8x128xf32, #tpu.memory_space<vmem>>
    %2400 = tpu.memref_squeeze %2399 : memref<1x90x8x128xf32, #tpu.memory_space<vmem>> -> memref<90x8x128xf32, #tpu.memory_space<vmem>>
    %c75_1175 = arith.constant 75 : index
    %c0_1176 = arith.constant 0 : index
    %c0_1177 = arith.constant 0 : index
    %2401 = vector.load %2400[%c75_1175, %c0_1176, %c0_1177] : memref<90x8x128xf32, #tpu.memory_space<vmem>>, vector<1x8x128xf32>
    %2402 = vector.shape_cast %2401 : vector<1x8x128xf32> to vector<8x128xf32>
    %c0_i32_1178 = arith.constant 0 : i32
    %c0_i32_1179 = arith.constant 0 : i32
    %c0_i32_1180 = arith.constant 0 : i32
    %2403 = tpu.memref_slice %arg2[%4, %c0_i32_1178, %c0_i32_1179, %c0_i32_1180] : memref<1x90x8x128xf32, #tpu.memory_space<vmem>> -> memref<1x90x8x128xf32, #tpu.memory_space<vmem>>
    %2404 = tpu.memref_squeeze %2403 : memref<1x90x8x128xf32, #tpu.memory_space<vmem>> -> memref<90x8x128xf32, #tpu.memory_space<vmem>>
    %c76_1181 = arith.constant 76 : index
    %c0_1182 = arith.constant 0 : index
    %c0_1183 = arith.constant 0 : index
    %2405 = vector.load %2404[%c76_1181, %c0_1182, %c0_1183] : memref<90x8x128xf32, #tpu.memory_space<vmem>>, vector<1x8x128xf32>
    %2406 = vector.shape_cast %2405 : vector<1x8x128xf32> to vector<8x128xf32>
    %c0_i32_1184 = arith.constant 0 : i32
    %c0_i32_1185 = arith.constant 0 : i32
    %c0_i32_1186 = arith.constant 0 : i32
    %2407 = tpu.memref_slice %arg2[%4, %c0_i32_1184, %c0_i32_1185, %c0_i32_1186] : memref<1x90x8x128xf32, #tpu.memory_space<vmem>> -> memref<1x90x8x128xf32, #tpu.memory_space<vmem>>
    %2408 = tpu.memref_squeeze %2407 : memref<1x90x8x128xf32, #tpu.memory_space<vmem>> -> memref<90x8x128xf32, #tpu.memory_space<vmem>>
    %c77_1187 = arith.constant 77 : index
    %c0_1188 = arith.constant 0 : index
    %c0_1189 = arith.constant 0 : index
    %2409 = vector.load %2408[%c77_1187, %c0_1188, %c0_1189] : memref<90x8x128xf32, #tpu.memory_space<vmem>>, vector<1x8x128xf32>
    %2410 = vector.shape_cast %2409 : vector<1x8x128xf32> to vector<8x128xf32>
    %2411 = arith.mulf %2390, %2390 : vector<8x128xf32>
    %2412 = arith.mulf %2394, %2394 : vector<8x128xf32>
    %2413 = arith.addf %2411, %2412 : vector<8x128xf32>
    %2414 = arith.mulf %2398, %2398 : vector<8x128xf32>
    %2415 = arith.addf %2413, %2414 : vector<8x128xf32>
    %cst_1190 = arith.constant 1.000000e-24 : f32
    %2416 = vector.broadcast %cst_1190 : f32 to vector<8x128xf32>
    %2417 = arith.maximumf %2415, %2416 : vector<8x128xf32>
    %2418 = math.rsqrt %2417 : vector<8x128xf32>
    %2419 = arith.mulf %2390, %2418 : vector<8x128xf32>
    %2420 = arith.mulf %2394, %2418 : vector<8x128xf32>
    %2421 = arith.mulf %2398, %2418 : vector<8x128xf32>
    %2422 = arith.mulf %2419, %2402 : vector<8x128xf32>
    %2423 = arith.mulf %2420, %2406 : vector<8x128xf32>
    %2424 = arith.addf %2422, %2423 : vector<8x128xf32>
    %2425 = arith.mulf %2421, %2410 : vector<8x128xf32>
    %2426 = arith.addf %2424, %2425 : vector<8x128xf32>
    %2427 = arith.mulf %2426, %2419 : vector<8x128xf32>
    %2428 = arith.subf %2402, %2427 : vector<8x128xf32>
    %2429 = arith.mulf %2426, %2420 : vector<8x128xf32>
    %2430 = arith.subf %2406, %2429 : vector<8x128xf32>
    %2431 = arith.mulf %2426, %2421 : vector<8x128xf32>
    %2432 = arith.subf %2410, %2431 : vector<8x128xf32>
    %2433 = arith.mulf %2428, %2428 : vector<8x128xf32>
    %2434 = arith.mulf %2430, %2430 : vector<8x128xf32>
    %2435 = arith.addf %2433, %2434 : vector<8x128xf32>
    %2436 = arith.mulf %2432, %2432 : vector<8x128xf32>
    %2437 = arith.addf %2435, %2436 : vector<8x128xf32>
    %cst_1191 = arith.constant 1.000000e-24 : f32
    %2438 = vector.broadcast %cst_1191 : f32 to vector<8x128xf32>
    %2439 = arith.maximumf %2437, %2438 : vector<8x128xf32>
    %2440 = math.rsqrt %2439 : vector<8x128xf32>
    %2441 = arith.mulf %2428, %2440 : vector<8x128xf32>
    %2442 = arith.mulf %2430, %2440 : vector<8x128xf32>
    %2443 = arith.mulf %2432, %2440 : vector<8x128xf32>
    %2444 = arith.mulf %2420, %2443 : vector<8x128xf32>
    %2445 = arith.mulf %2421, %2442 : vector<8x128xf32>
    %2446 = arith.subf %2444, %2445 : vector<8x128xf32>
    %2447 = arith.mulf %2421, %2441 : vector<8x128xf32>
    %2448 = arith.mulf %2419, %2443 : vector<8x128xf32>
    %2449 = arith.subf %2447, %2448 : vector<8x128xf32>
    %2450 = arith.mulf %2419, %2442 : vector<8x128xf32>
    %2451 = arith.mulf %2420, %2441 : vector<8x128xf32>
    %2452 = arith.subf %2450, %2451 : vector<8x128xf32>
    %2453 = arith.mulf %2260, %2419 : vector<8x128xf32>
    %2454 = arith.mulf %2265, %2420 : vector<8x128xf32>
    %2455 = arith.addf %2453, %2454 : vector<8x128xf32>
    %2456 = arith.mulf %2270, %2421 : vector<8x128xf32>
    %2457 = arith.addf %2455, %2456 : vector<8x128xf32>
    %2458 = arith.mulf %2260, %2441 : vector<8x128xf32>
    %2459 = arith.mulf %2265, %2442 : vector<8x128xf32>
    %2460 = arith.addf %2458, %2459 : vector<8x128xf32>
    %2461 = arith.mulf %2270, %2443 : vector<8x128xf32>
    %2462 = arith.addf %2460, %2461 : vector<8x128xf32>
    %2463 = arith.mulf %2260, %2446 : vector<8x128xf32>
    %2464 = arith.mulf %2265, %2449 : vector<8x128xf32>
    %2465 = arith.addf %2463, %2464 : vector<8x128xf32>
    %2466 = arith.mulf %2270, %2452 : vector<8x128xf32>
    %2467 = arith.addf %2465, %2466 : vector<8x128xf32>
    %2468 = arith.mulf %2275, %2419 : vector<8x128xf32>
    %2469 = arith.mulf %2280, %2420 : vector<8x128xf32>
    %2470 = arith.addf %2468, %2469 : vector<8x128xf32>
    %2471 = arith.mulf %2285, %2421 : vector<8x128xf32>
    %2472 = arith.addf %2470, %2471 : vector<8x128xf32>
    %2473 = arith.mulf %2275, %2441 : vector<8x128xf32>
    %2474 = arith.mulf %2280, %2442 : vector<8x128xf32>
    %2475 = arith.addf %2473, %2474 : vector<8x128xf32>
    %2476 = arith.mulf %2285, %2443 : vector<8x128xf32>
    %2477 = arith.addf %2475, %2476 : vector<8x128xf32>
    %2478 = arith.mulf %2275, %2446 : vector<8x128xf32>
    %2479 = arith.mulf %2280, %2449 : vector<8x128xf32>
    %2480 = arith.addf %2478, %2479 : vector<8x128xf32>
    %2481 = arith.mulf %2285, %2452 : vector<8x128xf32>
    %2482 = arith.addf %2480, %2481 : vector<8x128xf32>
    %2483 = arith.mulf %2290, %2419 : vector<8x128xf32>
    %2484 = arith.mulf %2295, %2420 : vector<8x128xf32>
    %2485 = arith.addf %2483, %2484 : vector<8x128xf32>
    %2486 = arith.mulf %2300, %2421 : vector<8x128xf32>
    %2487 = arith.addf %2485, %2486 : vector<8x128xf32>
    %2488 = arith.mulf %2290, %2441 : vector<8x128xf32>
    %2489 = arith.mulf %2295, %2442 : vector<8x128xf32>
    %2490 = arith.addf %2488, %2489 : vector<8x128xf32>
    %2491 = arith.mulf %2300, %2443 : vector<8x128xf32>
    %2492 = arith.addf %2490, %2491 : vector<8x128xf32>
    %2493 = arith.mulf %2290, %2446 : vector<8x128xf32>
    %2494 = arith.mulf %2295, %2449 : vector<8x128xf32>
    %2495 = arith.addf %2493, %2494 : vector<8x128xf32>
    %2496 = arith.mulf %2300, %2452 : vector<8x128xf32>
    %2497 = arith.addf %2495, %2496 : vector<8x128xf32>
    %c0_i32_1192 = arith.constant 0 : i32
    %c0_i32_1193 = arith.constant 0 : i32
    %c0_i32_1194 = arith.constant 0 : i32
    %2498 = tpu.memref_slice %arg3[%4, %c0_i32_1192, %c0_i32_1193, %c0_i32_1194] : memref<1x99x8x128xf32, #tpu.memory_space<vmem>> -> memref<1x99x8x128xf32, #tpu.memory_space<vmem>>
    %2499 = tpu.memref_squeeze %2498 : memref<1x99x8x128xf32, #tpu.memory_space<vmem>> -> memref<99x8x128xf32, #tpu.memory_space<vmem>>
    %c81 = arith.constant 81 : index
    %c0_1195 = arith.constant 0 : index
    %c0_1196 = arith.constant 0 : index
    %2500 = vector.load %2499[%c81, %c0_1195, %c0_1196] : memref<99x8x128xf32, #tpu.memory_space<vmem>>, vector<1x8x128xf32>
    %2501 = vector.shape_cast %2500 : vector<1x8x128xf32> to vector<8x128xf32>
    %c0_i32_1197 = arith.constant 0 : i32
    %c0_i32_1198 = arith.constant 0 : i32
    %c0_i32_1199 = arith.constant 0 : i32
    %2502 = tpu.memref_slice %arg3[%4, %c0_i32_1197, %c0_i32_1198, %c0_i32_1199] : memref<1x99x8x128xf32, #tpu.memory_space<vmem>> -> memref<1x99x8x128xf32, #tpu.memory_space<vmem>>
    %2503 = tpu.memref_squeeze %2502 : memref<1x99x8x128xf32, #tpu.memory_space<vmem>> -> memref<99x8x128xf32, #tpu.memory_space<vmem>>
    %c82 = arith.constant 82 : index
    %c0_1200 = arith.constant 0 : index
    %c0_1201 = arith.constant 0 : index
    %2504 = vector.load %2503[%c82, %c0_1200, %c0_1201] : memref<99x8x128xf32, #tpu.memory_space<vmem>>, vector<1x8x128xf32>
    %2505 = vector.shape_cast %2504 : vector<1x8x128xf32> to vector<8x128xf32>
    %c0_i32_1202 = arith.constant 0 : i32
    %c0_i32_1203 = arith.constant 0 : i32
    %c0_i32_1204 = arith.constant 0 : i32
    %2506 = tpu.memref_slice %arg3[%4, %c0_i32_1202, %c0_i32_1203, %c0_i32_1204] : memref<1x99x8x128xf32, #tpu.memory_space<vmem>> -> memref<1x99x8x128xf32, #tpu.memory_space<vmem>>
    %2507 = tpu.memref_squeeze %2506 : memref<1x99x8x128xf32, #tpu.memory_space<vmem>> -> memref<99x8x128xf32, #tpu.memory_space<vmem>>
    %c83 = arith.constant 83 : index
    %c0_1205 = arith.constant 0 : index
    %c0_1206 = arith.constant 0 : index
    %2508 = vector.load %2507[%c83, %c0_1205, %c0_1206] : memref<99x8x128xf32, #tpu.memory_space<vmem>>, vector<1x8x128xf32>
    %2509 = vector.shape_cast %2508 : vector<1x8x128xf32> to vector<8x128xf32>
    %2510 = arith.mulf %2457, %2501 : vector<8x128xf32>
    %2511 = arith.mulf %2462, %2505 : vector<8x128xf32>
    %2512 = arith.addf %2510, %2511 : vector<8x128xf32>
    %2513 = arith.mulf %2467, %2509 : vector<8x128xf32>
    %2514 = arith.addf %2512, %2513 : vector<8x128xf32>
    %2515 = arith.mulf %2472, %2501 : vector<8x128xf32>
    %2516 = arith.mulf %2477, %2505 : vector<8x128xf32>
    %2517 = arith.addf %2515, %2516 : vector<8x128xf32>
    %2518 = arith.mulf %2482, %2509 : vector<8x128xf32>
    %2519 = arith.addf %2517, %2518 : vector<8x128xf32>
    %2520 = arith.mulf %2487, %2501 : vector<8x128xf32>
    %2521 = arith.mulf %2492, %2505 : vector<8x128xf32>
    %2522 = arith.addf %2520, %2521 : vector<8x128xf32>
    %2523 = arith.mulf %2497, %2509 : vector<8x128xf32>
    %2524 = arith.addf %2522, %2523 : vector<8x128xf32>
    %2525 = arith.addf %2328, %2514 : vector<8x128xf32>
    %2526 = arith.addf %2329, %2519 : vector<8x128xf32>
    %2527 = arith.addf %2330, %2524 : vector<8x128xf32>
    %c0_i32_1207 = arith.constant 0 : i32
    %c0_i32_1208 = arith.constant 0 : i32
    %c0_i32_1209 = arith.constant 0 : i32
    %2528 = tpu.memref_slice %arg3[%4, %c0_i32_1207, %c0_i32_1208, %c0_i32_1209] : memref<1x99x8x128xf32, #tpu.memory_space<vmem>> -> memref<1x99x8x128xf32, #tpu.memory_space<vmem>>
    %2529 = tpu.memref_squeeze %2528 : memref<1x99x8x128xf32, #tpu.memory_space<vmem>> -> memref<99x8x128xf32, #tpu.memory_space<vmem>>
    %c36_1210 = arith.constant 36 : index
    %c0_1211 = arith.constant 0 : index
    %c0_1212 = arith.constant 0 : index
    %2530 = vector.load %2529[%c36_1210, %c0_1211, %c0_1212] : memref<99x8x128xf32, #tpu.memory_space<vmem>>, vector<1x8x128xf32>
    %2531 = vector.shape_cast %2530 : vector<1x8x128xf32> to vector<8x128xf32>
    %c0_i32_1213 = arith.constant 0 : i32
    %c0_i32_1214 = arith.constant 0 : i32
    %c0_i32_1215 = arith.constant 0 : i32
    %2532 = tpu.memref_slice %arg3[%4, %c0_i32_1213, %c0_i32_1214, %c0_i32_1215] : memref<1x99x8x128xf32, #tpu.memory_space<vmem>> -> memref<1x99x8x128xf32, #tpu.memory_space<vmem>>
    %2533 = tpu.memref_squeeze %2532 : memref<1x99x8x128xf32, #tpu.memory_space<vmem>> -> memref<99x8x128xf32, #tpu.memory_space<vmem>>
    %c33_1216 = arith.constant 33 : index
    %c0_1217 = arith.constant 0 : index
    %c0_1218 = arith.constant 0 : index
    %2534 = vector.load %2533[%c33_1216, %c0_1217, %c0_1218] : memref<99x8x128xf32, #tpu.memory_space<vmem>>, vector<1x8x128xf32>
    %2535 = vector.shape_cast %2534 : vector<1x8x128xf32> to vector<8x128xf32>
    %2536 = arith.subf %2531, %2535 : vector<8x128xf32>
    %c0_i32_1219 = arith.constant 0 : i32
    %c0_i32_1220 = arith.constant 0 : i32
    %c0_i32_1221 = arith.constant 0 : i32
    %2537 = tpu.memref_slice %arg3[%4, %c0_i32_1219, %c0_i32_1220, %c0_i32_1221] : memref<1x99x8x128xf32, #tpu.memory_space<vmem>> -> memref<1x99x8x128xf32, #tpu.memory_space<vmem>>
    %2538 = tpu.memref_squeeze %2537 : memref<1x99x8x128xf32, #tpu.memory_space<vmem>> -> memref<99x8x128xf32, #tpu.memory_space<vmem>>
    %c37_1222 = arith.constant 37 : index
    %c0_1223 = arith.constant 0 : index
    %c0_1224 = arith.constant 0 : index
    %2539 = vector.load %2538[%c37_1222, %c0_1223, %c0_1224] : memref<99x8x128xf32, #tpu.memory_space<vmem>>, vector<1x8x128xf32>
    %2540 = vector.shape_cast %2539 : vector<1x8x128xf32> to vector<8x128xf32>
    %c0_i32_1225 = arith.constant 0 : i32
    %c0_i32_1226 = arith.constant 0 : i32
    %c0_i32_1227 = arith.constant 0 : i32
    %2541 = tpu.memref_slice %arg3[%4, %c0_i32_1225, %c0_i32_1226, %c0_i32_1227] : memref<1x99x8x128xf32, #tpu.memory_space<vmem>> -> memref<1x99x8x128xf32, #tpu.memory_space<vmem>>
    %2542 = tpu.memref_squeeze %2541 : memref<1x99x8x128xf32, #tpu.memory_space<vmem>> -> memref<99x8x128xf32, #tpu.memory_space<vmem>>
    %c34_1228 = arith.constant 34 : index
    %c0_1229 = arith.constant 0 : index
    %c0_1230 = arith.constant 0 : index
    %2543 = vector.load %2542[%c34_1228, %c0_1229, %c0_1230] : memref<99x8x128xf32, #tpu.memory_space<vmem>>, vector<1x8x128xf32>
    %2544 = vector.shape_cast %2543 : vector<1x8x128xf32> to vector<8x128xf32>
    %2545 = arith.subf %2540, %2544 : vector<8x128xf32>
    %c0_i32_1231 = arith.constant 0 : i32
    %c0_i32_1232 = arith.constant 0 : i32
    %c0_i32_1233 = arith.constant 0 : i32
    %2546 = tpu.memref_slice %arg3[%4, %c0_i32_1231, %c0_i32_1232, %c0_i32_1233] : memref<1x99x8x128xf32, #tpu.memory_space<vmem>> -> memref<1x99x8x128xf32, #tpu.memory_space<vmem>>
    %2547 = tpu.memref_squeeze %2546 : memref<1x99x8x128xf32, #tpu.memory_space<vmem>> -> memref<99x8x128xf32, #tpu.memory_space<vmem>>
    %c38_1234 = arith.constant 38 : index
    %c0_1235 = arith.constant 0 : index
    %c0_1236 = arith.constant 0 : index
    %2548 = vector.load %2547[%c38_1234, %c0_1235, %c0_1236] : memref<99x8x128xf32, #tpu.memory_space<vmem>>, vector<1x8x128xf32>
    %2549 = vector.shape_cast %2548 : vector<1x8x128xf32> to vector<8x128xf32>
    %c0_i32_1237 = arith.constant 0 : i32
    %c0_i32_1238 = arith.constant 0 : i32
    %c0_i32_1239 = arith.constant 0 : i32
    %2550 = tpu.memref_slice %arg3[%4, %c0_i32_1237, %c0_i32_1238, %c0_i32_1239] : memref<1x99x8x128xf32, #tpu.memory_space<vmem>> -> memref<1x99x8x128xf32, #tpu.memory_space<vmem>>
    %2551 = tpu.memref_squeeze %2550 : memref<1x99x8x128xf32, #tpu.memory_space<vmem>> -> memref<99x8x128xf32, #tpu.memory_space<vmem>>
    %c35_1240 = arith.constant 35 : index
    %c0_1241 = arith.constant 0 : index
    %c0_1242 = arith.constant 0 : index
    %2552 = vector.load %2551[%c35_1240, %c0_1241, %c0_1242] : memref<99x8x128xf32, #tpu.memory_space<vmem>>, vector<1x8x128xf32>
    %2553 = vector.shape_cast %2552 : vector<1x8x128xf32> to vector<8x128xf32>
    %2554 = arith.subf %2549, %2553 : vector<8x128xf32>
    %2555 = arith.subf %2525, %2328 : vector<8x128xf32>
    %2556 = arith.subf %2526, %2329 : vector<8x128xf32>
    %2557 = arith.subf %2527, %2330 : vector<8x128xf32>
    %2558 = arith.mulf %2536, %2555 : vector<8x128xf32>
    %2559 = arith.mulf %2545, %2556 : vector<8x128xf32>
    %2560 = arith.addf %2558, %2559 : vector<8x128xf32>
    %2561 = arith.mulf %2554, %2557 : vector<8x128xf32>
    %2562 = arith.addf %2560, %2561 : vector<8x128xf32>
    %2563 = arith.mulf %2536, %2536 : vector<8x128xf32>
    %2564 = arith.mulf %2545, %2545 : vector<8x128xf32>
    %2565 = arith.addf %2563, %2564 : vector<8x128xf32>
    %2566 = arith.mulf %2554, %2554 : vector<8x128xf32>
    %2567 = arith.addf %2565, %2566 : vector<8x128xf32>
    %2568 = arith.mulf %2555, %2555 : vector<8x128xf32>
    %2569 = arith.mulf %2556, %2556 : vector<8x128xf32>
    %2570 = arith.addf %2568, %2569 : vector<8x128xf32>
    %2571 = arith.mulf %2557, %2557 : vector<8x128xf32>
    %2572 = arith.addf %2570, %2571 : vector<8x128xf32>
    %2573 = arith.mulf %2567, %2572 : vector<8x128xf32>
    %cst_1243 = arith.constant 1.000000e-16 : f32
    %2574 = vector.broadcast %cst_1243 : f32 to vector<8x128xf32>
    %2575 = arith.maximumf %2573, %2574 : vector<8x128xf32>
    %2576 = math.rsqrt %2575 : vector<8x128xf32>
    %2577 = arith.mulf %2562, %2576 : vector<8x128xf32>
    %c12_1244 = arith.constant 12 : index
    %c0_1245 = arith.constant 0 : index
    %c0_1246 = arith.constant 0 : index
    %2578 = vector.load %arg5[%c12_1244, %c0_1245, %c0_1246] : memref<15x8x128xf32, #tpu.memory_space<vmem>>, vector<1x8x128xf32>
    %2579 = vector.shape_cast %2578 : vector<1x8x128xf32> to vector<8x128xf32>
    %2580 = arith.addf %2579, %2577 : vector<8x128xf32>
    %c12_1247 = arith.constant 12 : index
    %c0_1248 = arith.constant 0 : index
    %c0_1249 = arith.constant 0 : index
    %2581 = vector.load %arg5[%c12_1247, %c0_1248, %c0_1249] : memref<15x8x128xf32, #tpu.memory_space<vmem>>, vector<1x8x128xf32>
    %2582 = vector.shape_cast %2581 : vector<1x8x128xf32> to vector<8x128xf32>
    %2583 = vector.shape_cast %2580 : vector<8x128xf32> to vector<1x8x128xf32>
    tpu.vector_store %arg5[%c12_1247, %c0_1248, %c0_1249], %2583 {strides = array<i32>} : memref<15x8x128xf32, #tpu.memory_space<vmem>>, vector<1x8x128xf32>,
    %c0_i32_1250 = arith.constant 0 : i32
    %c0_i32_1251 = arith.constant 0 : i32
    %c0_i32_1252 = arith.constant 0 : i32
    %2584 = tpu.memref_slice %arg2[%4, %c0_i32_1250, %c0_i32_1251, %c0_i32_1252] : memref<1x90x8x128xf32, #tpu.memory_space<vmem>> -> memref<1x90x8x128xf32, #tpu.memory_space<vmem>>
    %2585 = tpu.memref_squeeze %2584 : memref<1x90x8x128xf32, #tpu.memory_space<vmem>> -> memref<90x8x128xf32, #tpu.memory_space<vmem>>
    %c78_1253 = arith.constant 78 : index
    %c0_1254 = arith.constant 0 : index
    %c0_1255 = arith.constant 0 : index
    %2586 = vector.load %2585[%c78_1253, %c0_1254, %c0_1255] : memref<90x8x128xf32, #tpu.memory_space<vmem>>, vector<1x8x128xf32>
    %2587 = vector.shape_cast %2586 : vector<1x8x128xf32> to vector<8x128xf32>
    %c0_i32_1256 = arith.constant 0 : i32
    %c0_i32_1257 = arith.constant 0 : i32
    %c0_i32_1258 = arith.constant 0 : i32
    %2588 = tpu.memref_slice %arg2[%4, %c0_i32_1256, %c0_i32_1257, %c0_i32_1258] : memref<1x90x8x128xf32, #tpu.memory_space<vmem>> -> memref<1x90x8x128xf32, #tpu.memory_space<vmem>>
    %2589 = tpu.memref_squeeze %2588 : memref<1x90x8x128xf32, #tpu.memory_space<vmem>> -> memref<90x8x128xf32, #tpu.memory_space<vmem>>
    %c79_1259 = arith.constant 79 : index
    %c0_1260 = arith.constant 0 : index
    %c0_1261 = arith.constant 0 : index
    %2590 = vector.load %2589[%c79_1259, %c0_1260, %c0_1261] : memref<90x8x128xf32, #tpu.memory_space<vmem>>, vector<1x8x128xf32>
    %2591 = vector.shape_cast %2590 : vector<1x8x128xf32> to vector<8x128xf32>
    %c0_i32_1262 = arith.constant 0 : i32
    %c0_i32_1263 = arith.constant 0 : i32
    %c0_i32_1264 = arith.constant 0 : i32
    %2592 = tpu.memref_slice %arg2[%4, %c0_i32_1262, %c0_i32_1263, %c0_i32_1264] : memref<1x90x8x128xf32, #tpu.memory_space<vmem>> -> memref<1x90x8x128xf32, #tpu.memory_space<vmem>>
    %2593 = tpu.memref_squeeze %2592 : memref<1x90x8x128xf32, #tpu.memory_space<vmem>> -> memref<90x8x128xf32, #tpu.memory_space<vmem>>
    %c80_1265 = arith.constant 80 : index
    %c0_1266 = arith.constant 0 : index
    %c0_1267 = arith.constant 0 : index
    %2594 = vector.load %2593[%c80_1265, %c0_1266, %c0_1267] : memref<90x8x128xf32, #tpu.memory_space<vmem>>, vector<1x8x128xf32>
    %2595 = vector.shape_cast %2594 : vector<1x8x128xf32> to vector<8x128xf32>
    %c0_i32_1268 = arith.constant 0 : i32
    %c0_i32_1269 = arith.constant 0 : i32
    %c0_i32_1270 = arith.constant 0 : i32
    %2596 = tpu.memref_slice %arg2[%4, %c0_i32_1268, %c0_i32_1269, %c0_i32_1270] : memref<1x90x8x128xf32, #tpu.memory_space<vmem>> -> memref<1x90x8x128xf32, #tpu.memory_space<vmem>>
    %2597 = tpu.memref_squeeze %2596 : memref<1x90x8x128xf32, #tpu.memory_space<vmem>> -> memref<90x8x128xf32, #tpu.memory_space<vmem>>
    %c81_1271 = arith.constant 81 : index
    %c0_1272 = arith.constant 0 : index
    %c0_1273 = arith.constant 0 : index
    %2598 = vector.load %2597[%c81_1271, %c0_1272, %c0_1273] : memref<90x8x128xf32, #tpu.memory_space<vmem>>, vector<1x8x128xf32>
    %2599 = vector.shape_cast %2598 : vector<1x8x128xf32> to vector<8x128xf32>
    %c0_i32_1274 = arith.constant 0 : i32
    %c0_i32_1275 = arith.constant 0 : i32
    %c0_i32_1276 = arith.constant 0 : i32
    %2600 = tpu.memref_slice %arg2[%4, %c0_i32_1274, %c0_i32_1275, %c0_i32_1276] : memref<1x90x8x128xf32, #tpu.memory_space<vmem>> -> memref<1x90x8x128xf32, #tpu.memory_space<vmem>>
    %2601 = tpu.memref_squeeze %2600 : memref<1x90x8x128xf32, #tpu.memory_space<vmem>> -> memref<90x8x128xf32, #tpu.memory_space<vmem>>
    %c82_1277 = arith.constant 82 : index
    %c0_1278 = arith.constant 0 : index
    %c0_1279 = arith.constant 0 : index
    %2602 = vector.load %2601[%c82_1277, %c0_1278, %c0_1279] : memref<90x8x128xf32, #tpu.memory_space<vmem>>, vector<1x8x128xf32>
    %2603 = vector.shape_cast %2602 : vector<1x8x128xf32> to vector<8x128xf32>
    %c0_i32_1280 = arith.constant 0 : i32
    %c0_i32_1281 = arith.constant 0 : i32
    %c0_i32_1282 = arith.constant 0 : i32
    %2604 = tpu.memref_slice %arg2[%4, %c0_i32_1280, %c0_i32_1281, %c0_i32_1282] : memref<1x90x8x128xf32, #tpu.memory_space<vmem>> -> memref<1x90x8x128xf32, #tpu.memory_space<vmem>>
    %2605 = tpu.memref_squeeze %2604 : memref<1x90x8x128xf32, #tpu.memory_space<vmem>> -> memref<90x8x128xf32, #tpu.memory_space<vmem>>
    %c83_1283 = arith.constant 83 : index
    %c0_1284 = arith.constant 0 : index
    %c0_1285 = arith.constant 0 : index
    %2606 = vector.load %2605[%c83_1283, %c0_1284, %c0_1285] : memref<90x8x128xf32, #tpu.memory_space<vmem>>, vector<1x8x128xf32>
    %2607 = vector.shape_cast %2606 : vector<1x8x128xf32> to vector<8x128xf32>
    %2608 = arith.mulf %2587, %2587 : vector<8x128xf32>
    %2609 = arith.mulf %2591, %2591 : vector<8x128xf32>
    %2610 = arith.addf %2608, %2609 : vector<8x128xf32>
    %2611 = arith.mulf %2595, %2595 : vector<8x128xf32>
    %2612 = arith.addf %2610, %2611 : vector<8x128xf32>
    %cst_1286 = arith.constant 1.000000e-24 : f32
    %2613 = vector.broadcast %cst_1286 : f32 to vector<8x128xf32>
    %2614 = arith.maximumf %2612, %2613 : vector<8x128xf32>
    %2615 = math.rsqrt %2614 : vector<8x128xf32>
    %2616 = arith.mulf %2587, %2615 : vector<8x128xf32>
    %2617 = arith.mulf %2591, %2615 : vector<8x128xf32>
    %2618 = arith.mulf %2595, %2615 : vector<8x128xf32>
    %2619 = arith.mulf %2616, %2599 : vector<8x128xf32>
    %2620 = arith.mulf %2617, %2603 : vector<8x128xf32>
    %2621 = arith.addf %2619, %2620 : vector<8x128xf32>
    %2622 = arith.mulf %2618, %2607 : vector<8x128xf32>
    %2623 = arith.addf %2621, %2622 : vector<8x128xf32>
    %2624 = arith.mulf %2623, %2616 : vector<8x128xf32>
    %2625 = arith.subf %2599, %2624 : vector<8x128xf32>
    %2626 = arith.mulf %2623, %2617 : vector<8x128xf32>
    %2627 = arith.subf %2603, %2626 : vector<8x128xf32>
    %2628 = arith.mulf %2623, %2618 : vector<8x128xf32>
    %2629 = arith.subf %2607, %2628 : vector<8x128xf32>
    %2630 = arith.mulf %2625, %2625 : vector<8x128xf32>
    %2631 = arith.mulf %2627, %2627 : vector<8x128xf32>
    %2632 = arith.addf %2630, %2631 : vector<8x128xf32>
    %2633 = arith.mulf %2629, %2629 : vector<8x128xf32>
    %2634 = arith.addf %2632, %2633 : vector<8x128xf32>
    %cst_1287 = arith.constant 1.000000e-24 : f32
    %2635 = vector.broadcast %cst_1287 : f32 to vector<8x128xf32>
    %2636 = arith.maximumf %2634, %2635 : vector<8x128xf32>
    %2637 = math.rsqrt %2636 : vector<8x128xf32>
    %2638 = arith.mulf %2625, %2637 : vector<8x128xf32>
    %2639 = arith.mulf %2627, %2637 : vector<8x128xf32>
    %2640 = arith.mulf %2629, %2637 : vector<8x128xf32>
    %2641 = arith.mulf %2617, %2640 : vector<8x128xf32>
    %2642 = arith.mulf %2618, %2639 : vector<8x128xf32>
    %2643 = arith.subf %2641, %2642 : vector<8x128xf32>
    %2644 = arith.mulf %2618, %2638 : vector<8x128xf32>
    %2645 = arith.mulf %2616, %2640 : vector<8x128xf32>
    %2646 = arith.subf %2644, %2645 : vector<8x128xf32>
    %2647 = arith.mulf %2616, %2639 : vector<8x128xf32>
    %2648 = arith.mulf %2617, %2638 : vector<8x128xf32>
    %2649 = arith.subf %2647, %2648 : vector<8x128xf32>
    %2650 = arith.mulf %2457, %2616 : vector<8x128xf32>
    %2651 = arith.mulf %2462, %2617 : vector<8x128xf32>
    %2652 = arith.addf %2650, %2651 : vector<8x128xf32>
    %2653 = arith.mulf %2467, %2618 : vector<8x128xf32>
    %2654 = arith.addf %2652, %2653 : vector<8x128xf32>
    %2655 = arith.mulf %2457, %2638 : vector<8x128xf32>
    %2656 = arith.mulf %2462, %2639 : vector<8x128xf32>
    %2657 = arith.addf %2655, %2656 : vector<8x128xf32>
    %2658 = arith.mulf %2467, %2640 : vector<8x128xf32>
    %2659 = arith.addf %2657, %2658 : vector<8x128xf32>
    %2660 = arith.mulf %2457, %2643 : vector<8x128xf32>
    %2661 = arith.mulf %2462, %2646 : vector<8x128xf32>
    %2662 = arith.addf %2660, %2661 : vector<8x128xf32>
    %2663 = arith.mulf %2467, %2649 : vector<8x128xf32>
    %2664 = arith.addf %2662, %2663 : vector<8x128xf32>
    %2665 = arith.mulf %2472, %2616 : vector<8x128xf32>
    %2666 = arith.mulf %2477, %2617 : vector<8x128xf32>
    %2667 = arith.addf %2665, %2666 : vector<8x128xf32>
    %2668 = arith.mulf %2482, %2618 : vector<8x128xf32>
    %2669 = arith.addf %2667, %2668 : vector<8x128xf32>
    %2670 = arith.mulf %2472, %2638 : vector<8x128xf32>
    %2671 = arith.mulf %2477, %2639 : vector<8x128xf32>
    %2672 = arith.addf %2670, %2671 : vector<8x128xf32>
    %2673 = arith.mulf %2482, %2640 : vector<8x128xf32>
    %2674 = arith.addf %2672, %2673 : vector<8x128xf32>
    %2675 = arith.mulf %2472, %2643 : vector<8x128xf32>
    %2676 = arith.mulf %2477, %2646 : vector<8x128xf32>
    %2677 = arith.addf %2675, %2676 : vector<8x128xf32>
    %2678 = arith.mulf %2482, %2649 : vector<8x128xf32>
    %2679 = arith.addf %2677, %2678 : vector<8x128xf32>
    %2680 = arith.mulf %2487, %2616 : vector<8x128xf32>
    %2681 = arith.mulf %2492, %2617 : vector<8x128xf32>
    %2682 = arith.addf %2680, %2681 : vector<8x128xf32>
    %2683 = arith.mulf %2497, %2618 : vector<8x128xf32>
    %2684 = arith.addf %2682, %2683 : vector<8x128xf32>
    %2685 = arith.mulf %2487, %2638 : vector<8x128xf32>
    %2686 = arith.mulf %2492, %2639 : vector<8x128xf32>
    %2687 = arith.addf %2685, %2686 : vector<8x128xf32>
    %2688 = arith.mulf %2497, %2640 : vector<8x128xf32>
    %2689 = arith.addf %2687, %2688 : vector<8x128xf32>
    %2690 = arith.mulf %2487, %2643 : vector<8x128xf32>
    %2691 = arith.mulf %2492, %2646 : vector<8x128xf32>
    %2692 = arith.addf %2690, %2691 : vector<8x128xf32>
    %2693 = arith.mulf %2497, %2649 : vector<8x128xf32>
    %2694 = arith.addf %2692, %2693 : vector<8x128xf32>
    %c0_i32_1288 = arith.constant 0 : i32
    %c0_i32_1289 = arith.constant 0 : i32
    %c0_i32_1290 = arith.constant 0 : i32
    %2695 = tpu.memref_slice %arg3[%4, %c0_i32_1288, %c0_i32_1289, %c0_i32_1290] : memref<1x99x8x128xf32, #tpu.memory_space<vmem>> -> memref<1x99x8x128xf32, #tpu.memory_space<vmem>>
    %2696 = tpu.memref_squeeze %2695 : memref<1x99x8x128xf32, #tpu.memory_space<vmem>> -> memref<99x8x128xf32, #tpu.memory_space<vmem>>
    %c84 = arith.constant 84 : index
    %c0_1291 = arith.constant 0 : index
    %c0_1292 = arith.constant 0 : index
    %2697 = vector.load %2696[%c84, %c0_1291, %c0_1292] : memref<99x8x128xf32, #tpu.memory_space<vmem>>, vector<1x8x128xf32>
    %2698 = vector.shape_cast %2697 : vector<1x8x128xf32> to vector<8x128xf32>
    %c0_i32_1293 = arith.constant 0 : i32
    %c0_i32_1294 = arith.constant 0 : i32
    %c0_i32_1295 = arith.constant 0 : i32
    %2699 = tpu.memref_slice %arg3[%4, %c0_i32_1293, %c0_i32_1294, %c0_i32_1295] : memref<1x99x8x128xf32, #tpu.memory_space<vmem>> -> memref<1x99x8x128xf32, #tpu.memory_space<vmem>>
    %2700 = tpu.memref_squeeze %2699 : memref<1x99x8x128xf32, #tpu.memory_space<vmem>> -> memref<99x8x128xf32, #tpu.memory_space<vmem>>
    %c85 = arith.constant 85 : index
    %c0_1296 = arith.constant 0 : index
    %c0_1297 = arith.constant 0 : index
    %2701 = vector.load %2700[%c85, %c0_1296, %c0_1297] : memref<99x8x128xf32, #tpu.memory_space<vmem>>, vector<1x8x128xf32>
    %2702 = vector.shape_cast %2701 : vector<1x8x128xf32> to vector<8x128xf32>
    %c0_i32_1298 = arith.constant 0 : i32
    %c0_i32_1299 = arith.constant 0 : i32
    %c0_i32_1300 = arith.constant 0 : i32
    %2703 = tpu.memref_slice %arg3[%4, %c0_i32_1298, %c0_i32_1299, %c0_i32_1300] : memref<1x99x8x128xf32, #tpu.memory_space<vmem>> -> memref<1x99x8x128xf32, #tpu.memory_space<vmem>>
    %2704 = tpu.memref_squeeze %2703 : memref<1x99x8x128xf32, #tpu.memory_space<vmem>> -> memref<99x8x128xf32, #tpu.memory_space<vmem>>
    %c86 = arith.constant 86 : index
    %c0_1301 = arith.constant 0 : index
    %c0_1302 = arith.constant 0 : index
    %2705 = vector.load %2704[%c86, %c0_1301, %c0_1302] : memref<99x8x128xf32, #tpu.memory_space<vmem>>, vector<1x8x128xf32>
    %2706 = vector.shape_cast %2705 : vector<1x8x128xf32> to vector<8x128xf32>
    %2707 = arith.mulf %2654, %2698 : vector<8x128xf32>
    %2708 = arith.mulf %2659, %2702 : vector<8x128xf32>
    %2709 = arith.addf %2707, %2708 : vector<8x128xf32>
    %2710 = arith.mulf %2664, %2706 : vector<8x128xf32>
    %2711 = arith.addf %2709, %2710 : vector<8x128xf32>
    %2712 = arith.mulf %2669, %2698 : vector<8x128xf32>
    %2713 = arith.mulf %2674, %2702 : vector<8x128xf32>
    %2714 = arith.addf %2712, %2713 : vector<8x128xf32>
    %2715 = arith.mulf %2679, %2706 : vector<8x128xf32>
    %2716 = arith.addf %2714, %2715 : vector<8x128xf32>
    %2717 = arith.mulf %2684, %2698 : vector<8x128xf32>
    %2718 = arith.mulf %2689, %2702 : vector<8x128xf32>
    %2719 = arith.addf %2717, %2718 : vector<8x128xf32>
    %2720 = arith.mulf %2694, %2706 : vector<8x128xf32>
    %2721 = arith.addf %2719, %2720 : vector<8x128xf32>
    %2722 = arith.addf %2525, %2711 : vector<8x128xf32>
    %2723 = arith.addf %2526, %2716 : vector<8x128xf32>
    %2724 = arith.addf %2527, %2721 : vector<8x128xf32>
    %c0_i32_1303 = arith.constant 0 : i32
    %c0_i32_1304 = arith.constant 0 : i32
    %c0_i32_1305 = arith.constant 0 : i32
    %2725 = tpu.memref_slice %arg3[%4, %c0_i32_1303, %c0_i32_1304, %c0_i32_1305] : memref<1x99x8x128xf32, #tpu.memory_space<vmem>> -> memref<1x99x8x128xf32, #tpu.memory_space<vmem>>
    %2726 = tpu.memref_squeeze %2725 : memref<1x99x8x128xf32, #tpu.memory_space<vmem>> -> memref<99x8x128xf32, #tpu.memory_space<vmem>>
    %c39_1306 = arith.constant 39 : index
    %c0_1307 = arith.constant 0 : index
    %c0_1308 = arith.constant 0 : index
    %2727 = vector.load %2726[%c39_1306, %c0_1307, %c0_1308] : memref<99x8x128xf32, #tpu.memory_space<vmem>>, vector<1x8x128xf32>
    %2728 = vector.shape_cast %2727 : vector<1x8x128xf32> to vector<8x128xf32>
    %c0_i32_1309 = arith.constant 0 : i32
    %c0_i32_1310 = arith.constant 0 : i32
    %c0_i32_1311 = arith.constant 0 : i32
    %2729 = tpu.memref_slice %arg3[%4, %c0_i32_1309, %c0_i32_1310, %c0_i32_1311] : memref<1x99x8x128xf32, #tpu.memory_space<vmem>> -> memref<1x99x8x128xf32, #tpu.memory_space<vmem>>
    %2730 = tpu.memref_squeeze %2729 : memref<1x99x8x128xf32, #tpu.memory_space<vmem>> -> memref<99x8x128xf32, #tpu.memory_space<vmem>>
    %c36_1312 = arith.constant 36 : index
    %c0_1313 = arith.constant 0 : index
    %c0_1314 = arith.constant 0 : index
    %2731 = vector.load %2730[%c36_1312, %c0_1313, %c0_1314] : memref<99x8x128xf32, #tpu.memory_space<vmem>>, vector<1x8x128xf32>
    %2732 = vector.shape_cast %2731 : vector<1x8x128xf32> to vector<8x128xf32>
    %2733 = arith.subf %2728, %2732 : vector<8x128xf32>
    %c0_i32_1315 = arith.constant 0 : i32
    %c0_i32_1316 = arith.constant 0 : i32
    %c0_i32_1317 = arith.constant 0 : i32
    %2734 = tpu.memref_slice %arg3[%4, %c0_i32_1315, %c0_i32_1316, %c0_i32_1317] : memref<1x99x8x128xf32, #tpu.memory_space<vmem>> -> memref<1x99x8x128xf32, #tpu.memory_space<vmem>>
    %2735 = tpu.memref_squeeze %2734 : memref<1x99x8x128xf32, #tpu.memory_space<vmem>> -> memref<99x8x128xf32, #tpu.memory_space<vmem>>
    %c40_1318 = arith.constant 40 : index
    %c0_1319 = arith.constant 0 : index
    %c0_1320 = arith.constant 0 : index
    %2736 = vector.load %2735[%c40_1318, %c0_1319, %c0_1320] : memref<99x8x128xf32, #tpu.memory_space<vmem>>, vector<1x8x128xf32>
    %2737 = vector.shape_cast %2736 : vector<1x8x128xf32> to vector<8x128xf32>
    %c0_i32_1321 = arith.constant 0 : i32
    %c0_i32_1322 = arith.constant 0 : i32
    %c0_i32_1323 = arith.constant 0 : i32
    %2738 = tpu.memref_slice %arg3[%4, %c0_i32_1321, %c0_i32_1322, %c0_i32_1323] : memref<1x99x8x128xf32, #tpu.memory_space<vmem>> -> memref<1x99x8x128xf32, #tpu.memory_space<vmem>>
    %2739 = tpu.memref_squeeze %2738 : memref<1x99x8x128xf32, #tpu.memory_space<vmem>> -> memref<99x8x128xf32, #tpu.memory_space<vmem>>
    %c37_1324 = arith.constant 37 : index
    %c0_1325 = arith.constant 0 : index
    %c0_1326 = arith.constant 0 : index
    %2740 = vector.load %2739[%c37_1324, %c0_1325, %c0_1326] : memref<99x8x128xf32, #tpu.memory_space<vmem>>, vector<1x8x128xf32>
    %2741 = vector.shape_cast %2740 : vector<1x8x128xf32> to vector<8x128xf32>
    %2742 = arith.subf %2737, %2741 : vector<8x128xf32>
    %c0_i32_1327 = arith.constant 0 : i32
    %c0_i32_1328 = arith.constant 0 : i32
    %c0_i32_1329 = arith.constant 0 : i32
    %2743 = tpu.memref_slice %arg3[%4, %c0_i32_1327, %c0_i32_1328, %c0_i32_1329] : memref<1x99x8x128xf32, #tpu.memory_space<vmem>> -> memref<1x99x8x128xf32, #tpu.memory_space<vmem>>
    %2744 = tpu.memref_squeeze %2743 : memref<1x99x8x128xf32, #tpu.memory_space<vmem>> -> memref<99x8x128xf32, #tpu.memory_space<vmem>>
    %c41_1330 = arith.constant 41 : index
    %c0_1331 = arith.constant 0 : index
    %c0_1332 = arith.constant 0 : index
    %2745 = vector.load %2744[%c41_1330, %c0_1331, %c0_1332] : memref<99x8x128xf32, #tpu.memory_space<vmem>>, vector<1x8x128xf32>
    %2746 = vector.shape_cast %2745 : vector<1x8x128xf32> to vector<8x128xf32>
    %c0_i32_1333 = arith.constant 0 : i32
    %c0_i32_1334 = arith.constant 0 : i32
    %c0_i32_1335 = arith.constant 0 : i32
    %2747 = tpu.memref_slice %arg3[%4, %c0_i32_1333, %c0_i32_1334, %c0_i32_1335] : memref<1x99x8x128xf32, #tpu.memory_space<vmem>> -> memref<1x99x8x128xf32, #tpu.memory_space<vmem>>
    %2748 = tpu.memref_squeeze %2747 : memref<1x99x8x128xf32, #tpu.memory_space<vmem>> -> memref<99x8x128xf32, #tpu.memory_space<vmem>>
    %c38_1336 = arith.constant 38 : index
    %c0_1337 = arith.constant 0 : index
    %c0_1338 = arith.constant 0 : index
    %2749 = vector.load %2748[%c38_1336, %c0_1337, %c0_1338] : memref<99x8x128xf32, #tpu.memory_space<vmem>>, vector<1x8x128xf32>
    %2750 = vector.shape_cast %2749 : vector<1x8x128xf32> to vector<8x128xf32>
    %2751 = arith.subf %2746, %2750 : vector<8x128xf32>
    %2752 = arith.subf %2722, %2525 : vector<8x128xf32>
    %2753 = arith.subf %2723, %2526 : vector<8x128xf32>
    %2754 = arith.subf %2724, %2527 : vector<8x128xf32>
    %2755 = arith.mulf %2733, %2752 : vector<8x128xf32>
    %2756 = arith.mulf %2742, %2753 : vector<8x128xf32>
    %2757 = arith.addf %2755, %2756 : vector<8x128xf32>
    %2758 = arith.mulf %2751, %2754 : vector<8x128xf32>
    %2759 = arith.addf %2757, %2758 : vector<8x128xf32>
    %2760 = arith.mulf %2733, %2733 : vector<8x128xf32>
    %2761 = arith.mulf %2742, %2742 : vector<8x128xf32>
    %2762 = arith.addf %2760, %2761 : vector<8x128xf32>
    %2763 = arith.mulf %2751, %2751 : vector<8x128xf32>
    %2764 = arith.addf %2762, %2763 : vector<8x128xf32>
    %2765 = arith.mulf %2752, %2752 : vector<8x128xf32>
    %2766 = arith.mulf %2753, %2753 : vector<8x128xf32>
    %2767 = arith.addf %2765, %2766 : vector<8x128xf32>
    %2768 = arith.mulf %2754, %2754 : vector<8x128xf32>
    %2769 = arith.addf %2767, %2768 : vector<8x128xf32>
    %2770 = arith.mulf %2764, %2769 : vector<8x128xf32>
    %cst_1339 = arith.constant 1.000000e-16 : f32
    %2771 = vector.broadcast %cst_1339 : f32 to vector<8x128xf32>
    %2772 = arith.maximumf %2770, %2771 : vector<8x128xf32>
    %2773 = math.rsqrt %2772 : vector<8x128xf32>
    %2774 = arith.mulf %2759, %2773 : vector<8x128xf32>
    %c13_1340 = arith.constant 13 : index
    %c0_1341 = arith.constant 0 : index
    %c0_1342 = arith.constant 0 : index
    %2775 = vector.load %arg5[%c13_1340, %c0_1341, %c0_1342] : memref<15x8x128xf32, #tpu.memory_space<vmem>>, vector<1x8x128xf32>
    %2776 = vector.shape_cast %2775 : vector<1x8x128xf32> to vector<8x128xf32>
    %2777 = arith.addf %2776, %2774 : vector<8x128xf32>
    %c13_1343 = arith.constant 13 : index
    %c0_1344 = arith.constant 0 : index
    %c0_1345 = arith.constant 0 : index
    %2778 = vector.load %arg5[%c13_1343, %c0_1344, %c0_1345] : memref<15x8x128xf32, #tpu.memory_space<vmem>>, vector<1x8x128xf32>
    %2779 = vector.shape_cast %2778 : vector<1x8x128xf32> to vector<8x128xf32>
    %2780 = vector.shape_cast %2777 : vector<8x128xf32> to vector<1x8x128xf32>
    tpu.vector_store %arg5[%c13_1343, %c0_1344, %c0_1345], %2780 {strides = array<i32>} : memref<15x8x128xf32, #tpu.memory_space<vmem>>, vector<1x8x128xf32>,
    %c0_i32_1346 = arith.constant 0 : i32
    %c0_i32_1347 = arith.constant 0 : i32
    %c0_i32_1348 = arith.constant 0 : i32
    %2781 = tpu.memref_slice %arg2[%4, %c0_i32_1346, %c0_i32_1347, %c0_i32_1348] : memref<1x90x8x128xf32, #tpu.memory_space<vmem>> -> memref<1x90x8x128xf32, #tpu.memory_space<vmem>>
    %2782 = tpu.memref_squeeze %2781 : memref<1x90x8x128xf32, #tpu.memory_space<vmem>> -> memref<90x8x128xf32, #tpu.memory_space<vmem>>
    %c84_1349 = arith.constant 84 : index
    %c0_1350 = arith.constant 0 : index
    %c0_1351 = arith.constant 0 : index
    %2783 = vector.load %2782[%c84_1349, %c0_1350, %c0_1351] : memref<90x8x128xf32, #tpu.memory_space<vmem>>, vector<1x8x128xf32>
    %2784 = vector.shape_cast %2783 : vector<1x8x128xf32> to vector<8x128xf32>
    %c0_i32_1352 = arith.constant 0 : i32
    %c0_i32_1353 = arith.constant 0 : i32
    %c0_i32_1354 = arith.constant 0 : i32
    %2785 = tpu.memref_slice %arg2[%4, %c0_i32_1352, %c0_i32_1353, %c0_i32_1354] : memref<1x90x8x128xf32, #tpu.memory_space<vmem>> -> memref<1x90x8x128xf32, #tpu.memory_space<vmem>>
    %2786 = tpu.memref_squeeze %2785 : memref<1x90x8x128xf32, #tpu.memory_space<vmem>> -> memref<90x8x128xf32, #tpu.memory_space<vmem>>
    %c85_1355 = arith.constant 85 : index
    %c0_1356 = arith.constant 0 : index
    %c0_1357 = arith.constant 0 : index
    %2787 = vector.load %2786[%c85_1355, %c0_1356, %c0_1357] : memref<90x8x128xf32, #tpu.memory_space<vmem>>, vector<1x8x128xf32>
    %2788 = vector.shape_cast %2787 : vector<1x8x128xf32> to vector<8x128xf32>
    %c0_i32_1358 = arith.constant 0 : i32
    %c0_i32_1359 = arith.constant 0 : i32
    %c0_i32_1360 = arith.constant 0 : i32
    %2789 = tpu.memref_slice %arg2[%4, %c0_i32_1358, %c0_i32_1359, %c0_i32_1360] : memref<1x90x8x128xf32, #tpu.memory_space<vmem>> -> memref<1x90x8x128xf32, #tpu.memory_space<vmem>>
    %2790 = tpu.memref_squeeze %2789 : memref<1x90x8x128xf32, #tpu.memory_space<vmem>> -> memref<90x8x128xf32, #tpu.memory_space<vmem>>
    %c86_1361 = arith.constant 86 : index
    %c0_1362 = arith.constant 0 : index
    %c0_1363 = arith.constant 0 : index
    %2791 = vector.load %2790[%c86_1361, %c0_1362, %c0_1363] : memref<90x8x128xf32, #tpu.memory_space<vmem>>, vector<1x8x128xf32>
    %2792 = vector.shape_cast %2791 : vector<1x8x128xf32> to vector<8x128xf32>
    %c0_i32_1364 = arith.constant 0 : i32
    %c0_i32_1365 = arith.constant 0 : i32
    %c0_i32_1366 = arith.constant 0 : i32
    %2793 = tpu.memref_slice %arg2[%4, %c0_i32_1364, %c0_i32_1365, %c0_i32_1366] : memref<1x90x8x128xf32, #tpu.memory_space<vmem>> -> memref<1x90x8x128xf32, #tpu.memory_space<vmem>>
    %2794 = tpu.memref_squeeze %2793 : memref<1x90x8x128xf32, #tpu.memory_space<vmem>> -> memref<90x8x128xf32, #tpu.memory_space<vmem>>
    %c87 = arith.constant 87 : index
    %c0_1367 = arith.constant 0 : index
    %c0_1368 = arith.constant 0 : index
    %2795 = vector.load %2794[%c87, %c0_1367, %c0_1368] : memref<90x8x128xf32, #tpu.memory_space<vmem>>, vector<1x8x128xf32>
    %2796 = vector.shape_cast %2795 : vector<1x8x128xf32> to vector<8x128xf32>
    %c0_i32_1369 = arith.constant 0 : i32
    %c0_i32_1370 = arith.constant 0 : i32
    %c0_i32_1371 = arith.constant 0 : i32
    %2797 = tpu.memref_slice %arg2[%4, %c0_i32_1369, %c0_i32_1370, %c0_i32_1371] : memref<1x90x8x128xf32, #tpu.memory_space<vmem>> -> memref<1x90x8x128xf32, #tpu.memory_space<vmem>>
    %2798 = tpu.memref_squeeze %2797 : memref<1x90x8x128xf32, #tpu.memory_space<vmem>> -> memref<90x8x128xf32, #tpu.memory_space<vmem>>
    %c88 = arith.constant 88 : index
    %c0_1372 = arith.constant 0 : index
    %c0_1373 = arith.constant 0 : index
    %2799 = vector.load %2798[%c88, %c0_1372, %c0_1373] : memref<90x8x128xf32, #tpu.memory_space<vmem>>, vector<1x8x128xf32>
    %2800 = vector.shape_cast %2799 : vector<1x8x128xf32> to vector<8x128xf32>
    %c0_i32_1374 = arith.constant 0 : i32
    %c0_i32_1375 = arith.constant 0 : i32
    %c0_i32_1376 = arith.constant 0 : i32
    %2801 = tpu.memref_slice %arg2[%4, %c0_i32_1374, %c0_i32_1375, %c0_i32_1376] : memref<1x90x8x128xf32, #tpu.memory_space<vmem>> -> memref<1x90x8x128xf32, #tpu.memory_space<vmem>>
    %2802 = tpu.memref_squeeze %2801 : memref<1x90x8x128xf32, #tpu.memory_space<vmem>> -> memref<90x8x128xf32, #tpu.memory_space<vmem>>
    %c89 = arith.constant 89 : index
    %c0_1377 = arith.constant 0 : index
    %c0_1378 = arith.constant 0 : index
    %2803 = vector.load %2802[%c89, %c0_1377, %c0_1378] : memref<90x8x128xf32, #tpu.memory_space<vmem>>, vector<1x8x128xf32>
    %2804 = vector.shape_cast %2803 : vector<1x8x128xf32> to vector<8x128xf32>
    %2805 = arith.mulf %2784, %2784 : vector<8x128xf32>
    %2806 = arith.mulf %2788, %2788 : vector<8x128xf32>
    %2807 = arith.addf %2805, %2806 : vector<8x128xf32>
    %2808 = arith.mulf %2792, %2792 : vector<8x128xf32>
    %2809 = arith.addf %2807, %2808 : vector<8x128xf32>
    %cst_1379 = arith.constant 1.000000e-24 : f32
    %2810 = vector.broadcast %cst_1379 : f32 to vector<8x128xf32>
    %2811 = arith.maximumf %2809, %2810 : vector<8x128xf32>
    %2812 = math.rsqrt %2811 : vector<8x128xf32>
    %2813 = arith.mulf %2784, %2812 : vector<8x128xf32>
    %2814 = arith.mulf %2788, %2812 : vector<8x128xf32>
    %2815 = arith.mulf %2792, %2812 : vector<8x128xf32>
    %2816 = arith.mulf %2813, %2796 : vector<8x128xf32>
    %2817 = arith.mulf %2814, %2800 : vector<8x128xf32>
    %2818 = arith.addf %2816, %2817 : vector<8x128xf32>
    %2819 = arith.mulf %2815, %2804 : vector<8x128xf32>
    %2820 = arith.addf %2818, %2819 : vector<8x128xf32>
    %2821 = arith.mulf %2820, %2813 : vector<8x128xf32>
    %2822 = arith.subf %2796, %2821 : vector<8x128xf32>
    %2823 = arith.mulf %2820, %2814 : vector<8x128xf32>
    %2824 = arith.subf %2800, %2823 : vector<8x128xf32>
    %2825 = arith.mulf %2820, %2815 : vector<8x128xf32>
    %2826 = arith.subf %2804, %2825 : vector<8x128xf32>
    %2827 = arith.mulf %2822, %2822 : vector<8x128xf32>
    %2828 = arith.mulf %2824, %2824 : vector<8x128xf32>
    %2829 = arith.addf %2827, %2828 : vector<8x128xf32>
    %2830 = arith.mulf %2826, %2826 : vector<8x128xf32>
    %2831 = arith.addf %2829, %2830 : vector<8x128xf32>
    %cst_1380 = arith.constant 1.000000e-24 : f32
    %2832 = vector.broadcast %cst_1380 : f32 to vector<8x128xf32>
    %2833 = arith.maximumf %2831, %2832 : vector<8x128xf32>
    %2834 = math.rsqrt %2833 : vector<8x128xf32>
    %2835 = arith.mulf %2822, %2834 : vector<8x128xf32>
    %2836 = arith.mulf %2824, %2834 : vector<8x128xf32>
    %2837 = arith.mulf %2826, %2834 : vector<8x128xf32>
    %2838 = arith.mulf %2814, %2837 : vector<8x128xf32>
    %2839 = arith.mulf %2815, %2836 : vector<8x128xf32>
    %2840 = arith.subf %2838, %2839 : vector<8x128xf32>
    %2841 = arith.mulf %2815, %2835 : vector<8x128xf32>
    %2842 = arith.mulf %2813, %2837 : vector<8x128xf32>
    %2843 = arith.subf %2841, %2842 : vector<8x128xf32>
    %2844 = arith.mulf %2813, %2836 : vector<8x128xf32>
    %2845 = arith.mulf %2814, %2835 : vector<8x128xf32>
    %2846 = arith.subf %2844, %2845 : vector<8x128xf32>
    %2847 = arith.mulf %290, %2813 : vector<8x128xf32>
    %2848 = arith.mulf %295, %2814 : vector<8x128xf32>
    %2849 = arith.addf %2847, %2848 : vector<8x128xf32>
    %2850 = arith.mulf %300, %2815 : vector<8x128xf32>
    %2851 = arith.addf %2849, %2850 : vector<8x128xf32>
    %2852 = arith.mulf %290, %2835 : vector<8x128xf32>
    %2853 = arith.mulf %295, %2836 : vector<8x128xf32>
    %2854 = arith.addf %2852, %2853 : vector<8x128xf32>
    %2855 = arith.mulf %300, %2837 : vector<8x128xf32>
    %2856 = arith.addf %2854, %2855 : vector<8x128xf32>
    %2857 = arith.mulf %290, %2840 : vector<8x128xf32>
    %2858 = arith.mulf %295, %2843 : vector<8x128xf32>
    %2859 = arith.addf %2857, %2858 : vector<8x128xf32>
    %2860 = arith.mulf %300, %2846 : vector<8x128xf32>
    %2861 = arith.addf %2859, %2860 : vector<8x128xf32>
    %2862 = arith.mulf %305, %2813 : vector<8x128xf32>
    %2863 = arith.mulf %310, %2814 : vector<8x128xf32>
    %2864 = arith.addf %2862, %2863 : vector<8x128xf32>
    %2865 = arith.mulf %315, %2815 : vector<8x128xf32>
    %2866 = arith.addf %2864, %2865 : vector<8x128xf32>
    %2867 = arith.mulf %305, %2835 : vector<8x128xf32>
    %2868 = arith.mulf %310, %2836 : vector<8x128xf32>
    %2869 = arith.addf %2867, %2868 : vector<8x128xf32>
    %2870 = arith.mulf %315, %2837 : vector<8x128xf32>
    %2871 = arith.addf %2869, %2870 : vector<8x128xf32>
    %2872 = arith.mulf %305, %2840 : vector<8x128xf32>
    %2873 = arith.mulf %310, %2843 : vector<8x128xf32>
    %2874 = arith.addf %2872, %2873 : vector<8x128xf32>
    %2875 = arith.mulf %315, %2846 : vector<8x128xf32>
    %2876 = arith.addf %2874, %2875 : vector<8x128xf32>
    %2877 = arith.mulf %320, %2813 : vector<8x128xf32>
    %2878 = arith.mulf %325, %2814 : vector<8x128xf32>
    %2879 = arith.addf %2877, %2878 : vector<8x128xf32>
    %2880 = arith.mulf %330, %2815 : vector<8x128xf32>
    %2881 = arith.addf %2879, %2880 : vector<8x128xf32>
    %2882 = arith.mulf %320, %2835 : vector<8x128xf32>
    %2883 = arith.mulf %325, %2836 : vector<8x128xf32>
    %2884 = arith.addf %2882, %2883 : vector<8x128xf32>
    %2885 = arith.mulf %330, %2837 : vector<8x128xf32>
    %2886 = arith.addf %2884, %2885 : vector<8x128xf32>
    %2887 = arith.mulf %320, %2840 : vector<8x128xf32>
    %2888 = arith.mulf %325, %2843 : vector<8x128xf32>
    %2889 = arith.addf %2887, %2888 : vector<8x128xf32>
    %2890 = arith.mulf %330, %2846 : vector<8x128xf32>
    %2891 = arith.addf %2889, %2890 : vector<8x128xf32>
    %c0_i32_1381 = arith.constant 0 : i32
    %c0_i32_1382 = arith.constant 0 : i32
    %c0_i32_1383 = arith.constant 0 : i32
    %2892 = tpu.memref_slice %arg3[%4, %c0_i32_1381, %c0_i32_1382, %c0_i32_1383] : memref<1x99x8x128xf32, #tpu.memory_space<vmem>> -> memref<1x99x8x128xf32, #tpu.memory_space<vmem>>
    %2893 = tpu.memref_squeeze %2892 : memref<1x99x8x128xf32, #tpu.memory_space<vmem>> -> memref<99x8x128xf32, #tpu.memory_space<vmem>>
    %c87_1384 = arith.constant 87 : index
    %c0_1385 = arith.constant 0 : index
    %c0_1386 = arith.constant 0 : index
    %2894 = vector.load %2893[%c87_1384, %c0_1385, %c0_1386] : memref<99x8x128xf32, #tpu.memory_space<vmem>>, vector<1x8x128xf32>
    %2895 = vector.shape_cast %2894 : vector<1x8x128xf32> to vector<8x128xf32>
    %c0_i32_1387 = arith.constant 0 : i32
    %c0_i32_1388 = arith.constant 0 : i32
    %c0_i32_1389 = arith.constant 0 : i32
    %2896 = tpu.memref_slice %arg3[%4, %c0_i32_1387, %c0_i32_1388, %c0_i32_1389] : memref<1x99x8x128xf32, #tpu.memory_space<vmem>> -> memref<1x99x8x128xf32, #tpu.memory_space<vmem>>
    %2897 = tpu.memref_squeeze %2896 : memref<1x99x8x128xf32, #tpu.memory_space<vmem>> -> memref<99x8x128xf32, #tpu.memory_space<vmem>>
    %c88_1390 = arith.constant 88 : index
    %c0_1391 = arith.constant 0 : index
    %c0_1392 = arith.constant 0 : index
    %2898 = vector.load %2897[%c88_1390, %c0_1391, %c0_1392] : memref<99x8x128xf32, #tpu.memory_space<vmem>>, vector<1x8x128xf32>
    %2899 = vector.shape_cast %2898 : vector<1x8x128xf32> to vector<8x128xf32>
    %c0_i32_1393 = arith.constant 0 : i32
    %c0_i32_1394 = arith.constant 0 : i32
    %c0_i32_1395 = arith.constant 0 : i32
    %2900 = tpu.memref_slice %arg3[%4, %c0_i32_1393, %c0_i32_1394, %c0_i32_1395] : memref<1x99x8x128xf32, #tpu.memory_space<vmem>> -> memref<1x99x8x128xf32, #tpu.memory_space<vmem>>
    %2901 = tpu.memref_squeeze %2900 : memref<1x99x8x128xf32, #tpu.memory_space<vmem>> -> memref<99x8x128xf32, #tpu.memory_space<vmem>>
    %c89_1396 = arith.constant 89 : index
    %c0_1397 = arith.constant 0 : index
    %c0_1398 = arith.constant 0 : index
    %2902 = vector.load %2901[%c89_1396, %c0_1397, %c0_1398] : memref<99x8x128xf32, #tpu.memory_space<vmem>>, vector<1x8x128xf32>
    %2903 = vector.shape_cast %2902 : vector<1x8x128xf32> to vector<8x128xf32>
    %2904 = arith.mulf %2851, %2895 : vector<8x128xf32>
    %2905 = arith.mulf %2856, %2899 : vector<8x128xf32>
    %2906 = arith.addf %2904, %2905 : vector<8x128xf32>
    %2907 = arith.mulf %2861, %2903 : vector<8x128xf32>
    %2908 = arith.addf %2906, %2907 : vector<8x128xf32>
    %2909 = arith.mulf %2866, %2895 : vector<8x128xf32>
    %2910 = arith.mulf %2871, %2899 : vector<8x128xf32>
    %2911 = arith.addf %2909, %2910 : vector<8x128xf32>
    %2912 = arith.mulf %2876, %2903 : vector<8x128xf32>
    %2913 = arith.addf %2911, %2912 : vector<8x128xf32>
    %2914 = arith.mulf %2881, %2895 : vector<8x128xf32>
    %2915 = arith.mulf %2886, %2899 : vector<8x128xf32>
    %2916 = arith.addf %2914, %2915 : vector<8x128xf32>
    %2917 = arith.mulf %2891, %2903 : vector<8x128xf32>
    %2918 = arith.addf %2916, %2917 : vector<8x128xf32>
    %2919 = arith.addf %358, %2908 : vector<8x128xf32>
    %2920 = arith.addf %359, %2913 : vector<8x128xf32>
    %2921 = arith.addf %360, %2918 : vector<8x128xf32>
    %c0_i32_1399 = arith.constant 0 : i32
    %c0_i32_1400 = arith.constant 0 : i32
    %c0_i32_1401 = arith.constant 0 : i32
    %2922 = tpu.memref_slice %arg3[%4, %c0_i32_1399, %c0_i32_1400, %c0_i32_1401] : memref<1x99x8x128xf32, #tpu.memory_space<vmem>> -> memref<1x99x8x128xf32, #tpu.memory_space<vmem>>
    %2923 = tpu.memref_squeeze %2922 : memref<1x99x8x128xf32, #tpu.memory_space<vmem>> -> memref<99x8x128xf32, #tpu.memory_space<vmem>>
    %c42_1402 = arith.constant 42 : index
    %c0_1403 = arith.constant 0 : index
    %c0_1404 = arith.constant 0 : index
    %2924 = vector.load %2923[%c42_1402, %c0_1403, %c0_1404] : memref<99x8x128xf32, #tpu.memory_space<vmem>>, vector<1x8x128xf32>
    %2925 = vector.shape_cast %2924 : vector<1x8x128xf32> to vector<8x128xf32>
    %c0_i32_1405 = arith.constant 0 : i32
    %c0_i32_1406 = arith.constant 0 : i32
    %c0_i32_1407 = arith.constant 0 : i32
    %2926 = tpu.memref_slice %arg3[%4, %c0_i32_1405, %c0_i32_1406, %c0_i32_1407] : memref<1x99x8x128xf32, #tpu.memory_space<vmem>> -> memref<1x99x8x128xf32, #tpu.memory_space<vmem>>
    %2927 = tpu.memref_squeeze %2926 : memref<1x99x8x128xf32, #tpu.memory_space<vmem>> -> memref<99x8x128xf32, #tpu.memory_space<vmem>>
    %c3_1408 = arith.constant 3 : index
    %c0_1409 = arith.constant 0 : index
    %c0_1410 = arith.constant 0 : index
    %2928 = vector.load %2927[%c3_1408, %c0_1409, %c0_1410] : memref<99x8x128xf32, #tpu.memory_space<vmem>>, vector<1x8x128xf32>
    %2929 = vector.shape_cast %2928 : vector<1x8x128xf32> to vector<8x128xf32>
    %2930 = arith.subf %2925, %2929 : vector<8x128xf32>
    %c0_i32_1411 = arith.constant 0 : i32
    %c0_i32_1412 = arith.constant 0 : i32
    %c0_i32_1413 = arith.constant 0 : i32
    %2931 = tpu.memref_slice %arg3[%4, %c0_i32_1411, %c0_i32_1412, %c0_i32_1413] : memref<1x99x8x128xf32, #tpu.memory_space<vmem>> -> memref<1x99x8x128xf32, #tpu.memory_space<vmem>>
    %2932 = tpu.memref_squeeze %2931 : memref<1x99x8x128xf32, #tpu.memory_space<vmem>> -> memref<99x8x128xf32, #tpu.memory_space<vmem>>
    %c43_1414 = arith.constant 43 : index
    %c0_1415 = arith.constant 0 : index
    %c0_1416 = arith.constant 0 : index
    %2933 = vector.load %2932[%c43_1414, %c0_1415, %c0_1416] : memref<99x8x128xf32, #tpu.memory_space<vmem>>, vector<1x8x128xf32>
    %2934 = vector.shape_cast %2933 : vector<1x8x128xf32> to vector<8x128xf32>
    %c0_i32_1417 = arith.constant 0 : i32
    %c0_i32_1418 = arith.constant 0 : i32
    %c0_i32_1419 = arith.constant 0 : i32
    %2935 = tpu.memref_slice %arg3[%4, %c0_i32_1417, %c0_i32_1418, %c0_i32_1419] : memref<1x99x8x128xf32, #tpu.memory_space<vmem>> -> memref<1x99x8x128xf32, #tpu.memory_space<vmem>>
    %2936 = tpu.memref_squeeze %2935 : memref<1x99x8x128xf32, #tpu.memory_space<vmem>> -> memref<99x8x128xf32, #tpu.memory_space<vmem>>
    %c4_1420 = arith.constant 4 : index
    %c0_1421 = arith.constant 0 : index
    %c0_1422 = arith.constant 0 : index
    %2937 = vector.load %2936[%c4_1420, %c0_1421, %c0_1422] : memref<99x8x128xf32, #tpu.memory_space<vmem>>, vector<1x8x128xf32>
    %2938 = vector.shape_cast %2937 : vector<1x8x128xf32> to vector<8x128xf32>
    %2939 = arith.subf %2934, %2938 : vector<8x128xf32>
    %c0_i32_1423 = arith.constant 0 : i32
    %c0_i32_1424 = arith.constant 0 : i32
    %c0_i32_1425 = arith.constant 0 : i32
    %2940 = tpu.memref_slice %arg3[%4, %c0_i32_1423, %c0_i32_1424, %c0_i32_1425] : memref<1x99x8x128xf32, #tpu.memory_space<vmem>> -> memref<1x99x8x128xf32, #tpu.memory_space<vmem>>
    %2941 = tpu.memref_squeeze %2940 : memref<1x99x8x128xf32, #tpu.memory_space<vmem>> -> memref<99x8x128xf32, #tpu.memory_space<vmem>>
    %c44_1426 = arith.constant 44 : index
    %c0_1427 = arith.constant 0 : index
    %c0_1428 = arith.constant 0 : index
    %2942 = vector.load %2941[%c44_1426, %c0_1427, %c0_1428] : memref<99x8x128xf32, #tpu.memory_space<vmem>>, vector<1x8x128xf32>
    %2943 = vector.shape_cast %2942 : vector<1x8x128xf32> to vector<8x128xf32>
    %c0_i32_1429 = arith.constant 0 : i32
    %c0_i32_1430 = arith.constant 0 : i32
    %c0_i32_1431 = arith.constant 0 : i32
    %2944 = tpu.memref_slice %arg3[%4, %c0_i32_1429, %c0_i32_1430, %c0_i32_1431] : memref<1x99x8x128xf32, #tpu.memory_space<vmem>> -> memref<1x99x8x128xf32, #tpu.memory_space<vmem>>
    %2945 = tpu.memref_squeeze %2944 : memref<1x99x8x128xf32, #tpu.memory_space<vmem>> -> memref<99x8x128xf32, #tpu.memory_space<vmem>>
    %c5_1432 = arith.constant 5 : index
    %c0_1433 = arith.constant 0 : index
    %c0_1434 = arith.constant 0 : index
    %2946 = vector.load %2945[%c5_1432, %c0_1433, %c0_1434] : memref<99x8x128xf32, #tpu.memory_space<vmem>>, vector<1x8x128xf32>
    %2947 = vector.shape_cast %2946 : vector<1x8x128xf32> to vector<8x128xf32>
    %2948 = arith.subf %2943, %2947 : vector<8x128xf32>
    %2949 = arith.subf %2919, %358 : vector<8x128xf32>
    %2950 = arith.subf %2920, %359 : vector<8x128xf32>
    %2951 = arith.subf %2921, %360 : vector<8x128xf32>
    %2952 = arith.mulf %2930, %2949 : vector<8x128xf32>
    %2953 = arith.mulf %2939, %2950 : vector<8x128xf32>
    %2954 = arith.addf %2952, %2953 : vector<8x128xf32>
    %2955 = arith.mulf %2948, %2951 : vector<8x128xf32>
    %2956 = arith.addf %2954, %2955 : vector<8x128xf32>
    %2957 = arith.mulf %2930, %2930 : vector<8x128xf32>
    %2958 = arith.mulf %2939, %2939 : vector<8x128xf32>
    %2959 = arith.addf %2957, %2958 : vector<8x128xf32>
    %2960 = arith.mulf %2948, %2948 : vector<8x128xf32>
    %2961 = arith.addf %2959, %2960 : vector<8x128xf32>
    %2962 = arith.mulf %2949, %2949 : vector<8x128xf32>
    %2963 = arith.mulf %2950, %2950 : vector<8x128xf32>
    %2964 = arith.addf %2962, %2963 : vector<8x128xf32>
    %2965 = arith.mulf %2951, %2951 : vector<8x128xf32>
    %2966 = arith.addf %2964, %2965 : vector<8x128xf32>
    %2967 = arith.mulf %2961, %2966 : vector<8x128xf32>
    %cst_1435 = arith.constant 1.000000e-16 : f32
    %2968 = vector.broadcast %cst_1435 : f32 to vector<8x128xf32>
    %2969 = arith.maximumf %2967, %2968 : vector<8x128xf32>
    %2970 = math.rsqrt %2969 : vector<8x128xf32>
    %2971 = arith.mulf %2956, %2970 : vector<8x128xf32>
    %c14_1436 = arith.constant 14 : index
    %c0_1437 = arith.constant 0 : index
    %c0_1438 = arith.constant 0 : index
    %2972 = vector.load %arg5[%c14_1436, %c0_1437, %c0_1438] : memref<15x8x128xf32, #tpu.memory_space<vmem>>, vector<1x8x128xf32>
    %2973 = vector.shape_cast %2972 : vector<1x8x128xf32> to vector<8x128xf32>
    %2974 = arith.addf %2973, %2971 : vector<8x128xf32>
    %c14_1439 = arith.constant 14 : index
    %c0_1440 = arith.constant 0 : index
    %c0_1441 = arith.constant 0 : index
    %2975 = vector.load %arg5[%c14_1439, %c0_1440, %c0_1441] : memref<15x8x128xf32, #tpu.memory_space<vmem>>, vector<1x8x128xf32>
    %2976 = vector.shape_cast %2975 : vector<1x8x128xf32> to vector<8x128xf32>
    %2977 = vector.shape_cast %2974 : vector<8x128xf32> to vector<1x8x128xf32>
    tpu.vector_store %arg5[%c14_1439, %c0_1440, %c0_1441], %2977 {strides = array<i32>} : memref<15x8x128xf32, #tpu.memory_space<vmem>>, vector<1x8x128xf32>,
    %c1_i32_1442 = arith.constant 1 : i32
    %c0_i32_1443 = arith.constant 0 : i32
    %2978 = arith.cmpi eq, %arg1, %c0_i32_1443 : i32
    %2979 = arith.extui %2978 : i1 to i32
    %c0_i32_1444 = arith.constant 0 : i32
    %2980 = arith.cmpi ne, %2979, %c0_i32_1444 : i32
    scf.if %2980 {
      %c0_1445 = arith.constant 0 : index
      %c0_1446 = arith.constant 0 : index
      %c0_1447 = arith.constant 0 : index
      %2981 = vector.load %arg5[%c0_1445, %c0_1446, %c0_1447] : memref<15x8x128xf32, #tpu.memory_space<vmem>>, vector<1x8x128xf32>
      %2982 = vector.shape_cast %2981 : vector<1x8x128xf32> to vector<8x128xf32>
      %2983 = vector.shape_cast %2982 : vector<8x128xf32> to vector<1x8x128xf32>
      %cst_1448 = arith.constant dense<0.000000e+00> : vector<1xf32>
      %2984 = vector.multi_reduction <add>, %2983, %cst_1448 [1, 2] : vector<1x8x128xf32> to vector<1xf32>
      %2985 = vector.shape_cast %2984 : vector<1xf32> to vector<1x1x1xf32>
      %2986 = vector.extract %2985[0, 0, 0] : f32 from vector<1x1x1xf32>
      %2987 = vector.broadcast %2986 : f32 to vector<1x1xf32>
      %c1_1449 = arith.constant 1 : index
      %c0_1450 = arith.constant 0 : index
      %c0_1451 = arith.constant 0 : index
      %2988 = vector.load %arg5[%c1_1449, %c0_1450, %c0_1451] : memref<15x8x128xf32, #tpu.memory_space<vmem>>, vector<1x8x128xf32>
      %2989 = vector.shape_cast %2988 : vector<1x8x128xf32> to vector<8x128xf32>
      %2990 = vector.shape_cast %2989 : vector<8x128xf32> to vector<1x8x128xf32>
      %cst_1452 = arith.constant dense<0.000000e+00> : vector<1xf32>
      %2991 = vector.multi_reduction <add>, %2990, %cst_1452 [1, 2] : vector<1x8x128xf32> to vector<1xf32>
      %2992 = vector.shape_cast %2991 : vector<1xf32> to vector<1x1x1xf32>
      %2993 = vector.extract %2992[0, 0, 0] : f32 from vector<1x1x1xf32>
      %2994 = vector.broadcast %2993 : f32 to vector<1x1xf32>
      %c2_1453 = arith.constant 2 : index
      %c0_1454 = arith.constant 0 : index
      %c0_1455 = arith.constant 0 : index
      %2995 = vector.load %arg5[%c2_1453, %c0_1454, %c0_1455] : memref<15x8x128xf32, #tpu.memory_space<vmem>>, vector<1x8x128xf32>
      %2996 = vector.shape_cast %2995 : vector<1x8x128xf32> to vector<8x128xf32>
      %2997 = vector.shape_cast %2996 : vector<8x128xf32> to vector<1x8x128xf32>
      %cst_1456 = arith.constant dense<0.000000e+00> : vector<1xf32>
      %2998 = vector.multi_reduction <add>, %2997, %cst_1456 [1, 2] : vector<1x8x128xf32> to vector<1xf32>
      %2999 = vector.shape_cast %2998 : vector<1xf32> to vector<1x1x1xf32>
      %3000 = vector.extract %2999[0, 0, 0] : f32 from vector<1x1x1xf32>
      %3001 = vector.broadcast %3000 : f32 to vector<1x1xf32>
      %c3_1457 = arith.constant 3 : index
      %c0_1458 = arith.constant 0 : index
      %c0_1459 = arith.constant 0 : index
      %3002 = vector.load %arg5[%c3_1457, %c0_1458, %c0_1459] : memref<15x8x128xf32, #tpu.memory_space<vmem>>, vector<1x8x128xf32>
      %3003 = vector.shape_cast %3002 : vector<1x8x128xf32> to vector<8x128xf32>
      %3004 = vector.shape_cast %3003 : vector<8x128xf32> to vector<1x8x128xf32>
      %cst_1460 = arith.constant dense<0.000000e+00> : vector<1xf32>
      %3005 = vector.multi_reduction <add>, %3004, %cst_1460 [1, 2] : vector<1x8x128xf32> to vector<1xf32>
      %3006 = vector.shape_cast %3005 : vector<1xf32> to vector<1x1x1xf32>
      %3007 = vector.extract %3006[0, 0, 0] : f32 from vector<1x1x1xf32>
      %3008 = vector.broadcast %3007 : f32 to vector<1x1xf32>
      %c4_1461 = arith.constant 4 : index
      %c0_1462 = arith.constant 0 : index
      %c0_1463 = arith.constant 0 : index
      %3009 = vector.load %arg5[%c4_1461, %c0_1462, %c0_1463] : memref<15x8x128xf32, #tpu.memory_space<vmem>>, vector<1x8x128xf32>
      %3010 = vector.shape_cast %3009 : vector<1x8x128xf32> to vector<8x128xf32>
      %3011 = vector.shape_cast %3010 : vector<8x128xf32> to vector<1x8x128xf32>
      %cst_1464 = arith.constant dense<0.000000e+00> : vector<1xf32>
      %3012 = vector.multi_reduction <add>, %3011, %cst_1464 [1, 2] : vector<1x8x128xf32> to vector<1xf32>
      %3013 = vector.shape_cast %3012 : vector<1xf32> to vector<1x1x1xf32>
      %3014 = vector.extract %3013[0, 0, 0] : f32 from vector<1x1x1xf32>
      %3015 = vector.broadcast %3014 : f32 to vector<1x1xf32>
      %c5_1465 = arith.constant 5 : index
      %c0_1466 = arith.constant 0 : index
      %c0_1467 = arith.constant 0 : index
      %3016 = vector.load %arg5[%c5_1465, %c0_1466, %c0_1467] : memref<15x8x128xf32, #tpu.memory_space<vmem>>, vector<1x8x128xf32>
      %3017 = vector.shape_cast %3016 : vector<1x8x128xf32> to vector<8x128xf32>
      %3018 = vector.shape_cast %3017 : vector<8x128xf32> to vector<1x8x128xf32>
      %cst_1468 = arith.constant dense<0.000000e+00> : vector<1xf32>
      %3019 = vector.multi_reduction <add>, %3018, %cst_1468 [1, 2] : vector<1x8x128xf32> to vector<1xf32>
      %3020 = vector.shape_cast %3019 : vector<1xf32> to vector<1x1x1xf32>
      %3021 = vector.extract %3020[0, 0, 0] : f32 from vector<1x1x1xf32>
      %3022 = vector.broadcast %3021 : f32 to vector<1x1xf32>
      %c6_1469 = arith.constant 6 : index
      %c0_1470 = arith.constant 0 : index
      %c0_1471 = arith.constant 0 : index
      %3023 = vector.load %arg5[%c6_1469, %c0_1470, %c0_1471] : memref<15x8x128xf32, #tpu.memory_space<vmem>>, vector<1x8x128xf32>
      %3024 = vector.shape_cast %3023 : vector<1x8x128xf32> to vector<8x128xf32>
      %3025 = vector.shape_cast %3024 : vector<8x128xf32> to vector<1x8x128xf32>
      %cst_1472 = arith.constant dense<0.000000e+00> : vector<1xf32>
      %3026 = vector.multi_reduction <add>, %3025, %cst_1472 [1, 2] : vector<1x8x128xf32> to vector<1xf32>
      %3027 = vector.shape_cast %3026 : vector<1xf32> to vector<1x1x1xf32>
      %3028 = vector.extract %3027[0, 0, 0] : f32 from vector<1x1x1xf32>
      %3029 = vector.broadcast %3028 : f32 to vector<1x1xf32>
      %c7_1473 = arith.constant 7 : index
      %c0_1474 = arith.constant 0 : index
      %c0_1475 = arith.constant 0 : index
      %3030 = vector.load %arg5[%c7_1473, %c0_1474, %c0_1475] : memref<15x8x128xf32, #tpu.memory_space<vmem>>, vector<1x8x128xf32>
      %3031 = vector.shape_cast %3030 : vector<1x8x128xf32> to vector<8x128xf32>
      %3032 = vector.shape_cast %3031 : vector<8x128xf32> to vector<1x8x128xf32>
      %cst_1476 = arith.constant dense<0.000000e+00> : vector<1xf32>
      %3033 = vector.multi_reduction <add>, %3032, %cst_1476 [1, 2] : vector<1x8x128xf32> to vector<1xf32>
      %3034 = vector.shape_cast %3033 : vector<1xf32> to vector<1x1x1xf32>
      %3035 = vector.extract %3034[0, 0, 0] : f32 from vector<1x1x1xf32>
      %3036 = vector.broadcast %3035 : f32 to vector<1x1xf32>
      %c8_1477 = arith.constant 8 : index
      %c0_1478 = arith.constant 0 : index
      %c0_1479 = arith.constant 0 : index
      %3037 = vector.load %arg5[%c8_1477, %c0_1478, %c0_1479] : memref<15x8x128xf32, #tpu.memory_space<vmem>>, vector<1x8x128xf32>
      %3038 = vector.shape_cast %3037 : vector<1x8x128xf32> to vector<8x128xf32>
      %3039 = vector.shape_cast %3038 : vector<8x128xf32> to vector<1x8x128xf32>
      %cst_1480 = arith.constant dense<0.000000e+00> : vector<1xf32>
      %3040 = vector.multi_reduction <add>, %3039, %cst_1480 [1, 2] : vector<1x8x128xf32> to vector<1xf32>
      %3041 = vector.shape_cast %3040 : vector<1xf32> to vector<1x1x1xf32>
      %3042 = vector.extract %3041[0, 0, 0] : f32 from vector<1x1x1xf32>
      %3043 = vector.broadcast %3042 : f32 to vector<1x1xf32>
      %c9_1481 = arith.constant 9 : index
      %c0_1482 = arith.constant 0 : index
      %c0_1483 = arith.constant 0 : index
      %3044 = vector.load %arg5[%c9_1481, %c0_1482, %c0_1483] : memref<15x8x128xf32, #tpu.memory_space<vmem>>, vector<1x8x128xf32>
      %3045 = vector.shape_cast %3044 : vector<1x8x128xf32> to vector<8x128xf32>
      %3046 = vector.shape_cast %3045 : vector<8x128xf32> to vector<1x8x128xf32>
      %cst_1484 = arith.constant dense<0.000000e+00> : vector<1xf32>
      %3047 = vector.multi_reduction <add>, %3046, %cst_1484 [1, 2] : vector<1x8x128xf32> to vector<1xf32>
      %3048 = vector.shape_cast %3047 : vector<1xf32> to vector<1x1x1xf32>
      %3049 = vector.extract %3048[0, 0, 0] : f32 from vector<1x1x1xf32>
      %3050 = vector.broadcast %3049 : f32 to vector<1x1xf32>
      %c10_1485 = arith.constant 10 : index
      %c0_1486 = arith.constant 0 : index
      %c0_1487 = arith.constant 0 : index
      %3051 = vector.load %arg5[%c10_1485, %c0_1486, %c0_1487] : memref<15x8x128xf32, #tpu.memory_space<vmem>>, vector<1x8x128xf32>
      %3052 = vector.shape_cast %3051 : vector<1x8x128xf32> to vector<8x128xf32>
      %3053 = vector.shape_cast %3052 : vector<8x128xf32> to vector<1x8x128xf32>
      %cst_1488 = arith.constant dense<0.000000e+00> : vector<1xf32>
      %3054 = vector.multi_reduction <add>, %3053, %cst_1488 [1, 2] : vector<1x8x128xf32> to vector<1xf32>
      %3055 = vector.shape_cast %3054 : vector<1xf32> to vector<1x1x1xf32>
      %3056 = vector.extract %3055[0, 0, 0] : f32 from vector<1x1x1xf32>
      %3057 = vector.broadcast %3056 : f32 to vector<1x1xf32>
      %c11_1489 = arith.constant 11 : index
      %c0_1490 = arith.constant 0 : index
      %c0_1491 = arith.constant 0 : index
      %3058 = vector.load %arg5[%c11_1489, %c0_1490, %c0_1491] : memref<15x8x128xf32, #tpu.memory_space<vmem>>, vector<1x8x128xf32>
      %3059 = vector.shape_cast %3058 : vector<1x8x128xf32> to vector<8x128xf32>
      %3060 = vector.shape_cast %3059 : vector<8x128xf32> to vector<1x8x128xf32>
      %cst_1492 = arith.constant dense<0.000000e+00> : vector<1xf32>
      %3061 = vector.multi_reduction <add>, %3060, %cst_1492 [1, 2] : vector<1x8x128xf32> to vector<1xf32>
      %3062 = vector.shape_cast %3061 : vector<1xf32> to vector<1x1x1xf32>
      %3063 = vector.extract %3062[0, 0, 0] : f32 from vector<1x1x1xf32>
      %3064 = vector.broadcast %3063 : f32 to vector<1x1xf32>
      %c12_1493 = arith.constant 12 : index
      %c0_1494 = arith.constant 0 : index
      %c0_1495 = arith.constant 0 : index
      %3065 = vector.load %arg5[%c12_1493, %c0_1494, %c0_1495] : memref<15x8x128xf32, #tpu.memory_space<vmem>>, vector<1x8x128xf32>
      %3066 = vector.shape_cast %3065 : vector<1x8x128xf32> to vector<8x128xf32>
      %3067 = vector.shape_cast %3066 : vector<8x128xf32> to vector<1x8x128xf32>
      %cst_1496 = arith.constant dense<0.000000e+00> : vector<1xf32>
      %3068 = vector.multi_reduction <add>, %3067, %cst_1496 [1, 2] : vector<1x8x128xf32> to vector<1xf32>
      %3069 = vector.shape_cast %3068 : vector<1xf32> to vector<1x1x1xf32>
      %3070 = vector.extract %3069[0, 0, 0] : f32 from vector<1x1x1xf32>
      %3071 = vector.broadcast %3070 : f32 to vector<1x1xf32>
      %c13_1497 = arith.constant 13 : index
      %c0_1498 = arith.constant 0 : index
      %c0_1499 = arith.constant 0 : index
      %3072 = vector.load %arg5[%c13_1497, %c0_1498, %c0_1499] : memref<15x8x128xf32, #tpu.memory_space<vmem>>, vector<1x8x128xf32>
      %3073 = vector.shape_cast %3072 : vector<1x8x128xf32> to vector<8x128xf32>
      %3074 = vector.shape_cast %3073 : vector<8x128xf32> to vector<1x8x128xf32>
      %cst_1500 = arith.constant dense<0.000000e+00> : vector<1xf32>
      %3075 = vector.multi_reduction <add>, %3074, %cst_1500 [1, 2] : vector<1x8x128xf32> to vector<1xf32>
      %3076 = vector.shape_cast %3075 : vector<1xf32> to vector<1x1x1xf32>
      %3077 = vector.extract %3076[0, 0, 0] : f32 from vector<1x1x1xf32>
      %3078 = vector.broadcast %3077 : f32 to vector<1x1xf32>
      %c14_1501 = arith.constant 14 : index
      %c0_1502 = arith.constant 0 : index
      %c0_1503 = arith.constant 0 : index
      %3079 = vector.load %arg5[%c14_1501, %c0_1502, %c0_1503] : memref<15x8x128xf32, #tpu.memory_space<vmem>>, vector<1x8x128xf32>
      %3080 = vector.shape_cast %3079 : vector<1x8x128xf32> to vector<8x128xf32>
      %3081 = vector.shape_cast %3080 : vector<8x128xf32> to vector<1x8x128xf32>
      %cst_1504 = arith.constant dense<0.000000e+00> : vector<1xf32>
      %3082 = vector.multi_reduction <add>, %3081, %cst_1504 [1, 2] : vector<1x8x128xf32> to vector<1xf32>
      %3083 = vector.shape_cast %3082 : vector<1xf32> to vector<1x1x1xf32>
      %3084 = vector.extract %3083[0, 0, 0] : f32 from vector<1x1x1xf32>
      %3085 = vector.broadcast %3084 : f32 to vector<1x1xf32>
      %3086 = tpu.concatenate %2987, %2994, %3001, %3008, %3015, %3022, %3029, %3036, %3043, %3050, %3057, %3064, %3071, %3078, %3085 in 1 : vector<1x1xf32>, vector<1x1xf32>, vector<1x1xf32>, vector<1x1xf32>, vector<1x1xf32>, vector<1x1xf32>, vector<1x1xf32>, vector<1x1xf32>, vector<1x1xf32>, vector<1x1xf32>, vector<1x1xf32>, vector<1x1xf32>, vector<1x1xf32>, vector<1x1xf32>, vector<1x1xf32> -> vector<1x15xf32>
      %c0_1505 = arith.constant 0 : index
      %c0_1506 = arith.constant 0 : index
      %c0_1507 = arith.constant 0 : index
      %3087 = vector.load %arg4[%c0_1505, %c0_1506, %c0_1507] : memref<1x1x15xf32, #tpu.memory_space<vmem>>, vector<1x1x15xf32>
      %3088 = vector.shape_cast %3087 : vector<1x1x15xf32> to vector<1x15xf32>
      %3089 = vector.shape_cast %3086 : vector<1x15xf32> to vector<1x1x15xf32>
      tpu.vector_store %arg4[%c0_1505, %c0_1506, %c0_1507], %3089 {strides = array<i32>} : memref<1x1x15xf32, #tpu.memory_space<vmem>>, vector<1x1x15xf32>,
    } else {
    }
    return
  }
  func.func @transform_0(%arg0: i32, %arg1: i32) -> (i32, i32, i32, i32) {
    %c1_i32 = arith.constant 1 : i32
    %0 = arith.muli %arg0, %c1_i32 : i32
    %1 = arith.addi %0, %arg1 : i32
    %c0_i32 = arith.constant 0 : i32
    %c0_i32_0 = arith.constant 0 : i32
    %c0_i32_1 = arith.constant 0 : i32
    %c0_i32_2 = arith.constant 0 : i32
    return %1, %c0_i32, %c0_i32_0, %c0_i32_1 : i32, i32, i32, i32
  }
  func.func @transform_1(%arg0: i32, %arg1: i32) -> (i32, i32, i32, i32) {
    %c1_i32 = arith.constant 1 : i32
    %0 = arith.muli %arg0, %c1_i32 : i32
    %1 = arith.addi %0, %arg1 : i32
    %c0_i32 = arith.constant 0 : i32
    %c0_i32_0 = arith.constant 0 : i32
    %c0_i32_1 = arith.constant 0 : i32
    %c0_i32_2 = arith.constant 0 : i32
    return %1, %c0_i32, %c0_i32_0, %c0_i32_1 : i32, i32, i32, i32
  }
  func.func @transform_2(%arg0: i32, %arg1: i32) -> (i32, i32, i32) {
    %c0_i32 = arith.constant 0 : i32
    %c0_i32_0 = arith.constant 0 : i32
    %c0_i32_1 = arith.constant 0 : i32
    return %arg0, %c0_i32, %c0_i32_0 : i32, i32, i32
  }
}

</mosaic_0001>

<llo_original>
// kernel: tpu_custom_call.1
$region0: #{tpu_custom_call.1}
  #allocation0 [shape = 'u32[]', space=smem, size = 0x4, offset = 0x4, fixed_abs, tag = 'smem constant byte address 0x4 - core index']
  #allocation1 [shape = 'u32[144,128]{1,0:T(1,128)}', space=vmem, size = 0x12000, scoped, tag = 'internal scratch']
  #allocation2 [shape = 'f32[15,8,128]{2,1,0:T(8,128)}', space=vmem, size = 0xf000, scoped, tag = 'scratch operand']
  %s0 = inlined_call_operand.hbm [shape: f32[1,90,8,128], index: 0, kind: input, shape index: {}]
  %s1 = inlined_call_operand.hbm [shape: f32[1,99,8,128], index: 1, kind: input, shape index: {}]
  %s2 = inlined_call_operand.hbm [shape: f32[1,1,15], index: 2, kind: output, shape index: {}]
  %s3 = sld [smem:[#allocation0]]
  $region34: #{tpu_custom_call.1} parent=0
    _
  %s5 = ssub.s32 1, %s3
  %s6 = scalar_select 0, %s5, %s3
  $region1: #{tpu_custom_call.1} parent=0
    #allocation3 [shape = 'u8[368640]{0}', space=vmem, size = 0x5a000, scoped, tag = 'input window, operand 0, single buffered']
    #allocation4 [shape = 's32[1]{0}', space=sflag, size = 0x4, scoped, tag = 'scoped memory for tpu_custom_call.1']
    #allocation5 [shape = 's32[1]{0}', space=sflag, size = 0x4, scoped, tag = 'scoped memory for tpu_custom_call.1']
    #allocation6 [shape = 'u8[405504]{0}', space=vmem, size = 0x63000, scoped, tag = 'input window, operand 1, single buffered']
    #allocation7 [shape = 's32[1]{0}', space=sflag, size = 0x4, scoped, tag = 'scoped memory for tpu_custom_call.1']
    #allocation8 [shape = 'u8[512]{0}', space=vmem, size = 0x400, scoped, tag = 'output window, operand 0, single buffered']
    %7 = vsyncpa [#allocation4], 0
    %8 = vsyncpa [#allocation7], 0
    %9 = vsyncpa [#allocation5], 0
    // Predicated region
    $region2: #{tpu_custom_call.1} parent=1 // pred_check
      _
    $region3: #{tpu_custom_call.1} parent=1 // pred_check_branch
      %11 = sbr.rel (0) target = $region5
    $region4: #{tpu_custom_call.1} parent=1 // pred_region
      %s12 = sadd.s32 0, 0
      %s14 = ssub.s32 11520, 11520
      %15 = vsyncadd [#allocation4], %s14
      %s16 = smul.addr %s12, 90
      %s17 = smul.addr %s16, 128
      %s18 = scalar_lea.hbm %s0, %s17
      %s19 = sshll.u32 [#allocation3], 4
      %s20 = int_to_ptr.vmem [resolvable:$true] %s19
      %25 = dma.hbm_to_vmem [thread:$0]  %s18, 11520, %s20, [#allocation4], 128, 128, 8
    $region5: #{tpu_custom_call.1} parent=1 // pred_fallthru
      _
    // Predicated region
    $region6: #{tpu_custom_call.1} parent=1 // pred_check
      _
    $region7: #{tpu_custom_call.1} parent=1 // pred_check_branch
      %27 = sbr.rel (0) target = $region9
    $region8: #{tpu_custom_call.1} parent=1 // pred_region
      %s28 = sadd.s32 0, 0
      %s30 = ssub.s32 12672, 12672
      %31 = vsyncadd [#allocation7], %s30
      %s32 = smul.addr %s28, 99
      %s33 = smul.addr %s32, 128
      %s34 = scalar_lea.hbm %s1, %s33
      %s35 = sshll.u32 [#allocation6], 4
      %s36 = int_to_ptr.vmem [resolvable:$true] %s35
      %41 = dma.hbm_to_vmem [thread:$0]  %s34, 12672, %s36, [#allocation7], 128, 128, 8
    $region9: #{tpu_custom_call.1} parent=1 // pred_fallthru
      _
    // Predicated region
    $region10: #{tpu_custom_call.1} parent=1 // pred_check
      _
    $region11: #{tpu_custom_call.1} parent=1 // pred_check_branch
      %43 = sbr.rel (0) target = $region13
    $region12: #{tpu_custom_call.1} parent=1 // pred_region
      %44 = dma.done [#allocation4], 11520
    $region13: #{tpu_custom_call.1} parent=1 // pred_fallthru
      _
    // Predicated region
    $region14: #{tpu_custom_call.1} parent=1 // pred_check
      _
    $region15: #{tpu_custom_call.1} parent=1 // pred_check_branch
      %46 = sbr.rel (0) target = $region17
    $region16: #{tpu_custom_call.1} parent=1 // pred_region
      %47 = dma.done [#allocation7], 12672
    $region17: #{tpu_custom_call.1} parent=1 // pred_fallthru
      _
    %s48 = sadd.s32 0, 0
    %s49 = sadd.s32 0, 0
    %p50 = scmp.eq.s32.totalorder 0, 0
    // Predicated region
    $region18: #{tpu_custom_call.1} parent=1 // pred_check
      %p51 = pneg %p50
    $region19: #{tpu_custom_call.1} parent=1 // pred_check_branch
      %53 = sbr.rel (%p51) target = $region21
    $region20: #{tpu_custom_call.1} parent=1 // pred_region
      %54 = vst [vmem:[#allocation2] sm:$0xff] 0.0
      %55 = vst [vmem:[#allocation2 + $0x8] sm:$0xff] 0.0
      %56 = vst [vmem:[#allocation2 + $0x10] sm:$0xff] 0.0
      %57 = vst [vmem:[#allocation2 + $0x18] sm:$0xff] 0.0
      %58 = vst [vmem:[#allocation2 + $0x20] sm:$0xff] 0.0
      %59 = vst [vmem:[#allocation2 + $0x28] sm:$0xff] 0.0
      %60 = vst [vmem:[#allocation2 + $0x30] sm:$0xff] 0.0
      %61 = vst [vmem:[#allocation2 + $0x38] sm:$0xff] 0.0
      %62 = vst [vmem:[#allocation2 + $0x40] sm:$0xff] 0.0
      %63 = vst [vmem:[#allocation2 + $0x48] sm:$0xff] 0.0
      %64 = vst [vmem:[#allocation2 + $0x50] sm:$0xff] 0.0
      %65 = vst [vmem:[#allocation2 + $0x58] sm:$0xff] 0.0
      %66 = vst [vmem:[#allocation2 + $0x60] sm:$0xff] 0.0
      %67 = vst [vmem:[#allocation2 + $0x68] sm:$0xff] 0.0
      %68 = vst [vmem:[#allocation2 + $0x70] sm:$0xff] 0.0
    $region21: #{tpu_custom_call.1} parent=1 // pred_fallthru
      _
    %v69 = vld [vmem:[#allocation3] sm:$0xff]
    %s70 = scalar_lea.vmem [#allocation3], 8
    %v71 = vld [vmem:[%s70] sm:$0xff]
    %s72 = scalar_lea.vmem [#allocation3], 16
    %v73 = vld [vmem:[%s72] sm:$0xff]
    %s74 = scalar_lea.vmem [#allocation3], 24
    %v75 = vld [vmem:[%s74] sm:$0xff]
    %s76 = scalar_lea.vmem [#allocation3], 32
    %v77 = vld [vmem:[%s76] sm:$0xff]
    %s78 = scalar_lea.vmem [#allocation3], 40
    %v79 = vld [vmem:[%s78] sm:$0xff]
    %v80 = vmul.f32 %v69, %v69
    %v81 = vmul.f32 %v71, %v71
    %v82 = vadd.f32 %v80, %v81
    %v83 = vmul.f32 %v73, %v73
    %v84 = vadd.f32 %v82, %v83
    %v85 = vmax.f32 %v84, 1e-24
    %v86 = vrsqrt.pop %v85
    %v87 = vmul.f32 %v69, %v86
    %v88 = vmul.f32 %v71, %v86
    %v89 = vmul.f32 %v73, %v86
    %v90 = vmul.f32 %v87, %v75
    %v91 = vmul.f32 %v88, %v77
    %v92 = vadd.f32 %v90, %v91
    %v93 = vmul.f32 %v89, %v79
    %v94 = vadd.f32 %v92, %v93
    %v95 = vmul.f32 %v94, %v87
    %v96 = vsub.f32 %v75, %v95
    %v97 = vmul.f32 %v94, %v88
    %v98 = vsub.f32 %v77, %v97
    %v99 = vmul.f32 %v94, %v89
    %v100 = vsub.f32 %v79, %v99
    %v101 = vmul.f32 %v96, %v96
    %v102 = vmul.f32 %v98, %v98
    %v103 = vadd.f32 %v101, %v102
    %v104 = vmul.f32 %v100, %v100
    %v105 = vadd.f32 %v103, %v104
    %v106 = vmax.f32 %v105, 1e-24
    %v107 = vrsqrt.pop %v106
    %v108 = vmul.f32 %v96, %v107
    %v109 = vmul.f32 %v98, %v107
    %v110 = vmul.f32 %v100, %v107
    %v111 = vmul.f32 %v88, %v110
    %v112 = vmul.f32 %v89, %v109
    %v113 = vsub.f32 %v111, %v112
    %v114 = vmul.f32 %v89, %v108
    %v115 = vmul.f32 %v87, %v110
    %v116 = vsub.f32 %v114, %v115
    %v117 = vmul.f32 %v87, %v109
    %v118 = vmul.f32 %v88, %v108
    %v119 = vsub.f32 %v117, %v118
    %s120 = scalar_lea.vmem [#allocation6], 720
    %v121 = vld [vmem:[%s120] sm:$0xff]
    %s122 = scalar_lea.vmem [#allocation6], 728
    %v123 = vld [vmem:[%s122] sm:$0xff]
    %s124 = scalar_lea.vmem [#allocation6], 736
    %v125 = vld [vmem:[%s124] sm:$0xff]
    %s126 = scalar_lea.vmem [#allocation6], 744
    %v127 = vld [vmem:[%s126] sm:$0xff]
    %s128 = scalar_lea.vmem [#allocation6], 752
    %v129 = vld [vmem:[%s128] sm:$0xff]
    %s130 = scalar_lea.vmem [#allocation6], 760
    %v131 = vld [vmem:[%s130] sm:$0xff]
    %s132 = scalar_lea.vmem [#allocation6], 768
    %v133 = vld [vmem:[%s132] sm:$0xff]
    %s134 = scalar_lea.vmem [#allocation6], 776
    %v135 = vld [vmem:[%s134] sm:$0xff]
    %s136 = scalar_lea.vmem [#allocation6], 784
    %v137 = vld [vmem:[%s136] sm:$0xff]
    %v138 = vmul.f32 %v121, %v87
    %v139 = vmul.f32 %v123, %v88
    %v140 = vadd.f32 %v138, %v139
    %v141 = vmul.f32 %v125, %v89
    %v142 = vadd.f32 %v140, %v141
    %v143 = vmul.f32 %v121, %v108
    %v144 = vmul.f32 %v123, %v109
    %v145 = vadd.f32 %v143, %v144
    %v146 = vmul.f32 %v125, %v110
    %v147 = vadd.f32 %v145, %v146
    %v148 = vmul.f32 %v121, %v113
    %v149 = vmul.f32 %v123, %v116
    %v150 = vadd.f32 %v148, %v149
    %v151 = vmul.f32 %v125, %v119
    %v152 = vadd.f32 %v150, %v151
    %v153 = vmul.f32 %v127, %v87
    %v154 = vmul.f32 %v129, %v88
    %v155 = vadd.f32 %v153, %v154
    %v156 = vmul.f32 %v131, %v89
    %v157 = vadd.f32 %v155, %v156
    %v158 = vmul.f32 %v127, %v108
    %v159 = vmul.f32 %v129, %v109
    %v160 = vadd.f32 %v158, %v159
    %v161 = vmul.f32 %v131, %v110
    %v162 = vadd.f32 %v160, %v161
    %v163 = vmul.f32 %v127, %v113
    %v164 = vmul.f32 %v129, %v116
    %v165 = vadd.f32 %v163, %v164
    %v166 = vmul.f32 %v131, %v119
    %v167 = vadd.f32 %v165, %v166
    %v168 = vmul.f32 %v133, %v87
    %v169 = vmul.f32 %v135, %v88
    %v170 = vadd.f32 %v168, %v169
    %v171 = vmul.f32 %v137, %v89
    %v172 = vadd.f32 %v170, %v171
    %v173 = vmul.f32 %v133, %v108
    %v174 = vmul.f32 %v135, %v109
    %v175 = vadd.f32 %v173, %v174
    %v176 = vmul.f32 %v137, %v110
    %v177 = vadd.f32 %v175, %v176
    %v178 = vmul.f32 %v133, %v113
    %v179 = vmul.f32 %v135, %v116
    %v180 = vadd.f32 %v178, %v179
    %v181 = vmul.f32 %v137, %v119
    %v182 = vadd.f32 %v180, %v181
    %s183 = scalar_lea.vmem [#allocation6], 360
    %v184 = vld [vmem:[%s183] sm:$0xff]
    %s185 = scalar_lea.vmem [#allocation6], 368
    %v186 = vld [vmem:[%s185] sm:$0xff]
    %s187 = scalar_lea.vmem [#allocation6], 376
    %v188 = vld [vmem:[%s187] sm:$0xff]
    %v189 = vld [vmem:[#allocation6] sm:$0xff]
    %v190 = vsub.f32 %v189, %v189
    %s191 = scalar_lea.vmem [#allocation6], 8
    %v192 = vld [vmem:[%s191] sm:$0xff]
    %v193 = vsub.f32 %v192, %v192
    %s194 = scalar_lea.vmem [#allocation6], 16
    %v195 = vld [vmem:[%s194] sm:$0xff]
    %v196 = vsub.f32 %v195, %v195
    %v197 = vsub.f32 %v184, %v184
    %v198 = vsub.f32 %v186, %v186
    %v199 = vsub.f32 %v188, %v188
    %v200 = vmul.f32 %v190, %v197
    %v201 = vmul.f32 %v193, %v198
    %v202 = vadd.f32 %v200, %v201
    %v203 = vmul.f32 %v196, %v199
    %v204 = vadd.f32 %v202, %v203
    %v205 = vmul.f32 %v190, %v190
    %v206 = vmul.f32 %v193, %v193
    %v207 = vadd.f32 %v205, %v206
    %v208 = vmul.f32 %v196, %v196
    %v209 = vadd.f32 %v207, %v208
    %v210 = vmul.f32 %v197, %v197
    %v211 = vmul.f32 %v198, %v198
    %v212 = vadd.f32 %v210, %v211
    %v213 = vmul.f32 %v199, %v199
    %v214 = vadd.f32 %v212, %v213
    %v215 = vmul.f32 %v209, %v214
    %v216 = vmax.f32 %v215, 1e-16
    %v217 = vrsqrt.pop %v216
    %v218 = vmul.f32 %v204, %v217
    %v219 = vld [vmem:[#allocation2] sm:$0xff]
    %v220 = vadd.f32 %v219, %v218
    %221 = vst [vmem:[#allocation2] sm:$0xff] %v220
    %s222 = scalar_lea.vmem [#allocation3], 48
    %v223 = vld [vmem:[%s222] sm:$0xff]
    %s224 = scalar_lea.vmem [#allocation3], 56
    %v225 = vld [vmem:[%s224] sm:$0xff]
    %s226 = scalar_lea.vmem [#allocation3], 64
    %v227 = vld [vmem:[%s226] sm:$0xff]
    %s228 = scalar_lea.vmem [#allocation3], 72
    %v229 = vld [vmem:[%s228] sm:$0xff]
    %s230 = scalar_lea.vmem [#allocation3], 80
    %v231 = vld [vmem:[%s230] sm:$0xff]
    %s232 = scalar_lea.vmem [#allocation3], 88
    %v233 = vld [vmem:[%s232] sm:$0xff]
    %v234 = vmul.f32 %v223, %v223
    %v235 = vmul.f32 %v225, %v225
    %v236 = vadd.f32 %v234, %v235
    %v237 = vmul.f32 %v227, %v227
    %v238 = vadd.f32 %v236, %v237
    %v239 = vmax.f32 %v238, 1e-24
    %v240 = vrsqrt.pop %v239
    %v241 = vmul.f32 %v223, %v240
    %v242 = vmul.f32 %v225, %v240
    %v243 = vmul.f32 %v227, %v240
    %v244 = vmul.f32 %v241, %v229
    %v245 = vmul.f32 %v242, %v231
    %v246 = vadd.f32 %v244, %v245
    %v247 = vmul.f32 %v243, %v233
    %v248 = vadd.f32 %v246, %v247
    %v249 = vmul.f32 %v248, %v241
    %v250 = vsub.f32 %v229, %v249
    %v251 = vmul.f32 %v248, %v242
    %v252 = vsub.f32 %v231, %v251
    %v253 = vmul.f32 %v248, %v243
    %v254 = vsub.f32 %v233, %v253
    %v255 = vmul.f32 %v250, %v250
    %v256 = vmul.f32 %v252, %v252
    %v257 = vadd.f32 %v255, %v256
    %v258 = vmul.f32 %v254, %v254
    %v259 = vadd.f32 %v257, %v258
    %v260 = vmax.f32 %v259, 1e-24
    %v261 = vrsqrt.pop %v260
    %v262 = vmul.f32 %v250, %v261
    %v263 = vmul.f32 %v252, %v261
    %v264 = vmul.f32 %v254, %v261
    %v265 = vmul.f32 %v242, %v264
    %v266 = vmul.f32 %v243, %v263
    %v267 = vsub.f32 %v265, %v266
    %v268 = vmul.f32 %v243, %v262
    %v269 = vmul.f32 %v241, %v264
    %v270 = vsub.f32 %v268, %v269
    %v271 = vmul.f32 %v241, %v263
    %v272 = vmul.f32 %v242, %v262
    %v273 = vsub.f32 %v271, %v272
    %v274 = vmul.f32 %v142, %v241
    %v275 = vmul.f32 %v147, %v242
    %v276 = vadd.f32 %v274, %v275
    %v277 = vmul.f32 %v152, %v243
    %v278 = vadd.f32 %v276, %v277
    %v279 = vmul.f32 %v142, %v262
    %v280 = vmul.f32 %v147, %v263
    %v281 = vadd.f32 %v279, %v280
    %v282 = vmul.f32 %v152, %v264
    %v283 = vadd.f32 %v281, %v282
    %v284 = vmul.f32 %v142, %v267
    %v285 = vmul.f32 %v147, %v270
    %v286 = vadd.f32 %v284, %v285
    %v287 = vmul.f32 %v152, %v273
    %v288 = vadd.f32 %v286, %v287
    %v289 = vmul.f32 %v157, %v241
    %v290 = vmul.f32 %v162, %v242
    %v291 = vadd.f32 %v289, %v290
    %v292 = vmul.f32 %v167, %v243
    %v293 = vadd.f32 %v291, %v292
    %v294 = vmul.f32 %v157, %v262
    %v295 = vmul.f32 %v162, %v263
    %v296 = vadd.f32 %v294, %v295
    %v297 = vmul.f32 %v167, %v264
    %v298 = vadd.f32 %v296, %v297
    %v299 = vmul.f32 %v157, %v267
    %v300 = vmul.f32 %v162, %v270
    %v301 = vadd.f32 %v299, %v300
    %v302 = vmul.f32 %v167, %v273
    %v303 = vadd.f32 %v301, %v302
    %v304 = vmul.f32 %v172, %v241
    %v305 = vmul.f32 %v177, %v242
    %v306 = vadd.f32 %v304, %v305
    %v307 = vmul.f32 %v182, %v243
    %v308 = vadd.f32 %v306, %v307
    %v309 = vmul.f32 %v172, %v262
    %v310 = vmul.f32 %v177, %v263
    %v311 = vadd.f32 %v309, %v310
    %v312 = vmul.f32 %v182, %v264
    %v313 = vadd.f32 %v311, %v312
    %v314 = vmul.f32 %v172, %v267
    %v315 = vmul.f32 %v177, %v270
    %v316 = vadd.f32 %v314, %v315
    %v317 = vmul.f32 %v182, %v273
    %v318 = vadd.f32 %v316, %v317
    %s319 = scalar_lea.vmem [#allocation6], 384
    %v320 = vld [vmem:[%s319] sm:$0xff]
    %s321 = scalar_lea.vmem [#allocation6], 392
    %v322 = vld [vmem:[%s321] sm:$0xff]
    %s323 = scalar_lea.vmem [#allocation6], 400
    %v324 = vld [vmem:[%s323] sm:$0xff]
    %v325 = vmul.f32 %v278, %v320
    %v326 = vmul.f32 %v283, %v322
    %v327 = vadd.f32 %v325, %v326
    %v328 = vmul.f32 %v288, %v324
    %v329 = vadd.f32 %v327, %v328
    %v330 = vmul.f32 %v293, %v320
    %v331 = vmul.f32 %v298, %v322
    %v332 = vadd.f32 %v330, %v331
    %v333 = vmul.f32 %v303, %v324
    %v334 = vadd.f32 %v332, %v333
    %v335 = vmul.f32 %v308, %v320
    %v336 = vmul.f32 %v313, %v322
    %v337 = vadd.f32 %v335, %v336
    %v338 = vmul.f32 %v318, %v324
    %v339 = vadd.f32 %v337, %v338
    %v340 = vadd.f32 %v184, %v329
    %v341 = vadd.f32 %v186, %v334
    %v342 = vadd.f32 %v188, %v339
    %s343 = scalar_lea.vmem [#allocation6], 24
    %v344 = vld [vmem:[%s343] sm:$0xff]
    %v345 = vld [vmem:[#allocation6] sm:$0xff]
    %v346 = vsub.f32 %v344, %v345
    %s347 = scalar_lea.vmem [#allocation6], 32
    %v348 = vld [vmem:[%s347] sm:$0xff]
    %v349 = vld [vmem:[%s191] sm:$0xff]
    %v350 = vsub.f32 %v348, %v349
    %s351 = scalar_lea.vmem [#allocation6], 40
    %v352 = vld [vmem:[%s351] sm:$0xff]
    %v353 = vld [vmem:[%s194] sm:$0xff]
    %v354 = vsub.f32 %v352, %v353
    %v355 = vsub.f32 %v340, %v184
    %v356 = vsub.f32 %v341, %v186
    %v357 = vsub.f32 %v342, %v188
    %v358 = vmul.f32 %v346, %v355
    %v359 = vmul.f32 %v350, %v356
    %v360 = vadd.f32 %v358, %v359
    %v361 = vmul.f32 %v354, %v357
    %v362 = vadd.f32 %v360, %v361
    %v363 = vmul.f32 %v346, %v346
    %v364 = vmul.f32 %v350, %v350
    %v365 = vadd.f32 %v363, %v364
    %v366 = vmul.f32 %v354, %v354
    %v367 = vadd.f32 %v365, %v366
    %v368 = vmul.f32 %v355, %v355
    %v369 = vmul.f32 %v356, %v356
    %v370 = vadd.f32 %v368, %v369
    %v371 = vmul.f32 %v357, %v357
    %v372 = vadd.f32 %v370, %v371
    %v373 = vmul.f32 %v367, %v372
    %v374 = vmax.f32 %v373, 1e-16
    %v375 = vrsqrt.pop %v374
    %v376 = vmul.f32 %v362, %v375
    %s377 = scalar_lea.vmem [#allocation2], 8
    %v378 = vld [vmem:[%s377] sm:$0xff]
    %v379 = vadd.f32 %v378, %v376
    %380 = vst [vmem:[%s377] sm:$0xff] %v379
    %s381 = scalar_lea.vmem [#allocation3], 96
    %v382 = vld [vmem:[%s381] sm:$0xff]
    %s383 = scalar_lea.vmem [#allocation3], 104
    %v384 = vld [vmem:[%s383] sm:$0xff]
    %s385 = scalar_lea.vmem [#allocation3], 112
    %v386 = vld [vmem:[%s385] sm:$0xff]
    %s387 = scalar_lea.vmem [#allocation3], 120
    %v388 = vld [vmem:[%s387] sm:$0xff]
    %s389 = scalar_lea.vmem [#allocation3], 128
    %v390 = vld [vmem:[%s389] sm:$0xff]
    %s391 = scalar_lea.vmem [#allocation3], 136
    %v392 = vld [vmem:[%s391] sm:$0xff]
    %v393 = vmul.f32 %v382, %v382
    %v394 = vmul.f32 %v384, %v384
    %v395 = vadd.f32 %v393, %v394
    %v396 = vmul.f32 %v386, %v386
    %v397 = vadd.f32 %v395, %v396
    %v398 = vmax.f32 %v397, 1e-24
    %v399 = vrsqrt.pop %v398
    %v400 = vmul.f32 %v382, %v399
    %v401 = vmul.f32 %v384, %v399
    %v402 = vmul.f32 %v386, %v399
    %v403 = vmul.f32 %v400, %v388
    %v404 = vmul.f32 %v401, %v390
    %v405 = vadd.f32 %v403, %v404
    %v406 = vmul.f32 %v402, %v392
    %v407 = vadd.f32 %v405, %v406
    %v408 = vmul.f32 %v407, %v400
    %v409 = vsub.f32 %v388, %v408
    %v410 = vmul.f32 %v407, %v401
    %v411 = vsub.f32 %v390, %v410
    %v412 = vmul.f32 %v407, %v402
    %v413 = vsub.f32 %v392, %v412
    %v414 = vmul.f32 %v409, %v409
    %v415 = vmul.f32 %v411, %v411
    %v416 = vadd.f32 %v414, %v415
    %v417 = vmul.f32 %v413, %v413
    %v418 = vadd.f32 %v416, %v417
    %v419 = vmax.f32 %v418, 1e-24
    %v420 = vrsqrt.pop %v419
    %v421 = vmul.f32 %v409, %v420
    %v422 = vmul.f32 %v411, %v420
    %v423 = vmul.f32 %v413, %v420
    %v424 = vmul.f32 %v401, %v423
    %v425 = vmul.f32 %v402, %v422
    %v426 = vsub.f32 %v424, %v425
    %v427 = vmul.f32 %v402, %v421
    %v428 = vmul.f32 %v400, %v423
    %v429 = vsub.f32 %v427, %v428
    %v430 = vmul.f32 %v400, %v422
    %v431 = vmul.f32 %v401, %v421
    %v432 = vsub.f32 %v430, %v431
    %v433 = vmul.f32 %v278, %v400
    %v434 = vmul.f32 %v283, %v401
    %v435 = vadd.f32 %v433, %v434
    %v436 = vmul.f32 %v288, %v402
    %v437 = vadd.f32 %v435, %v436
    %v438 = vmul.f32 %v278, %v421
    %v439 = vmul.f32 %v283, %v422
    %v440 = vadd.f32 %v438, %v439
    %v441 = vmul.f32 %v288, %v423
    %v442 = vadd.f32 %v440, %v441
    %v443 = vmul.f32 %v278, %v426
    %v444 = vmul.f32 %v283, %v429
    %v445 = vadd.f32 %v443, %v444
    %v446 = vmul.f32 %v288, %v432
    %v447 = vadd.f32 %v445, %v446
    %v448 = vmul.f32 %v293, %v400
    %v449 = vmul.f32 %v298, %v401
    %v450 = vadd.f32 %v448, %v449
    %v451 = vmul.f32 %v303, %v402
    %v452 = vadd.f32 %v450, %v451
    %v453 = vmul.f32 %v293, %v421
    %v454 = vmul.f32 %v298, %v422
    %v455 = vadd.f32 %v453, %v454
    %v456 = vmul.f32 %v303, %v423
    %v457 = vadd.f32 %v455, %v456
    %v458 = vmul.f32 %v293, %v426
    %v459 = vmul.f32 %v298, %v429
    %v460 = vadd.f32 %v458, %v459
    %v461 = vmul.f32 %v303, %v432
    %v462 = vadd.f32 %v460, %v461
    %v463 = vmul.f32 %v308, %v400
    %v464 = vmul.f32 %v313, %v401
    %v465 = vadd.f32 %v463, %v464
    %v466 = vmul.f32 %v318, %v402
    %v467 = vadd.f32 %v465, %v466
    %v468 = vmul.f32 %v308, %v421
    %v469 = vmul.f32 %v313, %v422
    %v470 = vadd.f32 %v468, %v469
    %v471 = vmul.f32 %v318, %v423
    %v472 = vadd.f32 %v470, %v471
    %v473 = vmul.f32 %v308, %v426
    %v474 = vmul.f32 %v313, %v429
    %v475 = vadd.f32 %v473, %v474
    %v476 = vmul.f32 %v318, %v432
    %v477 = vadd.f32 %v475, %v476
    %s478 = scalar_lea.vmem [#allocation6], 408
    %v479 = vld [vmem:[%s478] sm:$0xff]
    %s480 = scalar_lea.vmem [#allocation6], 416
    %v481 = vld [vmem:[%s480] sm:$0xff]
    %s482 = scalar_lea.vmem [#allocation6], 424
    %v483 = vld [vmem:[%s482] sm:$0xff]
    %v484 = vmul.f32 %v437, %v479
    %v485 = vmul.f32 %v442, %v481
    %v486 = vadd.f32 %v484, %v485
    %v487 = vmul.f32 %v447, %v483
    %v488 = vadd.f32 %v486, %v487
    %v489 = vmul.f32 %v452, %v479
    %v490 = vmul.f32 %v457, %v481
    %v491 = vadd.f32 %v489, %v490
    %v492 = vmul.f32 %v462, %v483
    %v493 = vadd.f32 %v491, %v492
    %v494 = vmul.f32 %v467, %v479
    %v495 = vmul.f32 %v472, %v481
    %v496 = vadd.f32 %v494, %v495
    %v497 = vmul.f32 %v477, %v483
    %v498 = vadd.f32 %v496, %v497
    %v499 = vadd.f32 %v340, %v488
    %v500 = vadd.f32 %v341, %v493
    %v501 = vadd.f32 %v342, %v498
    %s502 = scalar_lea.vmem [#allocation6], 48
    %v503 = vld [vmem:[%s502] sm:$0xff]
    %v504 = vld [vmem:[%s343] sm:$0xff]
    %v505 = vsub.f32 %v503, %v504
    %s506 = scalar_lea.vmem [#allocation6], 56
    %v507 = vld [vmem:[%s506] sm:$0xff]
    %v508 = vld [vmem:[%s347] sm:$0xff]
    %v509 = vsub.f32 %v507, %v508
    %s510 = scalar_lea.vmem [#allocation6], 64
    %v511 = vld [vmem:[%s510] sm:$0xff]
    %v512 = vld [vmem:[%s351] sm:$0xff]
    %v513 = vsub.f32 %v511, %v512
    %v514 = vsub.f32 %v499, %v340
    %v515 = vsub.f32 %v500, %v341
    %v516 = vsub.f32 %v501, %v342
    %v517 = vmul.f32 %v505, %v514
    %v518 = vmul.f32 %v509, %v515
    %v519 = vadd.f32 %v517, %v518
    %v520 = vmul.f32 %v513, %v516
    %v521 = vadd.f32 %v519, %v520
    %v522 = vmul.f32 %v505, %v505
    %v523 = vmul.f32 %v509, %v509
    %v524 = vadd.f32 %v522, %v523
    %v525 = vmul.f32 %v513, %v513
    %v526 = vadd.f32 %v524, %v525
    %v527 = vmul.f32 %v514, %v514
    %v528 = vmul.f32 %v515, %v515
    %v529 = vadd.f32 %v527, %v528
    %v530 = vmul.f32 %v516, %v516
    %v531 = vadd.f32 %v529, %v530
    %v532 = vmul.f32 %v526, %v531
    %v533 = vmax.f32 %v532, 1e-16
    %v534 = vrsqrt.pop %v533
    %v535 = vmul.f32 %v521, %v534
    %s536 = scalar_lea.vmem [#allocation2], 16
    %v537 = vld [vmem:[%s536] sm:$0xff]
    %v538 = vadd.f32 %v537, %v535
    %539 = vst [vmem:[%s536] sm:$0xff] %v538
    %s540 = scalar_lea.vmem [#allocation3], 144
    %v541 = vld [vmem:[%s540] sm:$0xff]
    %s542 = scalar_lea.vmem [#allocation3], 152
    %v543 = vld [vmem:[%s542] sm:$0xff]
    %s544 = scalar_lea.vmem [#allocation3], 160
    %v545 = vld [vmem:[%s544] sm:$0xff]
    %s546 = scalar_lea.vmem [#allocation3], 168
    %v547 = vld [vmem:[%s546] sm:$0xff]
    %s548 = scalar_lea.vmem [#allocation3], 176
    %v549 = vld [vmem:[%s548] sm:$0xff]
    %s550 = scalar_lea.vmem [#allocation3], 184
    %v551 = vld [vmem:[%s550] sm:$0xff]
    %v552 = vmul.f32 %v541, %v541
    %v553 = vmul.f32 %v543, %v543
    %v554 = vadd.f32 %v552, %v553
    %v555 = vmul.f32 %v545, %v545
    %v556 = vadd.f32 %v554, %v555
    %v557 = vmax.f32 %v556, 1e-24
    %v558 = vrsqrt.pop %v557
    %v559 = vmul.f32 %v541, %v558
    %v560 = vmul.f32 %v543, %v558
    %v561 = vmul.f32 %v545, %v558
    %v562 = vmul.f32 %v559, %v547
    %v563 = vmul.f32 %v560, %v549
    %v564 = vadd.f32 %v562, %v563
    %v565 = vmul.f32 %v561, %v551
    %v566 = vadd.f32 %v564, %v565
    %v567 = vmul.f32 %v566, %v559
    %v568 = vsub.f32 %v547, %v567
    %v569 = vmul.f32 %v566, %v560
    %v570 = vsub.f32 %v549, %v569
    %v571 = vmul.f32 %v566, %v561
    %v572 = vsub.f32 %v551, %v571
    %v573 = vmul.f32 %v568, %v568
    %v574 = vmul.f32 %v570, %v570
    %v575 = vadd.f32 %v573, %v574
    %v576 = vmul.f32 %v572, %v572
    %v577 = vadd.f32 %v575, %v576
    %v578 = vmax.f32 %v577, 1e-24
    %v579 = vrsqrt.pop %v578
    %v580 = vmul.f32 %v568, %v579
    %v581 = vmul.f32 %v570, %v579
    %v582 = vmul.f32 %v572, %v579
    %v583 = vmul.f32 %v560, %v582
    %v584 = vmul.f32 %v561, %v581
    %v585 = vsub.f32 %v583, %v584
    %v586 = vmul.f32 %v561, %v580
    %v587 = vmul.f32 %v559, %v582
    %v588 = vsub.f32 %v586, %v587
    %v589 = vmul.f32 %v559, %v581
    %v590 = vmul.f32 %v560, %v580
    %v591 = vsub.f32 %v589, %v590
    %v592 = vmul.f32 %v437, %v559
    %v593 = vmul.f32 %v442, %v560
    %v594 = vadd.f32 %v592, %v593
    %v595 = vmul.f32 %v447, %v561
    %v596 = vadd.f32 %v594, %v595
    %v597 = vmul.f32 %v437, %v580
    %v598 = vmul.f32 %v442, %v581
    %v599 = vadd.f32 %v597, %v598
    %v600 = vmul.f32 %v447, %v582
    %v601 = vadd.f32 %v599, %v600
    %v602 = vmul.f32 %v437, %v585
    %v603 = vmul.f32 %v442, %v588
    %v604 = vadd.f32 %v602, %v603
    %v605 = vmul.f32 %v447, %v591
    %v606 = vadd.f32 %v604, %v605
    %v607 = vmul.f32 %v452, %v559
    %v608 = vmul.f32 %v457, %v560
    %v609 = vadd.f32 %v607, %v608
    %v610 = vmul.f32 %v462, %v561
    %v611 = vadd.f32 %v609, %v610
    %v612 = vmul.f32 %v452, %v580
    %v613 = vmul.f32 %v457, %v581
    %v614 = vadd.f32 %v612, %v613
    %v615 = vmul.f32 %v462, %v582
    %v616 = vadd.f32 %v614, %v615
    %v617 = vmul.f32 %v452, %v585
    %v618 = vmul.f32 %v457, %v588
    %v619 = vadd.f32 %v617, %v618
    %v620 = vmul.f32 %v462, %v591
    %v621 = vadd.f32 %v619, %v620
    %v622 = vmul.f32 %v467, %v559
    %v623 = vmul.f32 %v472, %v560
    %v624 = vadd.f32 %v622, %v623
    %v625 = vmul.f32 %v477, %v561
    %v626 = vadd.f32 %v624, %v625
    %v627 = vmul.f32 %v467, %v580
    %v628 = vmul.f32 %v472, %v581
    %v629 = vadd.f32 %v627, %v628
    %v630 = vmul.f32 %v477, %v582
    %v631 = vadd.f32 %v629, %v630
    %v632 = vmul.f32 %v467, %v585
    %v633 = vmul.f32 %v472, %v588
    %v634 = vadd.f32 %v632, %v633
    %v635 = vmul.f32 %v477, %v591
    %v636 = vadd.f32 %v634, %v635
    %s637 = scalar_lea.vmem [#allocation6], 432
    %v638 = vld [vmem:[%s637] sm:$0xff]
    %s639 = scalar_lea.vmem [#allocation6], 440
    %v640 = vld [vmem:[%s639] sm:$0xff]
    %s641 = scalar_lea.vmem [#allocation6], 448
    %v642 = vld [vmem:[%s641] sm:$0xff]
    %v643 = vmul.f32 %v596, %v638
    %v644 = vmul.f32 %v601, %v640
    %v645 = vadd.f32 %v643, %v644
    %v646 = vmul.f32 %v606, %v642
    %v647 = vadd.f32 %v645, %v646
    %v648 = vmul.f32 %v611, %v638
    %v649 = vmul.f32 %v616, %v640
    %v650 = vadd.f32 %v648, %v649
    %v651 = vmul.f32 %v621, %v642
    %v652 = vadd.f32 %v650, %v651
    %v653 = vmul.f32 %v626, %v638
    %v654 = vmul.f32 %v631, %v640
    %v655 = vadd.f32 %v653, %v654
    %v656 = vmul.f32 %v636, %v642
    %v657 = vadd.f32 %v655, %v656
    %v658 = vadd.f32 %v499, %v647
    %v659 = vadd.f32 %v500, %v652
    %v660 = vadd.f32 %v501, %v657
    %s661 = scalar_lea.vmem [#allocation6], 72
    %v662 = vld [vmem:[%s661] sm:$0xff]
    %v663 = vld [vmem:[%s502] sm:$0xff]
    %v664 = vsub.f32 %v662, %v663
    %s665 = scalar_lea.vmem [#allocation6], 80
    %v666 = vld [vmem:[%s665] sm:$0xff]
    %v667 = vld [vmem:[%s506] sm:$0xff]
    %v668 = vsub.f32 %v666, %v667
    %s669 = scalar_lea.vmem [#allocation6], 88
    %v670 = vld [vmem:[%s669] sm:$0xff]
    %v671 = vld [vmem:[%s510] sm:$0xff]
    %v672 = vsub.f32 %v670, %v671
    %v673 = vsub.f32 %v658, %v499
    %v674 = vsub.f32 %v659, %v500
    %v675 = vsub.f32 %v660, %v501
    %v676 = vmul.f32 %v664, %v673
    %v677 = vmul.f32 %v668, %v674
    %v678 = vadd.f32 %v676, %v677
    %v679 = vmul.f32 %v672, %v675
    %v680 = vadd.f32 %v678, %v679
    %v681 = vmul.f32 %v664, %v664
    %v682 = vmul.f32 %v668, %v668
    %v683 = vadd.f32 %v681, %v682
    %v684 = vmul.f32 %v672, %v672
    %v685 = vadd.f32 %v683, %v684
    %v686 = vmul.f32 %v673, %v673
    %v687 = vmul.f32 %v674, %v674
    %v688 = vadd.f32 %v686, %v687
    %v689 = vmul.f32 %v675, %v675
    %v690 = vadd.f32 %v688, %v689
    %v691 = vmul.f32 %v685, %v690
    %v692 = vmax.f32 %v691, 1e-16
    %v693 = vrsqrt.pop %v692
    %v694 = vmul.f32 %v680, %v693
    %s695 = scalar_lea.vmem [#allocation2], 24
    %v696 = vld [vmem:[%s695] sm:$0xff]
    %v697 = vadd.f32 %v696, %v694
    %698 = vst [vmem:[%s695] sm:$0xff] %v697
    %s699 = scalar_lea.vmem [#allocation3], 192
    %v700 = vld [vmem:[%s699] sm:$0xff]
    %s701 = scalar_lea.vmem [#allocation3], 200
    %v702 = vld [vmem:[%s701] sm:$0xff]
    %s703 = scalar_lea.vmem [#allocation3], 208
    %v704 = vld [vmem:[%s703] sm:$0xff]
    %s705 = scalar_lea.vmem [#allocation3], 216
    %v706 = vld [vmem:[%s705] sm:$0xff]
    %s707 = scalar_lea.vmem [#allocation3], 224
    %v708 = vld [vmem:[%s707] sm:$0xff]
    %s709 = scalar_lea.vmem [#allocation3], 232
    %v710 = vld [vmem:[%s709] sm:$0xff]
    %v711 = vmul.f32 %v700, %v700
    %v712 = vmul.f32 %v702, %v702
    %v713 = vadd.f32 %v711, %v712
    %v714 = vmul.f32 %v704, %v704
    %v715 = vadd.f32 %v713, %v714
    %v716 = vmax.f32 %v715, 1e-24
    %v717 = vrsqrt.pop %v716
    %v718 = vmul.f32 %v700, %v717
    %v719 = vmul.f32 %v702, %v717
    %v720 = vmul.f32 %v704, %v717
    %v721 = vmul.f32 %v718, %v706
    %v722 = vmul.f32 %v719, %v708
    %v723 = vadd.f32 %v721, %v722
    %v724 = vmul.f32 %v720, %v710
    %v725 = vadd.f32 %v723, %v724
    %v726 = vmul.f32 %v725, %v718
    %v727 = vsub.f32 %v706, %v726
    %v728 = vmul.f32 %v725, %v719
    %v729 = vsub.f32 %v708, %v728
    %v730 = vmul.f32 %v725, %v720
    %v731 = vsub.f32 %v710, %v730
    %v732 = vmul.f32 %v727, %v727
    %v733 = vmul.f32 %v729, %v729
    %v734 = vadd.f32 %v732, %v733
    %v735 = vmul.f32 %v731, %v731
    %v736 = vadd.f32 %v734, %v735
    %v737 = vmax.f32 %v736, 1e-24
    %v738 = vrsqrt.pop %v737
    %v739 = vmul.f32 %v727, %v738
    %v740 = vmul.f32 %v729, %v738
    %v741 = vmul.f32 %v731, %v738
    %v742 = vmul.f32 %v719, %v741
    %v743 = vmul.f32 %v720, %v740
    %v744 = vsub.f32 %v742, %v743
    %v745 = vmul.f32 %v720, %v739
    %v746 = vmul.f32 %v718, %v741
    %v747 = vsub.f32 %v745, %v746
    %v748 = vmul.f32 %v718, %v740
    %v749 = vmul.f32 %v719, %v739
    %v750 = vsub.f32 %v748, %v749
    %v751 = vmul.f32 %v596, %v718
    %v752 = vmul.f32 %v601, %v719
    %v753 = vadd.f32 %v751, %v752
    %v754 = vmul.f32 %v606, %v720
    %v755 = vadd.f32 %v753, %v754
    %v756 = vmul.f32 %v596, %v739
    %v757 = vmul.f32 %v601, %v740
    %v758 = vadd.f32 %v756, %v757
    %v759 = vmul.f32 %v606, %v741
    %v760 = vadd.f32 %v758, %v759
    %v761 = vmul.f32 %v596, %v744
    %v762 = vmul.f32 %v601, %v747
    %v763 = vadd.f32 %v761, %v762
    %v764 = vmul.f32 %v606, %v750
    %v765 = vadd.f32 %v763, %v764
    %v766 = vmul.f32 %v611, %v718
    %v767 = vmul.f32 %v616, %v719
    %v768 = vadd.f32 %v766, %v767
    %v769 = vmul.f32 %v621, %v720
    %v770 = vadd.f32 %v768, %v769
    %v771 = vmul.f32 %v611, %v739
    %v772 = vmul.f32 %v616, %v740
    %v773 = vadd.f32 %v771, %v772
    %v774 = vmul.f32 %v621, %v741
    %v775 = vadd.f32 %v773, %v774
    %v776 = vmul.f32 %v611, %v744
    %v777 = vmul.f32 %v616, %v747
    %v778 = vadd.f32 %v776, %v777
    %v779 = vmul.f32 %v621, %v750
    %v780 = vadd.f32 %v778, %v779
    %v781 = vmul.f32 %v626, %v718
    %v782 = vmul.f32 %v631, %v719
    %v783 = vadd.f32 %v781, %v782
    %v784 = vmul.f32 %v636, %v720
    %v785 = vadd.f32 %v783, %v784
    %v786 = vmul.f32 %v626, %v739
    %v787 = vmul.f32 %v631, %v740
    %v788 = vadd.f32 %v786, %v787
    %v789 = vmul.f32 %v636, %v741
    %v790 = vadd.f32 %v788, %v789
    %v791 = vmul.f32 %v626, %v744
    %v792 = vmul.f32 %v631, %v747
    %v793 = vadd.f32 %v791, %v792
    %v794 = vmul.f32 %v636, %v750
    %v795 = vadd.f32 %v793, %v794
    %s796 = scalar_lea.vmem [#allocation6], 456
    %v797 = vld [vmem:[%s796] sm:$0xff]
    %s798 = scalar_lea.vmem [#allocation6], 464
    %v799 = vld [vmem:[%s798] sm:$0xff]
    %s800 = scalar_lea.vmem [#allocation6], 472
    %v801 = vld [vmem:[%s800] sm:$0xff]
    %v802 = vmul.f32 %v755, %v797
    %v803 = vmul.f32 %v760, %v799
    %v804 = vadd.f32 %v802, %v803
    %v805 = vmul.f32 %v765, %v801
    %v806 = vadd.f32 %v804, %v805
    %v807 = vmul.f32 %v770, %v797
    %v808 = vmul.f32 %v775, %v799
    %v809 = vadd.f32 %v807, %v808
    %v810 = vmul.f32 %v780, %v801
    %v811 = vadd.f32 %v809, %v810
    %v812 = vmul.f32 %v785, %v797
    %v813 = vmul.f32 %v790, %v799
    %v814 = vadd.f32 %v812, %v813
    %v815 = vmul.f32 %v795, %v801
    %v816 = vadd.f32 %v814, %v815
    %v817 = vadd.f32 %v658, %v806
    %v818 = vadd.f32 %v659, %v811
    %v819 = vadd.f32 %v660, %v816
    %s820 = scalar_lea.vmem [#allocation6], 96
    %v821 = vld [vmem:[%s820] sm:$0xff]
    %v822 = vld [vmem:[%s661] sm:$0xff]
    %v823 = vsub.f32 %v821, %v822
    %s824 = scalar_lea.vmem [#allocation6], 104
    %v825 = vld [vmem:[%s824] sm:$0xff]
    %v826 = vld [vmem:[%s665] sm:$0xff]
    %v827 = vsub.f32 %v825, %v826
    %s828 = scalar_lea.vmem [#allocation6], 112
    %v829 = vld [vmem:[%s828] sm:$0xff]
    %v830 = vld [vmem:[%s669] sm:$0xff]
    %v831 = vsub.f32 %v829, %v830
    %v832 = vsub.f32 %v817, %v658
    %v833 = vsub.f32 %v818, %v659
    %v834 = vsub.f32 %v819, %v660
    %v835 = vmul.f32 %v823, %v832
    %v836 = vmul.f32 %v827, %v833
    %v837 = vadd.f32 %v835, %v836
    %v838 = vmul.f32 %v831, %v834
    %v839 = vadd.f32 %v837, %v838
    %v840 = vmul.f32 %v823, %v823
    %v841 = vmul.f32 %v827, %v827
    %v842 = vadd.f32 %v840, %v841
    %v843 = vmul.f32 %v831, %v831
    %v844 = vadd.f32 %v842, %v843
    %v845 = vmul.f32 %v832, %v832
    %v846 = vmul.f32 %v833, %v833
    %v847 = vadd.f32 %v845, %v846
    %v848 = vmul.f32 %v834, %v834
    %v849 = vadd.f32 %v847, %v848
    %v850 = vmul.f32 %v844, %v849
    %v851 = vmax.f32 %v850, 1e-16
    %v852 = vrsqrt.pop %v851
    %v853 = vmul.f32 %v839, %v852
    %s854 = scalar_lea.vmem [#allocation2], 32
    %v855 = vld [vmem:[%s854] sm:$0xff]
    %v856 = vadd.f32 %v855, %v853
    %857 = vst [vmem:[%s854] sm:$0xff] %v856
    %s858 = scalar_lea.vmem [#allocation3], 240
    %v859 = vld [vmem:[%s858] sm:$0xff]
    %s860 = scalar_lea.vmem [#allocation3], 248
    %v861 = vld [vmem:[%s860] sm:$0xff]
    %s862 = scalar_lea.vmem [#allocation3], 256
    %v863 = vld [vmem:[%s862] sm:$0xff]
    %s864 = scalar_lea.vmem [#allocation3], 264
    %v865 = vld [vmem:[%s864] sm:$0xff]
    %s866 = scalar_lea.vmem [#allocation3], 272
    %v867 = vld [vmem:[%s866] sm:$0xff]
    %s868 = scalar_lea.vmem [#allocation3], 280
    %v869 = vld [vmem:[%s868] sm:$0xff]
    %v870 = vmul.f32 %v859, %v859
    %v871 = vmul.f32 %v861, %v861
    %v872 = vadd.f32 %v870, %v871
    %v873 = vmul.f32 %v863, %v863
    %v874 = vadd.f32 %v872, %v873
    %v875 = vmax.f32 %v874, 1e-24
    %v876 = vrsqrt.pop %v875
    %v877 = vmul.f32 %v859, %v876
    %v878 = vmul.f32 %v861, %v876
    %v879 = vmul.f32 %v863, %v876
    %v880 = vmul.f32 %v877, %v865
    %v881 = vmul.f32 %v878, %v867
    %v882 = vadd.f32 %v880, %v881
    %v883 = vmul.f32 %v879, %v869
    %v884 = vadd.f32 %v882, %v883
    %v885 = vmul.f32 %v884, %v877
    %v886 = vsub.f32 %v865, %v885
    %v887 = vmul.f32 %v884, %v878
    %v888 = vsub.f32 %v867, %v887
    %v889 = vmul.f32 %v884, %v879
    %v890 = vsub.f32 %v869, %v889
    %v891 = vmul.f32 %v886, %v886
    %v892 = vmul.f32 %v888, %v888
    %v893 = vadd.f32 %v891, %v892
    %v894 = vmul.f32 %v890, %v890
    %v895 = vadd.f32 %v893, %v894
    %v896 = vmax.f32 %v895, 1e-24
    %v897 = vrsqrt.pop %v896
    %v898 = vmul.f32 %v886, %v897
    %v899 = vmul.f32 %v888, %v897
    %v900 = vmul.f32 %v890, %v897
    %v901 = vmul.f32 %v878, %v900
    %v902 = vmul.f32 %v879, %v899
    %v903 = vsub.f32 %v901, %v902
    %v904 = vmul.f32 %v879, %v898
    %v905 = vmul.f32 %v877, %v900
    %v906 = vsub.f32 %v904, %v905
    %v907 = vmul.f32 %v877, %v899
    %v908 = vmul.f32 %v878, %v898
    %v909 = vsub.f32 %v907, %v908
    %v910 = vmul.f32 %v278, %v877
    %v911 = vmul.f32 %v283, %v878
    %v912 = vadd.f32 %v910, %v911
    %v913 = vmul.f32 %v288, %v879
    %v914 = vadd.f32 %v912, %v913
    %v915 = vmul.f32 %v278, %v898
    %v916 = vmul.f32 %v283, %v899
    %v917 = vadd.f32 %v915, %v916
    %v918 = vmul.f32 %v288, %v900
    %v919 = vadd.f32 %v917, %v918
    %v920 = vmul.f32 %v278, %v903
    %v921 = vmul.f32 %v283, %v906
    %v922 = vadd.f32 %v920, %v921
    %v923 = vmul.f32 %v288, %v909
    %v924 = vadd.f32 %v922, %v923
    %v925 = vmul.f32 %v293, %v877
    %v926 = vmul.f32 %v298, %v878
    %v927 = vadd.f32 %v925, %v926
    %v928 = vmul.f32 %v303, %v879
    %v929 = vadd.f32 %v927, %v928
    %v930 = vmul.f32 %v293, %v898
    %v931 = vmul.f32 %v298, %v899
    %v932 = vadd.f32 %v930, %v931
    %v933 = vmul.f32 %v303, %v900
    %v934 = vadd.f32 %v932, %v933
    %v935 = vmul.f32 %v293, %v903
    %v936 = vmul.f32 %v298, %v906
    %v937 = vadd.f32 %v935, %v936
    %v938 = vmul.f32 %v303, %v909
    %v939 = vadd.f32 %v937, %v938
    %v940 = vmul.f32 %v308, %v877
    %v941 = vmul.f32 %v313, %v878
    %v942 = vadd.f32 %v940, %v941
    %v943 = vmul.f32 %v318, %v879
    %v944 = vadd.f32 %v942, %v943
    %v945 = vmul.f32 %v308, %v898
    %v946 = vmul.f32 %v313, %v899
    %v947 = vadd.f32 %v945, %v946
    %v948 = vmul.f32 %v318, %v900
    %v949 = vadd.f32 %v947, %v948
    %v950 = vmul.f32 %v308, %v903
    %v951 = vmul.f32 %v313, %v906
    %v952 = vadd.f32 %v950, %v951
    %v953 = vmul.f32 %v318, %v909
    %v954 = vadd.f32 %v952, %v953
    %s955 = scalar_lea.vmem [#allocation6], 480
    %v956 = vld [vmem:[%s955] sm:$0xff]
    %s957 = scalar_lea.vmem [#allocation6], 488
    %v958 = vld [vmem:[%s957] sm:$0xff]
    %s959 = scalar_lea.vmem [#allocation6], 496
    %v960 = vld [vmem:[%s959] sm:$0xff]
    %v961 = vmul.f32 %v914, %v956
    %v962 = vmul.f32 %v919, %v958
    %v963 = vadd.f32 %v961, %v962
    %v964 = vmul.f32 %v924, %v960
    %v965 = vadd.f32 %v963, %v964
    %v966 = vmul.f32 %v929, %v956
    %v967 = vmul.f32 %v934, %v958
    %v968 = vadd.f32 %v966, %v967
    %v969 = vmul.f32 %v939, %v960
    %v970 = vadd.f32 %v968, %v969
    %v971 = vmul.f32 %v944, %v956
    %v972 = vmul.f32 %v949, %v958
    %v973 = vadd.f32 %v971, %v972
    %v974 = vmul.f32 %v954, %v960
    %v975 = vadd.f32 %v973, %v974
    %v976 = vadd.f32 %v340, %v965
    %v977 = vadd.f32 %v341, %v970
    %v978 = vadd.f32 %v342, %v975
    %s979 = scalar_lea.vmem [#allocation6], 120
    %v980 = vld [vmem:[%s979] sm:$0xff]
    %v981 = vld [vmem:[%s343] sm:$0xff]
    %v982 = vsub.f32 %v980, %v981
    %s983 = scalar_lea.vmem [#allocation6], 128
    %v984 = vld [vmem:[%s983] sm:$0xff]
    %v985 = vld [vmem:[%s347] sm:$0xff]
    %v986 = vsub.f32 %v984, %v985
    %s987 = scalar_lea.vmem [#allocation6], 136
    %v988 = vld [vmem:[%s987] sm:$0xff]
    %v989 = vld [vmem:[%s351] sm:$0xff]
    %v990 = vsub.f32 %v988, %v989
    %v991 = vsub.f32 %v976, %v340
    %v992 = vsub.f32 %v977, %v341
    %v993 = vsub.f32 %v978, %v342
    %v994 = vmul.f32 %v982, %v991
    %v995 = vmul.f32 %v986, %v992
    %v996 = vadd.f32 %v994, %v995
    %v997 = vmul.f32 %v990, %v993
    %v998 = vadd.f32 %v996, %v997
    %v999 = vmul.f32 %v982, %v982
    %v1000 = vmul.f32 %v986, %v986
    %v1001 = vadd.f32 %v999, %v1000
    %v1002 = vmul.f32 %v990, %v990
    %v1003 = vadd.f32 %v1001, %v1002
    %v1004 = vmul.f32 %v991, %v991
    %v1005 = vmul.f32 %v992, %v992
    %v1006 = vadd.f32 %v1004, %v1005
    %v1007 = vmul.f32 %v993, %v993
    %v1008 = vadd.f32 %v1006, %v1007
    %v1009 = vmul.f32 %v1003, %v1008
    %v1010 = vmax.f32 %v1009, 1e-16
    %v1011 = vrsqrt.pop %v1010
    %v1012 = vmul.f32 %v998, %v1011
    %s1013 = scalar_lea.vmem [#allocation2], 40
    %v1014 = vld [vmem:[%s1013] sm:$0xff]
    %v1015 = vadd.f32 %v1014, %v1012
    %1016 = vst [vmem:[%s1013] sm:$0xff] %v1015
    %s1017 = scalar_lea.vmem [#allocation3], 288
    %v1018 = vld [vmem:[%s1017] sm:$0xff]
    %s1019 = scalar_lea.vmem [#allocation3], 296
    %v1020 = vld [vmem:[%s1019] sm:$0xff]
    %s1021 = scalar_lea.vmem [#allocation3], 304
    %v1022 = vld [vmem:[%s1021] sm:$0xff]
    %s1023 = scalar_lea.vmem [#allocation3], 312
    %v1024 = vld [vmem:[%s1023] sm:$0xff]
    %s1025 = scalar_lea.vmem [#allocation3], 320
    %v1026 = vld [vmem:[%s1025] sm:$0xff]
    %s1027 = scalar_lea.vmem [#allocation3], 328
    %v1028 = vld [vmem:[%s1027] sm:$0xff]
    %v1029 = vmul.f32 %v1018, %v1018
    %v1030 = vmul.f32 %v1020, %v1020
    %v1031 = vadd.f32 %v1029, %v1030
    %v1032 = vmul.f32 %v1022, %v1022
    %v1033 = vadd.f32 %v1031, %v1032
    %v1034 = vmax.f32 %v1033, 1e-24
    %v1035 = vrsqrt.pop %v1034
    %v1036 = vmul.f32 %v1018, %v1035
    %v1037 = vmul.f32 %v1020, %v1035
    %v1038 = vmul.f32 %v1022, %v1035
    %v1039 = vmul.f32 %v1036, %v1024
    %v1040 = vmul.f32 %v1037, %v1026
    %v1041 = vadd.f32 %v1039, %v1040
    %v1042 = vmul.f32 %v1038, %v1028
    %v1043 = vadd.f32 %v1041, %v1042
    %v1044 = vmul.f32 %v1043, %v1036
    %v1045 = vsub.f32 %v1024, %v1044
    %v1046 = vmul.f32 %v1043, %v1037
    %v1047 = vsub.f32 %v1026, %v1046
    %v1048 = vmul.f32 %v1043, %v1038
    %v1049 = vsub.f32 %v1028, %v1048
    %v1050 = vmul.f32 %v1045, %v1045
    %v1051 = vmul.f32 %v1047, %v1047
    %v1052 = vadd.f32 %v1050, %v1051
    %v1053 = vmul.f32 %v1049, %v1049
    %v1054 = vadd.f32 %v1052, %v1053
    %v1055 = vmax.f32 %v1054, 1e-24
    %v1056 = vrsqrt.pop %v1055
    %v1057 = vmul.f32 %v1045, %v1056
    %v1058 = vmul.f32 %v1047, %v1056
    %v1059 = vmul.f32 %v1049, %v1056
    %v1060 = vmul.f32 %v1037, %v1059
    %v1061 = vmul.f32 %v1038, %v1058
    %v1062 = vsub.f32 %v1060, %v1061
    %v1063 = vmul.f32 %v1038, %v1057
    %v1064 = vmul.f32 %v1036, %v1059
    %v1065 = vsub.f32 %v1063, %v1064
    %v1066 = vmul.f32 %v1036, %v1058
    %v1067 = vmul.f32 %v1037, %v1057
    %v1068 = vsub.f32 %v1066, %v1067
    %v1069 = vmul.f32 %v914, %v1036
    %v1070 = vmul.f32 %v919, %v1037
    %v1071 = vadd.f32 %v1069, %v1070
    %v1072 = vmul.f32 %v924, %v1038
    %v1073 = vadd.f32 %v1071, %v1072
    %v1074 = vmul.f32 %v914, %v1057
    %v1075 = vmul.f32 %v919, %v1058
    %v1076 = vadd.f32 %v1074, %v1075
    %v1077 = vmul.f32 %v924, %v1059
    %v1078 = vadd.f32 %v1076, %v1077
    %v1079 = vmul.f32 %v914, %v1062
    %v1080 = vmul.f32 %v919, %v1065
    %v1081 = vadd.f32 %v1079, %v1080
    %v1082 = vmul.f32 %v924, %v1068
    %v1083 = vadd.f32 %v1081, %v1082
    %v1084 = vmul.f32 %v929, %v1036
    %v1085 = vmul.f32 %v934, %v1037
    %v1086 = vadd.f32 %v1084, %v1085
    %v1087 = vmul.f32 %v939, %v1038
    %v1088 = vadd.f32 %v1086, %v1087
    %v1089 = vmul.f32 %v929, %v1057
    %v1090 = vmul.f32 %v934, %v1058
    %v1091 = vadd.f32 %v1089, %v1090
    %v1092 = vmul.f32 %v939, %v1059
    %v1093 = vadd.f32 %v1091, %v1092
    %v1094 = vmul.f32 %v929, %v1062
    %v1095 = vmul.f32 %v934, %v1065
    %v1096 = vadd.f32 %v1094, %v1095
    %v1097 = vmul.f32 %v939, %v1068
    %v1098 = vadd.f32 %v1096, %v1097
    %v1099 = vmul.f32 %v944, %v1036
    %v1100 = vmul.f32 %v949, %v1037
    %v1101 = vadd.f32 %v1099, %v1100
    %v1102 = vmul.f32 %v954, %v1038
    %v1103 = vadd.f32 %v1101, %v1102
    %v1104 = vmul.f32 %v944, %v1057
    %v1105 = vmul.f32 %v949, %v1058
    %v1106 = vadd.f32 %v1104, %v1105
    %v1107 = vmul.f32 %v954, %v1059
    %v1108 = vadd.f32 %v1106, %v1107
    %v1109 = vmul.f32 %v944, %v1062
    %v1110 = vmul.f32 %v949, %v1065
    %v1111 = vadd.f32 %v1109, %v1110
    %v1112 = vmul.f32 %v954, %v1068
    %v1113 = vadd.f32 %v1111, %v1112
    %s1114 = scalar_lea.vmem [#allocation6], 504
    %v1115 = vld [vmem:[%s1114] sm:$0xff]
    %s1116 = scalar_lea.vmem [#allocation6], 512
    %v1117 = vld [vmem:[%s1116] sm:$0xff]
    %s1118 = scalar_lea.vmem [#allocation6], 520
    %v1119 = vld [vmem:[%s1118] sm:$0xff]
    %v1120 = vmul.f32 %v1073, %v1115
    %v1121 = vmul.f32 %v1078, %v1117
    %v1122 = vadd.f32 %v1120, %v1121
    %v1123 = vmul.f32 %v1083, %v1119
    %v1124 = vadd.f32 %v1122, %v1123
    %v1125 = vmul.f32 %v1088, %v1115
    %v1126 = vmul.f32 %v1093, %v1117
    %v1127 = vadd.f32 %v1125, %v1126
    %v1128 = vmul.f32 %v1098, %v1119
    %v1129 = vadd.f32 %v1127, %v1128
    %v1130 = vmul.f32 %v1103, %v1115
    %v1131 = vmul.f32 %v1108, %v1117
    %v1132 = vadd.f32 %v1130, %v1131
    %v1133 = vmul.f32 %v1113, %v1119
    %v1134 = vadd.f32 %v1132, %v1133
    %v1135 = vadd.f32 %v976, %v1124
    %v1136 = vadd.f32 %v977, %v1129
    %v1137 = vadd.f32 %v978, %v1134
    %s1138 = scalar_lea.vmem [#allocation6], 144
    %v1139 = vld [vmem:[%s1138] sm:$0xff]
    %v1140 = vld [vmem:[%s979] sm:$0xff]
    %v1141 = vsub.f32 %v1139, %v1140
    %s1142 = scalar_lea.vmem [#allocation6], 152
    %v1143 = vld [vmem:[%s1142] sm:$0xff]
    %v1144 = vld [vmem:[%s983] sm:$0xff]
    %v1145 = vsub.f32 %v1143, %v1144
    %s1146 = scalar_lea.vmem [#allocation6], 160
    %v1147 = vld [vmem:[%s1146] sm:$0xff]
    %v1148 = vld [vmem:[%s987] sm:$0xff]
    %v1149 = vsub.f32 %v1147, %v1148
    %v1150 = vsub.f32 %v1135, %v976
    %v1151 = vsub.f32 %v1136, %v977
    %v1152 = vsub.f32 %v1137, %v978
    %v1153 = vmul.f32 %v1141, %v1150
    %v1154 = vmul.f32 %v1145, %v1151
    %v1155 = vadd.f32 %v1153, %v1154
    %v1156 = vmul.f32 %v1149, %v1152
    %v1157 = vadd.f32 %v1155, %v1156
    %v1158 = vmul.f32 %v1141, %v1141
    %v1159 = vmul.f32 %v1145, %v1145
    %v1160 = vadd.f32 %v1158, %v1159
    %v1161 = vmul.f32 %v1149, %v1149
    %v1162 = vadd.f32 %v1160, %v1161
    %v1163 = vmul.f32 %v1150, %v1150
    %v1164 = vmul.f32 %v1151, %v1151
    %v1165 = vadd.f32 %v1163, %v1164
    %v1166 = vmul.f32 %v1152, %v1152
    %v1167 = vadd.f32 %v1165, %v1166
    %v1168 = vmul.f32 %v1162, %v1167
    %v1169 = vmax.f32 %v1168, 1e-16
    %v1170 = vrsqrt.pop %v1169
    %v1171 = vmul.f32 %v1157, %v1170
    %s1172 = scalar_lea.vmem [#allocation2], 48
    %v1173 = vld [vmem:[%s1172] sm:$0xff]
    %v1174 = vadd.f32 %v1173, %v1171
    %1175 = vst [vmem:[%s1172] sm:$0xff] %v1174
    %s1176 = scalar_lea.vmem [#allocation3], 336
    %v1177 = vld [vmem:[%s1176] sm:$0xff]
    %s1178 = scalar_lea.vmem [#allocation3], 344
    %v1179 = vld [vmem:[%s1178] sm:$0xff]
    %s1180 = scalar_lea.vmem [#allocation3], 352
    %v1181 = vld [vmem:[%s1180] sm:$0xff]
    %s1182 = scalar_lea.vmem [#allocation3], 360
    %v1183 = vld [vmem:[%s1182] sm:$0xff]
    %s1184 = scalar_lea.vmem [#allocation3], 368
    %v1185 = vld [vmem:[%s1184] sm:$0xff]
    %s1186 = scalar_lea.vmem [#allocation3], 376
    %v1187 = vld [vmem:[%s1186] sm:$0xff]
    %v1188 = vmul.f32 %v1177, %v1177
    %v1189 = vmul.f32 %v1179, %v1179
    %v1190 = vadd.f32 %v1188, %v1189
    %v1191 = vmul.f32 %v1181, %v1181
    %v1192 = vadd.f32 %v1190, %v1191
    %v1193 = vmax.f32 %v1192, 1e-24
    %v1194 = vrsqrt.pop %v1193
    %v1195 = vmul.f32 %v1177, %v1194
    %v1196 = vmul.f32 %v1179, %v1194
    %v1197 = vmul.f32 %v1181, %v1194
    %v1198 = vmul.f32 %v1195, %v1183
    %v1199 = vmul.f32 %v1196, %v1185
    %v1200 = vadd.f32 %v1198, %v1199
    %v1201 = vmul.f32 %v1197, %v1187
    %v1202 = vadd.f32 %v1200, %v1201
    %v1203 = vmul.f32 %v1202, %v1195
    %v1204 = vsub.f32 %v1183, %v1203
    %v1205 = vmul.f32 %v1202, %v1196
    %v1206 = vsub.f32 %v1185, %v1205
    %v1207 = vmul.f32 %v1202, %v1197
    %v1208 = vsub.f32 %v1187, %v1207
    %v1209 = vmul.f32 %v1204, %v1204
    %v1210 = vmul.f32 %v1206, %v1206
    %v1211 = vadd.f32 %v1209, %v1210
    %v1212 = vmul.f32 %v1208, %v1208
    %v1213 = vadd.f32 %v1211, %v1212
    %v1214 = vmax.f32 %v1213, 1e-24
    %v1215 = vrsqrt.pop %v1214
    %v1216 = vmul.f32 %v1204, %v1215
    %v1217 = vmul.f32 %v1206, %v1215
    %v1218 = vmul.f32 %v1208, %v1215
    %v1219 = vmul.f32 %v1196, %v1218
    %v1220 = vmul.f32 %v1197, %v1217
    %v1221 = vsub.f32 %v1219, %v1220
    %v1222 = vmul.f32 %v1197, %v1216
    %v1223 = vmul.f32 %v1195, %v1218
    %v1224 = vsub.f32 %v1222, %v1223
    %v1225 = vmul.f32 %v1195, %v1217
    %v1226 = vmul.f32 %v1196, %v1216
    %v1227 = vsub.f32 %v1225, %v1226
    %v1228 = vmul.f32 %v1073, %v1195
    %v1229 = vmul.f32 %v1078, %v1196
    %v1230 = vadd.f32 %v1228, %v1229
    %v1231 = vmul.f32 %v1083, %v1197
    %v1232 = vadd.f32 %v1230, %v1231
    %v1233 = vmul.f32 %v1073, %v1216
    %v1234 = vmul.f32 %v1078, %v1217
    %v1235 = vadd.f32 %v1233, %v1234
    %v1236 = vmul.f32 %v1083, %v1218
    %v1237 = vadd.f32 %v1235, %v1236
    %v1238 = vmul.f32 %v1073, %v1221
    %v1239 = vmul.f32 %v1078, %v1224
    %v1240 = vadd.f32 %v1238, %v1239
    %v1241 = vmul.f32 %v1083, %v1227
    %v1242 = vadd.f32 %v1240, %v1241
    %v1243 = vmul.f32 %v1088, %v1195
    %v1244 = vmul.f32 %v1093, %v1196
    %v1245 = vadd.f32 %v1243, %v1244
    %v1246 = vmul.f32 %v1098, %v1197
    %v1247 = vadd.f32 %v1245, %v1246
    %v1248 = vmul.f32 %v1088, %v1216
    %v1249 = vmul.f32 %v1093, %v1217
    %v1250 = vadd.f32 %v1248, %v1249
    %v1251 = vmul.f32 %v1098, %v1218
    %v1252 = vadd.f32 %v1250, %v1251
    %v1253 = vmul.f32 %v1088, %v1221
    %v1254 = vmul.f32 %v1093, %v1224
    %v1255 = vadd.f32 %v1253, %v1254
    %v1256 = vmul.f32 %v1098, %v1227
    %v1257 = vadd.f32 %v1255, %v1256
    %v1258 = vmul.f32 %v1103, %v1195
    %v1259 = vmul.f32 %v1108, %v1196
    %v1260 = vadd.f32 %v1258, %v1259
    %v1261 = vmul.f32 %v1113, %v1197
    %v1262 = vadd.f32 %v1260, %v1261
    %v1263 = vmul.f32 %v1103, %v1216
    %v1264 = vmul.f32 %v1108, %v1217
    %v1265 = vadd.f32 %v1263, %v1264
    %v1266 = vmul.f32 %v1113, %v1218
    %v1267 = vadd.f32 %v1265, %v1266
    %v1268 = vmul.f32 %v1103, %v1221
    %v1269 = vmul.f32 %v1108, %v1224
    %v1270 = vadd.f32 %v1268, %v1269
    %v1271 = vmul.f32 %v1113, %v1227
    %v1272 = vadd.f32 %v1270, %v1271
    %s1273 = scalar_lea.vmem [#allocation6], 528
    %v1274 = vld [vmem:[%s1273] sm:$0xff]
    %s1275 = scalar_lea.vmem [#allocation6], 536
    %v1276 = vld [vmem:[%s1275] sm:$0xff]
    %s1277 = scalar_lea.vmem [#allocation6], 544
    %v1278 = vld [vmem:[%s1277] sm:$0xff]
    %v1279 = vmul.f32 %v1232, %v1274
    %v1280 = vmul.f32 %v1237, %v1276
    %v1281 = vadd.f32 %v1279, %v1280
    %v1282 = vmul.f32 %v1242, %v1278
    %v1283 = vadd.f32 %v1281, %v1282
    %v1284 = vmul.f32 %v1247, %v1274
    %v1285 = vmul.f32 %v1252, %v1276
    %v1286 = vadd.f32 %v1284, %v1285
    %v1287 = vmul.f32 %v1257, %v1278
    %v1288 = vadd.f32 %v1286, %v1287
    %v1289 = vmul.f32 %v1262, %v1274
    %v1290 = vmul.f32 %v1267, %v1276
    %v1291 = vadd.f32 %v1289, %v1290
    %v1292 = vmul.f32 %v1272, %v1278
    %v1293 = vadd.f32 %v1291, %v1292
    %v1294 = vadd.f32 %v1135, %v1283
    %v1295 = vadd.f32 %v1136, %v1288
    %v1296 = vadd.f32 %v1137, %v1293
    %s1297 = scalar_lea.vmem [#allocation6], 168
    %v1298 = vld [vmem:[%s1297] sm:$0xff]
    %v1299 = vld [vmem:[%s1138] sm:$0xff]
    %v1300 = vsub.f32 %v1298, %v1299
    %s1301 = scalar_lea.vmem [#allocation6], 176
    %v1302 = vld [vmem:[%s1301] sm:$0xff]
    %v1303 = vld [vmem:[%s1142] sm:$0xff]
    %v1304 = vsub.f32 %v1302, %v1303
    %s1305 = scalar_lea.vmem [#allocation6], 184
    %v1306 = vld [vmem:[%s1305] sm:$0xff]
    %v1307 = vld [vmem:[%s1146] sm:$0xff]
    %v1308 = vsub.f32 %v1306, %v1307
    %v1309 = vsub.f32 %v1294, %v1135
    %v1310 = vsub.f32 %v1295, %v1136
    %v1311 = vsub.f32 %v1296, %v1137
    %v1312 = vmul.f32 %v1300, %v1309
    %v1313 = vmul.f32 %v1304, %v1310
    %v1314 = vadd.f32 %v1312, %v1313
    %v1315 = vmul.f32 %v1308, %v1311
    %v1316 = vadd.f32 %v1314, %v1315
    %v1317 = vmul.f32 %v1300, %v1300
    %v1318 = vmul.f32 %v1304, %v1304
    %v1319 = vadd.f32 %v1317, %v1318
    %v1320 = vmul.f32 %v1308, %v1308
    %v1321 = vadd.f32 %v1319, %v1320
    %v1322 = vmul.f32 %v1309, %v1309
    %v1323 = vmul.f32 %v1310, %v1310
    %v1324 = vadd.f32 %v1322, %v1323
    %v1325 = vmul.f32 %v1311, %v1311
    %v1326 = vadd.f32 %v1324, %v1325
    %v1327 = vmul.f32 %v1321, %v1326
    %v1328 = vmax.f32 %v1327, 1e-16
    %v1329 = vrsqrt.pop %v1328
    %v1330 = vmul.f32 %v1316, %v1329
    %s1331 = scalar_lea.vmem [#allocation2], 56
    %v1332 = vld [vmem:[%s1331] sm:$0xff]
    %v1333 = vadd.f32 %v1332, %v1330
    %1334 = vst [vmem:[%s1331] sm:$0xff] %v1333
    %s1335 = scalar_lea.vmem [#allocation3], 384
    %v1336 = vld [vmem:[%s1335] sm:$0xff]
    %s1337 = scalar_lea.vmem [#allocation3], 392
    %v1338 = vld [vmem:[%s1337] sm:$0xff]
    %s1339 = scalar_lea.vmem [#allocation3], 400
    %v1340 = vld [vmem:[%s1339] sm:$0xff]
    %s1341 = scalar_lea.vmem [#allocation3], 408
    %v1342 = vld [vmem:[%s1341] sm:$0xff]
    %s1343 = scalar_lea.vmem [#allocation3], 416
    %v1344 = vld [vmem:[%s1343] sm:$0xff]
    %s1345 = scalar_lea.vmem [#allocation3], 424
    %v1346 = vld [vmem:[%s1345] sm:$0xff]
    %v1347 = vmul.f32 %v1336, %v1336
    %v1348 = vmul.f32 %v1338, %v1338
    %v1349 = vadd.f32 %v1347, %v1348
    %v1350 = vmul.f32 %v1340, %v1340
    %v1351 = vadd.f32 %v1349, %v1350
    %v1352 = vmax.f32 %v1351, 1e-24
    %v1353 = vrsqrt.pop %v1352
    %v1354 = vmul.f32 %v1336, %v1353
    %v1355 = vmul.f32 %v1338, %v1353
    %v1356 = vmul.f32 %v1340, %v1353
    %v1357 = vmul.f32 %v1354, %v1342
    %v1358 = vmul.f32 %v1355, %v1344
    %v1359 = vadd.f32 %v1357, %v1358
    %v1360 = vmul.f32 %v1356, %v1346
    %v1361 = vadd.f32 %v1359, %v1360
    %v1362 = vmul.f32 %v1361, %v1354
    %v1363 = vsub.f32 %v1342, %v1362
    %v1364 = vmul.f32 %v1361, %v1355
    %v1365 = vsub.f32 %v1344, %v1364
    %v1366 = vmul.f32 %v1361, %v1356
    %v1367 = vsub.f32 %v1346, %v1366
    %v1368 = vmul.f32 %v1363, %v1363
    %v1369 = vmul.f32 %v1365, %v1365
    %v1370 = vadd.f32 %v1368, %v1369
    %v1371 = vmul.f32 %v1367, %v1367
    %v1372 = vadd.f32 %v1370, %v1371
    %v1373 = vmax.f32 %v1372, 1e-24
    %v1374 = vrsqrt.pop %v1373
    %v1375 = vmul.f32 %v1363, %v1374
    %v1376 = vmul.f32 %v1365, %v1374
    %v1377 = vmul.f32 %v1367, %v1374
    %v1378 = vmul.f32 %v1355, %v1377
    %v1379 = vmul.f32 %v1356, %v1376
    %v1380 = vsub.f32 %v1378, %v1379
    %v1381 = vmul.f32 %v1356, %v1375
    %v1382 = vmul.f32 %v1354, %v1377
    %v1383 = vsub.f32 %v1381, %v1382
    %v1384 = vmul.f32 %v1354, %v1376
    %v1385 = vmul.f32 %v1355, %v1375
    %v1386 = vsub.f32 %v1384, %v1385
    %v1387 = vmul.f32 %v142, %v1354
    %v1388 = vmul.f32 %v147, %v1355
    %v1389 = vadd.f32 %v1387, %v1388
    %v1390 = vmul.f32 %v152, %v1356
    %v1391 = vadd.f32 %v1389, %v1390
    %v1392 = vmul.f32 %v142, %v1375
    %v1393 = vmul.f32 %v147, %v1376
    %v1394 = vadd.f32 %v1392, %v1393
    %v1395 = vmul.f32 %v152, %v1377
    %v1396 = vadd.f32 %v1394, %v1395
    %v1397 = vmul.f32 %v142, %v1380
    %v1398 = vmul.f32 %v147, %v1383
    %v1399 = vadd.f32 %v1397, %v1398
    %v1400 = vmul.f32 %v152, %v1386
    %v1401 = vadd.f32 %v1399, %v1400
    %v1402 = vmul.f32 %v157, %v1354
    %v1403 = vmul.f32 %v162, %v1355
    %v1404 = vadd.f32 %v1402, %v1403
    %v1405 = vmul.f32 %v167, %v1356
    %v1406 = vadd.f32 %v1404, %v1405
    %v1407 = vmul.f32 %v157, %v1375
    %v1408 = vmul.f32 %v162, %v1376
    %v1409 = vadd.f32 %v1407, %v1408
    %v1410 = vmul.f32 %v167, %v1377
    %v1411 = vadd.f32 %v1409, %v1410
    %v1412 = vmul.f32 %v157, %v1380
    %v1413 = vmul.f32 %v162, %v1383
    %v1414 = vadd.f32 %v1412, %v1413
    %v1415 = vmul.f32 %v167, %v1386
    %v1416 = vadd.f32 %v1414, %v1415
    %v1417 = vmul.f32 %v172, %v1354
    %v1418 = vmul.f32 %v177, %v1355
    %v1419 = vadd.f32 %v1417, %v1418
    %v1420 = vmul.f32 %v182, %v1356
    %v1421 = vadd.f32 %v1419, %v1420
    %v1422 = vmul.f32 %v172, %v1375
    %v1423 = vmul.f32 %v177, %v1376
    %v1424 = vadd.f32 %v1422, %v1423
    %v1425 = vmul.f32 %v182, %v1377
    %v1426 = vadd.f32 %v1424, %v1425
    %v1427 = vmul.f32 %v172, %v1380
    %v1428 = vmul.f32 %v177, %v1383
    %v1429 = vadd.f32 %v1427, %v1428
    %v1430 = vmul.f32 %v182, %v1386
    %v1431 = vadd.f32 %v1429, %v1430
    %s1432 = scalar_lea.vmem [#allocation6], 552
    %v1433 = vld [vmem:[%s1432] sm:$0xff]
    %s1434 = scalar_lea.vmem [#allocation6], 560
    %v1435 = vld [vmem:[%s1434] sm:$0xff]
    %s1436 = scalar_lea.vmem [#allocation6], 568
    %v1437 = vld [vmem:[%s1436] sm:$0xff]
    %v1438 = vmul.f32 %v1391, %v1433
    %v1439 = vmul.f32 %v1396, %v1435
    %v1440 = vadd.f32 %v1438, %v1439
    %v1441 = vmul.f32 %v1401, %v1437
    %v1442 = vadd.f32 %v1440, %v1441
    %v1443 = vmul.f32 %v1406, %v1433
    %v1444 = vmul.f32 %v1411, %v1435
    %v1445 = vadd.f32 %v1443, %v1444
    %v1446 = vmul.f32 %v1416, %v1437
    %v1447 = vadd.f32 %v1445, %v1446
    %v1448 = vmul.f32 %v1421, %v1433
    %v1449 = vmul.f32 %v1426, %v1435
    %v1450 = vadd.f32 %v1448, %v1449
    %v1451 = vmul.f32 %v1431, %v1437
    %v1452 = vadd.f32 %v1450, %v1451
    %v1453 = vadd.f32 %v184, %v1442
    %v1454 = vadd.f32 %v186, %v1447
    %v1455 = vadd.f32 %v188, %v1452
    %s1456 = scalar_lea.vmem [#allocation6], 192
    %v1457 = vld [vmem:[%s1456] sm:$0xff]
    %v1458 = vld [vmem:[#allocation6] sm:$0xff]
    %v1459 = vsub.f32 %v1457, %v1458
    %s1460 = scalar_lea.vmem [#allocation6], 200
    %v1461 = vld [vmem:[%s1460] sm:$0xff]
    %v1462 = vld [vmem:[%s191] sm:$0xff]
    %v1463 = vsub.f32 %v1461, %v1462
    %s1464 = scalar_lea.vmem [#allocation6], 208
    %v1465 = vld [vmem:[%s1464] sm:$0xff]
    %v1466 = vld [vmem:[%s194] sm:$0xff]
    %v1467 = vsub.f32 %v1465, %v1466
    %v1468 = vsub.f32 %v1453, %v184
    %v1469 = vsub.f32 %v1454, %v186
    %v1470 = vsub.f32 %v1455, %v188
    %v1471 = vmul.f32 %v1459, %v1468
    %v1472 = vmul.f32 %v1463, %v1469
    %v1473 = vadd.f32 %v1471, %v1472
    %v1474 = vmul.f32 %v1467, %v1470
    %v1475 = vadd.f32 %v1473, %v1474
    %v1476 = vmul.f32 %v1459, %v1459
    %v1477 = vmul.f32 %v1463, %v1463
    %v1478 = vadd.f32 %v1476, %v1477
    %v1479 = vmul.f32 %v1467, %v1467
    %v1480 = vadd.f32 %v1478, %v1479
    %v1481 = vmul.f32 %v1468, %v1468
    %v1482 = vmul.f32 %v1469, %v1469
    %v1483 = vadd.f32 %v1481, %v1482
    %v1484 = vmul.f32 %v1470, %v1470
    %v1485 = vadd.f32 %v1483, %v1484
    %v1486 = vmul.f32 %v1480, %v1485
    %v1487 = vmax.f32 %v1486, 1e-16
    %v1488 = vrsqrt.pop %v1487
    %v1489 = vmul.f32 %v1475, %v1488
    %s1490 = scalar_lea.vmem [#allocation2], 64
    %v1491 = vld [vmem:[%s1490] sm:$0xff]
    %v1492 = vadd.f32 %v1491, %v1489
    %1493 = vst [vmem:[%s1490] sm:$0xff] %v1492
    %s1494 = scalar_lea.vmem [#allocation3], 432
    %v1495 = vld [vmem:[%s1494] sm:$0xff]
    %s1496 = scalar_lea.vmem [#allocation3], 440
    %v1497 = vld [vmem:[%s1496] sm:$0xff]
    %s1498 = scalar_lea.vmem [#allocation3], 448
    %v1499 = vld [vmem:[%s1498] sm:$0xff]
    %s1500 = scalar_lea.vmem [#allocation3], 456
    %v1501 = vld [vmem:[%s1500] sm:$0xff]
    %s1502 = scalar_lea.vmem [#allocation3], 464
    %v1503 = vld [vmem:[%s1502] sm:$0xff]
    %s1504 = scalar_lea.vmem [#allocation3], 472
    %v1505 = vld [vmem:[%s1504] sm:$0xff]
    %v1506 = vmul.f32 %v1495, %v1495
    %v1507 = vmul.f32 %v1497, %v1497
    %v1508 = vadd.f32 %v1506, %v1507
    %v1509 = vmul.f32 %v1499, %v1499
    %v1510 = vadd.f32 %v1508, %v1509
    %v1511 = vmax.f32 %v1510, 1e-24
    %v1512 = vrsqrt.pop %v1511
    %v1513 = vmul.f32 %v1495, %v1512
    %v1514 = vmul.f32 %v1497, %v1512
    %v1515 = vmul.f32 %v1499, %v1512
    %v1516 = vmul.f32 %v1513, %v1501
    %v1517 = vmul.f32 %v1514, %v1503
    %v1518 = vadd.f32 %v1516, %v1517
    %v1519 = vmul.f32 %v1515, %v1505
    %v1520 = vadd.f32 %v1518, %v1519
    %v1521 = vmul.f32 %v1520, %v1513
    %v1522 = vsub.f32 %v1501, %v1521
    %v1523 = vmul.f32 %v1520, %v1514
    %v1524 = vsub.f32 %v1503, %v1523
    %v1525 = vmul.f32 %v1520, %v1515
    %v1526 = vsub.f32 %v1505, %v1525
    %v1527 = vmul.f32 %v1522, %v1522
    %v1528 = vmul.f32 %v1524, %v1524
    %v1529 = vadd.f32 %v1527, %v1528
    %v1530 = vmul.f32 %v1526, %v1526
    %v1531 = vadd.f32 %v1529, %v1530
    %v1532 = vmax.f32 %v1531, 1e-24
    %v1533 = vrsqrt.pop %v1532
    %v1534 = vmul.f32 %v1522, %v1533
    %v1535 = vmul.f32 %v1524, %v1533
    %v1536 = vmul.f32 %v1526, %v1533
    %v1537 = vmul.f32 %v1514, %v1536
    %v1538 = vmul.f32 %v1515, %v1535
    %v1539 = vsub.f32 %v1537, %v1538
    %v1540 = vmul.f32 %v1515, %v1534
    %v1541 = vmul.f32 %v1513, %v1536
    %v1542 = vsub.f32 %v1540, %v1541
    %v1543 = vmul.f32 %v1513, %v1535
    %v1544 = vmul.f32 %v1514, %v1534
    %v1545 = vsub.f32 %v1543, %v1544
    %v1546 = vmul.f32 %v1391, %v1513
    %v1547 = vmul.f32 %v1396, %v1514
    %v1548 = vadd.f32 %v1546, %v1547
    %v1549 = vmul.f32 %v1401, %v1515
    %v1550 = vadd.f32 %v1548, %v1549
    %v1551 = vmul.f32 %v1391, %v1534
    %v1552 = vmul.f32 %v1396, %v1535
    %v1553 = vadd.f32 %v1551, %v1552
    %v1554 = vmul.f32 %v1401, %v1536
    %v1555 = vadd.f32 %v1553, %v1554
    %v1556 = vmul.f32 %v1391, %v1539
    %v1557 = vmul.f32 %v1396, %v1542
    %v1558 = vadd.f32 %v1556, %v1557
    %v1559 = vmul.f32 %v1401, %v1545
    %v1560 = vadd.f32 %v1558, %v1559
    %v1561 = vmul.f32 %v1406, %v1513
    %v1562 = vmul.f32 %v1411, %v1514
    %v1563 = vadd.f32 %v1561, %v1562
    %v1564 = vmul.f32 %v1416, %v1515
    %v1565 = vadd.f32 %v1563, %v1564
    %v1566 = vmul.f32 %v1406, %v1534
    %v1567 = vmul.f32 %v1411, %v1535
    %v1568 = vadd.f32 %v1566, %v1567
    %v1569 = vmul.f32 %v1416, %v1536
    %v1570 = vadd.f32 %v1568, %v1569
    %v1571 = vmul.f32 %v1406, %v1539
    %v1572 = vmul.f32 %v1411, %v1542
    %v1573 = vadd.f32 %v1571, %v1572
    %v1574 = vmul.f32 %v1416, %v1545
    %v1575 = vadd.f32 %v1573, %v1574
    %v1576 = vmul.f32 %v1421, %v1513
    %v1577 = vmul.f32 %v1426, %v1514
    %v1578 = vadd.f32 %v1576, %v1577
    %v1579 = vmul.f32 %v1431, %v1515
    %v1580 = vadd.f32 %v1578, %v1579
    %v1581 = vmul.f32 %v1421, %v1534
    %v1582 = vmul.f32 %v1426, %v1535
    %v1583 = vadd.f32 %v1581, %v1582
    %v1584 = vmul.f32 %v1431, %v1536
    %v1585 = vadd.f32 %v1583, %v1584
    %v1586 = vmul.f32 %v1421, %v1539
    %v1587 = vmul.f32 %v1426, %v1542
    %v1588 = vadd.f32 %v1586, %v1587
    %v1589 = vmul.f32 %v1431, %v1545
    %v1590 = vadd.f32 %v1588, %v1589
    %s1591 = scalar_lea.vmem [#allocation6], 576
    %v1592 = vld [vmem:[%s1591] sm:$0xff]
    %s1593 = scalar_lea.vmem [#allocation6], 584
    %v1594 = vld [vmem:[%s1593] sm:$0xff]
    %s1595 = scalar_lea.vmem [#allocation6], 592
    %v1596 = vld [vmem:[%s1595] sm:$0xff]
    %v1597 = vmul.f32 %v1550, %v1592
    %v1598 = vmul.f32 %v1555, %v1594
    %v1599 = vadd.f32 %v1597, %v1598
    %v1600 = vmul.f32 %v1560, %v1596
    %v1601 = vadd.f32 %v1599, %v1600
    %v1602 = vmul.f32 %v1565, %v1592
    %v1603 = vmul.f32 %v1570, %v1594
    %v1604 = vadd.f32 %v1602, %v1603
    %v1605 = vmul.f32 %v1575, %v1596
    %v1606 = vadd.f32 %v1604, %v1605
    %v1607 = vmul.f32 %v1580, %v1592
    %v1608 = vmul.f32 %v1585, %v1594
    %v1609 = vadd.f32 %v1607, %v1608
    %v1610 = vmul.f32 %v1590, %v1596
    %v1611 = vadd.f32 %v1609, %v1610
    %v1612 = vadd.f32 %v1453, %v1601
    %v1613 = vadd.f32 %v1454, %v1606
    %v1614 = vadd.f32 %v1455, %v1611
    %s1615 = scalar_lea.vmem [#allocation6], 216
    %v1616 = vld [vmem:[%s1615] sm:$0xff]
    %v1617 = vld [vmem:[%s1456] sm:$0xff]
    %v1618 = vsub.f32 %v1616, %v1617
    %s1619 = scalar_lea.vmem [#allocation6], 224
    %v1620 = vld [vmem:[%s1619] sm:$0xff]
    %v1621 = vld [vmem:[%s1460] sm:$0xff]
    %v1622 = vsub.f32 %v1620, %v1621
    %s1623 = scalar_lea.vmem [#allocation6], 232
    %v1624 = vld [vmem:[%s1623] sm:$0xff]
    %v1625 = vld [vmem:[%s1464] sm:$0xff]
    %v1626 = vsub.f32 %v1624, %v1625
    %v1627 = vsub.f32 %v1612, %v1453
    %v1628 = vsub.f32 %v1613, %v1454
    %v1629 = vsub.f32 %v1614, %v1455
    %v1630 = vmul.f32 %v1618, %v1627
    %v1631 = vmul.f32 %v1622, %v1628
    %v1632 = vadd.f32 %v1630, %v1631
    %v1633 = vmul.f32 %v1626, %v1629
    %v1634 = vadd.f32 %v1632, %v1633
    %v1635 = vmul.f32 %v1618, %v1618
    %v1636 = vmul.f32 %v1622, %v1622
    %v1637 = vadd.f32 %v1635, %v1636
    %v1638 = vmul.f32 %v1626, %v1626
    %v1639 = vadd.f32 %v1637, %v1638
    %v1640 = vmul.f32 %v1627, %v1627
    %v1641 = vmul.f32 %v1628, %v1628
    %v1642 = vadd.f32 %v1640, %v1641
    %v1643 = vmul.f32 %v1629, %v1629
    %v1644 = vadd.f32 %v1642, %v1643
    %v1645 = vmul.f32 %v1639, %v1644
    %v1646 = vmax.f32 %v1645, 1e-16
    %v1647 = vrsqrt.pop %v1646
    %v1648 = vmul.f32 %v1634, %v1647
    %s1649 = scalar_lea.vmem [#allocation2], 72
    %v1650 = vld [vmem:[%s1649] sm:$0xff]
    %v1651 = vadd.f32 %v1650, %v1648
    %1652 = vst [vmem:[%s1649] sm:$0xff] %v1651
    %s1653 = scalar_lea.vmem [#allocation3], 480
    %v1654 = vld [vmem:[%s1653] sm:$0xff]
    %s1655 = scalar_lea.vmem [#allocation3], 488
    %v1656 = vld [vmem:[%s1655] sm:$0xff]
    %s1657 = scalar_lea.vmem [#allocation3], 496
    %v1658 = vld [vmem:[%s1657] sm:$0xff]
    %s1659 = scalar_lea.vmem [#allocation3], 504
    %v1660 = vld [vmem:[%s1659] sm:$0xff]
    %s1661 = scalar_lea.vmem [#allocation3], 512
    %v1662 = vld [vmem:[%s1661] sm:$0xff]
    %s1663 = scalar_lea.vmem [#allocation3], 520
    %v1664 = vld [vmem:[%s1663] sm:$0xff]
    %v1665 = vmul.f32 %v1654, %v1654
    %v1666 = vmul.f32 %v1656, %v1656
    %v1667 = vadd.f32 %v1665, %v1666
    %v1668 = vmul.f32 %v1658, %v1658
    %v1669 = vadd.f32 %v1667, %v1668
    %v1670 = vmax.f32 %v1669, 1e-24
    %v1671 = vrsqrt.pop %v1670
    %v1672 = vmul.f32 %v1654, %v1671
    %v1673 = vmul.f32 %v1656, %v1671
    %v1674 = vmul.f32 %v1658, %v1671
    %v1675 = vmul.f32 %v1672, %v1660
    %v1676 = vmul.f32 %v1673, %v1662
    %v1677 = vadd.f32 %v1675, %v1676
    %v1678 = vmul.f32 %v1674, %v1664
    %v1679 = vadd.f32 %v1677, %v1678
    %v1680 = vmul.f32 %v1679, %v1672
    %v1681 = vsub.f32 %v1660, %v1680
    %v1682 = vmul.f32 %v1679, %v1673
    %v1683 = vsub.f32 %v1662, %v1682
    %v1684 = vmul.f32 %v1679, %v1674
    %v1685 = vsub.f32 %v1664, %v1684
    %v1686 = vmul.f32 %v1681, %v1681
    %v1687 = vmul.f32 %v1683, %v1683
    %v1688 = vadd.f32 %v1686, %v1687
    %v1689 = vmul.f32 %v1685, %v1685
    %v1690 = vadd.f32 %v1688, %v1689
    %v1691 = vmax.f32 %v1690, 1e-24
    %v1692 = vrsqrt.pop %v1691
    %v1693 = vmul.f32 %v1681, %v1692
    %v1694 = vmul.f32 %v1683, %v1692
    %v1695 = vmul.f32 %v1685, %v1692
    %v1696 = vmul.f32 %v1673, %v1695
    %v1697 = vmul.f32 %v1674, %v1694
    %v1698 = vsub.f32 %v1696, %v1697
    %v1699 = vmul.f32 %v1674, %v1693
    %v1700 = vmul.f32 %v1672, %v1695
    %v1701 = vsub.f32 %v1699, %v1700
    %v1702 = vmul.f32 %v1672, %v1694
    %v1703 = vmul.f32 %v1673, %v1693
    %v1704 = vsub.f32 %v1702, %v1703
    %v1705 = vmul.f32 %v1550, %v1672
    %v1706 = vmul.f32 %v1555, %v1673
    %v1707 = vadd.f32 %v1705, %v1706
    %v1708 = vmul.f32 %v1560, %v1674
    %v1709 = vadd.f32 %v1707, %v1708
    %v1710 = vmul.f32 %v1550, %v1693
    %v1711 = vmul.f32 %v1555, %v1694
    %v1712 = vadd.f32 %v1710, %v1711
    %v1713 = vmul.f32 %v1560, %v1695
    %v1714 = vadd.f32 %v1712, %v1713
    %v1715 = vmul.f32 %v1550, %v1698
    %v1716 = vmul.f32 %v1555, %v1701
    %v1717 = vadd.f32 %v1715, %v1716
    %v1718 = vmul.f32 %v1560, %v1704
    %v1719 = vadd.f32 %v1717, %v1718
    %v1720 = vmul.f32 %v1565, %v1672
    %v1721 = vmul.f32 %v1570, %v1673
    %v1722 = vadd.f32 %v1720, %v1721
    %v1723 = vmul.f32 %v1575, %v1674
    %v1724 = vadd.f32 %v1722, %v1723
    %v1725 = vmul.f32 %v1565, %v1693
    %v1726 = vmul.f32 %v1570, %v1694
    %v1727 = vadd.f32 %v1725, %v1726
    %v1728 = vmul.f32 %v1575, %v1695
    %v1729 = vadd.f32 %v1727, %v1728
    %v1730 = vmul.f32 %v1565, %v1698
    %v1731 = vmul.f32 %v1570, %v1701
    %v1732 = vadd.f32 %v1730, %v1731
    %v1733 = vmul.f32 %v1575, %v1704
    %v1734 = vadd.f32 %v1732, %v1733
    %v1735 = vmul.f32 %v1580, %v1672
    %v1736 = vmul.f32 %v1585, %v1673
    %v1737 = vadd.f32 %v1735, %v1736
    %v1738 = vmul.f32 %v1590, %v1674
    %v1739 = vadd.f32 %v1737, %v1738
    %v1740 = vmul.f32 %v1580, %v1693
    %v1741 = vmul.f32 %v1585, %v1694
    %v1742 = vadd.f32 %v1740, %v1741
    %v1743 = vmul.f32 %v1590, %v1695
    %v1744 = vadd.f32 %v1742, %v1743
    %v1745 = vmul.f32 %v1580, %v1698
    %v1746 = vmul.f32 %v1585, %v1701
    %v1747 = vadd.f32 %v1745, %v1746
    %v1748 = vmul.f32 %v1590, %v1704
    %v1749 = vadd.f32 %v1747, %v1748
    %s1750 = scalar_lea.vmem [#allocation6], 600
    %v1751 = vld [vmem:[%s1750] sm:$0xff]
    %s1752 = scalar_lea.vmem [#allocation6], 608
    %v1753 = vld [vmem:[%s1752] sm:$0xff]
    %s1754 = scalar_lea.vmem [#allocation6], 616
    %v1755 = vld [vmem:[%s1754] sm:$0xff]
    %v1756 = vmul.f32 %v1709, %v1751
    %v1757 = vmul.f32 %v1714, %v1753
    %v1758 = vadd.f32 %v1756, %v1757
    %v1759 = vmul.f32 %v1719, %v1755
    %v1760 = vadd.f32 %v1758, %v1759
    %v1761 = vmul.f32 %v1724, %v1751
    %v1762 = vmul.f32 %v1729, %v1753
    %v1763 = vadd.f32 %v1761, %v1762
    %v1764 = vmul.f32 %v1734, %v1755
    %v1765 = vadd.f32 %v1763, %v1764
    %v1766 = vmul.f32 %v1739, %v1751
    %v1767 = vmul.f32 %v1744, %v1753
    %v1768 = vadd.f32 %v1766, %v1767
    %v1769 = vmul.f32 %v1749, %v1755
    %v1770 = vadd.f32 %v1768, %v1769
    %v1771 = vadd.f32 %v1612, %v1760
    %v1772 = vadd.f32 %v1613, %v1765
    %v1773 = vadd.f32 %v1614, %v1770
    %s1774 = scalar_lea.vmem [#allocation6], 240
    %v1775 = vld [vmem:[%s1774] sm:$0xff]
    %v1776 = vld [vmem:[%s1615] sm:$0xff]
    %v1777 = vsub.f32 %v1775, %v1776
    %s1778 = scalar_lea.vmem [#allocation6], 248
    %v1779 = vld [vmem:[%s1778] sm:$0xff]
    %v1780 = vld [vmem:[%s1619] sm:$0xff]
    %v1781 = vsub.f32 %v1779, %v1780
    %s1782 = scalar_lea.vmem [#allocation6], 256
    %v1783 = vld [vmem:[%s1782] sm:$0xff]
    %v1784 = vld [vmem:[%s1623] sm:$0xff]
    %v1785 = vsub.f32 %v1783, %v1784
    %v1786 = vsub.f32 %v1771, %v1612
    %v1787 = vsub.f32 %v1772, %v1613
    %v1788 = vsub.f32 %v1773, %v1614
    %v1789 = vmul.f32 %v1777, %v1786
    %v1790 = vmul.f32 %v1781, %v1787
    %v1791 = vadd.f32 %v1789, %v1790
    %v1792 = vmul.f32 %v1785, %v1788
    %v1793 = vadd.f32 %v1791, %v1792
    %v1794 = vmul.f32 %v1777, %v1777
    %v1795 = vmul.f32 %v1781, %v1781
    %v1796 = vadd.f32 %v1794, %v1795
    %v1797 = vmul.f32 %v1785, %v1785
    %v1798 = vadd.f32 %v1796, %v1797
    %v1799 = vmul.f32 %v1786, %v1786
    %v1800 = vmul.f32 %v1787, %v1787
    %v1801 = vadd.f32 %v1799, %v1800
    %v1802 = vmul.f32 %v1788, %v1788
    %v1803 = vadd.f32 %v1801, %v1802
    %v1804 = vmul.f32 %v1798, %v1803
    %v1805 = vmax.f32 %v1804, 1e-16
    %v1806 = vrsqrt.pop %v1805
    %v1807 = vmul.f32 %v1793, %v1806
    %s1808 = scalar_lea.vmem [#allocation2], 80
    %v1809 = vld [vmem:[%s1808] sm:$0xff]
    %v1810 = vadd.f32 %v1809, %v1807
    %1811 = vst [vmem:[%s1808] sm:$0xff] %v1810
    %s1812 = scalar_lea.vmem [#allocation3], 528
    %v1813 = vld [vmem:[%s1812] sm:$0xff]
    %s1814 = scalar_lea.vmem [#allocation3], 536
    %v1815 = vld [vmem:[%s1814] sm:$0xff]
    %s1816 = scalar_lea.vmem [#allocation3], 544
    %v1817 = vld [vmem:[%s1816] sm:$0xff]
    %s1818 = scalar_lea.vmem [#allocation3], 552
    %v1819 = vld [vmem:[%s1818] sm:$0xff]
    %s1820 = scalar_lea.vmem [#allocation3], 560
    %v1821 = vld [vmem:[%s1820] sm:$0xff]
    %s1822 = scalar_lea.vmem [#allocation3], 568
    %v1823 = vld [vmem:[%s1822] sm:$0xff]
    %v1824 = vmul.f32 %v1813, %v1813
    %v1825 = vmul.f32 %v1815, %v1815
    %v1826 = vadd.f32 %v1824, %v1825
    %v1827 = vmul.f32 %v1817, %v1817
    %v1828 = vadd.f32 %v1826, %v1827
    %v1829 = vmax.f32 %v1828, 1e-24
    %v1830 = vrsqrt.pop %v1829
    %v1831 = vmul.f32 %v1813, %v1830
    %v1832 = vmul.f32 %v1815, %v1830
    %v1833 = vmul.f32 %v1817, %v1830
    %v1834 = vmul.f32 %v1831, %v1819
    %v1835 = vmul.f32 %v1832, %v1821
    %v1836 = vadd.f32 %v1834, %v1835
    %v1837 = vmul.f32 %v1833, %v1823
    %v1838 = vadd.f32 %v1836, %v1837
    %v1839 = vmul.f32 %v1838, %v1831
    %v1840 = vsub.f32 %v1819, %v1839
    %v1841 = vmul.f32 %v1838, %v1832
    %v1842 = vsub.f32 %v1821, %v1841
    %v1843 = vmul.f32 %v1838, %v1833
    %v1844 = vsub.f32 %v1823, %v1843
    %v1845 = vmul.f32 %v1840, %v1840
    %v1846 = vmul.f32 %v1842, %v1842
    %v1847 = vadd.f32 %v1845, %v1846
    %v1848 = vmul.f32 %v1844, %v1844
    %v1849 = vadd.f32 %v1847, %v1848
    %v1850 = vmax.f32 %v1849, 1e-24
    %v1851 = vrsqrt.pop %v1850
    %v1852 = vmul.f32 %v1840, %v1851
    %v1853 = vmul.f32 %v1842, %v1851
    %v1854 = vmul.f32 %v1844, %v1851
    %v1855 = vmul.f32 %v1832, %v1854
    %v1856 = vmul.f32 %v1833, %v1853
    %v1857 = vsub.f32 %v1855, %v1856
    %v1858 = vmul.f32 %v1833, %v1852
    %v1859 = vmul.f32 %v1831, %v1854
    %v1860 = vsub.f32 %v1858, %v1859
    %v1861 = vmul.f32 %v1831, %v1853
    %v1862 = vmul.f32 %v1832, %v1852
    %v1863 = vsub.f32 %v1861, %v1862
    %v1864 = vmul.f32 %v142, %v1831
    %v1865 = vmul.f32 %v147, %v1832
    %v1866 = vadd.f32 %v1864, %v1865
    %v1867 = vmul.f32 %v152, %v1833
    %v1868 = vadd.f32 %v1866, %v1867
    %v1869 = vmul.f32 %v142, %v1852
    %v1870 = vmul.f32 %v147, %v1853
    %v1871 = vadd.f32 %v1869, %v1870
    %v1872 = vmul.f32 %v152, %v1854
    %v1873 = vadd.f32 %v1871, %v1872
    %v1874 = vmul.f32 %v142, %v1857
    %v1875 = vmul.f32 %v147, %v1860
    %v1876 = vadd.f32 %v1874, %v1875
    %v1877 = vmul.f32 %v152, %v1863
    %v1878 = vadd.f32 %v1876, %v1877
    %v1879 = vmul.f32 %v157, %v1831
    %v1880 = vmul.f32 %v162, %v1832
    %v1881 = vadd.f32 %v1879, %v1880
    %v1882 = vmul.f32 %v167, %v1833
    %v1883 = vadd.f32 %v1881, %v1882
    %v1884 = vmul.f32 %v157, %v1852
    %v1885 = vmul.f32 %v162, %v1853
    %v1886 = vadd.f32 %v1884, %v1885
    %v1887 = vmul.f32 %v167, %v1854
    %v1888 = vadd.f32 %v1886, %v1887
    %v1889 = vmul.f32 %v157, %v1857
    %v1890 = vmul.f32 %v162, %v1860
    %v1891 = vadd.f32 %v1889, %v1890
    %v1892 = vmul.f32 %v167, %v1863
    %v1893 = vadd.f32 %v1891, %v1892
    %v1894 = vmul.f32 %v172, %v1831
    %v1895 = vmul.f32 %v177, %v1832
    %v1896 = vadd.f32 %v1894, %v1895
    %v1897 = vmul.f32 %v182, %v1833
    %v1898 = vadd.f32 %v1896, %v1897
    %v1899 = vmul.f32 %v172, %v1852
    %v1900 = vmul.f32 %v177, %v1853
    %v1901 = vadd.f32 %v1899, %v1900
    %v1902 = vmul.f32 %v182, %v1854
    %v1903 = vadd.f32 %v1901, %v1902
    %v1904 = vmul.f32 %v172, %v1857
    %v1905 = vmul.f32 %v177, %v1860
    %v1906 = vadd.f32 %v1904, %v1905
    %v1907 = vmul.f32 %v182, %v1863
    %v1908 = vadd.f32 %v1906, %v1907
    %s1909 = scalar_lea.vmem [#allocation6], 624
    %v1910 = vld [vmem:[%s1909] sm:$0xff]
    %s1911 = scalar_lea.vmem [#allocation6], 632
    %v1912 = vld [vmem:[%s1911] sm:$0xff]
    %s1913 = scalar_lea.vmem [#allocation6], 640
    %v1914 = vld [vmem:[%s1913] sm:$0xff]
    %v1915 = vmul.f32 %v1868, %v1910
    %v1916 = vmul.f32 %v1873, %v1912
    %v1917 = vadd.f32 %v1915, %v1916
    %v1918 = vmul.f32 %v1878, %v1914
    %v1919 = vadd.f32 %v1917, %v1918
    %v1920 = vmul.f32 %v1883, %v1910
    %v1921 = vmul.f32 %v1888, %v1912
    %v1922 = vadd.f32 %v1920, %v1921
    %v1923 = vmul.f32 %v1893, %v1914
    %v1924 = vadd.f32 %v1922, %v1923
    %v1925 = vmul.f32 %v1898, %v1910
    %v1926 = vmul.f32 %v1903, %v1912
    %v1927 = vadd.f32 %v1925, %v1926
    %v1928 = vmul.f32 %v1908, %v1914
    %v1929 = vadd.f32 %v1927, %v1928
    %v1930 = vadd.f32 %v184, %v1919
    %v1931 = vadd.f32 %v186, %v1924
    %v1932 = vadd.f32 %v188, %v1929
    %s1933 = scalar_lea.vmem [#allocation6], 264
    %v1934 = vld [vmem:[%s1933] sm:$0xff]
    %v1935 = vld [vmem:[#allocation6] sm:$0xff]
    %v1936 = vsub.f32 %v1934, %v1935
    %s1937 = scalar_lea.vmem [#allocation6], 272
    %v1938 = vld [vmem:[%s1937] sm:$0xff]
    %v1939 = vld [vmem:[%s191] sm:$0xff]
    %v1940 = vsub.f32 %v1938, %v1939
    %s1941 = scalar_lea.vmem [#allocation6], 280
    %v1942 = vld [vmem:[%s1941] sm:$0xff]
    %v1943 = vld [vmem:[%s194] sm:$0xff]
    %v1944 = vsub.f32 %v1942, %v1943
    %v1945 = vsub.f32 %v1930, %v184
    %v1946 = vsub.f32 %v1931, %v186
    %v1947 = vsub.f32 %v1932, %v188
    %v1948 = vmul.f32 %v1936, %v1945
    %v1949 = vmul.f32 %v1940, %v1946
    %v1950 = vadd.f32 %v1948, %v1949
    %v1951 = vmul.f32 %v1944, %v1947
    %v1952 = vadd.f32 %v1950, %v1951
    %v1953 = vmul.f32 %v1936, %v1936
    %v1954 = vmul.f32 %v1940, %v1940
    %v1955 = vadd.f32 %v1953, %v1954
    %v1956 = vmul.f32 %v1944, %v1944
    %v1957 = vadd.f32 %v1955, %v1956
    %v1958 = vmul.f32 %v1945, %v1945
    %v1959 = vmul.f32 %v1946, %v1946
    %v1960 = vadd.f32 %v1958, %v1959
    %v1961 = vmul.f32 %v1947, %v1947
    %v1962 = vadd.f32 %v1960, %v1961
    %v1963 = vmul.f32 %v1957, %v1962
    %v1964 = vmax.f32 %v1963, 1e-16
    %v1965 = vrsqrt.pop %v1964
    %v1966 = vmul.f32 %v1952, %v1965
    %s1967 = scalar_lea.vmem [#allocation2], 88
    %v1968 = vld [vmem:[%s1967] sm:$0xff]
    %v1969 = vadd.f32 %v1968, %v1966
    %1970 = vst [vmem:[%s1967] sm:$0xff] %v1969
    %s1971 = scalar_lea.vmem [#allocation3], 576
    %v1972 = vld [vmem:[%s1971] sm:$0xff]
    %s1973 = scalar_lea.vmem [#allocation3], 584
    %v1974 = vld [vmem:[%s1973] sm:$0xff]
    %s1975 = scalar_lea.vmem [#allocation3], 592
    %v1976 = vld [vmem:[%s1975] sm:$0xff]
    %s1977 = scalar_lea.vmem [#allocation3], 600
    %v1978 = vld [vmem:[%s1977] sm:$0xff]
    %s1979 = scalar_lea.vmem [#allocation3], 608
    %v1980 = vld [vmem:[%s1979] sm:$0xff]
    %s1981 = scalar_lea.vmem [#allocation3], 616
    %v1982 = vld [vmem:[%s1981] sm:$0xff]
    %v1983 = vmul.f32 %v1972, %v1972
    %v1984 = vmul.f32 %v1974, %v1974
    %v1985 = vadd.f32 %v1983, %v1984
    %v1986 = vmul.f32 %v1976, %v1976
    %v1987 = vadd.f32 %v1985, %v1986
    %v1988 = vmax.f32 %v1987, 1e-24
    %v1989 = vrsqrt.pop %v1988
    %v1990 = vmul.f32 %v1972, %v1989
    %v1991 = vmul.f32 %v1974, %v1989
    %v1992 = vmul.f32 %v1976, %v1989
    %v1993 = vmul.f32 %v1990, %v1978
    %v1994 = vmul.f32 %v1991, %v1980
    %v1995 = vadd.f32 %v1993, %v1994
    %v1996 = vmul.f32 %v1992, %v1982
    %v1997 = vadd.f32 %v1995, %v1996
    %v1998 = vmul.f32 %v1997, %v1990
    %v1999 = vsub.f32 %v1978, %v1998
    %v2000 = vmul.f32 %v1997, %v1991
    %v2001 = vsub.f32 %v1980, %v2000
    %v2002 = vmul.f32 %v1997, %v1992
    %v2003 = vsub.f32 %v1982, %v2002
    %v2004 = vmul.f32 %v1999, %v1999
    %v2005 = vmul.f32 %v2001, %v2001
    %v2006 = vadd.f32 %v2004, %v2005
    %v2007 = vmul.f32 %v2003, %v2003
    %v2008 = vadd.f32 %v2006, %v2007
    %v2009 = vmax.f32 %v2008, 1e-24
    %v2010 = vrsqrt.pop %v2009
    %v2011 = vmul.f32 %v1999, %v2010
    %v2012 = vmul.f32 %v2001, %v2010
    %v2013 = vmul.f32 %v2003, %v2010
    %v2014 = vmul.f32 %v1991, %v2013
    %v2015 = vmul.f32 %v1992, %v2012
    %v2016 = vsub.f32 %v2014, %v2015
    %v2017 = vmul.f32 %v1992, %v2011
    %v2018 = vmul.f32 %v1990, %v2013
    %v2019 = vsub.f32 %v2017, %v2018
    %v2020 = vmul.f32 %v1990, %v2012
    %v2021 = vmul.f32 %v1991, %v2011
    %v2022 = vsub.f32 %v2020, %v2021
    %v2023 = vmul.f32 %v1868, %v1990
    %v2024 = vmul.f32 %v1873, %v1991
    %v2025 = vadd.f32 %v2023, %v2024
    %v2026 = vmul.f32 %v1878, %v1992
    %v2027 = vadd.f32 %v2025, %v2026
    %v2028 = vmul.f32 %v1868, %v2011
    %v2029 = vmul.f32 %v1873, %v2012
    %v2030 = vadd.f32 %v2028, %v2029
    %v2031 = vmul.f32 %v1878, %v2013
    %v2032 = vadd.f32 %v2030, %v2031
    %v2033 = vmul.f32 %v1868, %v2016
    %v2034 = vmul.f32 %v1873, %v2019
    %v2035 = vadd.f32 %v2033, %v2034
    %v2036 = vmul.f32 %v1878, %v2022
    %v2037 = vadd.f32 %v2035, %v2036
    %v2038 = vmul.f32 %v1883, %v1990
    %v2039 = vmul.f32 %v1888, %v1991
    %v2040 = vadd.f32 %v2038, %v2039
    %v2041 = vmul.f32 %v1893, %v1992
    %v2042 = vadd.f32 %v2040, %v2041
    %v2043 = vmul.f32 %v1883, %v2011
    %v2044 = vmul.f32 %v1888, %v2012
    %v2045 = vadd.f32 %v2043, %v2044
    %v2046 = vmul.f32 %v1893, %v2013
    %v2047 = vadd.f32 %v2045, %v2046
    %v2048 = vmul.f32 %v1883, %v2016
    %v2049 = vmul.f32 %v1888, %v2019
    %v2050 = vadd.f32 %v2048, %v2049
    %v2051 = vmul.f32 %v1893, %v2022
    %v2052 = vadd.f32 %v2050, %v2051
    %v2053 = vmul.f32 %v1898, %v1990
    %v2054 = vmul.f32 %v1903, %v1991
    %v2055 = vadd.f32 %v2053, %v2054
    %v2056 = vmul.f32 %v1908, %v1992
    %v2057 = vadd.f32 %v2055, %v2056
    %v2058 = vmul.f32 %v1898, %v2011
    %v2059 = vmul.f32 %v1903, %v2012
    %v2060 = vadd.f32 %v2058, %v2059
    %v2061 = vmul.f32 %v1908, %v2013
    %v2062 = vadd.f32 %v2060, %v2061
    %v2063 = vmul.f32 %v1898, %v2016
    %v2064 = vmul.f32 %v1903, %v2019
    %v2065 = vadd.f32 %v2063, %v2064
    %v2066 = vmul.f32 %v1908, %v2022
    %v2067 = vadd.f32 %v2065, %v2066
    %s2068 = scalar_lea.vmem [#allocation6], 648
    %v2069 = vld [vmem:[%s2068] sm:$0xff]
    %s2070 = scalar_lea.vmem [#allocation6], 656
    %v2071 = vld [vmem:[%s2070] sm:$0xff]
    %s2072 = scalar_lea.vmem [#allocation6], 664
    %v2073 = vld [vmem:[%s2072] sm:$0xff]
    %v2074 = vmul.f32 %v2027, %v2069
    %v2075 = vmul.f32 %v2032, %v2071
    %v2076 = vadd.f32 %v2074, %v2075
    %v2077 = vmul.f32 %v2037, %v2073
    %v2078 = vadd.f32 %v2076, %v2077
    %v2079 = vmul.f32 %v2042, %v2069
    %v2080 = vmul.f32 %v2047, %v2071
    %v2081 = vadd.f32 %v2079, %v2080
    %v2082 = vmul.f32 %v2052, %v2073
    %v2083 = vadd.f32 %v2081, %v2082
    %v2084 = vmul.f32 %v2057, %v2069
    %v2085 = vmul.f32 %v2062, %v2071
    %v2086 = vadd.f32 %v2084, %v2085
    %v2087 = vmul.f32 %v2067, %v2073
    %v2088 = vadd.f32 %v2086, %v2087
    %v2089 = vadd.f32 %v1930, %v2078
    %v2090 = vadd.f32 %v1931, %v2083
    %v2091 = vadd.f32 %v1932, %v2088
    %s2092 = scalar_lea.vmem [#allocation6], 288
    %v2093 = vld [vmem:[%s2092] sm:$0xff]
    %v2094 = vld [vmem:[%s1933] sm:$0xff]
    %v2095 = vsub.f32 %v2093, %v2094
    %s2096 = scalar_lea.vmem [#allocation6], 296
    %v2097 = vld [vmem:[%s2096] sm:$0xff]
    %v2098 = vld [vmem:[%s1937] sm:$0xff]
    %v2099 = vsub.f32 %v2097, %v2098
    %s2100 = scalar_lea.vmem [#allocation6], 304
    %v2101 = vld [vmem:[%s2100] sm:$0xff]
    %v2102 = vld [vmem:[%s1941] sm:$0xff]
    %v2103 = vsub.f32 %v2101, %v2102
    %v2104 = vsub.f32 %v2089, %v1930
    %v2105 = vsub.f32 %v2090, %v1931
    %v2106 = vsub.f32 %v2091, %v1932
    %v2107 = vmul.f32 %v2095, %v2104
    %v2108 = vmul.f32 %v2099, %v2105
    %v2109 = vadd.f32 %v2107, %v2108
    %v2110 = vmul.f32 %v2103, %v2106
    %v2111 = vadd.f32 %v2109, %v2110
    %v2112 = vmul.f32 %v2095, %v2095
    %v2113 = vmul.f32 %v2099, %v2099
    %v2114 = vadd.f32 %v2112, %v2113
    %v2115 = vmul.f32 %v2103, %v2103
    %v2116 = vadd.f32 %v2114, %v2115
    %v2117 = vmul.f32 %v2104, %v2104
    %v2118 = vmul.f32 %v2105, %v2105
    %v2119 = vadd.f32 %v2117, %v2118
    %v2120 = vmul.f32 %v2106, %v2106
    %v2121 = vadd.f32 %v2119, %v2120
    %v2122 = vmul.f32 %v2116, %v2121
    %v2123 = vmax.f32 %v2122, 1e-16
    %v2124 = vrsqrt.pop %v2123
    %v2125 = vmul.f32 %v2111, %v2124
    %s2126 = scalar_lea.vmem [#allocation2], 96
    %v2127 = vld [vmem:[%s2126] sm:$0xff]
    %v2128 = vadd.f32 %v2127, %v2125
    %2129 = vst [vmem:[%s2126] sm:$0xff] %v2128
    %s2130 = scalar_lea.vmem [#allocation3], 624
    %v2131 = vld [vmem:[%s2130] sm:$0xff]
    %s2132 = scalar_lea.vmem [#allocation3], 632
    %v2133 = vld [vmem:[%s2132] sm:$0xff]
    %s2134 = scalar_lea.vmem [#allocation3], 640
    %v2135 = vld [vmem:[%s2134] sm:$0xff]
    %s2136 = scalar_lea.vmem [#allocation3], 648
    %v2137 = vld [vmem:[%s2136] sm:$0xff]
    %s2138 = scalar_lea.vmem [#allocation3], 656
    %v2139 = vld [vmem:[%s2138] sm:$0xff]
    %s2140 = scalar_lea.vmem [#allocation3], 664
    %v2141 = vld [vmem:[%s2140] sm:$0xff]
    %v2142 = vmul.f32 %v2131, %v2131
    %v2143 = vmul.f32 %v2133, %v2133
    %v2144 = vadd.f32 %v2142, %v2143
    %v2145 = vmul.f32 %v2135, %v2135
    %v2146 = vadd.f32 %v2144, %v2145
    %v2147 = vmax.f32 %v2146, 1e-24
    %v2148 = vrsqrt.pop %v2147
    %v2149 = vmul.f32 %v2131, %v2148
    %v2150 = vmul.f32 %v2133, %v2148
    %v2151 = vmul.f32 %v2135, %v2148
    %v2152 = vmul.f32 %v2149, %v2137
    %v2153 = vmul.f32 %v2150, %v2139
    %v2154 = vadd.f32 %v2152, %v2153
    %v2155 = vmul.f32 %v2151, %v2141
    %v2156 = vadd.f32 %v2154, %v2155
    %v2157 = vmul.f32 %v2156, %v2149
    %v2158 = vsub.f32 %v2137, %v2157
    %v2159 = vmul.f32 %v2156, %v2150
    %v2160 = vsub.f32 %v2139, %v2159
    %v2161 = vmul.f32 %v2156, %v2151
    %v2162 = vsub.f32 %v2141, %v2161
    %v2163 = vmul.f32 %v2158, %v2158
    %v2164 = vmul.f32 %v2160, %v2160
    %v2165 = vadd.f32 %v2163, %v2164
    %v2166 = vmul.f32 %v2162, %v2162
    %v2167 = vadd.f32 %v2165, %v2166
    %v2168 = vmax.f32 %v2167, 1e-24
    %v2169 = vrsqrt.pop %v2168
    %v2170 = vmul.f32 %v2158, %v2169
    %v2171 = vmul.f32 %v2160, %v2169
    %v2172 = vmul.f32 %v2162, %v2169
    %v2173 = vmul.f32 %v2150, %v2172
    %v2174 = vmul.f32 %v2151, %v2171
    %v2175 = vsub.f32 %v2173, %v2174
    %v2176 = vmul.f32 %v2151, %v2170
    %v2177 = vmul.f32 %v2149, %v2172
    %v2178 = vsub.f32 %v2176, %v2177
    %v2179 = vmul.f32 %v2149, %v2171
    %v2180 = vmul.f32 %v2150, %v2170
    %v2181 = vsub.f32 %v2179, %v2180
    %v2182 = vmul.f32 %v2027, %v2149
    %v2183 = vmul.f32 %v2032, %v2150
    %v2184 = vadd.f32 %v2182, %v2183
    %v2185 = vmul.f32 %v2037, %v2151
    %v2186 = vadd.f32 %v2184, %v2185
    %v2187 = vmul.f32 %v2027, %v2170
    %v2188 = vmul.f32 %v2032, %v2171
    %v2189 = vadd.f32 %v2187, %v2188
    %v2190 = vmul.f32 %v2037, %v2172
    %v2191 = vadd.f32 %v2189, %v2190
    %v2192 = vmul.f32 %v2027, %v2175
    %v2193 = vmul.f32 %v2032, %v2178
    %v2194 = vadd.f32 %v2192, %v2193
    %v2195 = vmul.f32 %v2037, %v2181
    %v2196 = vadd.f32 %v2194, %v2195
    %v2197 = vmul.f32 %v2042, %v2149
    %v2198 = vmul.f32 %v2047, %v2150
    %v2199 = vadd.f32 %v2197, %v2198
    %v2200 = vmul.f32 %v2052, %v2151
    %v2201 = vadd.f32 %v2199, %v2200
    %v2202 = vmul.f32 %v2042, %v2170
    %v2203 = vmul.f32 %v2047, %v2171
    %v2204 = vadd.f32 %v2202, %v2203
    %v2205 = vmul.f32 %v2052, %v2172
    %v2206 = vadd.f32 %v2204, %v2205
    %v2207 = vmul.f32 %v2042, %v2175
    %v2208 = vmul.f32 %v2047, %v2178
    %v2209 = vadd.f32 %v2207, %v2208
    %v2210 = vmul.f32 %v2052, %v2181
    %v2211 = vadd.f32 %v2209, %v2210
    %v2212 = vmul.f32 %v2057, %v2149
    %v2213 = vmul.f32 %v2062, %v2150
    %v2214 = vadd.f32 %v2212, %v2213
    %v2215 = vmul.f32 %v2067, %v2151
    %v2216 = vadd.f32 %v2214, %v2215
    %v2217 = vmul.f32 %v2057, %v2170
    %v2218 = vmul.f32 %v2062, %v2171
    %v2219 = vadd.f32 %v2217, %v2218
    %v2220 = vmul.f32 %v2067, %v2172
    %v2221 = vadd.f32 %v2219, %v2220
    %v2222 = vmul.f32 %v2057, %v2175
    %v2223 = vmul.f32 %v2062, %v2178
    %v2224 = vadd.f32 %v2222, %v2223
    %v2225 = vmul.f32 %v2067, %v2181
    %v2226 = vadd.f32 %v2224, %v2225
    %s2227 = scalar_lea.vmem [#allocation6], 672
    %v2228 = vld [vmem:[%s2227] sm:$0xff]
    %s2229 = scalar_lea.vmem [#allocation6], 680
    %v2230 = vld [vmem:[%s2229] sm:$0xff]
    %s2231 = scalar_lea.vmem [#allocation6], 688
    %v2232 = vld [vmem:[%s2231] sm:$0xff]
    %v2233 = vmul.f32 %v2186, %v2228
    %v2234 = vmul.f32 %v2191, %v2230
    %v2235 = vadd.f32 %v2233, %v2234
    %v2236 = vmul.f32 %v2196, %v2232
    %v2237 = vadd.f32 %v2235, %v2236
    %v2238 = vmul.f32 %v2201, %v2228
    %v2239 = vmul.f32 %v2206, %v2230
    %v2240 = vadd.f32 %v2238, %v2239
    %v2241 = vmul.f32 %v2211, %v2232
    %v2242 = vadd.f32 %v2240, %v2241
    %v2243 = vmul.f32 %v2216, %v2228
    %v2244 = vmul.f32 %v2221, %v2230
    %v2245 = vadd.f32 %v2243, %v2244
    %v2246 = vmul.f32 %v2226, %v2232
    %v2247 = vadd.f32 %v2245, %v2246
    %v2248 = vadd.f32 %v2089, %v2237
    %v2249 = vadd.f32 %v2090, %v2242
    %v2250 = vadd.f32 %v2091, %v2247
    %s2251 = scalar_lea.vmem [#allocation6], 312
    %v2252 = vld [vmem:[%s2251] sm:$0xff]
    %v2253 = vld [vmem:[%s2092] sm:$0xff]
    %v2254 = vsub.f32 %v2252, %v2253
    %s2255 = scalar_lea.vmem [#allocation6], 320
    %v2256 = vld [vmem:[%s2255] sm:$0xff]
    %v2257 = vld [vmem:[%s2096] sm:$0xff]
    %v2258 = vsub.f32 %v2256, %v2257
    %s2259 = scalar_lea.vmem [#allocation6], 328
    %v2260 = vld [vmem:[%s2259] sm:$0xff]
    %v2261 = vld [vmem:[%s2100] sm:$0xff]
    %v2262 = vsub.f32 %v2260, %v2261
    %v2263 = vsub.f32 %v2248, %v2089
    %v2264 = vsub.f32 %v2249, %v2090
    %v2265 = vsub.f32 %v2250, %v2091
    %v2266 = vmul.f32 %v2254, %v2263
    %v2267 = vmul.f32 %v2258, %v2264
    %v2268 = vadd.f32 %v2266, %v2267
    %v2269 = vmul.f32 %v2262, %v2265
    %v2270 = vadd.f32 %v2268, %v2269
    %v2271 = vmul.f32 %v2254, %v2254
    %v2272 = vmul.f32 %v2258, %v2258
    %v2273 = vadd.f32 %v2271, %v2272
    %v2274 = vmul.f32 %v2262, %v2262
    %v2275 = vadd.f32 %v2273, %v2274
    %v2276 = vmul.f32 %v2263, %v2263
    %v2277 = vmul.f32 %v2264, %v2264
    %v2278 = vadd.f32 %v2276, %v2277
    %v2279 = vmul.f32 %v2265, %v2265
    %v2280 = vadd.f32 %v2278, %v2279
    %v2281 = vmul.f32 %v2275, %v2280
    %v2282 = vmax.f32 %v2281, 1e-16
    %v2283 = vrsqrt.pop %v2282
    %v2284 = vmul.f32 %v2270, %v2283
    %s2285 = scalar_lea.vmem [#allocation2], 104
    %v2286 = vld [vmem:[%s2285] sm:$0xff]
    %v2287 = vadd.f32 %v2286, %v2284
    %2288 = vst [vmem:[%s2285] sm:$0xff] %v2287
    %s2289 = scalar_lea.vmem [#allocation3], 672
    %v2290 = vld [vmem:[%s2289] sm:$0xff]
    %s2291 = scalar_lea.vmem [#allocation3], 680
    %v2292 = vld [vmem:[%s2291] sm:$0xff]
    %s2293 = scalar_lea.vmem [#allocation3], 688
    %v2294 = vld [vmem:[%s2293] sm:$0xff]
    %s2295 = scalar_lea.vmem [#allocation3], 696
    %v2296 = vld [vmem:[%s2295] sm:$0xff]
    %s2297 = scalar_lea.vmem [#allocation3], 704
    %v2298 = vld [vmem:[%s2297] sm:$0xff]
    %s2299 = scalar_lea.vmem [#allocation3], 712
    %v2300 = vld [vmem:[%s2299] sm:$0xff]
    %v2301 = vmul.f32 %v2290, %v2290
    %v2302 = vmul.f32 %v2292, %v2292
    %v2303 = vadd.f32 %v2301, %v2302
    %v2304 = vmul.f32 %v2294, %v2294
    %v2305 = vadd.f32 %v2303, %v2304
    %v2306 = vmax.f32 %v2305, 1e-24
    %v2307 = vrsqrt.pop %v2306
    %v2308 = vmul.f32 %v2290, %v2307
    %v2309 = vmul.f32 %v2292, %v2307
    %v2310 = vmul.f32 %v2294, %v2307
    %v2311 = vmul.f32 %v2308, %v2296
    %v2312 = vmul.f32 %v2309, %v2298
    %v2313 = vadd.f32 %v2311, %v2312
    %v2314 = vmul.f32 %v2310, %v2300
    %v2315 = vadd.f32 %v2313, %v2314
    %v2316 = vmul.f32 %v2315, %v2308
    %v2317 = vsub.f32 %v2296, %v2316
    %v2318 = vmul.f32 %v2315, %v2309
    %v2319 = vsub.f32 %v2298, %v2318
    %v2320 = vmul.f32 %v2315, %v2310
    %v2321 = vsub.f32 %v2300, %v2320
    %v2322 = vmul.f32 %v2317, %v2317
    %v2323 = vmul.f32 %v2319, %v2319
    %v2324 = vadd.f32 %v2322, %v2323
    %v2325 = vmul.f32 %v2321, %v2321
    %v2326 = vadd.f32 %v2324, %v2325
    %v2327 = vmax.f32 %v2326, 1e-24
    %v2328 = vrsqrt.pop %v2327
    %v2329 = vmul.f32 %v2317, %v2328
    %v2330 = vmul.f32 %v2319, %v2328
    %v2331 = vmul.f32 %v2321, %v2328
    %v2332 = vmul.f32 %v2309, %v2331
    %v2333 = vmul.f32 %v2310, %v2330
    %v2334 = vsub.f32 %v2332, %v2333
    %v2335 = vmul.f32 %v2310, %v2329
    %v2336 = vmul.f32 %v2308, %v2331
    %v2337 = vsub.f32 %v2335, %v2336
    %v2338 = vmul.f32 %v2308, %v2330
    %v2339 = vmul.f32 %v2309, %v2329
    %v2340 = vsub.f32 %v2338, %v2339
    %v2341 = vmul.f32 %v278, %v2308
    %v2342 = vmul.f32 %v283, %v2309
    %v2343 = vadd.f32 %v2341, %v2342
    %v2344 = vmul.f32 %v288, %v2310
    %v2345 = vadd.f32 %v2343, %v2344
    %v2346 = vmul.f32 %v278, %v2329
    %v2347 = vmul.f32 %v283, %v2330
    %v2348 = vadd.f32 %v2346, %v2347
    %v2349 = vmul.f32 %v288, %v2331
    %v2350 = vadd.f32 %v2348, %v2349
    %v2351 = vmul.f32 %v278, %v2334
    %v2352 = vmul.f32 %v283, %v2337
    %v2353 = vadd.f32 %v2351, %v2352
    %v2354 = vmul.f32 %v288, %v2340
    %v2355 = vadd.f32 %v2353, %v2354
    %v2356 = vmul.f32 %v293, %v2308
    %v2357 = vmul.f32 %v298, %v2309
    %v2358 = vadd.f32 %v2356, %v2357
    %v2359 = vmul.f32 %v303, %v2310
    %v2360 = vadd.f32 %v2358, %v2359
    %v2361 = vmul.f32 %v293, %v2329
    %v2362 = vmul.f32 %v298, %v2330
    %v2363 = vadd.f32 %v2361, %v2362
    %v2364 = vmul.f32 %v303, %v2331
    %v2365 = vadd.f32 %v2363, %v2364
    %v2366 = vmul.f32 %v293, %v2334
    %v2367 = vmul.f32 %v298, %v2337
    %v2368 = vadd.f32 %v2366, %v2367
    %v2369 = vmul.f32 %v303, %v2340
    %v2370 = vadd.f32 %v2368, %v2369
    %v2371 = vmul.f32 %v308, %v2308
    %v2372 = vmul.f32 %v313, %v2309
    %v2373 = vadd.f32 %v2371, %v2372
    %v2374 = vmul.f32 %v318, %v2310
    %v2375 = vadd.f32 %v2373, %v2374
    %v2376 = vmul.f32 %v308, %v2329
    %v2377 = vmul.f32 %v313, %v2330
    %v2378 = vadd.f32 %v2376, %v2377
    %v2379 = vmul.f32 %v318, %v2331
    %v2380 = vadd.f32 %v2378, %v2379
    %v2381 = vmul.f32 %v308, %v2334
    %v2382 = vmul.f32 %v313, %v2337
    %v2383 = vadd.f32 %v2381, %v2382
    %v2384 = vmul.f32 %v318, %v2340
    %v2385 = vadd.f32 %v2383, %v2384
    %s2386 = scalar_lea.vmem [#allocation6], 696
    %v2387 = vld [vmem:[%s2386] sm:$0xff]
    %s2388 = scalar_lea.vmem [#allocation6], 704
    %v2389 = vld [vmem:[%s2388] sm:$0xff]
    %s2390 = scalar_lea.vmem [#allocation6], 712
    %v2391 = vld [vmem:[%s2390] sm:$0xff]
    %v2392 = vmul.f32 %v2345, %v2387
    %v2393 = vmul.f32 %v2350, %v2389
    %v2394 = vadd.f32 %v2392, %v2393
    %v2395 = vmul.f32 %v2355, %v2391
    %v2396 = vadd.f32 %v2394, %v2395
    %v2397 = vmul.f32 %v2360, %v2387
    %v2398 = vmul.f32 %v2365, %v2389
    %v2399 = vadd.f32 %v2397, %v2398
    %v2400 = vmul.f32 %v2370, %v2391
    %v2401 = vadd.f32 %v2399, %v2400
    %v2402 = vmul.f32 %v2375, %v2387
    %v2403 = vmul.f32 %v2380, %v2389
    %v2404 = vadd.f32 %v2402, %v2403
    %v2405 = vmul.f32 %v2385, %v2391
    %v2406 = vadd.f32 %v2404, %v2405
    %v2407 = vadd.f32 %v340, %v2396
    %v2408 = vadd.f32 %v341, %v2401
    %v2409 = vadd.f32 %v342, %v2406
    %s2410 = scalar_lea.vmem [#allocation6], 336
    %v2411 = vld [vmem:[%s2410] sm:$0xff]
    %v2412 = vld [vmem:[%s343] sm:$0xff]
    %v2413 = vsub.f32 %v2411, %v2412
    %s2414 = scalar_lea.vmem [#allocation6], 344
    %v2415 = vld [vmem:[%s2414] sm:$0xff]
    %v2416 = vld [vmem:[%s347] sm:$0xff]
    %v2417 = vsub.f32 %v2415, %v2416
    %s2418 = scalar_lea.vmem [#allocation6], 352
    %v2419 = vld [vmem:[%s2418] sm:$0xff]
    %v2420 = vld [vmem:[%s351] sm:$0xff]
    %v2421 = vsub.f32 %v2419, %v2420
    %v2422 = vsub.f32 %v2407, %v340
    %v2423 = vsub.f32 %v2408, %v341
    %v2424 = vsub.f32 %v2409, %v342
    %v2425 = vmul.f32 %v2413, %v2422
    %v2426 = vmul.f32 %v2417, %v2423
    %v2427 = vadd.f32 %v2425, %v2426
    %v2428 = vmul.f32 %v2421, %v2424
    %v2429 = vadd.f32 %v2427, %v2428
    %v2430 = vmul.f32 %v2413, %v2413
    %v2431 = vmul.f32 %v2417, %v2417
    %v2432 = vadd.f32 %v2430, %v2431
    %v2433 = vmul.f32 %v2421, %v2421
    %v2434 = vadd.f32 %v2432, %v2433
    %v2435 = vmul.f32 %v2422, %v2422
    %v2436 = vmul.f32 %v2423, %v2423
    %v2437 = vadd.f32 %v2435, %v2436
    %v2438 = vmul.f32 %v2424, %v2424
    %v2439 = vadd.f32 %v2437, %v2438
    %v2440 = vmul.f32 %v2434, %v2439
    %v2441 = vmax.f32 %v2440, 1e-16
    %v2442 = vrsqrt.pop %v2441
    %v2443 = vmul.f32 %v2429, %v2442
    %s2444 = scalar_lea.vmem [#allocation2], 112
    %v2445 = vld [vmem:[%s2444] sm:$0xff]
    %v2446 = vadd.f32 %v2445, %v2443
    %2447 = vst [vmem:[%s2444] sm:$0xff] %v2446
    // Predicated region
    $region22: #{tpu_custom_call.1} parent=1 // pred_check
      %p2448 = pneg %p50
    $region23: #{tpu_custom_call.1} parent=1 // pred_check_branch
      %2450 = sbr.rel (%p2448) target = $region25
    $region24: #{tpu_custom_call.1} parent=1 // pred_region
      %v2451 = vld [vmem:[#allocation2] sm:$0xff]
      %2452 = vadd.xlane.f32.xlu0 %v2451
      %v2453 = vpop.xlane.xlu0 %2452
      %v2454 = vrot.slane %v2453, 4
      %v2455 = vadd.f32 %v2453, %v2454
      %v2456 = vrot.slane %v2455, 2
      %v2457 = vadd.f32 %v2455, %v2456
      %v2458 = vrot.slane %v2457, 1
      %v2459 = vadd.f32 %v2457, %v2458
      %s2460 = vtos %v2459
      %v2461 = vstv %s2460
      %v2462 = vld [vmem:[%s377] sm:$0xff]
      %2463 = vadd.xlane.f32.xlu0 %v2462
      %v2464 = vpop.xlane.xlu0 %2463
      %v2465 = vrot.slane %v2464, 4
      %v2466 = vadd.f32 %v2464, %v2465
      %v2467 = vrot.slane %v2466, 2
      %v2468 = vadd.f32 %v2466, %v2467
      %v2469 = vrot.slane %v2468, 1
      %v2470 = vadd.f32 %v2468, %v2469
      %s2471 = vtos %v2470
      %v2472 = vstv %s2471
      %v2473 = vld [vmem:[%s536] sm:$0xff]
      %2474 = vadd.xlane.f32.xlu0 %v2473
      %v2475 = vpop.xlane.xlu0 %2474
      %v2476 = vrot.slane %v2475, 4
      %v2477 = vadd.f32 %v2475, %v2476
      %v2478 = vrot.slane %v2477, 2
      %v2479 = vadd.f32 %v2477, %v2478
      %v2480 = vrot.slane %v2479, 1
      %v2481 = vadd.f32 %v2479, %v2480
      %s2482 = vtos %v2481
      %v2483 = vstv %s2482
      %v2484 = vld [vmem:[%s695] sm:$0xff]
      %2485 = vadd.xlane.f32.xlu0 %v2484
      %v2486 = vpop.xlane.xlu0 %2485
      %v2487 = vrot.slane %v2486, 4
      %v2488 = vadd.f32 %v2486, %v2487
      %v2489 = vrot.slane %v2488, 2
      %v2490 = vadd.f32 %v2488, %v2489
      %v2491 = vrot.slane %v2490, 1
      %v2492 = vadd.f32 %v2490, %v2491
      %s2493 = vtos %v2492
      %v2494 = vstv %s2493
      %v2495 = vld [vmem:[%s854] sm:$0xff]
      %2496 = vadd.xlane.f32.xlu0 %v2495
      %v2497 = vpop.xlane.xlu0 %2496
      %v2498 = vrot.slane %v2497, 4
      %v2499 = vadd.f32 %v2497, %v2498
      %v2500 = vrot.slane %v2499, 2
      %v2501 = vadd.f32 %v2499, %v2500
      %v2502 = vrot.slane %v2501, 1
      %v2503 = vadd.f32 %v2501, %v2502
      %s2504 = vtos %v2503
      %v2505 = vstv %s2504
      %v2506 = vld [vmem:[%s1013] sm:$0xff]
      %2507 = vadd.xlane.f32.xlu0 %v2506
      %v2508 = vpop.xlane.xlu0 %2507
      %v2509 = vrot.slane %v2508, 4
      %v2510 = vadd.f32 %v2508, %v2509
      %v2511 = vrot.slane %v2510, 2
      %v2512 = vadd.f32 %v2510, %v2511
      %v2513 = vrot.slane %v2512, 1
      %v2514 = vadd.f32 %v2512, %v2513
      %s2515 = vtos %v2514
      %v2516 = vstv %s2515
      %v2517 = vld [vmem:[%s1172] sm:$0xff]
      %2518 = vadd.xlane.f32.xlu0 %v2517
      %v2519 = vpop.xlane.xlu0 %2518
      %v2520 = vrot.slane %v2519, 4
      %v2521 = vadd.f32 %v2519, %v2520
      %v2522 = vrot.slane %v2521, 2
      %v2523 = vadd.f32 %v2521, %v2522
      %v2524 = vrot.slane %v2523, 1
      %v2525 = vadd.f32 %v2523, %v2524
      %s2526 = vtos %v2525
      %v2527 = vstv %s2526
      %v2528 = vld [vmem:[%s1331] sm:$0xff]
      %2529 = vadd.xlane.f32.xlu0 %v2528
      %v2530 = vpop.xlane.xlu0 %2529
      %v2531 = vrot.slane %v2530, 4
      %v2532 = vadd.f32 %v2530, %v2531
      %v2533 = vrot.slane %v2532, 2
      %v2534 = vadd.f32 %v2532, %v2533
      %v2535 = vrot.slane %v2534, 1
      %v2536 = vadd.f32 %v2534, %v2535
      %s2537 = vtos %v2536
      %v2538 = vstv %s2537
      %v2539 = vld [vmem:[%s1490] sm:$0xff]
      %2540 = vadd.xlane.f32.xlu0 %v2539
      %v2541 = vpop.xlane.xlu0 %2540
      %v2542 = vrot.slane %v2541, 4
      %v2543 = vadd.f32 %v2541, %v2542
      %v2544 = vrot.slane %v2543, 2
      %v2545 = vadd.f32 %v2543, %v2544
      %v2546 = vrot.slane %v2545, 1
      %v2547 = vadd.f32 %v2545, %v2546
      %s2548 = vtos %v2547
      %v2549 = vstv %s2548
      %v2550 = vld [vmem:[%s1649] sm:$0xff]
      %2551 = vadd.xlane.f32.xlu0 %v2550
      %v2552 = vpop.xlane.xlu0 %2551
      %v2553 = vrot.slane %v2552, 4
      %v2554 = vadd.f32 %v2552, %v2553
      %v2555 = vrot.slane %v2554, 2
      %v2556 = vadd.f32 %v2554, %v2555
      %v2557 = vrot.slane %v2556, 1
      %v2558 = vadd.f32 %v2556, %v2557
      %s2559 = vtos %v2558
      %v2560 = vstv %s2559
      %v2561 = vld [vmem:[%s1808] sm:$0xff]
      %2562 = vadd.xlane.f32.xlu0 %v2561
      %v2563 = vpop.xlane.xlu0 %2562
      %v2564 = vrot.slane %v2563, 4
      %v2565 = vadd.f32 %v2563, %v2564
      %v2566 = vrot.slane %v2565, 2
      %v2567 = vadd.f32 %v2565, %v2566
      %v2568 = vrot.slane %v2567, 1
      %v2569 = vadd.f32 %v2567, %v2568
      %s2570 = vtos %v2569
      %v2571 = vstv %s2570
      %v2572 = vld [vmem:[%s1967] sm:$0xff]
      %2573 = vadd.xlane.f32.xlu0 %v2572
      %v2574 = vpop.xlane.xlu0 %2573
      %v2575 = vrot.slane %v2574, 4
      %v2576 = vadd.f32 %v2574, %v2575
      %v2577 = vrot.slane %v2576, 2
      %v2578 = vadd.f32 %v2576, %v2577
      %v2579 = vrot.slane %v2578, 1
      %v2580 = vadd.f32 %v2578, %v2579
      %s2581 = vtos %v2580
      %v2582 = vstv %s2581
      %v2583 = vld [vmem:[%s2126] sm:$0xff]
      %2584 = vadd.xlane.f32.xlu0 %v2583
      %v2585 = vpop.xlane.xlu0 %2584
      %v2586 = vrot.slane %v2585, 4
      %v2587 = vadd.f32 %v2585, %v2586
      %v2588 = vrot.slane %v2587, 2
      %v2589 = vadd.f32 %v2587, %v2588
      %v2590 = vrot.slane %v2589, 1
      %v2591 = vadd.f32 %v2589, %v2590
      %s2592 = vtos %v2591
      %v2593 = vstv %s2592
      %v2594 = vld [vmem:[%s2285] sm:$0xff]
      %2595 = vadd.xlane.f32.xlu0 %v2594
      %v2596 = vpop.xlane.xlu0 %2595
      %v2597 = vrot.slane %v2596, 4
      %v2598 = vadd.f32 %v2596, %v2597
      %v2599 = vrot.slane %v2598, 2
      %v2600 = vadd.f32 %v2598, %v2599
      %v2601 = vrot.slane %v2600, 1
      %v2602 = vadd.f32 %v2600, %v2601
      %s2603 = vtos %v2602
      %v2604 = vstv %s2603
      %v2605 = vld [vmem:[%s2444] sm:$0xff]
      %2606 = vadd.xlane.f32.xlu0 %v2605
      %v2607 = vpop.xlane.xlu0 %2606
      %v2608 = vrot.slane %v2607, 4
      %v2609 = vadd.f32 %v2607, %v2608
      %v2610 = vrot.slane %v2609, 2
      %v2611 = vadd.f32 %v2609, %v2610
      %v2612 = vrot.slane %v2611, 1
      %v2613 = vadd.f32 %v2611, %v2612
      %s2614 = vtos %v2613
      %v2615 = vstv %s2614
      %vm2616 = vcmask 7168
      %v2617 = vsel %vm2616, %v2461, %v2472
      %vm2618 = vcmask 15360
      %v2619 = vsel %vm2618, %v2617, %v2483
      %vm2620 = vcmask 23552
      %v2621 = vsel %vm2620, %v2619, %v2494
      %vm2622 = vcmask 31744
      %v2623 = vsel %vm2622, %v2621, %v2505
      %vm2624 = vcmask 39936
      %v2625 = vsel %vm2624, %v2623, %v2516
      %vm2626 = vcmask 48128
      %v2627 = vsel %vm2626, %v2625, %v2527
      %vm2628 = vcmask 56320
      %v2629 = vsel %vm2628, %v2627, %v2538
      %vm2630 = vcmask 64512
      %v2631 = vsel %vm2630, %v2629, %v2549
      %vm2632 = vcmask 72704
      %v2633 = vsel %vm2632, %v2631, %v2560
      %vm2634 = vcmask 80896
      %v2635 = vsel %vm2634, %v2633, %v2571
      %vm2636 = vcmask 89088
      %v2637 = vsel %vm2636, %v2635, %v2582
      %vm2638 = vcmask 97280
      %v2639 = vsel %vm2638, %v2637, %v2593
      %vm2640 = vcmask 105472
      %v2641 = vsel %vm2640, %v2639, %v2604
      %vm2642 = vcmask 113664
      %v2643 = vsel %vm2642, %v2641, %v2615
      %vm2644 = vcmask 114688
      %2645 = vst.msk [vmem:[#allocation8] sm:$0x1] %vm2644, %v2643
    $region25: #{tpu_custom_call.1} parent=1 // pred_fallthru
      _
    // Predicated region
    $region26: #{tpu_custom_call.1} parent=1 // pred_check
      _
    $region27: #{tpu_custom_call.1} parent=1 // pred_check_branch
      %2647 = sbr.rel (0) target = $region29
    $region28: #{tpu_custom_call.1} parent=1 // pred_region
      %s2649 = ssub.s32 16, 16
      %2650 = vsyncadd [#allocation5], %s2649
      %s2652 = sshll.u32 [#allocation8], 4
      %s2653 = int_to_ptr.vmem [resolvable:$true] %s2652
      %2655 = dma.vmem_to_hbm [thread:$0]  %s2653, 16, %s2, [#allocation5]
    $region29: #{tpu_custom_call.1} parent=1 // pred_fallthru
      _
    // Predicated region
    $region30: #{tpu_custom_call.1} parent=1 // pred_check
      _
    $region31: #{tpu_custom_call.1} parent=1 // pred_check_branch
      %2657 = sbr.rel (0) target = $region33
    $region32: #{tpu_custom_call.1} parent=1 // pred_region
      %2658 = dma.done [#allocation5], 16
    $region33: #{tpu_custom_call.1} parent=1 // pred_fallthru
      _
    %2659 = vsyncpa [#allocation4], 1
    %2660 = vsyncpa [#allocation7], 1
    %2661 = vsyncpa [#allocation5], 1

</llo_original>
